<compile_context>
chip_gen: v7x
topology: tpu7x:2x2x1
jax: 0.10.0
libtpu: 0.0.40
codegen_flags: <defaults>
</compile_context>

<pallas_src>
import functools

import jax
import jax.numpy as jnp
import numpy as np
from jax.experimental import pallas as pl
from jax.experimental.pallas import tpu as pltpu

# Hyper-parameters fixed by the PyTorch module.
KERNEL = 10               # c-1 temporal kernel
F1 = 8                    # c-1 filters
DF = 4                    # depth multiplier of c-2
F2 = F1 * DF              # 32
CHANNEL = 66              # EEG channels (H)
NUM_CLASS = 2
MAPSIZE = 256             # F2 * final time width (final width must be 8)
T = 32                    # 0.25 s @ 128 Hz; forced by mapsize = F2 * (T // 4)
PAD_L = KERNEL // 2 - 1   # p-1 left pad  = 4
PAD_R = KERNEL // 2       # p-1 right pad = 5
TC = T - (KERNEL - 1)     # 23 valid temporal-conv outputs
W1P = T // 2              # 16 width after a-1 (incl. pad columns)
WDW = W1P - 1             # 15 width after depthwise conv (before p-2)
WOUT = W1P // 2           # 8  width after a-2
N_ACT = WDW - 2           # 13 e2 / feature blocks computed in-kernel (t' = 1..13)
N_SLAB = N_ACT + 1        # 14 pooled h1 blocks feeding c-3 (pooled t2 = 1..14)
B_TILE = 256              # samples per grid step = lanes per time block


def _elu(v):
    return jnp.where(v > 0, v, jnp.exp(jnp.minimum(v, 0.0)) - 1.0)


# ----------------------------------------------------------------------------
# Pallas kernel: whole extractor + classifier for one batch tile per grid step.
# Per-tile input layout is (66, T*B) with lane index = t*B + b (time-major,
# batch-minor) so every temporal shift / time block is a static 128-aligned
# lane slice.
# ----------------------------------------------------------------------------
def _frame2_kernel(x_ref, w2_ref, wt_ref, cpc_ref, wpab_ref, wcls_ref, bcls_ref,
                   out_ref, slab_ref, *, b):
    f32 = jnp.float32
    bf16 = jnp.bfloat16

    # c-2 spatial contraction commuted ahead of c-1: one bf16 MXU matmul (f32 acc).
    xw = jnp.dot(w2_ref[...], x_ref[0], preferred_element_type=f32)   # (32, T*b) f32

    # Per-channel constants, broadcast once per tile (hoisted out of every loop).
    d_conv = jnp.broadcast_to(cpc_ref[0], (F2, b))     # conv-column constant (BN folds)
    e_pad = jnp.broadcast_to(cpc_ref[1], (F2, b))      # ELU of a p-1 pad column
    e_pad_bf = e_pad.astype(bf16)

    # c-1 temporal taps (+ELU) for an adjacent pair of conv times; accumulators stay
    # in vregs (8 vregs each at b=256) and tap planes are loaded once per pair.
    # wt_ref is pre-broadcast to (10, 32, b) so no broadcast op runs in this loop.
    def conv_pair_elu(lo):
        w = wt_ref[0]
        a0 = w * xw[:, lo * b:(lo + 1) * b]
        a1 = w * xw[:, (lo + 1) * b:(lo + 2) * b]
        for k in range(1, KERNEL):
            w = wt_ref[k]
            a0 = a0 + w * xw[:, (lo + k) * b:(lo + k + 1) * b]
            a1 = a1 + w * xw[:, (lo + 1 + k) * b:(lo + 2 + k) * b]
        return _elu(a0 + d_conv), _elu(a1 + d_conv)

    # a-1 average pool fused with the taps; each pooled block goes straight into the
    # lane-blocked bf16 slab feeding c-3 (slab block j <-> pooled time t2 = j + 1).
    slab_ref[:, 0:b] = e_pad_bf                                 # t2 = 1 (all pad)
    slab_ref[:, (N_SLAB - 1) * b:N_SLAB * b] = e_pad_bf         # t2 = 14 (all pad)
    for j in range(1, N_ACT - 1):                               # t2 = 2 .. 12
        e_lo, e_hi = conv_pair_elu(2 * j - 2)
        slab_ref[:, j * b:(j + 1) * b] = (0.5 * (e_lo + e_hi)).astype(bf16)
    # t2 = 13: last valid conv column averaged with a p-1 pad column.
    acc = wt_ref[0] * xw[:, (TC - 1) * b:TC * b]
    for k in range(1, KERNEL):
        acc = acc + wt_ref[k] * xw[:, (TC - 1 + k) * b:(TC + k) * b]
    slab_ref[:, (N_ACT - 1) * b:N_ACT * b] = (
        0.5 * (_elu(acc + d_conv) + e_pad)).astype(bf16)

    # c-3 depthwise(1x2) + pointwise + BN3 folded into two (32,32) bf16 matrices
    # applied to adjacent slab blocks, then ELU; covers e2 blocks t' = 1..13
    # (t' = 0 / 14 are constants folded into the classifier bias).
    z3 = (jnp.dot(wpab_ref[0], slab_ref[:, 0:N_ACT * b], preferred_element_type=f32)
          + jnp.dot(wpab_ref[1], slab_ref[:, b:N_SLAB * b], preferred_element_type=f32)
          + cpc_ref[2])
    e2 = _elu(z3).astype(bf16)                                  # (32, 13*b)

    # a-2 pool + flatten + fc-1/2/3 collapse into a single (2,416) x (416,b) MXU dot.
    feat = jnp.concatenate([e2[:, m * b:(m + 1) * b] for m in range(N_ACT)], axis=0)
    out_ref[...] = (jnp.dot(wcls_ref[...], feat, preferred_element_type=f32)
                    + bcls_ref[...])


# ----------------------------------------------------------------------------
# Wrapper: layout plumbing + parameter folding (all affine folds are exact).
# ----------------------------------------------------------------------------
def frame2_025s_forward(x, p, b_tile=B_TILE):
    n, in_ch, c_dim, t_dim = x.shape
    assert in_ch == 1 and c_dim == CHANNEL
    assert t_dim == T, "0.25 s frame at 128 Hz must have T == 32 time samples"
    assert F2 * WOUT == MAPSIZE

    # Keep >= 2 grid steps when the batch allows it (v7x: 2 TensorCores share the
    # "parallel" grid axis); otherwise use large lane-dense tiles.
    b_tile = int(min(b_tile, max(128, 128 * ((n + 255) // 256))))
    g = pl.cdiv(n, b_tile)
    n_pad = g * b_tile

    bf16, f32 = jnp.bfloat16, jnp.float32
    hp = 'highest'

    # Input restack in bf16 (halves the wrapper copy and the kernel re-read):
    # per-tile layout (66, T*B), lane index = t*B + b (time-major, batch-minor).
    xs = x[:, 0].astype(bf16)                                  # (N, 66, T)
    if n_pad != n:
        xs = jnp.pad(xs, ((0, n_pad - n), (0, 0), (0, 0)))
    xg = (xs.reshape(g, b_tile, CHANNEL, T)
            .transpose(0, 2, 3, 1)
            .reshape(g, CHANNEL, T * b_tile))

    eps = 0.0                                                  # nn.BatchNorm2d(F, False)
    w1 = p['conv1_w'].reshape(F1, KERNEL).astype(f32)          # (8, 10)
    b1 = p['conv1_b'].astype(f32)
    s1 = p['bn1_g'] / jnp.sqrt(p['bn1_rv'] + eps)
    t1 = p['bn1_b'] - p['bn1_rm'] * s1
    w2 = p['conv2_w'][:, 0, :, 0].astype(f32)                  # (32, 66)
    b2 = p['conv2_b'].astype(f32)
    s2 = p['bn2_g'] / jnp.sqrt(p['bn2_rv'] + eps)
    t2 = p['bn2_b'] - p['bn2_rm'] * s2

    grp = jnp.arange(F2) // DF                                 # output channel -> c-1 filter
    w2sum = jnp.sum(w2, axis=1)
    wt = (s2 * s1[grp])[:, None] * w1[grp]                     # (32, 10) folded temporal taps
    d_conv = s2 * ((s1[grp] * b1[grp] + t1[grp]) * w2sum + b2) + t2   # conv-column constant
    d_pad = s2 * (t1[grp] * w2sum + b2) + t2                   # p-1 pad-column constant
    e_pad = _elu(d_pad)

    wd = p['dw_w'].reshape(F2, KERNEL // 4).astype(f32)        # (32, 2) depthwise taps
    bd = p['dw_b'].astype(f32)
    wp = p['pw_w'].reshape(F2, F2).astype(f32)
    bp = p['pw_b'].astype(f32)
    s3 = p['bn3_g'] / jnp.sqrt(p['bn3_rv'] + eps)
    t3 = p['bn3_b'] - p['bn3_rm'] * s3
    wps = s3[:, None] * wp
    wpa = wps * wd[:, 0][None, :]                              # pointwise @ dw-tap-0
    wpb = wps * wd[:, 1][None, :]                              # pointwise @ dw-tap-1
    c3 = s3 * (jnp.dot(wp, bd, precision=hp) + bp) + t3
    e_pad3 = _elu(t3)                                          # ELU of the p-2 zero column

    # fc-1 -> fc-2 -> fc-3 is a pure affine chain: collapse to Linear(256, 2),
    # then fold the a-2 avg-pool (0.5 per tap) and the channel-major flatten order.
    wc = jnp.dot(p['fc3_w'], jnp.dot(p['fc2_w'], p['fc1_w'], precision=hp),
                 precision=hp)                                 # (2, 256)
    bc = (jnp.dot(p['fc3_w'],
                  jnp.dot(p['fc2_w'], p['fc1_b'], precision=hp) + p['fc2_b'],
                  precision=hp) + p['fc3_b'])                  # (2,)
    wc_r = wc.reshape(NUM_CLASS, F2, WOUT)                     # [cls, channel, t3]
    wcls = (0.5 * jnp.transpose(wc_r[:, :, jnp.arange(W1P) // 2], (0, 2, 1))
            ).reshape(NUM_CLASS, W1P * F2)                     # columns: t' * 32 + channel

    # Constant feature blocks t'=0, t'=14 (c-3 applied to two p-1 pad columns) and
    # t'=15 (p-2 zero column) fold into the classifier bias; t'=1..13 stay in-kernel.
    e2_c = _elu(jnp.dot(wpa + wpb, e_pad, precision=hp) + c3)  # (32,)
    bcls = (bc
            + jnp.dot(wcls[:, 0:F2], e2_c, precision=hp)
            + jnp.dot(wcls[:, (N_ACT + 1) * F2:(N_ACT + 2) * F2], e2_c, precision=hp)
            + jnp.dot(wcls[:, (N_ACT + 2) * F2:], e_pad3, precision=hp))
    wcls_act = wcls[:, F2:(N_ACT + 1) * F2]                    # (2, 416)

    params = (
        w2.astype(bf16),                                                     # (32, 66)
        jnp.broadcast_to(wt.T[:, :, None], (KERNEL, F2, b_tile)).astype(f32),
        jnp.stack([d_conv, e_pad, c3]).reshape(3, F2, 1).astype(f32),        # packed consts
        jnp.stack([wpa, wpb]).astype(bf16),                                  # (2, 32, 32)
        wcls_act.astype(bf16),                                               # (2, 416)
        bcls.reshape(NUM_CLASS, 1).astype(f32),
    )

    def const_spec(a):
        nd = a.ndim
        return pl.BlockSpec(a.shape, lambda i, _nd=nd: (0,) * _nd)

    in_specs = ([pl.BlockSpec((1, CHANNEL, T * b_tile), lambda i: (i, 0, 0))]
                + [const_spec(a) for a in params])

    kernel = functools.partial(_frame2_kernel, b=b_tile)
    logits = pl.pallas_call(
        kernel,
        grid=(g,),
        in_specs=in_specs,
        out_specs=pl.BlockSpec((NUM_CLASS, b_tile), lambda i: (0, i)),
        out_shape=jax.ShapeDtypeStruct((NUM_CLASS, n_pad), jnp.float32),
        scratch_shapes=[pltpu.VMEM((F2, N_SLAB * b_tile), jnp.bfloat16)],
        compiler_params=pltpu.CompilerParams(
            dimension_semantics=("parallel",),
            vmem_limit_bytes=32 * 1024 * 1024),
    )(xg, *params)

    class_output = logits.T[:n]                                # (N, 2)
    # TODO(synk): torch returns an int64 scalar 0; int32 here (x64 disabled by default).
    mmd_loss = jnp.array(0, dtype=jnp.int32)
    return class_output, mmd_loss


# ----------------------------------------------------------------------------
# Deterministic parameter init (synthetic weights; shapes match the module).
# ----------------------------------------------------------------------------
def init_params(key):
    ks = iter(jax.random.split(key, 32))

    def u(shape, lo=-0.3, hi=0.3):
        return jax.random.uniform(next(ks), shape, jnp.float32, lo, hi)

    return {
        'conv1_w': u((F1, 1, 1, KERNEL)), 'conv1_b': u((F1,)),
        'bn1_g': u((F1,), 0.8, 1.2), 'bn1_b': u((F1,)),
        'bn1_rm': u((F1,)), 'bn1_rv': u((F1,), 0.5, 1.5),
        'conv2_w': u((F2, 1, CHANNEL, 1)), 'conv2_b': u((F2,)),
        'bn2_g': u((F2,), 0.8, 1.2), 'bn2_b': u((F2,)),
        'bn2_rm': u((F2,)), 'bn2_rv': u((F2,), 0.5, 1.5),
        'dw_w': u((F2, 1, 1, KERNEL // 4)), 'dw_b': u((F2,)),
        'pw_w': u((F2, F2, 1, 1)), 'pw_b': u((F2,)),
        'bn3_g': u((F2,), 0.8, 1.2), 'bn3_b': u((F2,)),
        'bn3_rm': u((F2,)), 'bn3_rv': u((F2,), 0.5, 1.5),
        'fc1_w': u((128, MAPSIZE)), 'fc1_b': u((128,)),
        'fc2_w': u((64, 128)), 'fc2_b': u((64,)),
        'fc3_w': u((NUM_CLASS, 64)), 'fc3_b': u((NUM_CLASS,)),
    }


# ----------------------------------------------------------------------------
# Pure-JAX reference (eval-mode PyTorch semantics) for correctness checking.
# ----------------------------------------------------------------------------
def reference_forward(x, p):
    hp = 'highest'
    h = x.astype(jnp.float32)                                  # (N, 1, 66, T)
    w1 = p['conv1_w']
    tc = T - (KERNEL - 1)
    # c-1 valid temporal conv
    h = jnp.stack([
        sum(w1[f, 0, 0, k] * h[:, 0, :, k:k + tc] for k in range(KERNEL))
        + p['conv1_b'][f] for f in range(F1)], axis=1)         # (N, 8, 66, 23)
    h = jnp.pad(h, ((0, 0), (0, 0), (0, 0), (PAD_L, PAD_R)))   # p-1

    def bn(v, gg, bb, rm, rv):
        sh = (1, -1, 1, 1)
        return (v - rm.reshape(sh)) / jnp.sqrt(rv.reshape(sh)) * gg.reshape(sh) + bb.reshape(sh)

    def pool(v):
        wo = v.shape[-1] // 2
        return (v[..., 0:2 * wo:2] + v[..., 1:2 * wo:2]) * 0.5

    h = bn(h, p['bn1_g'], p['bn1_b'], p['bn1_rm'], p['bn1_rv'])
    # c-2 grouped spatial conv
    w2 = p['conv2_w'][:, 0, :, 0]
    h = jnp.stack([
        jnp.einsum('nct,c->nt', h[:, o // DF], w2[o], precision=hp) + p['conv2_b'][o]
        for o in range(F2)], axis=1)[:, :, None, :]            # (N, 32, 1, T)
    h = pool(_elu(bn(h, p['bn2_g'], p['bn2_b'], p['bn2_rm'], p['bn2_rv'])))
    # c-3 depthwise (1,2) + pointwise
    wd0 = p['dw_w'][:, 0, 0, 0].reshape(1, F2, 1, 1)
    wd1 = p['dw_w'][:, 0, 0, 1].reshape(1, F2, 1, 1)
    h = wd0 * h[..., :-1] + wd1 * h[..., 1:] + p['dw_b'].reshape(1, F2, 1, 1)
    h = (jnp.einsum('oc,ncht->noht', p['pw_w'][:, :, 0, 0], h, precision=hp)
         + p['pw_b'].reshape(1, F2, 1, 1))
    h = jnp.pad(h, ((0, 0), (0, 0), (0, 0), (0, 1)))           # p-2 (right zero column)
    h = pool(_elu(bn(h, p['bn3_g'], p['bn3_b'], p['bn3_rm'], p['bn3_rv'])))
    feature = h.reshape(-1, MAPSIZE)
    y = jnp.dot(feature, p['fc1_w'].T, precision=hp) + p['fc1_b']
    y = jnp.dot(y, p['fc2_w'].T, precision=hp) + p['fc2_b']
    y = jnp.dot(y, p['fc3_w'].T, precision=hp) + p['fc3_b']
    return y


if __name__ == "__main__":
    key = jax.random.PRNGKey(0)
    k_param, k_x = jax.random.split(key)
    params = init_params(k_param)
    fwd = jax.jit(frame2_025s_forward)

    # 128 Hz, 0.25 s frame -> T = 32 time samples; batch of 2; 66 EEG channels.
    batch = 2
    x = jax.random.normal(k_x, (batch, 1, CHANNEL, T), dtype=jnp.float32)
    class_out, mmd = fwd(x, params)
    class_out = jax.block_until_ready(class_out)
    assert class_out.shape == (batch, NUM_CLASS)
    assert int(mmd) == 0
    ref = reference_forward(x, params)
    np.testing.assert_allclose(np.asarray(class_out), np.asarray(ref),
                               rtol=2e-2, atol=2e-2)

    # Larger batch exercises the multi-tile ("parallel") grid path and padding.
    batch2 = 260
    x2 = jax.random.normal(jax.random.PRNGKey(7), (batch2, 1, CHANNEL, T),
                           dtype=jnp.float32)
    class_out2, _ = fwd(x2, params)
    class_out2 = jax.block_until_ready(class_out2)
    assert class_out2.shape == (batch2, NUM_CLASS)
    ref2 = reference_forward(x2, params)
    np.testing.assert_allclose(np.asarray(class_out2), np.asarray(ref2),
                               rtol=3e-2, atol=3e-2)

    print("KERNEL_OK")
</pallas_src>

<mosaic_0001>
module attributes {stable_mosaic.version = 11 : i64} {
  func.func @_frame2_kernel(%arg0: i32, %arg1: memref<1x66x4096xbf16, #tpu.memory_space<vmem>>, %arg2: memref<32x66xbf16, #tpu.memory_space<vmem>>, %arg3: memref<10x32x128xf32, #tpu.memory_space<vmem>>, %arg4: memref<3x32x1xf32, #tpu.memory_space<vmem>>, %arg5: memref<2x32x32xbf16, #tpu.memory_space<vmem>>, %arg6: memref<2x416xbf16, #tpu.memory_space<vmem>>, %arg7: memref<2x1xf32, #tpu.memory_space<vmem>>, %arg8: memref<2x128xf32, #tpu.memory_space<vmem>>, %arg9: memref<32x1792xbf16, #tpu.memory_space<vmem>>) attributes {dimension_semantics = [#tpu.dimension_semantics<parallel>], iteration_bounds = array<i64: 1>, scalar_prefetch = 0 : i64, scratch_operands = 1 : i64, tpu.core_type = #tpu.core_type<tc>, window_params = [{transform_indices = @transform_0, window_bounds = array<i64: 1, 66, 4096>}, {pipeline_mode = #tpu.pipeline_mode<synchronous>, transform_indices = @transform_1, window_bounds = array<i64: 32, 66>}, {pipeline_mode = #tpu.pipeline_mode<synchronous>, transform_indices = @transform_2, window_bounds = array<i64: 10, 32, 128>}, {pipeline_mode = #tpu.pipeline_mode<synchronous>, transform_indices = @transform_3, window_bounds = array<i64: 3, 32, 1>}, {pipeline_mode = #tpu.pipeline_mode<synchronous>, transform_indices = @transform_4, window_bounds = array<i64: 2, 32, 32>}, {pipeline_mode = #tpu.pipeline_mode<synchronous>, transform_indices = @transform_5, window_bounds = array<i64: 2, 416>}, {pipeline_mode = #tpu.pipeline_mode<synchronous>, transform_indices = @transform_6, window_bounds = array<i64: 2, 1>}, {transform_indices = @transform_7, window_bounds = array<i64: 2, 128>}]} {
    %c0 = arith.constant 0 : index
    %c0_0 = arith.constant 0 : index
    %0 = vector.load %arg2[%c0, %c0_0] : memref<32x66xbf16, #tpu.memory_space<vmem>>, vector<32x66xbf16>
    %c0_1 = arith.constant 0 : index
    %c0_2 = arith.constant 0 : index
    %c0_3 = arith.constant 0 : index
    %1 = vector.load %arg1[%c0_1, %c0_2, %c0_3] : memref<1x66x4096xbf16, #tpu.memory_space<vmem>>, vector<1x66x4096xbf16>
    %2 = vector.shape_cast %1 : vector<1x66x4096xbf16> to vector<66x4096xbf16>
    %cst = arith.constant dense<0.000000e+00> : vector<32x4096xf32>
    %3 = tpu.matmul %0, %2, %cst {dimension_numbers = #tpu.dot_dimension_numbers<[1], [0], [0], [1], [0, 0, 1, 1], [], []>} : vector<32x66xbf16>, vector<66x4096xbf16>, vector<32x4096xf32> -> vector<32x4096xf32>
    %c0_4 = arith.constant 0 : index
    %c0_5 = arith.constant 0 : index
    %c0_6 = arith.constant 0 : index
    %4 = vector.load %arg4[%c0_4, %c0_5, %c0_6] : memref<3x32x1xf32, #tpu.memory_space<vmem>>, vector<1x32x1xf32>
    %5 = vector.shape_cast %4 : vector<1x32x1xf32> to vector<32x1xf32>
    %6 = vector.shape_cast %5 : vector<32x1xf32> to vector<32x1xf32>
    %7 = vector.broadcast %6 : vector<32x1xf32> to vector<32x128xf32>
    %c1 = arith.constant 1 : index
    %c0_7 = arith.constant 0 : index
    %c0_8 = arith.constant 0 : index
    %8 = vector.load %arg4[%c1, %c0_7, %c0_8] : memref<3x32x1xf32, #tpu.memory_space<vmem>>, vector<1x32x1xf32>
    %9 = vector.shape_cast %8 : vector<1x32x1xf32> to vector<32x1xf32>
    %10 = vector.shape_cast %9 : vector<32x1xf32> to vector<32x1xf32>
    %11 = vector.broadcast %10 : vector<32x1xf32> to vector<32x128xf32>
    %12 = arith.truncf %11 : vector<32x128xf32> to vector<32x128xbf16>
    %c0_9 = arith.constant 0 : index
    %c0_10 = arith.constant 0 : index
    %13 = vector.load %arg9[%c0_9, %c0_10] : memref<32x1792xbf16, #tpu.memory_space<vmem>>, vector<32x128xbf16>
    tpu.vector_store %arg9[%c0_9, %c0_10], %12 {strides = array<i32>} : memref<32x1792xbf16, #tpu.memory_space<vmem>>, vector<32x128xbf16>,
    %c0_11 = arith.constant 0 : index
    %c1664 = arith.constant 1664 : index
    %14 = vector.load %arg9[%c0_11, %c1664] : memref<32x1792xbf16, #tpu.memory_space<vmem>>, vector<32x128xbf16>
    tpu.vector_store %arg9[%c0_11, %c1664], %12 {strides = array<i32>} : memref<32x1792xbf16, #tpu.memory_space<vmem>>, vector<32x128xbf16>,
    %c0_12 = arith.constant 0 : index
    %c0_13 = arith.constant 0 : index
    %c0_14 = arith.constant 0 : index
    %15 = vector.load %arg3[%c0_12, %c0_13, %c0_14] : memref<10x32x128xf32, #tpu.memory_space<vmem>>, vector<1x32x128xf32>
    %16 = vector.shape_cast %15 : vector<1x32x128xf32> to vector<32x128xf32>
    %17 = vector.extract_strided_slice %3 {offsets = [0, 0], sizes = [32, 128], strides = [1, 1]} : vector<32x4096xf32> to vector<32x128xf32>
    %18 = arith.mulf %16, %17 : vector<32x128xf32>
    %19 = vector.extract_strided_slice %3 {offsets = [0, 128], sizes = [32, 128], strides = [1, 1]} : vector<32x4096xf32> to vector<32x128xf32>
    %20 = arith.mulf %16, %19 : vector<32x128xf32>
    %c1_15 = arith.constant 1 : index
    %c0_16 = arith.constant 0 : index
    %c0_17 = arith.constant 0 : index
    %21 = vector.load %arg3[%c1_15, %c0_16, %c0_17] : memref<10x32x128xf32, #tpu.memory_space<vmem>>, vector<1x32x128xf32>
    %22 = vector.shape_cast %21 : vector<1x32x128xf32> to vector<32x128xf32>
    %23 = vector.extract_strided_slice %3 {offsets = [0, 128], sizes = [32, 128], strides = [1, 1]} : vector<32x4096xf32> to vector<32x128xf32>
    %24 = arith.mulf %22, %23 : vector<32x128xf32>
    %25 = arith.addf %18, %24 : vector<32x128xf32>
    %26 = vector.extract_strided_slice %3 {offsets = [0, 256], sizes = [32, 128], strides = [1, 1]} : vector<32x4096xf32> to vector<32x128xf32>
    %27 = arith.mulf %22, %26 : vector<32x128xf32>
    %28 = arith.addf %20, %27 : vector<32x128xf32>
    %c2 = arith.constant 2 : index
    %c0_18 = arith.constant 0 : index
    %c0_19 = arith.constant 0 : index
    %29 = vector.load %arg3[%c2, %c0_18, %c0_19] : memref<10x32x128xf32, #tpu.memory_space<vmem>>, vector<1x32x128xf32>
    %30 = vector.shape_cast %29 : vector<1x32x128xf32> to vector<32x128xf32>
    %31 = vector.extract_strided_slice %3 {offsets = [0, 256], sizes = [32, 128], strides = [1, 1]} : vector<32x4096xf32> to vector<32x128xf32>
    %32 = arith.mulf %30, %31 : vector<32x128xf32>
    %33 = arith.addf %25, %32 : vector<32x128xf32>
    %34 = vector.extract_strided_slice %3 {offsets = [0, 384], sizes = [32, 128], strides = [1, 1]} : vector<32x4096xf32> to vector<32x128xf32>
    %35 = arith.mulf %30, %34 : vector<32x128xf32>
    %36 = arith.addf %28, %35 : vector<32x128xf32>
    %c3 = arith.constant 3 : index
    %c0_20 = arith.constant 0 : index
    %c0_21 = arith.constant 0 : index
    %37 = vector.load %arg3[%c3, %c0_20, %c0_21] : memref<10x32x128xf32, #tpu.memory_space<vmem>>, vector<1x32x128xf32>
    %38 = vector.shape_cast %37 : vector<1x32x128xf32> to vector<32x128xf32>
    %39 = vector.extract_strided_slice %3 {offsets = [0, 384], sizes = [32, 128], strides = [1, 1]} : vector<32x4096xf32> to vector<32x128xf32>
    %40 = arith.mulf %38, %39 : vector<32x128xf32>
    %41 = arith.addf %33, %40 : vector<32x128xf32>
    %42 = vector.extract_strided_slice %3 {offsets = [0, 512], sizes = [32, 128], strides = [1, 1]} : vector<32x4096xf32> to vector<32x128xf32>
    %43 = arith.mulf %38, %42 : vector<32x128xf32>
    %44 = arith.addf %36, %43 : vector<32x128xf32>
    %c4 = arith.constant 4 : index
    %c0_22 = arith.constant 0 : index
    %c0_23 = arith.constant 0 : index
    %45 = vector.load %arg3[%c4, %c0_22, %c0_23] : memref<10x32x128xf32, #tpu.memory_space<vmem>>, vector<1x32x128xf32>
    %46 = vector.shape_cast %45 : vector<1x32x128xf32> to vector<32x128xf32>
    %47 = vector.extract_strided_slice %3 {offsets = [0, 512], sizes = [32, 128], strides = [1, 1]} : vector<32x4096xf32> to vector<32x128xf32>
    %48 = arith.mulf %46, %47 : vector<32x128xf32>
    %49 = arith.addf %41, %48 : vector<32x128xf32>
    %50 = vector.extract_strided_slice %3 {offsets = [0, 640], sizes = [32, 128], strides = [1, 1]} : vector<32x4096xf32> to vector<32x128xf32>
    %51 = arith.mulf %46, %50 : vector<32x128xf32>
    %52 = arith.addf %44, %51 : vector<32x128xf32>
    %c5 = arith.constant 5 : index
    %c0_24 = arith.constant 0 : index
    %c0_25 = arith.constant 0 : index
    %53 = vector.load %arg3[%c5, %c0_24, %c0_25] : memref<10x32x128xf32, #tpu.memory_space<vmem>>, vector<1x32x128xf32>
    %54 = vector.shape_cast %53 : vector<1x32x128xf32> to vector<32x128xf32>
    %55 = vector.extract_strided_slice %3 {offsets = [0, 640], sizes = [32, 128], strides = [1, 1]} : vector<32x4096xf32> to vector<32x128xf32>
    %56 = arith.mulf %54, %55 : vector<32x128xf32>
    %57 = arith.addf %49, %56 : vector<32x128xf32>
    %58 = vector.extract_strided_slice %3 {offsets = [0, 768], sizes = [32, 128], strides = [1, 1]} : vector<32x4096xf32> to vector<32x128xf32>
    %59 = arith.mulf %54, %58 : vector<32x128xf32>
    %60 = arith.addf %52, %59 : vector<32x128xf32>
    %c6 = arith.constant 6 : index
    %c0_26 = arith.constant 0 : index
    %c0_27 = arith.constant 0 : index
    %61 = vector.load %arg3[%c6, %c0_26, %c0_27] : memref<10x32x128xf32, #tpu.memory_space<vmem>>, vector<1x32x128xf32>
    %62 = vector.shape_cast %61 : vector<1x32x128xf32> to vector<32x128xf32>
    %63 = vector.extract_strided_slice %3 {offsets = [0, 768], sizes = [32, 128], strides = [1, 1]} : vector<32x4096xf32> to vector<32x128xf32>
    %64 = arith.mulf %62, %63 : vector<32x128xf32>
    %65 = arith.addf %57, %64 : vector<32x128xf32>
    %66 = vector.extract_strided_slice %3 {offsets = [0, 896], sizes = [32, 128], strides = [1, 1]} : vector<32x4096xf32> to vector<32x128xf32>
    %67 = arith.mulf %62, %66 : vector<32x128xf32>
    %68 = arith.addf %60, %67 : vector<32x128xf32>
    %c7 = arith.constant 7 : index
    %c0_28 = arith.constant 0 : index
    %c0_29 = arith.constant 0 : index
    %69 = vector.load %arg3[%c7, %c0_28, %c0_29] : memref<10x32x128xf32, #tpu.memory_space<vmem>>, vector<1x32x128xf32>
    %70 = vector.shape_cast %69 : vector<1x32x128xf32> to vector<32x128xf32>
    %71 = vector.extract_strided_slice %3 {offsets = [0, 896], sizes = [32, 128], strides = [1, 1]} : vector<32x4096xf32> to vector<32x128xf32>
    %72 = arith.mulf %70, %71 : vector<32x128xf32>
    %73 = arith.addf %65, %72 : vector<32x128xf32>
    %74 = vector.extract_strided_slice %3 {offsets = [0, 1024], sizes = [32, 128], strides = [1, 1]} : vector<32x4096xf32> to vector<32x128xf32>
    %75 = arith.mulf %70, %74 : vector<32x128xf32>
    %76 = arith.addf %68, %75 : vector<32x128xf32>
    %c8 = arith.constant 8 : index
    %c0_30 = arith.constant 0 : index
    %c0_31 = arith.constant 0 : index
    %77 = vector.load %arg3[%c8, %c0_30, %c0_31] : memref<10x32x128xf32, #tpu.memory_space<vmem>>, vector<1x32x128xf32>
    %78 = vector.shape_cast %77 : vector<1x32x128xf32> to vector<32x128xf32>
    %79 = vector.extract_strided_slice %3 {offsets = [0, 1024], sizes = [32, 128], strides = [1, 1]} : vector<32x4096xf32> to vector<32x128xf32>
    %80 = arith.mulf %78, %79 : vector<32x128xf32>
    %81 = arith.addf %73, %80 : vector<32x128xf32>
    %82 = vector.extract_strided_slice %3 {offsets = [0, 1152], sizes = [32, 128], strides = [1, 1]} : vector<32x4096xf32> to vector<32x128xf32>
    %83 = arith.mulf %78, %82 : vector<32x128xf32>
    %84 = arith.addf %76, %83 : vector<32x128xf32>
    %c9 = arith.constant 9 : index
    %c0_32 = arith.constant 0 : index
    %c0_33 = arith.constant 0 : index
    %85 = vector.load %arg3[%c9, %c0_32, %c0_33] : memref<10x32x128xf32, #tpu.memory_space<vmem>>, vector<1x32x128xf32>
    %86 = vector.shape_cast %85 : vector<1x32x128xf32> to vector<32x128xf32>
    %87 = vector.extract_strided_slice %3 {offsets = [0, 1152], sizes = [32, 128], strides = [1, 1]} : vector<32x4096xf32> to vector<32x128xf32>
    %88 = arith.mulf %86, %87 : vector<32x128xf32>
    %89 = arith.addf %81, %88 : vector<32x128xf32>
    %90 = vector.extract_strided_slice %3 {offsets = [0, 1280], sizes = [32, 128], strides = [1, 1]} : vector<32x4096xf32> to vector<32x128xf32>
    %91 = arith.mulf %86, %90 : vector<32x128xf32>
    %92 = arith.addf %84, %91 : vector<32x128xf32>
    %93 = arith.addf %89, %7 : vector<32x128xf32>
    %cst_34 = arith.constant 0.000000e+00 : f32
    %94 = vector.broadcast %cst_34 : f32 to vector<32x128xf32>
    %95 = arith.cmpf ogt, %93, %94 : vector<32x128xf32>
    %cst_35 = arith.constant 0.000000e+00 : f32
    %96 = vector.broadcast %cst_35 : f32 to vector<32x128xf32>
    %97 = arith.minimumf %93, %96 : vector<32x128xf32>
    %98 = math.exp %97 : vector<32x128xf32>
    %cst_36 = arith.constant 1.000000e+00 : f32
    %99 = vector.broadcast %cst_36 : f32 to vector<32x128xf32>
    %100 = arith.subf %98, %99 : vector<32x128xf32>
    %101 = arith.select %95, %93, %100 : vector<32x128xi1>, vector<32x128xf32>
    %102 = arith.addf %92, %7 : vector<32x128xf32>
    %cst_37 = arith.constant 0.000000e+00 : f32
    %103 = vector.broadcast %cst_37 : f32 to vector<32x128xf32>
    %104 = arith.cmpf ogt, %102, %103 : vector<32x128xf32>
    %cst_38 = arith.constant 0.000000e+00 : f32
    %105 = vector.broadcast %cst_38 : f32 to vector<32x128xf32>
    %106 = arith.minimumf %102, %105 : vector<32x128xf32>
    %107 = math.exp %106 : vector<32x128xf32>
    %cst_39 = arith.constant 1.000000e+00 : f32
    %108 = vector.broadcast %cst_39 : f32 to vector<32x128xf32>
    %109 = arith.subf %107, %108 : vector<32x128xf32>
    %110 = arith.select %104, %102, %109 : vector<32x128xi1>, vector<32x128xf32>
    %111 = arith.addf %101, %110 : vector<32x128xf32>
    %cst_40 = arith.constant 5.000000e-01 : f32
    %112 = vector.broadcast %cst_40 : f32 to vector<32x128xf32>
    %113 = arith.mulf %112, %111 : vector<32x128xf32>
    %114 = arith.truncf %113 : vector<32x128xf32> to vector<32x128xbf16>
    %c0_41 = arith.constant 0 : index
    %c128 = arith.constant 128 : index
    %115 = vector.load %arg9[%c0_41, %c128] : memref<32x1792xbf16, #tpu.memory_space<vmem>>, vector<32x128xbf16>
    tpu.vector_store %arg9[%c0_41, %c128], %114 {strides = array<i32>} : memref<32x1792xbf16, #tpu.memory_space<vmem>>, vector<32x128xbf16>,
    %c0_42 = arith.constant 0 : index
    %c0_43 = arith.constant 0 : index
    %c0_44 = arith.constant 0 : index
    %116 = vector.load %arg3[%c0_42, %c0_43, %c0_44] : memref<10x32x128xf32, #tpu.memory_space<vmem>>, vector<1x32x128xf32>
    %117 = vector.shape_cast %116 : vector<1x32x128xf32> to vector<32x128xf32>
    %118 = vector.extract_strided_slice %3 {offsets = [0, 256], sizes = [32, 128], strides = [1, 1]} : vector<32x4096xf32> to vector<32x128xf32>
    %119 = arith.mulf %117, %118 : vector<32x128xf32>
    %120 = vector.extract_strided_slice %3 {offsets = [0, 384], sizes = [32, 128], strides = [1, 1]} : vector<32x4096xf32> to vector<32x128xf32>
    %121 = arith.mulf %117, %120 : vector<32x128xf32>
    %c1_45 = arith.constant 1 : index
    %c0_46 = arith.constant 0 : index
    %c0_47 = arith.constant 0 : index
    %122 = vector.load %arg3[%c1_45, %c0_46, %c0_47] : memref<10x32x128xf32, #tpu.memory_space<vmem>>, vector<1x32x128xf32>
    %123 = vector.shape_cast %122 : vector<1x32x128xf32> to vector<32x128xf32>
    %124 = vector.extract_strided_slice %3 {offsets = [0, 384], sizes = [32, 128], strides = [1, 1]} : vector<32x4096xf32> to vector<32x128xf32>
    %125 = arith.mulf %123, %124 : vector<32x128xf32>
    %126 = arith.addf %119, %125 : vector<32x128xf32>
    %127 = vector.extract_strided_slice %3 {offsets = [0, 512], sizes = [32, 128], strides = [1, 1]} : vector<32x4096xf32> to vector<32x128xf32>
    %128 = arith.mulf %123, %127 : vector<32x128xf32>
    %129 = arith.addf %121, %128 : vector<32x128xf32>
    %c2_48 = arith.constant 2 : index
    %c0_49 = arith.constant 0 : index
    %c0_50 = arith.constant 0 : index
    %130 = vector.load %arg3[%c2_48, %c0_49, %c0_50] : memref<10x32x128xf32, #tpu.memory_space<vmem>>, vector<1x32x128xf32>
    %131 = vector.shape_cast %130 : vector<1x32x128xf32> to vector<32x128xf32>
    %132 = vector.extract_strided_slice %3 {offsets = [0, 512], sizes = [32, 128], strides = [1, 1]} : vector<32x4096xf32> to vector<32x128xf32>
    %133 = arith.mulf %131, %132 : vector<32x128xf32>
    %134 = arith.addf %126, %133 : vector<32x128xf32>
    %135 = vector.extract_strided_slice %3 {offsets = [0, 640], sizes = [32, 128], strides = [1, 1]} : vector<32x4096xf32> to vector<32x128xf32>
    %136 = arith.mulf %131, %135 : vector<32x128xf32>
    %137 = arith.addf %129, %136 : vector<32x128xf32>
    %c3_51 = arith.constant 3 : index
    %c0_52 = arith.constant 0 : index
    %c0_53 = arith.constant 0 : index
    %138 = vector.load %arg3[%c3_51, %c0_52, %c0_53] : memref<10x32x128xf32, #tpu.memory_space<vmem>>, vector<1x32x128xf32>
    %139 = vector.shape_cast %138 : vector<1x32x128xf32> to vector<32x128xf32>
    %140 = vector.extract_strided_slice %3 {offsets = [0, 640], sizes = [32, 128], strides = [1, 1]} : vector<32x4096xf32> to vector<32x128xf32>
    %141 = arith.mulf %139, %140 : vector<32x128xf32>
    %142 = arith.addf %134, %141 : vector<32x128xf32>
    %143 = vector.extract_strided_slice %3 {offsets = [0, 768], sizes = [32, 128], strides = [1, 1]} : vector<32x4096xf32> to vector<32x128xf32>
    %144 = arith.mulf %139, %143 : vector<32x128xf32>
    %145 = arith.addf %137, %144 : vector<32x128xf32>
    %c4_54 = arith.constant 4 : index
    %c0_55 = arith.constant 0 : index
    %c0_56 = arith.constant 0 : index
    %146 = vector.load %arg3[%c4_54, %c0_55, %c0_56] : memref<10x32x128xf32, #tpu.memory_space<vmem>>, vector<1x32x128xf32>
    %147 = vector.shape_cast %146 : vector<1x32x128xf32> to vector<32x128xf32>
    %148 = vector.extract_strided_slice %3 {offsets = [0, 768], sizes = [32, 128], strides = [1, 1]} : vector<32x4096xf32> to vector<32x128xf32>
    %149 = arith.mulf %147, %148 : vector<32x128xf32>
    %150 = arith.addf %142, %149 : vector<32x128xf32>
    %151 = vector.extract_strided_slice %3 {offsets = [0, 896], sizes = [32, 128], strides = [1, 1]} : vector<32x4096xf32> to vector<32x128xf32>
    %152 = arith.mulf %147, %151 : vector<32x128xf32>
    %153 = arith.addf %145, %152 : vector<32x128xf32>
    %c5_57 = arith.constant 5 : index
    %c0_58 = arith.constant 0 : index
    %c0_59 = arith.constant 0 : index
    %154 = vector.load %arg3[%c5_57, %c0_58, %c0_59] : memref<10x32x128xf32, #tpu.memory_space<vmem>>, vector<1x32x128xf32>
    %155 = vector.shape_cast %154 : vector<1x32x128xf32> to vector<32x128xf32>
    %156 = vector.extract_strided_slice %3 {offsets = [0, 896], sizes = [32, 128], strides = [1, 1]} : vector<32x4096xf32> to vector<32x128xf32>
    %157 = arith.mulf %155, %156 : vector<32x128xf32>
    %158 = arith.addf %150, %157 : vector<32x128xf32>
    %159 = vector.extract_strided_slice %3 {offsets = [0, 1024], sizes = [32, 128], strides = [1, 1]} : vector<32x4096xf32> to vector<32x128xf32>
    %160 = arith.mulf %155, %159 : vector<32x128xf32>
    %161 = arith.addf %153, %160 : vector<32x128xf32>
    %c6_60 = arith.constant 6 : index
    %c0_61 = arith.constant 0 : index
    %c0_62 = arith.constant 0 : index
    %162 = vector.load %arg3[%c6_60, %c0_61, %c0_62] : memref<10x32x128xf32, #tpu.memory_space<vmem>>, vector<1x32x128xf32>
    %163 = vector.shape_cast %162 : vector<1x32x128xf32> to vector<32x128xf32>
    %164 = vector.extract_strided_slice %3 {offsets = [0, 1024], sizes = [32, 128], strides = [1, 1]} : vector<32x4096xf32> to vector<32x128xf32>
    %165 = arith.mulf %163, %164 : vector<32x128xf32>
    %166 = arith.addf %158, %165 : vector<32x128xf32>
    %167 = vector.extract_strided_slice %3 {offsets = [0, 1152], sizes = [32, 128], strides = [1, 1]} : vector<32x4096xf32> to vector<32x128xf32>
    %168 = arith.mulf %163, %167 : vector<32x128xf32>
    %169 = arith.addf %161, %168 : vector<32x128xf32>
    %c7_63 = arith.constant 7 : index
    %c0_64 = arith.constant 0 : index
    %c0_65 = arith.constant 0 : index
    %170 = vector.load %arg3[%c7_63, %c0_64, %c0_65] : memref<10x32x128xf32, #tpu.memory_space<vmem>>, vector<1x32x128xf32>
    %171 = vector.shape_cast %170 : vector<1x32x128xf32> to vector<32x128xf32>
    %172 = vector.extract_strided_slice %3 {offsets = [0, 1152], sizes = [32, 128], strides = [1, 1]} : vector<32x4096xf32> to vector<32x128xf32>
    %173 = arith.mulf %171, %172 : vector<32x128xf32>
    %174 = arith.addf %166, %173 : vector<32x128xf32>
    %175 = vector.extract_strided_slice %3 {offsets = [0, 1280], sizes = [32, 128], strides = [1, 1]} : vector<32x4096xf32> to vector<32x128xf32>
    %176 = arith.mulf %171, %175 : vector<32x128xf32>
    %177 = arith.addf %169, %176 : vector<32x128xf32>
    %c8_66 = arith.constant 8 : index
    %c0_67 = arith.constant 0 : index
    %c0_68 = arith.constant 0 : index
    %178 = vector.load %arg3[%c8_66, %c0_67, %c0_68] : memref<10x32x128xf32, #tpu.memory_space<vmem>>, vector<1x32x128xf32>
    %179 = vector.shape_cast %178 : vector<1x32x128xf32> to vector<32x128xf32>
    %180 = vector.extract_strided_slice %3 {offsets = [0, 1280], sizes = [32, 128], strides = [1, 1]} : vector<32x4096xf32> to vector<32x128xf32>
    %181 = arith.mulf %179, %180 : vector<32x128xf32>
    %182 = arith.addf %174, %181 : vector<32x128xf32>
    %183 = vector.extract_strided_slice %3 {offsets = [0, 1408], sizes = [32, 128], strides = [1, 1]} : vector<32x4096xf32> to vector<32x128xf32>
    %184 = arith.mulf %179, %183 : vector<32x128xf32>
    %185 = arith.addf %177, %184 : vector<32x128xf32>
    %c9_69 = arith.constant 9 : index
    %c0_70 = arith.constant 0 : index
    %c0_71 = arith.constant 0 : index
    %186 = vector.load %arg3[%c9_69, %c0_70, %c0_71] : memref<10x32x128xf32, #tpu.memory_space<vmem>>, vector<1x32x128xf32>
    %187 = vector.shape_cast %186 : vector<1x32x128xf32> to vector<32x128xf32>
    %188 = vector.extract_strided_slice %3 {offsets = [0, 1408], sizes = [32, 128], strides = [1, 1]} : vector<32x4096xf32> to vector<32x128xf32>
    %189 = arith.mulf %187, %188 : vector<32x128xf32>
    %190 = arith.addf %182, %189 : vector<32x128xf32>
    %191 = vector.extract_strided_slice %3 {offsets = [0, 1536], sizes = [32, 128], strides = [1, 1]} : vector<32x4096xf32> to vector<32x128xf32>
    %192 = arith.mulf %187, %191 : vector<32x128xf32>
    %193 = arith.addf %185, %192 : vector<32x128xf32>
    %194 = arith.addf %190, %7 : vector<32x128xf32>
    %cst_72 = arith.constant 0.000000e+00 : f32
    %195 = vector.broadcast %cst_72 : f32 to vector<32x128xf32>
    %196 = arith.cmpf ogt, %194, %195 : vector<32x128xf32>
    %cst_73 = arith.constant 0.000000e+00 : f32
    %197 = vector.broadcast %cst_73 : f32 to vector<32x128xf32>
    %198 = arith.minimumf %194, %197 : vector<32x128xf32>
    %199 = math.exp %198 : vector<32x128xf32>
    %cst_74 = arith.constant 1.000000e+00 : f32
    %200 = vector.broadcast %cst_74 : f32 to vector<32x128xf32>
    %201 = arith.subf %199, %200 : vector<32x128xf32>
    %202 = arith.select %196, %194, %201 : vector<32x128xi1>, vector<32x128xf32>
    %203 = arith.addf %193, %7 : vector<32x128xf32>
    %cst_75 = arith.constant 0.000000e+00 : f32
    %204 = vector.broadcast %cst_75 : f32 to vector<32x128xf32>
    %205 = arith.cmpf ogt, %203, %204 : vector<32x128xf32>
    %cst_76 = arith.constant 0.000000e+00 : f32
    %206 = vector.broadcast %cst_76 : f32 to vector<32x128xf32>
    %207 = arith.minimumf %203, %206 : vector<32x128xf32>
    %208 = math.exp %207 : vector<32x128xf32>
    %cst_77 = arith.constant 1.000000e+00 : f32
    %209 = vector.broadcast %cst_77 : f32 to vector<32x128xf32>
    %210 = arith.subf %208, %209 : vector<32x128xf32>
    %211 = arith.select %205, %203, %210 : vector<32x128xi1>, vector<32x128xf32>
    %212 = arith.addf %202, %211 : vector<32x128xf32>
    %cst_78 = arith.constant 5.000000e-01 : f32
    %213 = vector.broadcast %cst_78 : f32 to vector<32x128xf32>
    %214 = arith.mulf %213, %212 : vector<32x128xf32>
    %215 = arith.truncf %214 : vector<32x128xf32> to vector<32x128xbf16>
    %c0_79 = arith.constant 0 : index
    %c256 = arith.constant 256 : index
    %216 = vector.load %arg9[%c0_79, %c256] : memref<32x1792xbf16, #tpu.memory_space<vmem>>, vector<32x128xbf16>
    tpu.vector_store %arg9[%c0_79, %c256], %215 {strides = array<i32>} : memref<32x1792xbf16, #tpu.memory_space<vmem>>, vector<32x128xbf16>,
    %c0_80 = arith.constant 0 : index
    %c0_81 = arith.constant 0 : index
    %c0_82 = arith.constant 0 : index
    %217 = vector.load %arg3[%c0_80, %c0_81, %c0_82] : memref<10x32x128xf32, #tpu.memory_space<vmem>>, vector<1x32x128xf32>
    %218 = vector.shape_cast %217 : vector<1x32x128xf32> to vector<32x128xf32>
    %219 = vector.extract_strided_slice %3 {offsets = [0, 512], sizes = [32, 128], strides = [1, 1]} : vector<32x4096xf32> to vector<32x128xf32>
    %220 = arith.mulf %218, %219 : vector<32x128xf32>
    %221 = vector.extract_strided_slice %3 {offsets = [0, 640], sizes = [32, 128], strides = [1, 1]} : vector<32x4096xf32> to vector<32x128xf32>
    %222 = arith.mulf %218, %221 : vector<32x128xf32>
    %c1_83 = arith.constant 1 : index
    %c0_84 = arith.constant 0 : index
    %c0_85 = arith.constant 0 : index
    %223 = vector.load %arg3[%c1_83, %c0_84, %c0_85] : memref<10x32x128xf32, #tpu.memory_space<vmem>>, vector<1x32x128xf32>
    %224 = vector.shape_cast %223 : vector<1x32x128xf32> to vector<32x128xf32>
    %225 = vector.extract_strided_slice %3 {offsets = [0, 640], sizes = [32, 128], strides = [1, 1]} : vector<32x4096xf32> to vector<32x128xf32>
    %226 = arith.mulf %224, %225 : vector<32x128xf32>
    %227 = arith.addf %220, %226 : vector<32x128xf32>
    %228 = vector.extract_strided_slice %3 {offsets = [0, 768], sizes = [32, 128], strides = [1, 1]} : vector<32x4096xf32> to vector<32x128xf32>
    %229 = arith.mulf %224, %228 : vector<32x128xf32>
    %230 = arith.addf %222, %229 : vector<32x128xf32>
    %c2_86 = arith.constant 2 : index
    %c0_87 = arith.constant 0 : index
    %c0_88 = arith.constant 0 : index
    %231 = vector.load %arg3[%c2_86, %c0_87, %c0_88] : memref<10x32x128xf32, #tpu.memory_space<vmem>>, vector<1x32x128xf32>
    %232 = vector.shape_cast %231 : vector<1x32x128xf32> to vector<32x128xf32>
    %233 = vector.extract_strided_slice %3 {offsets = [0, 768], sizes = [32, 128], strides = [1, 1]} : vector<32x4096xf32> to vector<32x128xf32>
    %234 = arith.mulf %232, %233 : vector<32x128xf32>
    %235 = arith.addf %227, %234 : vector<32x128xf32>
    %236 = vector.extract_strided_slice %3 {offsets = [0, 896], sizes = [32, 128], strides = [1, 1]} : vector<32x4096xf32> to vector<32x128xf32>
    %237 = arith.mulf %232, %236 : vector<32x128xf32>
    %238 = arith.addf %230, %237 : vector<32x128xf32>
    %c3_89 = arith.constant 3 : index
    %c0_90 = arith.constant 0 : index
    %c0_91 = arith.constant 0 : index
    %239 = vector.load %arg3[%c3_89, %c0_90, %c0_91] : memref<10x32x128xf32, #tpu.memory_space<vmem>>, vector<1x32x128xf32>
    %240 = vector.shape_cast %239 : vector<1x32x128xf32> to vector<32x128xf32>
    %241 = vector.extract_strided_slice %3 {offsets = [0, 896], sizes = [32, 128], strides = [1, 1]} : vector<32x4096xf32> to vector<32x128xf32>
    %242 = arith.mulf %240, %241 : vector<32x128xf32>
    %243 = arith.addf %235, %242 : vector<32x128xf32>
    %244 = vector.extract_strided_slice %3 {offsets = [0, 1024], sizes = [32, 128], strides = [1, 1]} : vector<32x4096xf32> to vector<32x128xf32>
    %245 = arith.mulf %240, %244 : vector<32x128xf32>
    %246 = arith.addf %238, %245 : vector<32x128xf32>
    %c4_92 = arith.constant 4 : index
    %c0_93 = arith.constant 0 : index
    %c0_94 = arith.constant 0 : index
    %247 = vector.load %arg3[%c4_92, %c0_93, %c0_94] : memref<10x32x128xf32, #tpu.memory_space<vmem>>, vector<1x32x128xf32>
    %248 = vector.shape_cast %247 : vector<1x32x128xf32> to vector<32x128xf32>
    %249 = vector.extract_strided_slice %3 {offsets = [0, 1024], sizes = [32, 128], strides = [1, 1]} : vector<32x4096xf32> to vector<32x128xf32>
    %250 = arith.mulf %248, %249 : vector<32x128xf32>
    %251 = arith.addf %243, %250 : vector<32x128xf32>
    %252 = vector.extract_strided_slice %3 {offsets = [0, 1152], sizes = [32, 128], strides = [1, 1]} : vector<32x4096xf32> to vector<32x128xf32>
    %253 = arith.mulf %248, %252 : vector<32x128xf32>
    %254 = arith.addf %246, %253 : vector<32x128xf32>
    %c5_95 = arith.constant 5 : index
    %c0_96 = arith.constant 0 : index
    %c0_97 = arith.constant 0 : index
    %255 = vector.load %arg3[%c5_95, %c0_96, %c0_97] : memref<10x32x128xf32, #tpu.memory_space<vmem>>, vector<1x32x128xf32>
    %256 = vector.shape_cast %255 : vector<1x32x128xf32> to vector<32x128xf32>
    %257 = vector.extract_strided_slice %3 {offsets = [0, 1152], sizes = [32, 128], strides = [1, 1]} : vector<32x4096xf32> to vector<32x128xf32>
    %258 = arith.mulf %256, %257 : vector<32x128xf32>
    %259 = arith.addf %251, %258 : vector<32x128xf32>
    %260 = vector.extract_strided_slice %3 {offsets = [0, 1280], sizes = [32, 128], strides = [1, 1]} : vector<32x4096xf32> to vector<32x128xf32>
    %261 = arith.mulf %256, %260 : vector<32x128xf32>
    %262 = arith.addf %254, %261 : vector<32x128xf32>
    %c6_98 = arith.constant 6 : index
    %c0_99 = arith.constant 0 : index
    %c0_100 = arith.constant 0 : index
    %263 = vector.load %arg3[%c6_98, %c0_99, %c0_100] : memref<10x32x128xf32, #tpu.memory_space<vmem>>, vector<1x32x128xf32>
    %264 = vector.shape_cast %263 : vector<1x32x128xf32> to vector<32x128xf32>
    %265 = vector.extract_strided_slice %3 {offsets = [0, 1280], sizes = [32, 128], strides = [1, 1]} : vector<32x4096xf32> to vector<32x128xf32>
    %266 = arith.mulf %264, %265 : vector<32x128xf32>
    %267 = arith.addf %259, %266 : vector<32x128xf32>
    %268 = vector.extract_strided_slice %3 {offsets = [0, 1408], sizes = [32, 128], strides = [1, 1]} : vector<32x4096xf32> to vector<32x128xf32>
    %269 = arith.mulf %264, %268 : vector<32x128xf32>
    %270 = arith.addf %262, %269 : vector<32x128xf32>
    %c7_101 = arith.constant 7 : index
    %c0_102 = arith.constant 0 : index
    %c0_103 = arith.constant 0 : index
    %271 = vector.load %arg3[%c7_101, %c0_102, %c0_103] : memref<10x32x128xf32, #tpu.memory_space<vmem>>, vector<1x32x128xf32>
    %272 = vector.shape_cast %271 : vector<1x32x128xf32> to vector<32x128xf32>
    %273 = vector.extract_strided_slice %3 {offsets = [0, 1408], sizes = [32, 128], strides = [1, 1]} : vector<32x4096xf32> to vector<32x128xf32>
    %274 = arith.mulf %272, %273 : vector<32x128xf32>
    %275 = arith.addf %267, %274 : vector<32x128xf32>
    %276 = vector.extract_strided_slice %3 {offsets = [0, 1536], sizes = [32, 128], strides = [1, 1]} : vector<32x4096xf32> to vector<32x128xf32>
    %277 = arith.mulf %272, %276 : vector<32x128xf32>
    %278 = arith.addf %270, %277 : vector<32x128xf32>
    %c8_104 = arith.constant 8 : index
    %c0_105 = arith.constant 0 : index
    %c0_106 = arith.constant 0 : index
    %279 = vector.load %arg3[%c8_104, %c0_105, %c0_106] : memref<10x32x128xf32, #tpu.memory_space<vmem>>, vector<1x32x128xf32>
    %280 = vector.shape_cast %279 : vector<1x32x128xf32> to vector<32x128xf32>
    %281 = vector.extract_strided_slice %3 {offsets = [0, 1536], sizes = [32, 128], strides = [1, 1]} : vector<32x4096xf32> to vector<32x128xf32>
    %282 = arith.mulf %280, %281 : vector<32x128xf32>
    %283 = arith.addf %275, %282 : vector<32x128xf32>
    %284 = vector.extract_strided_slice %3 {offsets = [0, 1664], sizes = [32, 128], strides = [1, 1]} : vector<32x4096xf32> to vector<32x128xf32>
    %285 = arith.mulf %280, %284 : vector<32x128xf32>
    %286 = arith.addf %278, %285 : vector<32x128xf32>
    %c9_107 = arith.constant 9 : index
    %c0_108 = arith.constant 0 : index
    %c0_109 = arith.constant 0 : index
    %287 = vector.load %arg3[%c9_107, %c0_108, %c0_109] : memref<10x32x128xf32, #tpu.memory_space<vmem>>, vector<1x32x128xf32>
    %288 = vector.shape_cast %287 : vector<1x32x128xf32> to vector<32x128xf32>
    %289 = vector.extract_strided_slice %3 {offsets = [0, 1664], sizes = [32, 128], strides = [1, 1]} : vector<32x4096xf32> to vector<32x128xf32>
    %290 = arith.mulf %288, %289 : vector<32x128xf32>
    %291 = arith.addf %283, %290 : vector<32x128xf32>
    %292 = vector.extract_strided_slice %3 {offsets = [0, 1792], sizes = [32, 128], strides = [1, 1]} : vector<32x4096xf32> to vector<32x128xf32>
    %293 = arith.mulf %288, %292 : vector<32x128xf32>
    %294 = arith.addf %286, %293 : vector<32x128xf32>
    %295 = arith.addf %291, %7 : vector<32x128xf32>
    %cst_110 = arith.constant 0.000000e+00 : f32
    %296 = vector.broadcast %cst_110 : f32 to vector<32x128xf32>
    %297 = arith.cmpf ogt, %295, %296 : vector<32x128xf32>
    %cst_111 = arith.constant 0.000000e+00 : f32
    %298 = vector.broadcast %cst_111 : f32 to vector<32x128xf32>
    %299 = arith.minimumf %295, %298 : vector<32x128xf32>
    %300 = math.exp %299 : vector<32x128xf32>
    %cst_112 = arith.constant 1.000000e+00 : f32
    %301 = vector.broadcast %cst_112 : f32 to vector<32x128xf32>
    %302 = arith.subf %300, %301 : vector<32x128xf32>
    %303 = arith.select %297, %295, %302 : vector<32x128xi1>, vector<32x128xf32>
    %304 = arith.addf %294, %7 : vector<32x128xf32>
    %cst_113 = arith.constant 0.000000e+00 : f32
    %305 = vector.broadcast %cst_113 : f32 to vector<32x128xf32>
    %306 = arith.cmpf ogt, %304, %305 : vector<32x128xf32>
    %cst_114 = arith.constant 0.000000e+00 : f32
    %307 = vector.broadcast %cst_114 : f32 to vector<32x128xf32>
    %308 = arith.minimumf %304, %307 : vector<32x128xf32>
    %309 = math.exp %308 : vector<32x128xf32>
    %cst_115 = arith.constant 1.000000e+00 : f32
    %310 = vector.broadcast %cst_115 : f32 to vector<32x128xf32>
    %311 = arith.subf %309, %310 : vector<32x128xf32>
    %312 = arith.select %306, %304, %311 : vector<32x128xi1>, vector<32x128xf32>
    %313 = arith.addf %303, %312 : vector<32x128xf32>
    %cst_116 = arith.constant 5.000000e-01 : f32
    %314 = vector.broadcast %cst_116 : f32 to vector<32x128xf32>
    %315 = arith.mulf %314, %313 : vector<32x128xf32>
    %316 = arith.truncf %315 : vector<32x128xf32> to vector<32x128xbf16>
    %c0_117 = arith.constant 0 : index
    %c384 = arith.constant 384 : index
    %317 = vector.load %arg9[%c0_117, %c384] : memref<32x1792xbf16, #tpu.memory_space<vmem>>, vector<32x128xbf16>
    tpu.vector_store %arg9[%c0_117, %c384], %316 {strides = array<i32>} : memref<32x1792xbf16, #tpu.memory_space<vmem>>, vector<32x128xbf16>,
    %c0_118 = arith.constant 0 : index
    %c0_119 = arith.constant 0 : index
    %c0_120 = arith.constant 0 : index
    %318 = vector.load %arg3[%c0_118, %c0_119, %c0_120] : memref<10x32x128xf32, #tpu.memory_space<vmem>>, vector<1x32x128xf32>
    %319 = vector.shape_cast %318 : vector<1x32x128xf32> to vector<32x128xf32>
    %320 = vector.extract_strided_slice %3 {offsets = [0, 768], sizes = [32, 128], strides = [1, 1]} : vector<32x4096xf32> to vector<32x128xf32>
    %321 = arith.mulf %319, %320 : vector<32x128xf32>
    %322 = vector.extract_strided_slice %3 {offsets = [0, 896], sizes = [32, 128], strides = [1, 1]} : vector<32x4096xf32> to vector<32x128xf32>
    %323 = arith.mulf %319, %322 : vector<32x128xf32>
    %c1_121 = arith.constant 1 : index
    %c0_122 = arith.constant 0 : index
    %c0_123 = arith.constant 0 : index
    %324 = vector.load %arg3[%c1_121, %c0_122, %c0_123] : memref<10x32x128xf32, #tpu.memory_space<vmem>>, vector<1x32x128xf32>
    %325 = vector.shape_cast %324 : vector<1x32x128xf32> to vector<32x128xf32>
    %326 = vector.extract_strided_slice %3 {offsets = [0, 896], sizes = [32, 128], strides = [1, 1]} : vector<32x4096xf32> to vector<32x128xf32>
    %327 = arith.mulf %325, %326 : vector<32x128xf32>
    %328 = arith.addf %321, %327 : vector<32x128xf32>
    %329 = vector.extract_strided_slice %3 {offsets = [0, 1024], sizes = [32, 128], strides = [1, 1]} : vector<32x4096xf32> to vector<32x128xf32>
    %330 = arith.mulf %325, %329 : vector<32x128xf32>
    %331 = arith.addf %323, %330 : vector<32x128xf32>
    %c2_124 = arith.constant 2 : index
    %c0_125 = arith.constant 0 : index
    %c0_126 = arith.constant 0 : index
    %332 = vector.load %arg3[%c2_124, %c0_125, %c0_126] : memref<10x32x128xf32, #tpu.memory_space<vmem>>, vector<1x32x128xf32>
    %333 = vector.shape_cast %332 : vector<1x32x128xf32> to vector<32x128xf32>
    %334 = vector.extract_strided_slice %3 {offsets = [0, 1024], sizes = [32, 128], strides = [1, 1]} : vector<32x4096xf32> to vector<32x128xf32>
    %335 = arith.mulf %333, %334 : vector<32x128xf32>
    %336 = arith.addf %328, %335 : vector<32x128xf32>
    %337 = vector.extract_strided_slice %3 {offsets = [0, 1152], sizes = [32, 128], strides = [1, 1]} : vector<32x4096xf32> to vector<32x128xf32>
    %338 = arith.mulf %333, %337 : vector<32x128xf32>
    %339 = arith.addf %331, %338 : vector<32x128xf32>
    %c3_127 = arith.constant 3 : index
    %c0_128 = arith.constant 0 : index
    %c0_129 = arith.constant 0 : index
    %340 = vector.load %arg3[%c3_127, %c0_128, %c0_129] : memref<10x32x128xf32, #tpu.memory_space<vmem>>, vector<1x32x128xf32>
    %341 = vector.shape_cast %340 : vector<1x32x128xf32> to vector<32x128xf32>
    %342 = vector.extract_strided_slice %3 {offsets = [0, 1152], sizes = [32, 128], strides = [1, 1]} : vector<32x4096xf32> to vector<32x128xf32>
    %343 = arith.mulf %341, %342 : vector<32x128xf32>
    %344 = arith.addf %336, %343 : vector<32x128xf32>
    %345 = vector.extract_strided_slice %3 {offsets = [0, 1280], sizes = [32, 128], strides = [1, 1]} : vector<32x4096xf32> to vector<32x128xf32>
    %346 = arith.mulf %341, %345 : vector<32x128xf32>
    %347 = arith.addf %339, %346 : vector<32x128xf32>
    %c4_130 = arith.constant 4 : index
    %c0_131 = arith.constant 0 : index
    %c0_132 = arith.constant 0 : index
    %348 = vector.load %arg3[%c4_130, %c0_131, %c0_132] : memref<10x32x128xf32, #tpu.memory_space<vmem>>, vector<1x32x128xf32>
    %349 = vector.shape_cast %348 : vector<1x32x128xf32> to vector<32x128xf32>
    %350 = vector.extract_strided_slice %3 {offsets = [0, 1280], sizes = [32, 128], strides = [1, 1]} : vector<32x4096xf32> to vector<32x128xf32>
    %351 = arith.mulf %349, %350 : vector<32x128xf32>
    %352 = arith.addf %344, %351 : vector<32x128xf32>
    %353 = vector.extract_strided_slice %3 {offsets = [0, 1408], sizes = [32, 128], strides = [1, 1]} : vector<32x4096xf32> to vector<32x128xf32>
    %354 = arith.mulf %349, %353 : vector<32x128xf32>
    %355 = arith.addf %347, %354 : vector<32x128xf32>
    %c5_133 = arith.constant 5 : index
    %c0_134 = arith.constant 0 : index
    %c0_135 = arith.constant 0 : index
    %356 = vector.load %arg3[%c5_133, %c0_134, %c0_135] : memref<10x32x128xf32, #tpu.memory_space<vmem>>, vector<1x32x128xf32>
    %357 = vector.shape_cast %356 : vector<1x32x128xf32> to vector<32x128xf32>
    %358 = vector.extract_strided_slice %3 {offsets = [0, 1408], sizes = [32, 128], strides = [1, 1]} : vector<32x4096xf32> to vector<32x128xf32>
    %359 = arith.mulf %357, %358 : vector<32x128xf32>
    %360 = arith.addf %352, %359 : vector<32x128xf32>
    %361 = vector.extract_strided_slice %3 {offsets = [0, 1536], sizes = [32, 128], strides = [1, 1]} : vector<32x4096xf32> to vector<32x128xf32>
    %362 = arith.mulf %357, %361 : vector<32x128xf32>
    %363 = arith.addf %355, %362 : vector<32x128xf32>
    %c6_136 = arith.constant 6 : index
    %c0_137 = arith.constant 0 : index
    %c0_138 = arith.constant 0 : index
    %364 = vector.load %arg3[%c6_136, %c0_137, %c0_138] : memref<10x32x128xf32, #tpu.memory_space<vmem>>, vector<1x32x128xf32>
    %365 = vector.shape_cast %364 : vector<1x32x128xf32> to vector<32x128xf32>
    %366 = vector.extract_strided_slice %3 {offsets = [0, 1536], sizes = [32, 128], strides = [1, 1]} : vector<32x4096xf32> to vector<32x128xf32>
    %367 = arith.mulf %365, %366 : vector<32x128xf32>
    %368 = arith.addf %360, %367 : vector<32x128xf32>
    %369 = vector.extract_strided_slice %3 {offsets = [0, 1664], sizes = [32, 128], strides = [1, 1]} : vector<32x4096xf32> to vector<32x128xf32>
    %370 = arith.mulf %365, %369 : vector<32x128xf32>
    %371 = arith.addf %363, %370 : vector<32x128xf32>
    %c7_139 = arith.constant 7 : index
    %c0_140 = arith.constant 0 : index
    %c0_141 = arith.constant 0 : index
    %372 = vector.load %arg3[%c7_139, %c0_140, %c0_141] : memref<10x32x128xf32, #tpu.memory_space<vmem>>, vector<1x32x128xf32>
    %373 = vector.shape_cast %372 : vector<1x32x128xf32> to vector<32x128xf32>
    %374 = vector.extract_strided_slice %3 {offsets = [0, 1664], sizes = [32, 128], strides = [1, 1]} : vector<32x4096xf32> to vector<32x128xf32>
    %375 = arith.mulf %373, %374 : vector<32x128xf32>
    %376 = arith.addf %368, %375 : vector<32x128xf32>
    %377 = vector.extract_strided_slice %3 {offsets = [0, 1792], sizes = [32, 128], strides = [1, 1]} : vector<32x4096xf32> to vector<32x128xf32>
    %378 = arith.mulf %373, %377 : vector<32x128xf32>
    %379 = arith.addf %371, %378 : vector<32x128xf32>
    %c8_142 = arith.constant 8 : index
    %c0_143 = arith.constant 0 : index
    %c0_144 = arith.constant 0 : index
    %380 = vector.load %arg3[%c8_142, %c0_143, %c0_144] : memref<10x32x128xf32, #tpu.memory_space<vmem>>, vector<1x32x128xf32>
    %381 = vector.shape_cast %380 : vector<1x32x128xf32> to vector<32x128xf32>
    %382 = vector.extract_strided_slice %3 {offsets = [0, 1792], sizes = [32, 128], strides = [1, 1]} : vector<32x4096xf32> to vector<32x128xf32>
    %383 = arith.mulf %381, %382 : vector<32x128xf32>
    %384 = arith.addf %376, %383 : vector<32x128xf32>
    %385 = vector.extract_strided_slice %3 {offsets = [0, 1920], sizes = [32, 128], strides = [1, 1]} : vector<32x4096xf32> to vector<32x128xf32>
    %386 = arith.mulf %381, %385 : vector<32x128xf32>
    %387 = arith.addf %379, %386 : vector<32x128xf32>
    %c9_145 = arith.constant 9 : index
    %c0_146 = arith.constant 0 : index
    %c0_147 = arith.constant 0 : index
    %388 = vector.load %arg3[%c9_145, %c0_146, %c0_147] : memref<10x32x128xf32, #tpu.memory_space<vmem>>, vector<1x32x128xf32>
    %389 = vector.shape_cast %388 : vector<1x32x128xf32> to vector<32x128xf32>
    %390 = vector.extract_strided_slice %3 {offsets = [0, 1920], sizes = [32, 128], strides = [1, 1]} : vector<32x4096xf32> to vector<32x128xf32>
    %391 = arith.mulf %389, %390 : vector<32x128xf32>
    %392 = arith.addf %384, %391 : vector<32x128xf32>
    %393 = vector.extract_strided_slice %3 {offsets = [0, 2048], sizes = [32, 128], strides = [1, 1]} : vector<32x4096xf32> to vector<32x128xf32>
    %394 = arith.mulf %389, %393 : vector<32x128xf32>
    %395 = arith.addf %387, %394 : vector<32x128xf32>
    %396 = arith.addf %392, %7 : vector<32x128xf32>
    %cst_148 = arith.constant 0.000000e+00 : f32
    %397 = vector.broadcast %cst_148 : f32 to vector<32x128xf32>
    %398 = arith.cmpf ogt, %396, %397 : vector<32x128xf32>
    %cst_149 = arith.constant 0.000000e+00 : f32
    %399 = vector.broadcast %cst_149 : f32 to vector<32x128xf32>
    %400 = arith.minimumf %396, %399 : vector<32x128xf32>
    %401 = math.exp %400 : vector<32x128xf32>
    %cst_150 = arith.constant 1.000000e+00 : f32
    %402 = vector.broadcast %cst_150 : f32 to vector<32x128xf32>
    %403 = arith.subf %401, %402 : vector<32x128xf32>
    %404 = arith.select %398, %396, %403 : vector<32x128xi1>, vector<32x128xf32>
    %405 = arith.addf %395, %7 : vector<32x128xf32>
    %cst_151 = arith.constant 0.000000e+00 : f32
    %406 = vector.broadcast %cst_151 : f32 to vector<32x128xf32>
    %407 = arith.cmpf ogt, %405, %406 : vector<32x128xf32>
    %cst_152 = arith.constant 0.000000e+00 : f32
    %408 = vector.broadcast %cst_152 : f32 to vector<32x128xf32>
    %409 = arith.minimumf %405, %408 : vector<32x128xf32>
    %410 = math.exp %409 : vector<32x128xf32>
    %cst_153 = arith.constant 1.000000e+00 : f32
    %411 = vector.broadcast %cst_153 : f32 to vector<32x128xf32>
    %412 = arith.subf %410, %411 : vector<32x128xf32>
    %413 = arith.select %407, %405, %412 : vector<32x128xi1>, vector<32x128xf32>
    %414 = arith.addf %404, %413 : vector<32x128xf32>
    %cst_154 = arith.constant 5.000000e-01 : f32
    %415 = vector.broadcast %cst_154 : f32 to vector<32x128xf32>
    %416 = arith.mulf %415, %414 : vector<32x128xf32>
    %417 = arith.truncf %416 : vector<32x128xf32> to vector<32x128xbf16>
    %c0_155 = arith.constant 0 : index
    %c512 = arith.constant 512 : index
    %418 = vector.load %arg9[%c0_155, %c512] : memref<32x1792xbf16, #tpu.memory_space<vmem>>, vector<32x128xbf16>
    tpu.vector_store %arg9[%c0_155, %c512], %417 {strides = array<i32>} : memref<32x1792xbf16, #tpu.memory_space<vmem>>, vector<32x128xbf16>,
    %c0_156 = arith.constant 0 : index
    %c0_157 = arith.constant 0 : index
    %c0_158 = arith.constant 0 : index
    %419 = vector.load %arg3[%c0_156, %c0_157, %c0_158] : memref<10x32x128xf32, #tpu.memory_space<vmem>>, vector<1x32x128xf32>
    %420 = vector.shape_cast %419 : vector<1x32x128xf32> to vector<32x128xf32>
    %421 = vector.extract_strided_slice %3 {offsets = [0, 1024], sizes = [32, 128], strides = [1, 1]} : vector<32x4096xf32> to vector<32x128xf32>
    %422 = arith.mulf %420, %421 : vector<32x128xf32>
    %423 = vector.extract_strided_slice %3 {offsets = [0, 1152], sizes = [32, 128], strides = [1, 1]} : vector<32x4096xf32> to vector<32x128xf32>
    %424 = arith.mulf %420, %423 : vector<32x128xf32>
    %c1_159 = arith.constant 1 : index
    %c0_160 = arith.constant 0 : index
    %c0_161 = arith.constant 0 : index
    %425 = vector.load %arg3[%c1_159, %c0_160, %c0_161] : memref<10x32x128xf32, #tpu.memory_space<vmem>>, vector<1x32x128xf32>
    %426 = vector.shape_cast %425 : vector<1x32x128xf32> to vector<32x128xf32>
    %427 = vector.extract_strided_slice %3 {offsets = [0, 1152], sizes = [32, 128], strides = [1, 1]} : vector<32x4096xf32> to vector<32x128xf32>
    %428 = arith.mulf %426, %427 : vector<32x128xf32>
    %429 = arith.addf %422, %428 : vector<32x128xf32>
    %430 = vector.extract_strided_slice %3 {offsets = [0, 1280], sizes = [32, 128], strides = [1, 1]} : vector<32x4096xf32> to vector<32x128xf32>
    %431 = arith.mulf %426, %430 : vector<32x128xf32>
    %432 = arith.addf %424, %431 : vector<32x128xf32>
    %c2_162 = arith.constant 2 : index
    %c0_163 = arith.constant 0 : index
    %c0_164 = arith.constant 0 : index
    %433 = vector.load %arg3[%c2_162, %c0_163, %c0_164] : memref<10x32x128xf32, #tpu.memory_space<vmem>>, vector<1x32x128xf32>
    %434 = vector.shape_cast %433 : vector<1x32x128xf32> to vector<32x128xf32>
    %435 = vector.extract_strided_slice %3 {offsets = [0, 1280], sizes = [32, 128], strides = [1, 1]} : vector<32x4096xf32> to vector<32x128xf32>
    %436 = arith.mulf %434, %435 : vector<32x128xf32>
    %437 = arith.addf %429, %436 : vector<32x128xf32>
    %438 = vector.extract_strided_slice %3 {offsets = [0, 1408], sizes = [32, 128], strides = [1, 1]} : vector<32x4096xf32> to vector<32x128xf32>
    %439 = arith.mulf %434, %438 : vector<32x128xf32>
    %440 = arith.addf %432, %439 : vector<32x128xf32>
    %c3_165 = arith.constant 3 : index
    %c0_166 = arith.constant 0 : index
    %c0_167 = arith.constant 0 : index
    %441 = vector.load %arg3[%c3_165, %c0_166, %c0_167] : memref<10x32x128xf32, #tpu.memory_space<vmem>>, vector<1x32x128xf32>
    %442 = vector.shape_cast %441 : vector<1x32x128xf32> to vector<32x128xf32>
    %443 = vector.extract_strided_slice %3 {offsets = [0, 1408], sizes = [32, 128], strides = [1, 1]} : vector<32x4096xf32> to vector<32x128xf32>
    %444 = arith.mulf %442, %443 : vector<32x128xf32>
    %445 = arith.addf %437, %444 : vector<32x128xf32>
    %446 = vector.extract_strided_slice %3 {offsets = [0, 1536], sizes = [32, 128], strides = [1, 1]} : vector<32x4096xf32> to vector<32x128xf32>
    %447 = arith.mulf %442, %446 : vector<32x128xf32>
    %448 = arith.addf %440, %447 : vector<32x128xf32>
    %c4_168 = arith.constant 4 : index
    %c0_169 = arith.constant 0 : index
    %c0_170 = arith.constant 0 : index
    %449 = vector.load %arg3[%c4_168, %c0_169, %c0_170] : memref<10x32x128xf32, #tpu.memory_space<vmem>>, vector<1x32x128xf32>
    %450 = vector.shape_cast %449 : vector<1x32x128xf32> to vector<32x128xf32>
    %451 = vector.extract_strided_slice %3 {offsets = [0, 1536], sizes = [32, 128], strides = [1, 1]} : vector<32x4096xf32> to vector<32x128xf32>
    %452 = arith.mulf %450, %451 : vector<32x128xf32>
    %453 = arith.addf %445, %452 : vector<32x128xf32>
    %454 = vector.extract_strided_slice %3 {offsets = [0, 1664], sizes = [32, 128], strides = [1, 1]} : vector<32x4096xf32> to vector<32x128xf32>
    %455 = arith.mulf %450, %454 : vector<32x128xf32>
    %456 = arith.addf %448, %455 : vector<32x128xf32>
    %c5_171 = arith.constant 5 : index
    %c0_172 = arith.constant 0 : index
    %c0_173 = arith.constant 0 : index
    %457 = vector.load %arg3[%c5_171, %c0_172, %c0_173] : memref<10x32x128xf32, #tpu.memory_space<vmem>>, vector<1x32x128xf32>
    %458 = vector.shape_cast %457 : vector<1x32x128xf32> to vector<32x128xf32>
    %459 = vector.extract_strided_slice %3 {offsets = [0, 1664], sizes = [32, 128], strides = [1, 1]} : vector<32x4096xf32> to vector<32x128xf32>
    %460 = arith.mulf %458, %459 : vector<32x128xf32>
    %461 = arith.addf %453, %460 : vector<32x128xf32>
    %462 = vector.extract_strided_slice %3 {offsets = [0, 1792], sizes = [32, 128], strides = [1, 1]} : vector<32x4096xf32> to vector<32x128xf32>
    %463 = arith.mulf %458, %462 : vector<32x128xf32>
    %464 = arith.addf %456, %463 : vector<32x128xf32>
    %c6_174 = arith.constant 6 : index
    %c0_175 = arith.constant 0 : index
    %c0_176 = arith.constant 0 : index
    %465 = vector.load %arg3[%c6_174, %c0_175, %c0_176] : memref<10x32x128xf32, #tpu.memory_space<vmem>>, vector<1x32x128xf32>
    %466 = vector.shape_cast %465 : vector<1x32x128xf32> to vector<32x128xf32>
    %467 = vector.extract_strided_slice %3 {offsets = [0, 1792], sizes = [32, 128], strides = [1, 1]} : vector<32x4096xf32> to vector<32x128xf32>
    %468 = arith.mulf %466, %467 : vector<32x128xf32>
    %469 = arith.addf %461, %468 : vector<32x128xf32>
    %470 = vector.extract_strided_slice %3 {offsets = [0, 1920], sizes = [32, 128], strides = [1, 1]} : vector<32x4096xf32> to vector<32x128xf32>
    %471 = arith.mulf %466, %470 : vector<32x128xf32>
    %472 = arith.addf %464, %471 : vector<32x128xf32>
    %c7_177 = arith.constant 7 : index
    %c0_178 = arith.constant 0 : index
    %c0_179 = arith.constant 0 : index
    %473 = vector.load %arg3[%c7_177, %c0_178, %c0_179] : memref<10x32x128xf32, #tpu.memory_space<vmem>>, vector<1x32x128xf32>
    %474 = vector.shape_cast %473 : vector<1x32x128xf32> to vector<32x128xf32>
    %475 = vector.extract_strided_slice %3 {offsets = [0, 1920], sizes = [32, 128], strides = [1, 1]} : vector<32x4096xf32> to vector<32x128xf32>
    %476 = arith.mulf %474, %475 : vector<32x128xf32>
    %477 = arith.addf %469, %476 : vector<32x128xf32>
    %478 = vector.extract_strided_slice %3 {offsets = [0, 2048], sizes = [32, 128], strides = [1, 1]} : vector<32x4096xf32> to vector<32x128xf32>
    %479 = arith.mulf %474, %478 : vector<32x128xf32>
    %480 = arith.addf %472, %479 : vector<32x128xf32>
    %c8_180 = arith.constant 8 : index
    %c0_181 = arith.constant 0 : index
    %c0_182 = arith.constant 0 : index
    %481 = vector.load %arg3[%c8_180, %c0_181, %c0_182] : memref<10x32x128xf32, #tpu.memory_space<vmem>>, vector<1x32x128xf32>
    %482 = vector.shape_cast %481 : vector<1x32x128xf32> to vector<32x128xf32>
    %483 = vector.extract_strided_slice %3 {offsets = [0, 2048], sizes = [32, 128], strides = [1, 1]} : vector<32x4096xf32> to vector<32x128xf32>
    %484 = arith.mulf %482, %483 : vector<32x128xf32>
    %485 = arith.addf %477, %484 : vector<32x128xf32>
    %486 = vector.extract_strided_slice %3 {offsets = [0, 2176], sizes = [32, 128], strides = [1, 1]} : vector<32x4096xf32> to vector<32x128xf32>
    %487 = arith.mulf %482, %486 : vector<32x128xf32>
    %488 = arith.addf %480, %487 : vector<32x128xf32>
    %c9_183 = arith.constant 9 : index
    %c0_184 = arith.constant 0 : index
    %c0_185 = arith.constant 0 : index
    %489 = vector.load %arg3[%c9_183, %c0_184, %c0_185] : memref<10x32x128xf32, #tpu.memory_space<vmem>>, vector<1x32x128xf32>
    %490 = vector.shape_cast %489 : vector<1x32x128xf32> to vector<32x128xf32>
    %491 = vector.extract_strided_slice %3 {offsets = [0, 2176], sizes = [32, 128], strides = [1, 1]} : vector<32x4096xf32> to vector<32x128xf32>
    %492 = arith.mulf %490, %491 : vector<32x128xf32>
    %493 = arith.addf %485, %492 : vector<32x128xf32>
    %494 = vector.extract_strided_slice %3 {offsets = [0, 2304], sizes = [32, 128], strides = [1, 1]} : vector<32x4096xf32> to vector<32x128xf32>
    %495 = arith.mulf %490, %494 : vector<32x128xf32>
    %496 = arith.addf %488, %495 : vector<32x128xf32>
    %497 = arith.addf %493, %7 : vector<32x128xf32>
    %cst_186 = arith.constant 0.000000e+00 : f32
    %498 = vector.broadcast %cst_186 : f32 to vector<32x128xf32>
    %499 = arith.cmpf ogt, %497, %498 : vector<32x128xf32>
    %cst_187 = arith.constant 0.000000e+00 : f32
    %500 = vector.broadcast %cst_187 : f32 to vector<32x128xf32>
    %501 = arith.minimumf %497, %500 : vector<32x128xf32>
    %502 = math.exp %501 : vector<32x128xf32>
    %cst_188 = arith.constant 1.000000e+00 : f32
    %503 = vector.broadcast %cst_188 : f32 to vector<32x128xf32>
    %504 = arith.subf %502, %503 : vector<32x128xf32>
    %505 = arith.select %499, %497, %504 : vector<32x128xi1>, vector<32x128xf32>
    %506 = arith.addf %496, %7 : vector<32x128xf32>
    %cst_189 = arith.constant 0.000000e+00 : f32
    %507 = vector.broadcast %cst_189 : f32 to vector<32x128xf32>
    %508 = arith.cmpf ogt, %506, %507 : vector<32x128xf32>
    %cst_190 = arith.constant 0.000000e+00 : f32
    %509 = vector.broadcast %cst_190 : f32 to vector<32x128xf32>
    %510 = arith.minimumf %506, %509 : vector<32x128xf32>
    %511 = math.exp %510 : vector<32x128xf32>
    %cst_191 = arith.constant 1.000000e+00 : f32
    %512 = vector.broadcast %cst_191 : f32 to vector<32x128xf32>
    %513 = arith.subf %511, %512 : vector<32x128xf32>
    %514 = arith.select %508, %506, %513 : vector<32x128xi1>, vector<32x128xf32>
    %515 = arith.addf %505, %514 : vector<32x128xf32>
    %cst_192 = arith.constant 5.000000e-01 : f32
    %516 = vector.broadcast %cst_192 : f32 to vector<32x128xf32>
    %517 = arith.mulf %516, %515 : vector<32x128xf32>
    %518 = arith.truncf %517 : vector<32x128xf32> to vector<32x128xbf16>
    %c0_193 = arith.constant 0 : index
    %c640 = arith.constant 640 : index
    %519 = vector.load %arg9[%c0_193, %c640] : memref<32x1792xbf16, #tpu.memory_space<vmem>>, vector<32x128xbf16>
    tpu.vector_store %arg9[%c0_193, %c640], %518 {strides = array<i32>} : memref<32x1792xbf16, #tpu.memory_space<vmem>>, vector<32x128xbf16>,
    %c0_194 = arith.constant 0 : index
    %c0_195 = arith.constant 0 : index
    %c0_196 = arith.constant 0 : index
    %520 = vector.load %arg3[%c0_194, %c0_195, %c0_196] : memref<10x32x128xf32, #tpu.memory_space<vmem>>, vector<1x32x128xf32>
    %521 = vector.shape_cast %520 : vector<1x32x128xf32> to vector<32x128xf32>
    %522 = vector.extract_strided_slice %3 {offsets = [0, 1280], sizes = [32, 128], strides = [1, 1]} : vector<32x4096xf32> to vector<32x128xf32>
    %523 = arith.mulf %521, %522 : vector<32x128xf32>
    %524 = vector.extract_strided_slice %3 {offsets = [0, 1408], sizes = [32, 128], strides = [1, 1]} : vector<32x4096xf32> to vector<32x128xf32>
    %525 = arith.mulf %521, %524 : vector<32x128xf32>
    %c1_197 = arith.constant 1 : index
    %c0_198 = arith.constant 0 : index
    %c0_199 = arith.constant 0 : index
    %526 = vector.load %arg3[%c1_197, %c0_198, %c0_199] : memref<10x32x128xf32, #tpu.memory_space<vmem>>, vector<1x32x128xf32>
    %527 = vector.shape_cast %526 : vector<1x32x128xf32> to vector<32x128xf32>
    %528 = vector.extract_strided_slice %3 {offsets = [0, 1408], sizes = [32, 128], strides = [1, 1]} : vector<32x4096xf32> to vector<32x128xf32>
    %529 = arith.mulf %527, %528 : vector<32x128xf32>
    %530 = arith.addf %523, %529 : vector<32x128xf32>
    %531 = vector.extract_strided_slice %3 {offsets = [0, 1536], sizes = [32, 128], strides = [1, 1]} : vector<32x4096xf32> to vector<32x128xf32>
    %532 = arith.mulf %527, %531 : vector<32x128xf32>
    %533 = arith.addf %525, %532 : vector<32x128xf32>
    %c2_200 = arith.constant 2 : index
    %c0_201 = arith.constant 0 : index
    %c0_202 = arith.constant 0 : index
    %534 = vector.load %arg3[%c2_200, %c0_201, %c0_202] : memref<10x32x128xf32, #tpu.memory_space<vmem>>, vector<1x32x128xf32>
    %535 = vector.shape_cast %534 : vector<1x32x128xf32> to vector<32x128xf32>
    %536 = vector.extract_strided_slice %3 {offsets = [0, 1536], sizes = [32, 128], strides = [1, 1]} : vector<32x4096xf32> to vector<32x128xf32>
    %537 = arith.mulf %535, %536 : vector<32x128xf32>
    %538 = arith.addf %530, %537 : vector<32x128xf32>
    %539 = vector.extract_strided_slice %3 {offsets = [0, 1664], sizes = [32, 128], strides = [1, 1]} : vector<32x4096xf32> to vector<32x128xf32>
    %540 = arith.mulf %535, %539 : vector<32x128xf32>
    %541 = arith.addf %533, %540 : vector<32x128xf32>
    %c3_203 = arith.constant 3 : index
    %c0_204 = arith.constant 0 : index
    %c0_205 = arith.constant 0 : index
    %542 = vector.load %arg3[%c3_203, %c0_204, %c0_205] : memref<10x32x128xf32, #tpu.memory_space<vmem>>, vector<1x32x128xf32>
    %543 = vector.shape_cast %542 : vector<1x32x128xf32> to vector<32x128xf32>
    %544 = vector.extract_strided_slice %3 {offsets = [0, 1664], sizes = [32, 128], strides = [1, 1]} : vector<32x4096xf32> to vector<32x128xf32>
    %545 = arith.mulf %543, %544 : vector<32x128xf32>
    %546 = arith.addf %538, %545 : vector<32x128xf32>
    %547 = vector.extract_strided_slice %3 {offsets = [0, 1792], sizes = [32, 128], strides = [1, 1]} : vector<32x4096xf32> to vector<32x128xf32>
    %548 = arith.mulf %543, %547 : vector<32x128xf32>
    %549 = arith.addf %541, %548 : vector<32x128xf32>
    %c4_206 = arith.constant 4 : index
    %c0_207 = arith.constant 0 : index
    %c0_208 = arith.constant 0 : index
    %550 = vector.load %arg3[%c4_206, %c0_207, %c0_208] : memref<10x32x128xf32, #tpu.memory_space<vmem>>, vector<1x32x128xf32>
    %551 = vector.shape_cast %550 : vector<1x32x128xf32> to vector<32x128xf32>
    %552 = vector.extract_strided_slice %3 {offsets = [0, 1792], sizes = [32, 128], strides = [1, 1]} : vector<32x4096xf32> to vector<32x128xf32>
    %553 = arith.mulf %551, %552 : vector<32x128xf32>
    %554 = arith.addf %546, %553 : vector<32x128xf32>
    %555 = vector.extract_strided_slice %3 {offsets = [0, 1920], sizes = [32, 128], strides = [1, 1]} : vector<32x4096xf32> to vector<32x128xf32>
    %556 = arith.mulf %551, %555 : vector<32x128xf32>
    %557 = arith.addf %549, %556 : vector<32x128xf32>
    %c5_209 = arith.constant 5 : index
    %c0_210 = arith.constant 0 : index
    %c0_211 = arith.constant 0 : index
    %558 = vector.load %arg3[%c5_209, %c0_210, %c0_211] : memref<10x32x128xf32, #tpu.memory_space<vmem>>, vector<1x32x128xf32>
    %559 = vector.shape_cast %558 : vector<1x32x128xf32> to vector<32x128xf32>
    %560 = vector.extract_strided_slice %3 {offsets = [0, 1920], sizes = [32, 128], strides = [1, 1]} : vector<32x4096xf32> to vector<32x128xf32>
    %561 = arith.mulf %559, %560 : vector<32x128xf32>
    %562 = arith.addf %554, %561 : vector<32x128xf32>
    %563 = vector.extract_strided_slice %3 {offsets = [0, 2048], sizes = [32, 128], strides = [1, 1]} : vector<32x4096xf32> to vector<32x128xf32>
    %564 = arith.mulf %559, %563 : vector<32x128xf32>
    %565 = arith.addf %557, %564 : vector<32x128xf32>
    %c6_212 = arith.constant 6 : index
    %c0_213 = arith.constant 0 : index
    %c0_214 = arith.constant 0 : index
    %566 = vector.load %arg3[%c6_212, %c0_213, %c0_214] : memref<10x32x128xf32, #tpu.memory_space<vmem>>, vector<1x32x128xf32>
    %567 = vector.shape_cast %566 : vector<1x32x128xf32> to vector<32x128xf32>
    %568 = vector.extract_strided_slice %3 {offsets = [0, 2048], sizes = [32, 128], strides = [1, 1]} : vector<32x4096xf32> to vector<32x128xf32>
    %569 = arith.mulf %567, %568 : vector<32x128xf32>
    %570 = arith.addf %562, %569 : vector<32x128xf32>
    %571 = vector.extract_strided_slice %3 {offsets = [0, 2176], sizes = [32, 128], strides = [1, 1]} : vector<32x4096xf32> to vector<32x128xf32>
    %572 = arith.mulf %567, %571 : vector<32x128xf32>
    %573 = arith.addf %565, %572 : vector<32x128xf32>
    %c7_215 = arith.constant 7 : index
    %c0_216 = arith.constant 0 : index
    %c0_217 = arith.constant 0 : index
    %574 = vector.load %arg3[%c7_215, %c0_216, %c0_217] : memref<10x32x128xf32, #tpu.memory_space<vmem>>, vector<1x32x128xf32>
    %575 = vector.shape_cast %574 : vector<1x32x128xf32> to vector<32x128xf32>
    %576 = vector.extract_strided_slice %3 {offsets = [0, 2176], sizes = [32, 128], strides = [1, 1]} : vector<32x4096xf32> to vector<32x128xf32>
    %577 = arith.mulf %575, %576 : vector<32x128xf32>
    %578 = arith.addf %570, %577 : vector<32x128xf32>
    %579 = vector.extract_strided_slice %3 {offsets = [0, 2304], sizes = [32, 128], strides = [1, 1]} : vector<32x4096xf32> to vector<32x128xf32>
    %580 = arith.mulf %575, %579 : vector<32x128xf32>
    %581 = arith.addf %573, %580 : vector<32x128xf32>
    %c8_218 = arith.constant 8 : index
    %c0_219 = arith.constant 0 : index
    %c0_220 = arith.constant 0 : index
    %582 = vector.load %arg3[%c8_218, %c0_219, %c0_220] : memref<10x32x128xf32, #tpu.memory_space<vmem>>, vector<1x32x128xf32>
    %583 = vector.shape_cast %582 : vector<1x32x128xf32> to vector<32x128xf32>
    %584 = vector.extract_strided_slice %3 {offsets = [0, 2304], sizes = [32, 128], strides = [1, 1]} : vector<32x4096xf32> to vector<32x128xf32>
    %585 = arith.mulf %583, %584 : vector<32x128xf32>
    %586 = arith.addf %578, %585 : vector<32x128xf32>
    %587 = vector.extract_strided_slice %3 {offsets = [0, 2432], sizes = [32, 128], strides = [1, 1]} : vector<32x4096xf32> to vector<32x128xf32>
    %588 = arith.mulf %583, %587 : vector<32x128xf32>
    %589 = arith.addf %581, %588 : vector<32x128xf32>
    %c9_221 = arith.constant 9 : index
    %c0_222 = arith.constant 0 : index
    %c0_223 = arith.constant 0 : index
    %590 = vector.load %arg3[%c9_221, %c0_222, %c0_223] : memref<10x32x128xf32, #tpu.memory_space<vmem>>, vector<1x32x128xf32>
    %591 = vector.shape_cast %590 : vector<1x32x128xf32> to vector<32x128xf32>
    %592 = vector.extract_strided_slice %3 {offsets = [0, 2432], sizes = [32, 128], strides = [1, 1]} : vector<32x4096xf32> to vector<32x128xf32>
    %593 = arith.mulf %591, %592 : vector<32x128xf32>
    %594 = arith.addf %586, %593 : vector<32x128xf32>
    %595 = vector.extract_strided_slice %3 {offsets = [0, 2560], sizes = [32, 128], strides = [1, 1]} : vector<32x4096xf32> to vector<32x128xf32>
    %596 = arith.mulf %591, %595 : vector<32x128xf32>
    %597 = arith.addf %589, %596 : vector<32x128xf32>
    %598 = arith.addf %594, %7 : vector<32x128xf32>
    %cst_224 = arith.constant 0.000000e+00 : f32
    %599 = vector.broadcast %cst_224 : f32 to vector<32x128xf32>
    %600 = arith.cmpf ogt, %598, %599 : vector<32x128xf32>
    %cst_225 = arith.constant 0.000000e+00 : f32
    %601 = vector.broadcast %cst_225 : f32 to vector<32x128xf32>
    %602 = arith.minimumf %598, %601 : vector<32x128xf32>
    %603 = math.exp %602 : vector<32x128xf32>
    %cst_226 = arith.constant 1.000000e+00 : f32
    %604 = vector.broadcast %cst_226 : f32 to vector<32x128xf32>
    %605 = arith.subf %603, %604 : vector<32x128xf32>
    %606 = arith.select %600, %598, %605 : vector<32x128xi1>, vector<32x128xf32>
    %607 = arith.addf %597, %7 : vector<32x128xf32>
    %cst_227 = arith.constant 0.000000e+00 : f32
    %608 = vector.broadcast %cst_227 : f32 to vector<32x128xf32>
    %609 = arith.cmpf ogt, %607, %608 : vector<32x128xf32>
    %cst_228 = arith.constant 0.000000e+00 : f32
    %610 = vector.broadcast %cst_228 : f32 to vector<32x128xf32>
    %611 = arith.minimumf %607, %610 : vector<32x128xf32>
    %612 = math.exp %611 : vector<32x128xf32>
    %cst_229 = arith.constant 1.000000e+00 : f32
    %613 = vector.broadcast %cst_229 : f32 to vector<32x128xf32>
    %614 = arith.subf %612, %613 : vector<32x128xf32>
    %615 = arith.select %609, %607, %614 : vector<32x128xi1>, vector<32x128xf32>
    %616 = arith.addf %606, %615 : vector<32x128xf32>
    %cst_230 = arith.constant 5.000000e-01 : f32
    %617 = vector.broadcast %cst_230 : f32 to vector<32x128xf32>
    %618 = arith.mulf %617, %616 : vector<32x128xf32>
    %619 = arith.truncf %618 : vector<32x128xf32> to vector<32x128xbf16>
    %c0_231 = arith.constant 0 : index
    %c768 = arith.constant 768 : index
    %620 = vector.load %arg9[%c0_231, %c768] : memref<32x1792xbf16, #tpu.memory_space<vmem>>, vector<32x128xbf16>
    tpu.vector_store %arg9[%c0_231, %c768], %619 {strides = array<i32>} : memref<32x1792xbf16, #tpu.memory_space<vmem>>, vector<32x128xbf16>,
    %c0_232 = arith.constant 0 : index
    %c0_233 = arith.constant 0 : index
    %c0_234 = arith.constant 0 : index
    %621 = vector.load %arg3[%c0_232, %c0_233, %c0_234] : memref<10x32x128xf32, #tpu.memory_space<vmem>>, vector<1x32x128xf32>
    %622 = vector.shape_cast %621 : vector<1x32x128xf32> to vector<32x128xf32>
    %623 = vector.extract_strided_slice %3 {offsets = [0, 1536], sizes = [32, 128], strides = [1, 1]} : vector<32x4096xf32> to vector<32x128xf32>
    %624 = arith.mulf %622, %623 : vector<32x128xf32>
    %625 = vector.extract_strided_slice %3 {offsets = [0, 1664], sizes = [32, 128], strides = [1, 1]} : vector<32x4096xf32> to vector<32x128xf32>
    %626 = arith.mulf %622, %625 : vector<32x128xf32>
    %c1_235 = arith.constant 1 : index
    %c0_236 = arith.constant 0 : index
    %c0_237 = arith.constant 0 : index
    %627 = vector.load %arg3[%c1_235, %c0_236, %c0_237] : memref<10x32x128xf32, #tpu.memory_space<vmem>>, vector<1x32x128xf32>
    %628 = vector.shape_cast %627 : vector<1x32x128xf32> to vector<32x128xf32>
    %629 = vector.extract_strided_slice %3 {offsets = [0, 1664], sizes = [32, 128], strides = [1, 1]} : vector<32x4096xf32> to vector<32x128xf32>
    %630 = arith.mulf %628, %629 : vector<32x128xf32>
    %631 = arith.addf %624, %630 : vector<32x128xf32>
    %632 = vector.extract_strided_slice %3 {offsets = [0, 1792], sizes = [32, 128], strides = [1, 1]} : vector<32x4096xf32> to vector<32x128xf32>
    %633 = arith.mulf %628, %632 : vector<32x128xf32>
    %634 = arith.addf %626, %633 : vector<32x128xf32>
    %c2_238 = arith.constant 2 : index
    %c0_239 = arith.constant 0 : index
    %c0_240 = arith.constant 0 : index
    %635 = vector.load %arg3[%c2_238, %c0_239, %c0_240] : memref<10x32x128xf32, #tpu.memory_space<vmem>>, vector<1x32x128xf32>
    %636 = vector.shape_cast %635 : vector<1x32x128xf32> to vector<32x128xf32>
    %637 = vector.extract_strided_slice %3 {offsets = [0, 1792], sizes = [32, 128], strides = [1, 1]} : vector<32x4096xf32> to vector<32x128xf32>
    %638 = arith.mulf %636, %637 : vector<32x128xf32>
    %639 = arith.addf %631, %638 : vector<32x128xf32>
    %640 = vector.extract_strided_slice %3 {offsets = [0, 1920], sizes = [32, 128], strides = [1, 1]} : vector<32x4096xf32> to vector<32x128xf32>
    %641 = arith.mulf %636, %640 : vector<32x128xf32>
    %642 = arith.addf %634, %641 : vector<32x128xf32>
    %c3_241 = arith.constant 3 : index
    %c0_242 = arith.constant 0 : index
    %c0_243 = arith.constant 0 : index
    %643 = vector.load %arg3[%c3_241, %c0_242, %c0_243] : memref<10x32x128xf32, #tpu.memory_space<vmem>>, vector<1x32x128xf32>
    %644 = vector.shape_cast %643 : vector<1x32x128xf32> to vector<32x128xf32>
    %645 = vector.extract_strided_slice %3 {offsets = [0, 1920], sizes = [32, 128], strides = [1, 1]} : vector<32x4096xf32> to vector<32x128xf32>
    %646 = arith.mulf %644, %645 : vector<32x128xf32>
    %647 = arith.addf %639, %646 : vector<32x128xf32>
    %648 = vector.extract_strided_slice %3 {offsets = [0, 2048], sizes = [32, 128], strides = [1, 1]} : vector<32x4096xf32> to vector<32x128xf32>
    %649 = arith.mulf %644, %648 : vector<32x128xf32>
    %650 = arith.addf %642, %649 : vector<32x128xf32>
    %c4_244 = arith.constant 4 : index
    %c0_245 = arith.constant 0 : index
    %c0_246 = arith.constant 0 : index
    %651 = vector.load %arg3[%c4_244, %c0_245, %c0_246] : memref<10x32x128xf32, #tpu.memory_space<vmem>>, vector<1x32x128xf32>
    %652 = vector.shape_cast %651 : vector<1x32x128xf32> to vector<32x128xf32>
    %653 = vector.extract_strided_slice %3 {offsets = [0, 2048], sizes = [32, 128], strides = [1, 1]} : vector<32x4096xf32> to vector<32x128xf32>
    %654 = arith.mulf %652, %653 : vector<32x128xf32>
    %655 = arith.addf %647, %654 : vector<32x128xf32>
    %656 = vector.extract_strided_slice %3 {offsets = [0, 2176], sizes = [32, 128], strides = [1, 1]} : vector<32x4096xf32> to vector<32x128xf32>
    %657 = arith.mulf %652, %656 : vector<32x128xf32>
    %658 = arith.addf %650, %657 : vector<32x128xf32>
    %c5_247 = arith.constant 5 : index
    %c0_248 = arith.constant 0 : index
    %c0_249 = arith.constant 0 : index
    %659 = vector.load %arg3[%c5_247, %c0_248, %c0_249] : memref<10x32x128xf32, #tpu.memory_space<vmem>>, vector<1x32x128xf32>
    %660 = vector.shape_cast %659 : vector<1x32x128xf32> to vector<32x128xf32>
    %661 = vector.extract_strided_slice %3 {offsets = [0, 2176], sizes = [32, 128], strides = [1, 1]} : vector<32x4096xf32> to vector<32x128xf32>
    %662 = arith.mulf %660, %661 : vector<32x128xf32>
    %663 = arith.addf %655, %662 : vector<32x128xf32>
    %664 = vector.extract_strided_slice %3 {offsets = [0, 2304], sizes = [32, 128], strides = [1, 1]} : vector<32x4096xf32> to vector<32x128xf32>
    %665 = arith.mulf %660, %664 : vector<32x128xf32>
    %666 = arith.addf %658, %665 : vector<32x128xf32>
    %c6_250 = arith.constant 6 : index
    %c0_251 = arith.constant 0 : index
    %c0_252 = arith.constant 0 : index
    %667 = vector.load %arg3[%c6_250, %c0_251, %c0_252] : memref<10x32x128xf32, #tpu.memory_space<vmem>>, vector<1x32x128xf32>
    %668 = vector.shape_cast %667 : vector<1x32x128xf32> to vector<32x128xf32>
    %669 = vector.extract_strided_slice %3 {offsets = [0, 2304], sizes = [32, 128], strides = [1, 1]} : vector<32x4096xf32> to vector<32x128xf32>
    %670 = arith.mulf %668, %669 : vector<32x128xf32>
    %671 = arith.addf %663, %670 : vector<32x128xf32>
    %672 = vector.extract_strided_slice %3 {offsets = [0, 2432], sizes = [32, 128], strides = [1, 1]} : vector<32x4096xf32> to vector<32x128xf32>
    %673 = arith.mulf %668, %672 : vector<32x128xf32>
    %674 = arith.addf %666, %673 : vector<32x128xf32>
    %c7_253 = arith.constant 7 : index
    %c0_254 = arith.constant 0 : index
    %c0_255 = arith.constant 0 : index
    %675 = vector.load %arg3[%c7_253, %c0_254, %c0_255] : memref<10x32x128xf32, #tpu.memory_space<vmem>>, vector<1x32x128xf32>
    %676 = vector.shape_cast %675 : vector<1x32x128xf32> to vector<32x128xf32>
    %677 = vector.extract_strided_slice %3 {offsets = [0, 2432], sizes = [32, 128], strides = [1, 1]} : vector<32x4096xf32> to vector<32x128xf32>
    %678 = arith.mulf %676, %677 : vector<32x128xf32>
    %679 = arith.addf %671, %678 : vector<32x128xf32>
    %680 = vector.extract_strided_slice %3 {offsets = [0, 2560], sizes = [32, 128], strides = [1, 1]} : vector<32x4096xf32> to vector<32x128xf32>
    %681 = arith.mulf %676, %680 : vector<32x128xf32>
    %682 = arith.addf %674, %681 : vector<32x128xf32>
    %c8_256 = arith.constant 8 : index
    %c0_257 = arith.constant 0 : index
    %c0_258 = arith.constant 0 : index
    %683 = vector.load %arg3[%c8_256, %c0_257, %c0_258] : memref<10x32x128xf32, #tpu.memory_space<vmem>>, vector<1x32x128xf32>
    %684 = vector.shape_cast %683 : vector<1x32x128xf32> to vector<32x128xf32>
    %685 = vector.extract_strided_slice %3 {offsets = [0, 2560], sizes = [32, 128], strides = [1, 1]} : vector<32x4096xf32> to vector<32x128xf32>
    %686 = arith.mulf %684, %685 : vector<32x128xf32>
    %687 = arith.addf %679, %686 : vector<32x128xf32>
    %688 = vector.extract_strided_slice %3 {offsets = [0, 2688], sizes = [32, 128], strides = [1, 1]} : vector<32x4096xf32> to vector<32x128xf32>
    %689 = arith.mulf %684, %688 : vector<32x128xf32>
    %690 = arith.addf %682, %689 : vector<32x128xf32>
    %c9_259 = arith.constant 9 : index
    %c0_260 = arith.constant 0 : index
    %c0_261 = arith.constant 0 : index
    %691 = vector.load %arg3[%c9_259, %c0_260, %c0_261] : memref<10x32x128xf32, #tpu.memory_space<vmem>>, vector<1x32x128xf32>
    %692 = vector.shape_cast %691 : vector<1x32x128xf32> to vector<32x128xf32>
    %693 = vector.extract_strided_slice %3 {offsets = [0, 2688], sizes = [32, 128], strides = [1, 1]} : vector<32x4096xf32> to vector<32x128xf32>
    %694 = arith.mulf %692, %693 : vector<32x128xf32>
    %695 = arith.addf %687, %694 : vector<32x128xf32>
    %696 = vector.extract_strided_slice %3 {offsets = [0, 2816], sizes = [32, 128], strides = [1, 1]} : vector<32x4096xf32> to vector<32x128xf32>
    %697 = arith.mulf %692, %696 : vector<32x128xf32>
    %698 = arith.addf %690, %697 : vector<32x128xf32>
    %699 = arith.addf %695, %7 : vector<32x128xf32>
    %cst_262 = arith.constant 0.000000e+00 : f32
    %700 = vector.broadcast %cst_262 : f32 to vector<32x128xf32>
    %701 = arith.cmpf ogt, %699, %700 : vector<32x128xf32>
    %cst_263 = arith.constant 0.000000e+00 : f32
    %702 = vector.broadcast %cst_263 : f32 to vector<32x128xf32>
    %703 = arith.minimumf %699, %702 : vector<32x128xf32>
    %704 = math.exp %703 : vector<32x128xf32>
    %cst_264 = arith.constant 1.000000e+00 : f32
    %705 = vector.broadcast %cst_264 : f32 to vector<32x128xf32>
    %706 = arith.subf %704, %705 : vector<32x128xf32>
    %707 = arith.select %701, %699, %706 : vector<32x128xi1>, vector<32x128xf32>
    %708 = arith.addf %698, %7 : vector<32x128xf32>
    %cst_265 = arith.constant 0.000000e+00 : f32
    %709 = vector.broadcast %cst_265 : f32 to vector<32x128xf32>
    %710 = arith.cmpf ogt, %708, %709 : vector<32x128xf32>
    %cst_266 = arith.constant 0.000000e+00 : f32
    %711 = vector.broadcast %cst_266 : f32 to vector<32x128xf32>
    %712 = arith.minimumf %708, %711 : vector<32x128xf32>
    %713 = math.exp %712 : vector<32x128xf32>
    %cst_267 = arith.constant 1.000000e+00 : f32
    %714 = vector.broadcast %cst_267 : f32 to vector<32x128xf32>
    %715 = arith.subf %713, %714 : vector<32x128xf32>
    %716 = arith.select %710, %708, %715 : vector<32x128xi1>, vector<32x128xf32>
    %717 = arith.addf %707, %716 : vector<32x128xf32>
    %cst_268 = arith.constant 5.000000e-01 : f32
    %718 = vector.broadcast %cst_268 : f32 to vector<32x128xf32>
    %719 = arith.mulf %718, %717 : vector<32x128xf32>
    %720 = arith.truncf %719 : vector<32x128xf32> to vector<32x128xbf16>
    %c0_269 = arith.constant 0 : index
    %c896 = arith.constant 896 : index
    %721 = vector.load %arg9[%c0_269, %c896] : memref<32x1792xbf16, #tpu.memory_space<vmem>>, vector<32x128xbf16>
    tpu.vector_store %arg9[%c0_269, %c896], %720 {strides = array<i32>} : memref<32x1792xbf16, #tpu.memory_space<vmem>>, vector<32x128xbf16>,
    %c0_270 = arith.constant 0 : index
    %c0_271 = arith.constant 0 : index
    %c0_272 = arith.constant 0 : index
    %722 = vector.load %arg3[%c0_270, %c0_271, %c0_272] : memref<10x32x128xf32, #tpu.memory_space<vmem>>, vector<1x32x128xf32>
    %723 = vector.shape_cast %722 : vector<1x32x128xf32> to vector<32x128xf32>
    %724 = vector.extract_strided_slice %3 {offsets = [0, 1792], sizes = [32, 128], strides = [1, 1]} : vector<32x4096xf32> to vector<32x128xf32>
    %725 = arith.mulf %723, %724 : vector<32x128xf32>
    %726 = vector.extract_strided_slice %3 {offsets = [0, 1920], sizes = [32, 128], strides = [1, 1]} : vector<32x4096xf32> to vector<32x128xf32>
    %727 = arith.mulf %723, %726 : vector<32x128xf32>
    %c1_273 = arith.constant 1 : index
    %c0_274 = arith.constant 0 : index
    %c0_275 = arith.constant 0 : index
    %728 = vector.load %arg3[%c1_273, %c0_274, %c0_275] : memref<10x32x128xf32, #tpu.memory_space<vmem>>, vector<1x32x128xf32>
    %729 = vector.shape_cast %728 : vector<1x32x128xf32> to vector<32x128xf32>
    %730 = vector.extract_strided_slice %3 {offsets = [0, 1920], sizes = [32, 128], strides = [1, 1]} : vector<32x4096xf32> to vector<32x128xf32>
    %731 = arith.mulf %729, %730 : vector<32x128xf32>
    %732 = arith.addf %725, %731 : vector<32x128xf32>
    %733 = vector.extract_strided_slice %3 {offsets = [0, 2048], sizes = [32, 128], strides = [1, 1]} : vector<32x4096xf32> to vector<32x128xf32>
    %734 = arith.mulf %729, %733 : vector<32x128xf32>
    %735 = arith.addf %727, %734 : vector<32x128xf32>
    %c2_276 = arith.constant 2 : index
    %c0_277 = arith.constant 0 : index
    %c0_278 = arith.constant 0 : index
    %736 = vector.load %arg3[%c2_276, %c0_277, %c0_278] : memref<10x32x128xf32, #tpu.memory_space<vmem>>, vector<1x32x128xf32>
    %737 = vector.shape_cast %736 : vector<1x32x128xf32> to vector<32x128xf32>
    %738 = vector.extract_strided_slice %3 {offsets = [0, 2048], sizes = [32, 128], strides = [1, 1]} : vector<32x4096xf32> to vector<32x128xf32>
    %739 = arith.mulf %737, %738 : vector<32x128xf32>
    %740 = arith.addf %732, %739 : vector<32x128xf32>
    %741 = vector.extract_strided_slice %3 {offsets = [0, 2176], sizes = [32, 128], strides = [1, 1]} : vector<32x4096xf32> to vector<32x128xf32>
    %742 = arith.mulf %737, %741 : vector<32x128xf32>
    %743 = arith.addf %735, %742 : vector<32x128xf32>
    %c3_279 = arith.constant 3 : index
    %c0_280 = arith.constant 0 : index
    %c0_281 = arith.constant 0 : index
    %744 = vector.load %arg3[%c3_279, %c0_280, %c0_281] : memref<10x32x128xf32, #tpu.memory_space<vmem>>, vector<1x32x128xf32>
    %745 = vector.shape_cast %744 : vector<1x32x128xf32> to vector<32x128xf32>
    %746 = vector.extract_strided_slice %3 {offsets = [0, 2176], sizes = [32, 128], strides = [1, 1]} : vector<32x4096xf32> to vector<32x128xf32>
    %747 = arith.mulf %745, %746 : vector<32x128xf32>
    %748 = arith.addf %740, %747 : vector<32x128xf32>
    %749 = vector.extract_strided_slice %3 {offsets = [0, 2304], sizes = [32, 128], strides = [1, 1]} : vector<32x4096xf32> to vector<32x128xf32>
    %750 = arith.mulf %745, %749 : vector<32x128xf32>
    %751 = arith.addf %743, %750 : vector<32x128xf32>
    %c4_282 = arith.constant 4 : index
    %c0_283 = arith.constant 0 : index
    %c0_284 = arith.constant 0 : index
    %752 = vector.load %arg3[%c4_282, %c0_283, %c0_284] : memref<10x32x128xf32, #tpu.memory_space<vmem>>, vector<1x32x128xf32>
    %753 = vector.shape_cast %752 : vector<1x32x128xf32> to vector<32x128xf32>
    %754 = vector.extract_strided_slice %3 {offsets = [0, 2304], sizes = [32, 128], strides = [1, 1]} : vector<32x4096xf32> to vector<32x128xf32>
    %755 = arith.mulf %753, %754 : vector<32x128xf32>
    %756 = arith.addf %748, %755 : vector<32x128xf32>
    %757 = vector.extract_strided_slice %3 {offsets = [0, 2432], sizes = [32, 128], strides = [1, 1]} : vector<32x4096xf32> to vector<32x128xf32>
    %758 = arith.mulf %753, %757 : vector<32x128xf32>
    %759 = arith.addf %751, %758 : vector<32x128xf32>
    %c5_285 = arith.constant 5 : index
    %c0_286 = arith.constant 0 : index
    %c0_287 = arith.constant 0 : index
    %760 = vector.load %arg3[%c5_285, %c0_286, %c0_287] : memref<10x32x128xf32, #tpu.memory_space<vmem>>, vector<1x32x128xf32>
    %761 = vector.shape_cast %760 : vector<1x32x128xf32> to vector<32x128xf32>
    %762 = vector.extract_strided_slice %3 {offsets = [0, 2432], sizes = [32, 128], strides = [1, 1]} : vector<32x4096xf32> to vector<32x128xf32>
    %763 = arith.mulf %761, %762 : vector<32x128xf32>
    %764 = arith.addf %756, %763 : vector<32x128xf32>
    %765 = vector.extract_strided_slice %3 {offsets = [0, 2560], sizes = [32, 128], strides = [1, 1]} : vector<32x4096xf32> to vector<32x128xf32>
    %766 = arith.mulf %761, %765 : vector<32x128xf32>
    %767 = arith.addf %759, %766 : vector<32x128xf32>
    %c6_288 = arith.constant 6 : index
    %c0_289 = arith.constant 0 : index
    %c0_290 = arith.constant 0 : index
    %768 = vector.load %arg3[%c6_288, %c0_289, %c0_290] : memref<10x32x128xf32, #tpu.memory_space<vmem>>, vector<1x32x128xf32>
    %769 = vector.shape_cast %768 : vector<1x32x128xf32> to vector<32x128xf32>
    %770 = vector.extract_strided_slice %3 {offsets = [0, 2560], sizes = [32, 128], strides = [1, 1]} : vector<32x4096xf32> to vector<32x128xf32>
    %771 = arith.mulf %769, %770 : vector<32x128xf32>
    %772 = arith.addf %764, %771 : vector<32x128xf32>
    %773 = vector.extract_strided_slice %3 {offsets = [0, 2688], sizes = [32, 128], strides = [1, 1]} : vector<32x4096xf32> to vector<32x128xf32>
    %774 = arith.mulf %769, %773 : vector<32x128xf32>
    %775 = arith.addf %767, %774 : vector<32x128xf32>
    %c7_291 = arith.constant 7 : index
    %c0_292 = arith.constant 0 : index
    %c0_293 = arith.constant 0 : index
    %776 = vector.load %arg3[%c7_291, %c0_292, %c0_293] : memref<10x32x128xf32, #tpu.memory_space<vmem>>, vector<1x32x128xf32>
    %777 = vector.shape_cast %776 : vector<1x32x128xf32> to vector<32x128xf32>
    %778 = vector.extract_strided_slice %3 {offsets = [0, 2688], sizes = [32, 128], strides = [1, 1]} : vector<32x4096xf32> to vector<32x128xf32>
    %779 = arith.mulf %777, %778 : vector<32x128xf32>
    %780 = arith.addf %772, %779 : vector<32x128xf32>
    %781 = vector.extract_strided_slice %3 {offsets = [0, 2816], sizes = [32, 128], strides = [1, 1]} : vector<32x4096xf32> to vector<32x128xf32>
    %782 = arith.mulf %777, %781 : vector<32x128xf32>
    %783 = arith.addf %775, %782 : vector<32x128xf32>
    %c8_294 = arith.constant 8 : index
    %c0_295 = arith.constant 0 : index
    %c0_296 = arith.constant 0 : index
    %784 = vector.load %arg3[%c8_294, %c0_295, %c0_296] : memref<10x32x128xf32, #tpu.memory_space<vmem>>, vector<1x32x128xf32>
    %785 = vector.shape_cast %784 : vector<1x32x128xf32> to vector<32x128xf32>
    %786 = vector.extract_strided_slice %3 {offsets = [0, 2816], sizes = [32, 128], strides = [1, 1]} : vector<32x4096xf32> to vector<32x128xf32>
    %787 = arith.mulf %785, %786 : vector<32x128xf32>
    %788 = arith.addf %780, %787 : vector<32x128xf32>
    %789 = vector.extract_strided_slice %3 {offsets = [0, 2944], sizes = [32, 128], strides = [1, 1]} : vector<32x4096xf32> to vector<32x128xf32>
    %790 = arith.mulf %785, %789 : vector<32x128xf32>
    %791 = arith.addf %783, %790 : vector<32x128xf32>
    %c9_297 = arith.constant 9 : index
    %c0_298 = arith.constant 0 : index
    %c0_299 = arith.constant 0 : index
    %792 = vector.load %arg3[%c9_297, %c0_298, %c0_299] : memref<10x32x128xf32, #tpu.memory_space<vmem>>, vector<1x32x128xf32>
    %793 = vector.shape_cast %792 : vector<1x32x128xf32> to vector<32x128xf32>
    %794 = vector.extract_strided_slice %3 {offsets = [0, 2944], sizes = [32, 128], strides = [1, 1]} : vector<32x4096xf32> to vector<32x128xf32>
    %795 = arith.mulf %793, %794 : vector<32x128xf32>
    %796 = arith.addf %788, %795 : vector<32x128xf32>
    %797 = vector.extract_strided_slice %3 {offsets = [0, 3072], sizes = [32, 128], strides = [1, 1]} : vector<32x4096xf32> to vector<32x128xf32>
    %798 = arith.mulf %793, %797 : vector<32x128xf32>
    %799 = arith.addf %791, %798 : vector<32x128xf32>
    %800 = arith.addf %796, %7 : vector<32x128xf32>
    %cst_300 = arith.constant 0.000000e+00 : f32
    %801 = vector.broadcast %cst_300 : f32 to vector<32x128xf32>
    %802 = arith.cmpf ogt, %800, %801 : vector<32x128xf32>
    %cst_301 = arith.constant 0.000000e+00 : f32
    %803 = vector.broadcast %cst_301 : f32 to vector<32x128xf32>
    %804 = arith.minimumf %800, %803 : vector<32x128xf32>
    %805 = math.exp %804 : vector<32x128xf32>
    %cst_302 = arith.constant 1.000000e+00 : f32
    %806 = vector.broadcast %cst_302 : f32 to vector<32x128xf32>
    %807 = arith.subf %805, %806 : vector<32x128xf32>
    %808 = arith.select %802, %800, %807 : vector<32x128xi1>, vector<32x128xf32>
    %809 = arith.addf %799, %7 : vector<32x128xf32>
    %cst_303 = arith.constant 0.000000e+00 : f32
    %810 = vector.broadcast %cst_303 : f32 to vector<32x128xf32>
    %811 = arith.cmpf ogt, %809, %810 : vector<32x128xf32>
    %cst_304 = arith.constant 0.000000e+00 : f32
    %812 = vector.broadcast %cst_304 : f32 to vector<32x128xf32>
    %813 = arith.minimumf %809, %812 : vector<32x128xf32>
    %814 = math.exp %813 : vector<32x128xf32>
    %cst_305 = arith.constant 1.000000e+00 : f32
    %815 = vector.broadcast %cst_305 : f32 to vector<32x128xf32>
    %816 = arith.subf %814, %815 : vector<32x128xf32>
    %817 = arith.select %811, %809, %816 : vector<32x128xi1>, vector<32x128xf32>
    %818 = arith.addf %808, %817 : vector<32x128xf32>
    %cst_306 = arith.constant 5.000000e-01 : f32
    %819 = vector.broadcast %cst_306 : f32 to vector<32x128xf32>
    %820 = arith.mulf %819, %818 : vector<32x128xf32>
    %821 = arith.truncf %820 : vector<32x128xf32> to vector<32x128xbf16>
    %c0_307 = arith.constant 0 : index
    %c1024 = arith.constant 1024 : index
    %822 = vector.load %arg9[%c0_307, %c1024] : memref<32x1792xbf16, #tpu.memory_space<vmem>>, vector<32x128xbf16>
    tpu.vector_store %arg9[%c0_307, %c1024], %821 {strides = array<i32>} : memref<32x1792xbf16, #tpu.memory_space<vmem>>, vector<32x128xbf16>,
    %c0_308 = arith.constant 0 : index
    %c0_309 = arith.constant 0 : index
    %c0_310 = arith.constant 0 : index
    %823 = vector.load %arg3[%c0_308, %c0_309, %c0_310] : memref<10x32x128xf32, #tpu.memory_space<vmem>>, vector<1x32x128xf32>
    %824 = vector.shape_cast %823 : vector<1x32x128xf32> to vector<32x128xf32>
    %825 = vector.extract_strided_slice %3 {offsets = [0, 2048], sizes = [32, 128], strides = [1, 1]} : vector<32x4096xf32> to vector<32x128xf32>
    %826 = arith.mulf %824, %825 : vector<32x128xf32>
    %827 = vector.extract_strided_slice %3 {offsets = [0, 2176], sizes = [32, 128], strides = [1, 1]} : vector<32x4096xf32> to vector<32x128xf32>
    %828 = arith.mulf %824, %827 : vector<32x128xf32>
    %c1_311 = arith.constant 1 : index
    %c0_312 = arith.constant 0 : index
    %c0_313 = arith.constant 0 : index
    %829 = vector.load %arg3[%c1_311, %c0_312, %c0_313] : memref<10x32x128xf32, #tpu.memory_space<vmem>>, vector<1x32x128xf32>
    %830 = vector.shape_cast %829 : vector<1x32x128xf32> to vector<32x128xf32>
    %831 = vector.extract_strided_slice %3 {offsets = [0, 2176], sizes = [32, 128], strides = [1, 1]} : vector<32x4096xf32> to vector<32x128xf32>
    %832 = arith.mulf %830, %831 : vector<32x128xf32>
    %833 = arith.addf %826, %832 : vector<32x128xf32>
    %834 = vector.extract_strided_slice %3 {offsets = [0, 2304], sizes = [32, 128], strides = [1, 1]} : vector<32x4096xf32> to vector<32x128xf32>
    %835 = arith.mulf %830, %834 : vector<32x128xf32>
    %836 = arith.addf %828, %835 : vector<32x128xf32>
    %c2_314 = arith.constant 2 : index
    %c0_315 = arith.constant 0 : index
    %c0_316 = arith.constant 0 : index
    %837 = vector.load %arg3[%c2_314, %c0_315, %c0_316] : memref<10x32x128xf32, #tpu.memory_space<vmem>>, vector<1x32x128xf32>
    %838 = vector.shape_cast %837 : vector<1x32x128xf32> to vector<32x128xf32>
    %839 = vector.extract_strided_slice %3 {offsets = [0, 2304], sizes = [32, 128], strides = [1, 1]} : vector<32x4096xf32> to vector<32x128xf32>
    %840 = arith.mulf %838, %839 : vector<32x128xf32>
    %841 = arith.addf %833, %840 : vector<32x128xf32>
    %842 = vector.extract_strided_slice %3 {offsets = [0, 2432], sizes = [32, 128], strides = [1, 1]} : vector<32x4096xf32> to vector<32x128xf32>
    %843 = arith.mulf %838, %842 : vector<32x128xf32>
    %844 = arith.addf %836, %843 : vector<32x128xf32>
    %c3_317 = arith.constant 3 : index
    %c0_318 = arith.constant 0 : index
    %c0_319 = arith.constant 0 : index
    %845 = vector.load %arg3[%c3_317, %c0_318, %c0_319] : memref<10x32x128xf32, #tpu.memory_space<vmem>>, vector<1x32x128xf32>
    %846 = vector.shape_cast %845 : vector<1x32x128xf32> to vector<32x128xf32>
    %847 = vector.extract_strided_slice %3 {offsets = [0, 2432], sizes = [32, 128], strides = [1, 1]} : vector<32x4096xf32> to vector<32x128xf32>
    %848 = arith.mulf %846, %847 : vector<32x128xf32>
    %849 = arith.addf %841, %848 : vector<32x128xf32>
    %850 = vector.extract_strided_slice %3 {offsets = [0, 2560], sizes = [32, 128], strides = [1, 1]} : vector<32x4096xf32> to vector<32x128xf32>
    %851 = arith.mulf %846, %850 : vector<32x128xf32>
    %852 = arith.addf %844, %851 : vector<32x128xf32>
    %c4_320 = arith.constant 4 : index
    %c0_321 = arith.constant 0 : index
    %c0_322 = arith.constant 0 : index
    %853 = vector.load %arg3[%c4_320, %c0_321, %c0_322] : memref<10x32x128xf32, #tpu.memory_space<vmem>>, vector<1x32x128xf32>
    %854 = vector.shape_cast %853 : vector<1x32x128xf32> to vector<32x128xf32>
    %855 = vector.extract_strided_slice %3 {offsets = [0, 2560], sizes = [32, 128], strides = [1, 1]} : vector<32x4096xf32> to vector<32x128xf32>
    %856 = arith.mulf %854, %855 : vector<32x128xf32>
    %857 = arith.addf %849, %856 : vector<32x128xf32>
    %858 = vector.extract_strided_slice %3 {offsets = [0, 2688], sizes = [32, 128], strides = [1, 1]} : vector<32x4096xf32> to vector<32x128xf32>
    %859 = arith.mulf %854, %858 : vector<32x128xf32>
    %860 = arith.addf %852, %859 : vector<32x128xf32>
    %c5_323 = arith.constant 5 : index
    %c0_324 = arith.constant 0 : index
    %c0_325 = arith.constant 0 : index
    %861 = vector.load %arg3[%c5_323, %c0_324, %c0_325] : memref<10x32x128xf32, #tpu.memory_space<vmem>>, vector<1x32x128xf32>
    %862 = vector.shape_cast %861 : vector<1x32x128xf32> to vector<32x128xf32>
    %863 = vector.extract_strided_slice %3 {offsets = [0, 2688], sizes = [32, 128], strides = [1, 1]} : vector<32x4096xf32> to vector<32x128xf32>
    %864 = arith.mulf %862, %863 : vector<32x128xf32>
    %865 = arith.addf %857, %864 : vector<32x128xf32>
    %866 = vector.extract_strided_slice %3 {offsets = [0, 2816], sizes = [32, 128], strides = [1, 1]} : vector<32x4096xf32> to vector<32x128xf32>
    %867 = arith.mulf %862, %866 : vector<32x128xf32>
    %868 = arith.addf %860, %867 : vector<32x128xf32>
    %c6_326 = arith.constant 6 : index
    %c0_327 = arith.constant 0 : index
    %c0_328 = arith.constant 0 : index
    %869 = vector.load %arg3[%c6_326, %c0_327, %c0_328] : memref<10x32x128xf32, #tpu.memory_space<vmem>>, vector<1x32x128xf32>
    %870 = vector.shape_cast %869 : vector<1x32x128xf32> to vector<32x128xf32>
    %871 = vector.extract_strided_slice %3 {offsets = [0, 2816], sizes = [32, 128], strides = [1, 1]} : vector<32x4096xf32> to vector<32x128xf32>
    %872 = arith.mulf %870, %871 : vector<32x128xf32>
    %873 = arith.addf %865, %872 : vector<32x128xf32>
    %874 = vector.extract_strided_slice %3 {offsets = [0, 2944], sizes = [32, 128], strides = [1, 1]} : vector<32x4096xf32> to vector<32x128xf32>
    %875 = arith.mulf %870, %874 : vector<32x128xf32>
    %876 = arith.addf %868, %875 : vector<32x128xf32>
    %c7_329 = arith.constant 7 : index
    %c0_330 = arith.constant 0 : index
    %c0_331 = arith.constant 0 : index
    %877 = vector.load %arg3[%c7_329, %c0_330, %c0_331] : memref<10x32x128xf32, #tpu.memory_space<vmem>>, vector<1x32x128xf32>
    %878 = vector.shape_cast %877 : vector<1x32x128xf32> to vector<32x128xf32>
    %879 = vector.extract_strided_slice %3 {offsets = [0, 2944], sizes = [32, 128], strides = [1, 1]} : vector<32x4096xf32> to vector<32x128xf32>
    %880 = arith.mulf %878, %879 : vector<32x128xf32>
    %881 = arith.addf %873, %880 : vector<32x128xf32>
    %882 = vector.extract_strided_slice %3 {offsets = [0, 3072], sizes = [32, 128], strides = [1, 1]} : vector<32x4096xf32> to vector<32x128xf32>
    %883 = arith.mulf %878, %882 : vector<32x128xf32>
    %884 = arith.addf %876, %883 : vector<32x128xf32>
    %c8_332 = arith.constant 8 : index
    %c0_333 = arith.constant 0 : index
    %c0_334 = arith.constant 0 : index
    %885 = vector.load %arg3[%c8_332, %c0_333, %c0_334] : memref<10x32x128xf32, #tpu.memory_space<vmem>>, vector<1x32x128xf32>
    %886 = vector.shape_cast %885 : vector<1x32x128xf32> to vector<32x128xf32>
    %887 = vector.extract_strided_slice %3 {offsets = [0, 3072], sizes = [32, 128], strides = [1, 1]} : vector<32x4096xf32> to vector<32x128xf32>
    %888 = arith.mulf %886, %887 : vector<32x128xf32>
    %889 = arith.addf %881, %888 : vector<32x128xf32>
    %890 = vector.extract_strided_slice %3 {offsets = [0, 3200], sizes = [32, 128], strides = [1, 1]} : vector<32x4096xf32> to vector<32x128xf32>
    %891 = arith.mulf %886, %890 : vector<32x128xf32>
    %892 = arith.addf %884, %891 : vector<32x128xf32>
    %c9_335 = arith.constant 9 : index
    %c0_336 = arith.constant 0 : index
    %c0_337 = arith.constant 0 : index
    %893 = vector.load %arg3[%c9_335, %c0_336, %c0_337] : memref<10x32x128xf32, #tpu.memory_space<vmem>>, vector<1x32x128xf32>
    %894 = vector.shape_cast %893 : vector<1x32x128xf32> to vector<32x128xf32>
    %895 = vector.extract_strided_slice %3 {offsets = [0, 3200], sizes = [32, 128], strides = [1, 1]} : vector<32x4096xf32> to vector<32x128xf32>
    %896 = arith.mulf %894, %895 : vector<32x128xf32>
    %897 = arith.addf %889, %896 : vector<32x128xf32>
    %898 = vector.extract_strided_slice %3 {offsets = [0, 3328], sizes = [32, 128], strides = [1, 1]} : vector<32x4096xf32> to vector<32x128xf32>
    %899 = arith.mulf %894, %898 : vector<32x128xf32>
    %900 = arith.addf %892, %899 : vector<32x128xf32>
    %901 = arith.addf %897, %7 : vector<32x128xf32>
    %cst_338 = arith.constant 0.000000e+00 : f32
    %902 = vector.broadcast %cst_338 : f32 to vector<32x128xf32>
    %903 = arith.cmpf ogt, %901, %902 : vector<32x128xf32>
    %cst_339 = arith.constant 0.000000e+00 : f32
    %904 = vector.broadcast %cst_339 : f32 to vector<32x128xf32>
    %905 = arith.minimumf %901, %904 : vector<32x128xf32>
    %906 = math.exp %905 : vector<32x128xf32>
    %cst_340 = arith.constant 1.000000e+00 : f32
    %907 = vector.broadcast %cst_340 : f32 to vector<32x128xf32>
    %908 = arith.subf %906, %907 : vector<32x128xf32>
    %909 = arith.select %903, %901, %908 : vector<32x128xi1>, vector<32x128xf32>
    %910 = arith.addf %900, %7 : vector<32x128xf32>
    %cst_341 = arith.constant 0.000000e+00 : f32
    %911 = vector.broadcast %cst_341 : f32 to vector<32x128xf32>
    %912 = arith.cmpf ogt, %910, %911 : vector<32x128xf32>
    %cst_342 = arith.constant 0.000000e+00 : f32
    %913 = vector.broadcast %cst_342 : f32 to vector<32x128xf32>
    %914 = arith.minimumf %910, %913 : vector<32x128xf32>
    %915 = math.exp %914 : vector<32x128xf32>
    %cst_343 = arith.constant 1.000000e+00 : f32
    %916 = vector.broadcast %cst_343 : f32 to vector<32x128xf32>
    %917 = arith.subf %915, %916 : vector<32x128xf32>
    %918 = arith.select %912, %910, %917 : vector<32x128xi1>, vector<32x128xf32>
    %919 = arith.addf %909, %918 : vector<32x128xf32>
    %cst_344 = arith.constant 5.000000e-01 : f32
    %920 = vector.broadcast %cst_344 : f32 to vector<32x128xf32>
    %921 = arith.mulf %920, %919 : vector<32x128xf32>
    %922 = arith.truncf %921 : vector<32x128xf32> to vector<32x128xbf16>
    %c0_345 = arith.constant 0 : index
    %c1152 = arith.constant 1152 : index
    %923 = vector.load %arg9[%c0_345, %c1152] : memref<32x1792xbf16, #tpu.memory_space<vmem>>, vector<32x128xbf16>
    tpu.vector_store %arg9[%c0_345, %c1152], %922 {strides = array<i32>} : memref<32x1792xbf16, #tpu.memory_space<vmem>>, vector<32x128xbf16>,
    %c0_346 = arith.constant 0 : index
    %c0_347 = arith.constant 0 : index
    %c0_348 = arith.constant 0 : index
    %924 = vector.load %arg3[%c0_346, %c0_347, %c0_348] : memref<10x32x128xf32, #tpu.memory_space<vmem>>, vector<1x32x128xf32>
    %925 = vector.shape_cast %924 : vector<1x32x128xf32> to vector<32x128xf32>
    %926 = vector.extract_strided_slice %3 {offsets = [0, 2304], sizes = [32, 128], strides = [1, 1]} : vector<32x4096xf32> to vector<32x128xf32>
    %927 = arith.mulf %925, %926 : vector<32x128xf32>
    %928 = vector.extract_strided_slice %3 {offsets = [0, 2432], sizes = [32, 128], strides = [1, 1]} : vector<32x4096xf32> to vector<32x128xf32>
    %929 = arith.mulf %925, %928 : vector<32x128xf32>
    %c1_349 = arith.constant 1 : index
    %c0_350 = arith.constant 0 : index
    %c0_351 = arith.constant 0 : index
    %930 = vector.load %arg3[%c1_349, %c0_350, %c0_351] : memref<10x32x128xf32, #tpu.memory_space<vmem>>, vector<1x32x128xf32>
    %931 = vector.shape_cast %930 : vector<1x32x128xf32> to vector<32x128xf32>
    %932 = vector.extract_strided_slice %3 {offsets = [0, 2432], sizes = [32, 128], strides = [1, 1]} : vector<32x4096xf32> to vector<32x128xf32>
    %933 = arith.mulf %931, %932 : vector<32x128xf32>
    %934 = arith.addf %927, %933 : vector<32x128xf32>
    %935 = vector.extract_strided_slice %3 {offsets = [0, 2560], sizes = [32, 128], strides = [1, 1]} : vector<32x4096xf32> to vector<32x128xf32>
    %936 = arith.mulf %931, %935 : vector<32x128xf32>
    %937 = arith.addf %929, %936 : vector<32x128xf32>
    %c2_352 = arith.constant 2 : index
    %c0_353 = arith.constant 0 : index
    %c0_354 = arith.constant 0 : index
    %938 = vector.load %arg3[%c2_352, %c0_353, %c0_354] : memref<10x32x128xf32, #tpu.memory_space<vmem>>, vector<1x32x128xf32>
    %939 = vector.shape_cast %938 : vector<1x32x128xf32> to vector<32x128xf32>
    %940 = vector.extract_strided_slice %3 {offsets = [0, 2560], sizes = [32, 128], strides = [1, 1]} : vector<32x4096xf32> to vector<32x128xf32>
    %941 = arith.mulf %939, %940 : vector<32x128xf32>
    %942 = arith.addf %934, %941 : vector<32x128xf32>
    %943 = vector.extract_strided_slice %3 {offsets = [0, 2688], sizes = [32, 128], strides = [1, 1]} : vector<32x4096xf32> to vector<32x128xf32>
    %944 = arith.mulf %939, %943 : vector<32x128xf32>
    %945 = arith.addf %937, %944 : vector<32x128xf32>
    %c3_355 = arith.constant 3 : index
    %c0_356 = arith.constant 0 : index
    %c0_357 = arith.constant 0 : index
    %946 = vector.load %arg3[%c3_355, %c0_356, %c0_357] : memref<10x32x128xf32, #tpu.memory_space<vmem>>, vector<1x32x128xf32>
    %947 = vector.shape_cast %946 : vector<1x32x128xf32> to vector<32x128xf32>
    %948 = vector.extract_strided_slice %3 {offsets = [0, 2688], sizes = [32, 128], strides = [1, 1]} : vector<32x4096xf32> to vector<32x128xf32>
    %949 = arith.mulf %947, %948 : vector<32x128xf32>
    %950 = arith.addf %942, %949 : vector<32x128xf32>
    %951 = vector.extract_strided_slice %3 {offsets = [0, 2816], sizes = [32, 128], strides = [1, 1]} : vector<32x4096xf32> to vector<32x128xf32>
    %952 = arith.mulf %947, %951 : vector<32x128xf32>
    %953 = arith.addf %945, %952 : vector<32x128xf32>
    %c4_358 = arith.constant 4 : index
    %c0_359 = arith.constant 0 : index
    %c0_360 = arith.constant 0 : index
    %954 = vector.load %arg3[%c4_358, %c0_359, %c0_360] : memref<10x32x128xf32, #tpu.memory_space<vmem>>, vector<1x32x128xf32>
    %955 = vector.shape_cast %954 : vector<1x32x128xf32> to vector<32x128xf32>
    %956 = vector.extract_strided_slice %3 {offsets = [0, 2816], sizes = [32, 128], strides = [1, 1]} : vector<32x4096xf32> to vector<32x128xf32>
    %957 = arith.mulf %955, %956 : vector<32x128xf32>
    %958 = arith.addf %950, %957 : vector<32x128xf32>
    %959 = vector.extract_strided_slice %3 {offsets = [0, 2944], sizes = [32, 128], strides = [1, 1]} : vector<32x4096xf32> to vector<32x128xf32>
    %960 = arith.mulf %955, %959 : vector<32x128xf32>
    %961 = arith.addf %953, %960 : vector<32x128xf32>
    %c5_361 = arith.constant 5 : index
    %c0_362 = arith.constant 0 : index
    %c0_363 = arith.constant 0 : index
    %962 = vector.load %arg3[%c5_361, %c0_362, %c0_363] : memref<10x32x128xf32, #tpu.memory_space<vmem>>, vector<1x32x128xf32>
    %963 = vector.shape_cast %962 : vector<1x32x128xf32> to vector<32x128xf32>
    %964 = vector.extract_strided_slice %3 {offsets = [0, 2944], sizes = [32, 128], strides = [1, 1]} : vector<32x4096xf32> to vector<32x128xf32>
    %965 = arith.mulf %963, %964 : vector<32x128xf32>
    %966 = arith.addf %958, %965 : vector<32x128xf32>
    %967 = vector.extract_strided_slice %3 {offsets = [0, 3072], sizes = [32, 128], strides = [1, 1]} : vector<32x4096xf32> to vector<32x128xf32>
    %968 = arith.mulf %963, %967 : vector<32x128xf32>
    %969 = arith.addf %961, %968 : vector<32x128xf32>
    %c6_364 = arith.constant 6 : index
    %c0_365 = arith.constant 0 : index
    %c0_366 = arith.constant 0 : index
    %970 = vector.load %arg3[%c6_364, %c0_365, %c0_366] : memref<10x32x128xf32, #tpu.memory_space<vmem>>, vector<1x32x128xf32>
    %971 = vector.shape_cast %970 : vector<1x32x128xf32> to vector<32x128xf32>
    %972 = vector.extract_strided_slice %3 {offsets = [0, 3072], sizes = [32, 128], strides = [1, 1]} : vector<32x4096xf32> to vector<32x128xf32>
    %973 = arith.mulf %971, %972 : vector<32x128xf32>
    %974 = arith.addf %966, %973 : vector<32x128xf32>
    %975 = vector.extract_strided_slice %3 {offsets = [0, 3200], sizes = [32, 128], strides = [1, 1]} : vector<32x4096xf32> to vector<32x128xf32>
    %976 = arith.mulf %971, %975 : vector<32x128xf32>
    %977 = arith.addf %969, %976 : vector<32x128xf32>
    %c7_367 = arith.constant 7 : index
    %c0_368 = arith.constant 0 : index
    %c0_369 = arith.constant 0 : index
    %978 = vector.load %arg3[%c7_367, %c0_368, %c0_369] : memref<10x32x128xf32, #tpu.memory_space<vmem>>, vector<1x32x128xf32>
    %979 = vector.shape_cast %978 : vector<1x32x128xf32> to vector<32x128xf32>
    %980 = vector.extract_strided_slice %3 {offsets = [0, 3200], sizes = [32, 128], strides = [1, 1]} : vector<32x4096xf32> to vector<32x128xf32>
    %981 = arith.mulf %979, %980 : vector<32x128xf32>
    %982 = arith.addf %974, %981 : vector<32x128xf32>
    %983 = vector.extract_strided_slice %3 {offsets = [0, 3328], sizes = [32, 128], strides = [1, 1]} : vector<32x4096xf32> to vector<32x128xf32>
    %984 = arith.mulf %979, %983 : vector<32x128xf32>
    %985 = arith.addf %977, %984 : vector<32x128xf32>
    %c8_370 = arith.constant 8 : index
    %c0_371 = arith.constant 0 : index
    %c0_372 = arith.constant 0 : index
    %986 = vector.load %arg3[%c8_370, %c0_371, %c0_372] : memref<10x32x128xf32, #tpu.memory_space<vmem>>, vector<1x32x128xf32>
    %987 = vector.shape_cast %986 : vector<1x32x128xf32> to vector<32x128xf32>
    %988 = vector.extract_strided_slice %3 {offsets = [0, 3328], sizes = [32, 128], strides = [1, 1]} : vector<32x4096xf32> to vector<32x128xf32>
    %989 = arith.mulf %987, %988 : vector<32x128xf32>
    %990 = arith.addf %982, %989 : vector<32x128xf32>
    %991 = vector.extract_strided_slice %3 {offsets = [0, 3456], sizes = [32, 128], strides = [1, 1]} : vector<32x4096xf32> to vector<32x128xf32>
    %992 = arith.mulf %987, %991 : vector<32x128xf32>
    %993 = arith.addf %985, %992 : vector<32x128xf32>
    %c9_373 = arith.constant 9 : index
    %c0_374 = arith.constant 0 : index
    %c0_375 = arith.constant 0 : index
    %994 = vector.load %arg3[%c9_373, %c0_374, %c0_375] : memref<10x32x128xf32, #tpu.memory_space<vmem>>, vector<1x32x128xf32>
    %995 = vector.shape_cast %994 : vector<1x32x128xf32> to vector<32x128xf32>
    %996 = vector.extract_strided_slice %3 {offsets = [0, 3456], sizes = [32, 128], strides = [1, 1]} : vector<32x4096xf32> to vector<32x128xf32>
    %997 = arith.mulf %995, %996 : vector<32x128xf32>
    %998 = arith.addf %990, %997 : vector<32x128xf32>
    %999 = vector.extract_strided_slice %3 {offsets = [0, 3584], sizes = [32, 128], strides = [1, 1]} : vector<32x4096xf32> to vector<32x128xf32>
    %1000 = arith.mulf %995, %999 : vector<32x128xf32>
    %1001 = arith.addf %993, %1000 : vector<32x128xf32>
    %1002 = arith.addf %998, %7 : vector<32x128xf32>
    %cst_376 = arith.constant 0.000000e+00 : f32
    %1003 = vector.broadcast %cst_376 : f32 to vector<32x128xf32>
    %1004 = arith.cmpf ogt, %1002, %1003 : vector<32x128xf32>
    %cst_377 = arith.constant 0.000000e+00 : f32
    %1005 = vector.broadcast %cst_377 : f32 to vector<32x128xf32>
    %1006 = arith.minimumf %1002, %1005 : vector<32x128xf32>
    %1007 = math.exp %1006 : vector<32x128xf32>
    %cst_378 = arith.constant 1.000000e+00 : f32
    %1008 = vector.broadcast %cst_378 : f32 to vector<32x128xf32>
    %1009 = arith.subf %1007, %1008 : vector<32x128xf32>
    %1010 = arith.select %1004, %1002, %1009 : vector<32x128xi1>, vector<32x128xf32>
    %1011 = arith.addf %1001, %7 : vector<32x128xf32>
    %cst_379 = arith.constant 0.000000e+00 : f32
    %1012 = vector.broadcast %cst_379 : f32 to vector<32x128xf32>
    %1013 = arith.cmpf ogt, %1011, %1012 : vector<32x128xf32>
    %cst_380 = arith.constant 0.000000e+00 : f32
    %1014 = vector.broadcast %cst_380 : f32 to vector<32x128xf32>
    %1015 = arith.minimumf %1011, %1014 : vector<32x128xf32>
    %1016 = math.exp %1015 : vector<32x128xf32>
    %cst_381 = arith.constant 1.000000e+00 : f32
    %1017 = vector.broadcast %cst_381 : f32 to vector<32x128xf32>
    %1018 = arith.subf %1016, %1017 : vector<32x128xf32>
    %1019 = arith.select %1013, %1011, %1018 : vector<32x128xi1>, vector<32x128xf32>
    %1020 = arith.addf %1010, %1019 : vector<32x128xf32>
    %cst_382 = arith.constant 5.000000e-01 : f32
    %1021 = vector.broadcast %cst_382 : f32 to vector<32x128xf32>
    %1022 = arith.mulf %1021, %1020 : vector<32x128xf32>
    %1023 = arith.truncf %1022 : vector<32x128xf32> to vector<32x128xbf16>
    %c0_383 = arith.constant 0 : index
    %c1280 = arith.constant 1280 : index
    %1024 = vector.load %arg9[%c0_383, %c1280] : memref<32x1792xbf16, #tpu.memory_space<vmem>>, vector<32x128xbf16>
    tpu.vector_store %arg9[%c0_383, %c1280], %1023 {strides = array<i32>} : memref<32x1792xbf16, #tpu.memory_space<vmem>>, vector<32x128xbf16>,
    %c0_384 = arith.constant 0 : index
    %c0_385 = arith.constant 0 : index
    %c0_386 = arith.constant 0 : index
    %1025 = vector.load %arg3[%c0_384, %c0_385, %c0_386] : memref<10x32x128xf32, #tpu.memory_space<vmem>>, vector<1x32x128xf32>
    %1026 = vector.shape_cast %1025 : vector<1x32x128xf32> to vector<32x128xf32>
    %1027 = vector.extract_strided_slice %3 {offsets = [0, 2560], sizes = [32, 128], strides = [1, 1]} : vector<32x4096xf32> to vector<32x128xf32>
    %1028 = arith.mulf %1026, %1027 : vector<32x128xf32>
    %1029 = vector.extract_strided_slice %3 {offsets = [0, 2688], sizes = [32, 128], strides = [1, 1]} : vector<32x4096xf32> to vector<32x128xf32>
    %1030 = arith.mulf %1026, %1029 : vector<32x128xf32>
    %c1_387 = arith.constant 1 : index
    %c0_388 = arith.constant 0 : index
    %c0_389 = arith.constant 0 : index
    %1031 = vector.load %arg3[%c1_387, %c0_388, %c0_389] : memref<10x32x128xf32, #tpu.memory_space<vmem>>, vector<1x32x128xf32>
    %1032 = vector.shape_cast %1031 : vector<1x32x128xf32> to vector<32x128xf32>
    %1033 = vector.extract_strided_slice %3 {offsets = [0, 2688], sizes = [32, 128], strides = [1, 1]} : vector<32x4096xf32> to vector<32x128xf32>
    %1034 = arith.mulf %1032, %1033 : vector<32x128xf32>
    %1035 = arith.addf %1028, %1034 : vector<32x128xf32>
    %1036 = vector.extract_strided_slice %3 {offsets = [0, 2816], sizes = [32, 128], strides = [1, 1]} : vector<32x4096xf32> to vector<32x128xf32>
    %1037 = arith.mulf %1032, %1036 : vector<32x128xf32>
    %1038 = arith.addf %1030, %1037 : vector<32x128xf32>
    %c2_390 = arith.constant 2 : index
    %c0_391 = arith.constant 0 : index
    %c0_392 = arith.constant 0 : index
    %1039 = vector.load %arg3[%c2_390, %c0_391, %c0_392] : memref<10x32x128xf32, #tpu.memory_space<vmem>>, vector<1x32x128xf32>
    %1040 = vector.shape_cast %1039 : vector<1x32x128xf32> to vector<32x128xf32>
    %1041 = vector.extract_strided_slice %3 {offsets = [0, 2816], sizes = [32, 128], strides = [1, 1]} : vector<32x4096xf32> to vector<32x128xf32>
    %1042 = arith.mulf %1040, %1041 : vector<32x128xf32>
    %1043 = arith.addf %1035, %1042 : vector<32x128xf32>
    %1044 = vector.extract_strided_slice %3 {offsets = [0, 2944], sizes = [32, 128], strides = [1, 1]} : vector<32x4096xf32> to vector<32x128xf32>
    %1045 = arith.mulf %1040, %1044 : vector<32x128xf32>
    %1046 = arith.addf %1038, %1045 : vector<32x128xf32>
    %c3_393 = arith.constant 3 : index
    %c0_394 = arith.constant 0 : index
    %c0_395 = arith.constant 0 : index
    %1047 = vector.load %arg3[%c3_393, %c0_394, %c0_395] : memref<10x32x128xf32, #tpu.memory_space<vmem>>, vector<1x32x128xf32>
    %1048 = vector.shape_cast %1047 : vector<1x32x128xf32> to vector<32x128xf32>
    %1049 = vector.extract_strided_slice %3 {offsets = [0, 2944], sizes = [32, 128], strides = [1, 1]} : vector<32x4096xf32> to vector<32x128xf32>
    %1050 = arith.mulf %1048, %1049 : vector<32x128xf32>
    %1051 = arith.addf %1043, %1050 : vector<32x128xf32>
    %1052 = vector.extract_strided_slice %3 {offsets = [0, 3072], sizes = [32, 128], strides = [1, 1]} : vector<32x4096xf32> to vector<32x128xf32>
    %1053 = arith.mulf %1048, %1052 : vector<32x128xf32>
    %1054 = arith.addf %1046, %1053 : vector<32x128xf32>
    %c4_396 = arith.constant 4 : index
    %c0_397 = arith.constant 0 : index
    %c0_398 = arith.constant 0 : index
    %1055 = vector.load %arg3[%c4_396, %c0_397, %c0_398] : memref<10x32x128xf32, #tpu.memory_space<vmem>>, vector<1x32x128xf32>
    %1056 = vector.shape_cast %1055 : vector<1x32x128xf32> to vector<32x128xf32>
    %1057 = vector.extract_strided_slice %3 {offsets = [0, 3072], sizes = [32, 128], strides = [1, 1]} : vector<32x4096xf32> to vector<32x128xf32>
    %1058 = arith.mulf %1056, %1057 : vector<32x128xf32>
    %1059 = arith.addf %1051, %1058 : vector<32x128xf32>
    %1060 = vector.extract_strided_slice %3 {offsets = [0, 3200], sizes = [32, 128], strides = [1, 1]} : vector<32x4096xf32> to vector<32x128xf32>
    %1061 = arith.mulf %1056, %1060 : vector<32x128xf32>
    %1062 = arith.addf %1054, %1061 : vector<32x128xf32>
    %c5_399 = arith.constant 5 : index
    %c0_400 = arith.constant 0 : index
    %c0_401 = arith.constant 0 : index
    %1063 = vector.load %arg3[%c5_399, %c0_400, %c0_401] : memref<10x32x128xf32, #tpu.memory_space<vmem>>, vector<1x32x128xf32>
    %1064 = vector.shape_cast %1063 : vector<1x32x128xf32> to vector<32x128xf32>
    %1065 = vector.extract_strided_slice %3 {offsets = [0, 3200], sizes = [32, 128], strides = [1, 1]} : vector<32x4096xf32> to vector<32x128xf32>
    %1066 = arith.mulf %1064, %1065 : vector<32x128xf32>
    %1067 = arith.addf %1059, %1066 : vector<32x128xf32>
    %1068 = vector.extract_strided_slice %3 {offsets = [0, 3328], sizes = [32, 128], strides = [1, 1]} : vector<32x4096xf32> to vector<32x128xf32>
    %1069 = arith.mulf %1064, %1068 : vector<32x128xf32>
    %1070 = arith.addf %1062, %1069 : vector<32x128xf32>
    %c6_402 = arith.constant 6 : index
    %c0_403 = arith.constant 0 : index
    %c0_404 = arith.constant 0 : index
    %1071 = vector.load %arg3[%c6_402, %c0_403, %c0_404] : memref<10x32x128xf32, #tpu.memory_space<vmem>>, vector<1x32x128xf32>
    %1072 = vector.shape_cast %1071 : vector<1x32x128xf32> to vector<32x128xf32>
    %1073 = vector.extract_strided_slice %3 {offsets = [0, 3328], sizes = [32, 128], strides = [1, 1]} : vector<32x4096xf32> to vector<32x128xf32>
    %1074 = arith.mulf %1072, %1073 : vector<32x128xf32>
    %1075 = arith.addf %1067, %1074 : vector<32x128xf32>
    %1076 = vector.extract_strided_slice %3 {offsets = [0, 3456], sizes = [32, 128], strides = [1, 1]} : vector<32x4096xf32> to vector<32x128xf32>
    %1077 = arith.mulf %1072, %1076 : vector<32x128xf32>
    %1078 = arith.addf %1070, %1077 : vector<32x128xf32>
    %c7_405 = arith.constant 7 : index
    %c0_406 = arith.constant 0 : index
    %c0_407 = arith.constant 0 : index
    %1079 = vector.load %arg3[%c7_405, %c0_406, %c0_407] : memref<10x32x128xf32, #tpu.memory_space<vmem>>, vector<1x32x128xf32>
    %1080 = vector.shape_cast %1079 : vector<1x32x128xf32> to vector<32x128xf32>
    %1081 = vector.extract_strided_slice %3 {offsets = [0, 3456], sizes = [32, 128], strides = [1, 1]} : vector<32x4096xf32> to vector<32x128xf32>
    %1082 = arith.mulf %1080, %1081 : vector<32x128xf32>
    %1083 = arith.addf %1075, %1082 : vector<32x128xf32>
    %1084 = vector.extract_strided_slice %3 {offsets = [0, 3584], sizes = [32, 128], strides = [1, 1]} : vector<32x4096xf32> to vector<32x128xf32>
    %1085 = arith.mulf %1080, %1084 : vector<32x128xf32>
    %1086 = arith.addf %1078, %1085 : vector<32x128xf32>
    %c8_408 = arith.constant 8 : index
    %c0_409 = arith.constant 0 : index
    %c0_410 = arith.constant 0 : index
    %1087 = vector.load %arg3[%c8_408, %c0_409, %c0_410] : memref<10x32x128xf32, #tpu.memory_space<vmem>>, vector<1x32x128xf32>
    %1088 = vector.shape_cast %1087 : vector<1x32x128xf32> to vector<32x128xf32>
    %1089 = vector.extract_strided_slice %3 {offsets = [0, 3584], sizes = [32, 128], strides = [1, 1]} : vector<32x4096xf32> to vector<32x128xf32>
    %1090 = arith.mulf %1088, %1089 : vector<32x128xf32>
    %1091 = arith.addf %1083, %1090 : vector<32x128xf32>
    %1092 = vector.extract_strided_slice %3 {offsets = [0, 3712], sizes = [32, 128], strides = [1, 1]} : vector<32x4096xf32> to vector<32x128xf32>
    %1093 = arith.mulf %1088, %1092 : vector<32x128xf32>
    %1094 = arith.addf %1086, %1093 : vector<32x128xf32>
    %c9_411 = arith.constant 9 : index
    %c0_412 = arith.constant 0 : index
    %c0_413 = arith.constant 0 : index
    %1095 = vector.load %arg3[%c9_411, %c0_412, %c0_413] : memref<10x32x128xf32, #tpu.memory_space<vmem>>, vector<1x32x128xf32>
    %1096 = vector.shape_cast %1095 : vector<1x32x128xf32> to vector<32x128xf32>
    %1097 = vector.extract_strided_slice %3 {offsets = [0, 3712], sizes = [32, 128], strides = [1, 1]} : vector<32x4096xf32> to vector<32x128xf32>
    %1098 = arith.mulf %1096, %1097 : vector<32x128xf32>
    %1099 = arith.addf %1091, %1098 : vector<32x128xf32>
    %1100 = vector.extract_strided_slice %3 {offsets = [0, 3840], sizes = [32, 128], strides = [1, 1]} : vector<32x4096xf32> to vector<32x128xf32>
    %1101 = arith.mulf %1096, %1100 : vector<32x128xf32>
    %1102 = arith.addf %1094, %1101 : vector<32x128xf32>
    %1103 = arith.addf %1099, %7 : vector<32x128xf32>
    %cst_414 = arith.constant 0.000000e+00 : f32
    %1104 = vector.broadcast %cst_414 : f32 to vector<32x128xf32>
    %1105 = arith.cmpf ogt, %1103, %1104 : vector<32x128xf32>
    %cst_415 = arith.constant 0.000000e+00 : f32
    %1106 = vector.broadcast %cst_415 : f32 to vector<32x128xf32>
    %1107 = arith.minimumf %1103, %1106 : vector<32x128xf32>
    %1108 = math.exp %1107 : vector<32x128xf32>
    %cst_416 = arith.constant 1.000000e+00 : f32
    %1109 = vector.broadcast %cst_416 : f32 to vector<32x128xf32>
    %1110 = arith.subf %1108, %1109 : vector<32x128xf32>
    %1111 = arith.select %1105, %1103, %1110 : vector<32x128xi1>, vector<32x128xf32>
    %1112 = arith.addf %1102, %7 : vector<32x128xf32>
    %cst_417 = arith.constant 0.000000e+00 : f32
    %1113 = vector.broadcast %cst_417 : f32 to vector<32x128xf32>
    %1114 = arith.cmpf ogt, %1112, %1113 : vector<32x128xf32>
    %cst_418 = arith.constant 0.000000e+00 : f32
    %1115 = vector.broadcast %cst_418 : f32 to vector<32x128xf32>
    %1116 = arith.minimumf %1112, %1115 : vector<32x128xf32>
    %1117 = math.exp %1116 : vector<32x128xf32>
    %cst_419 = arith.constant 1.000000e+00 : f32
    %1118 = vector.broadcast %cst_419 : f32 to vector<32x128xf32>
    %1119 = arith.subf %1117, %1118 : vector<32x128xf32>
    %1120 = arith.select %1114, %1112, %1119 : vector<32x128xi1>, vector<32x128xf32>
    %1121 = arith.addf %1111, %1120 : vector<32x128xf32>
    %cst_420 = arith.constant 5.000000e-01 : f32
    %1122 = vector.broadcast %cst_420 : f32 to vector<32x128xf32>
    %1123 = arith.mulf %1122, %1121 : vector<32x128xf32>
    %1124 = arith.truncf %1123 : vector<32x128xf32> to vector<32x128xbf16>
    %c0_421 = arith.constant 0 : index
    %c1408 = arith.constant 1408 : index
    %1125 = vector.load %arg9[%c0_421, %c1408] : memref<32x1792xbf16, #tpu.memory_space<vmem>>, vector<32x128xbf16>
    tpu.vector_store %arg9[%c0_421, %c1408], %1124 {strides = array<i32>} : memref<32x1792xbf16, #tpu.memory_space<vmem>>, vector<32x128xbf16>,
    %c0_422 = arith.constant 0 : index
    %c0_423 = arith.constant 0 : index
    %c0_424 = arith.constant 0 : index
    %1126 = vector.load %arg3[%c0_422, %c0_423, %c0_424] : memref<10x32x128xf32, #tpu.memory_space<vmem>>, vector<1x32x128xf32>
    %1127 = vector.shape_cast %1126 : vector<1x32x128xf32> to vector<32x128xf32>
    %1128 = vector.extract_strided_slice %3 {offsets = [0, 2816], sizes = [32, 128], strides = [1, 1]} : vector<32x4096xf32> to vector<32x128xf32>
    %1129 = arith.mulf %1127, %1128 : vector<32x128xf32>
    %c1_425 = arith.constant 1 : index
    %c0_426 = arith.constant 0 : index
    %c0_427 = arith.constant 0 : index
    %1130 = vector.load %arg3[%c1_425, %c0_426, %c0_427] : memref<10x32x128xf32, #tpu.memory_space<vmem>>, vector<1x32x128xf32>
    %1131 = vector.shape_cast %1130 : vector<1x32x128xf32> to vector<32x128xf32>
    %1132 = vector.extract_strided_slice %3 {offsets = [0, 2944], sizes = [32, 128], strides = [1, 1]} : vector<32x4096xf32> to vector<32x128xf32>
    %1133 = arith.mulf %1131, %1132 : vector<32x128xf32>
    %1134 = arith.addf %1129, %1133 : vector<32x128xf32>
    %c2_428 = arith.constant 2 : index
    %c0_429 = arith.constant 0 : index
    %c0_430 = arith.constant 0 : index
    %1135 = vector.load %arg3[%c2_428, %c0_429, %c0_430] : memref<10x32x128xf32, #tpu.memory_space<vmem>>, vector<1x32x128xf32>
    %1136 = vector.shape_cast %1135 : vector<1x32x128xf32> to vector<32x128xf32>
    %1137 = vector.extract_strided_slice %3 {offsets = [0, 3072], sizes = [32, 128], strides = [1, 1]} : vector<32x4096xf32> to vector<32x128xf32>
    %1138 = arith.mulf %1136, %1137 : vector<32x128xf32>
    %1139 = arith.addf %1134, %1138 : vector<32x128xf32>
    %c3_431 = arith.constant 3 : index
    %c0_432 = arith.constant 0 : index
    %c0_433 = arith.constant 0 : index
    %1140 = vector.load %arg3[%c3_431, %c0_432, %c0_433] : memref<10x32x128xf32, #tpu.memory_space<vmem>>, vector<1x32x128xf32>
    %1141 = vector.shape_cast %1140 : vector<1x32x128xf32> to vector<32x128xf32>
    %1142 = vector.extract_strided_slice %3 {offsets = [0, 3200], sizes = [32, 128], strides = [1, 1]} : vector<32x4096xf32> to vector<32x128xf32>
    %1143 = arith.mulf %1141, %1142 : vector<32x128xf32>
    %1144 = arith.addf %1139, %1143 : vector<32x128xf32>
    %c4_434 = arith.constant 4 : index
    %c0_435 = arith.constant 0 : index
    %c0_436 = arith.constant 0 : index
    %1145 = vector.load %arg3[%c4_434, %c0_435, %c0_436] : memref<10x32x128xf32, #tpu.memory_space<vmem>>, vector<1x32x128xf32>
    %1146 = vector.shape_cast %1145 : vector<1x32x128xf32> to vector<32x128xf32>
    %1147 = vector.extract_strided_slice %3 {offsets = [0, 3328], sizes = [32, 128], strides = [1, 1]} : vector<32x4096xf32> to vector<32x128xf32>
    %1148 = arith.mulf %1146, %1147 : vector<32x128xf32>
    %1149 = arith.addf %1144, %1148 : vector<32x128xf32>
    %c5_437 = arith.constant 5 : index
    %c0_438 = arith.constant 0 : index
    %c0_439 = arith.constant 0 : index
    %1150 = vector.load %arg3[%c5_437, %c0_438, %c0_439] : memref<10x32x128xf32, #tpu.memory_space<vmem>>, vector<1x32x128xf32>
    %1151 = vector.shape_cast %1150 : vector<1x32x128xf32> to vector<32x128xf32>
    %1152 = vector.extract_strided_slice %3 {offsets = [0, 3456], sizes = [32, 128], strides = [1, 1]} : vector<32x4096xf32> to vector<32x128xf32>
    %1153 = arith.mulf %1151, %1152 : vector<32x128xf32>
    %1154 = arith.addf %1149, %1153 : vector<32x128xf32>
    %c6_440 = arith.constant 6 : index
    %c0_441 = arith.constant 0 : index
    %c0_442 = arith.constant 0 : index
    %1155 = vector.load %arg3[%c6_440, %c0_441, %c0_442] : memref<10x32x128xf32, #tpu.memory_space<vmem>>, vector<1x32x128xf32>
    %1156 = vector.shape_cast %1155 : vector<1x32x128xf32> to vector<32x128xf32>
    %1157 = vector.extract_strided_slice %3 {offsets = [0, 3584], sizes = [32, 128], strides = [1, 1]} : vector<32x4096xf32> to vector<32x128xf32>
    %1158 = arith.mulf %1156, %1157 : vector<32x128xf32>
    %1159 = arith.addf %1154, %1158 : vector<32x128xf32>
    %c7_443 = arith.constant 7 : index
    %c0_444 = arith.constant 0 : index
    %c0_445 = arith.constant 0 : index
    %1160 = vector.load %arg3[%c7_443, %c0_444, %c0_445] : memref<10x32x128xf32, #tpu.memory_space<vmem>>, vector<1x32x128xf32>
    %1161 = vector.shape_cast %1160 : vector<1x32x128xf32> to vector<32x128xf32>
    %1162 = vector.extract_strided_slice %3 {offsets = [0, 3712], sizes = [32, 128], strides = [1, 1]} : vector<32x4096xf32> to vector<32x128xf32>
    %1163 = arith.mulf %1161, %1162 : vector<32x128xf32>
    %1164 = arith.addf %1159, %1163 : vector<32x128xf32>
    %c8_446 = arith.constant 8 : index
    %c0_447 = arith.constant 0 : index
    %c0_448 = arith.constant 0 : index
    %1165 = vector.load %arg3[%c8_446, %c0_447, %c0_448] : memref<10x32x128xf32, #tpu.memory_space<vmem>>, vector<1x32x128xf32>
    %1166 = vector.shape_cast %1165 : vector<1x32x128xf32> to vector<32x128xf32>
    %1167 = vector.extract_strided_slice %3 {offsets = [0, 3840], sizes = [32, 128], strides = [1, 1]} : vector<32x4096xf32> to vector<32x128xf32>
    %1168 = arith.mulf %1166, %1167 : vector<32x128xf32>
    %1169 = arith.addf %1164, %1168 : vector<32x128xf32>
    %c9_449 = arith.constant 9 : index
    %c0_450 = arith.constant 0 : index
    %c0_451 = arith.constant 0 : index
    %1170 = vector.load %arg3[%c9_449, %c0_450, %c0_451] : memref<10x32x128xf32, #tpu.memory_space<vmem>>, vector<1x32x128xf32>
    %1171 = vector.shape_cast %1170 : vector<1x32x128xf32> to vector<32x128xf32>
    %1172 = vector.extract_strided_slice %3 {offsets = [0, 3968], sizes = [32, 128], strides = [1, 1]} : vector<32x4096xf32> to vector<32x128xf32>
    %1173 = arith.mulf %1171, %1172 : vector<32x128xf32>
    %1174 = arith.addf %1169, %1173 : vector<32x128xf32>
    %1175 = arith.addf %1174, %7 : vector<32x128xf32>
    %cst_452 = arith.constant 0.000000e+00 : f32
    %1176 = vector.broadcast %cst_452 : f32 to vector<32x128xf32>
    %1177 = arith.cmpf ogt, %1175, %1176 : vector<32x128xf32>
    %cst_453 = arith.constant 0.000000e+00 : f32
    %1178 = vector.broadcast %cst_453 : f32 to vector<32x128xf32>
    %1179 = arith.minimumf %1175, %1178 : vector<32x128xf32>
    %1180 = math.exp %1179 : vector<32x128xf32>
    %cst_454 = arith.constant 1.000000e+00 : f32
    %1181 = vector.broadcast %cst_454 : f32 to vector<32x128xf32>
    %1182 = arith.subf %1180, %1181 : vector<32x128xf32>
    %1183 = arith.select %1177, %1175, %1182 : vector<32x128xi1>, vector<32x128xf32>
    %1184 = arith.addf %1183, %11 : vector<32x128xf32>
    %cst_455 = arith.constant 5.000000e-01 : f32
    %1185 = vector.broadcast %cst_455 : f32 to vector<32x128xf32>
    %1186 = arith.mulf %1185, %1184 : vector<32x128xf32>
    %1187 = arith.truncf %1186 : vector<32x128xf32> to vector<32x128xbf16>
    %c0_456 = arith.constant 0 : index
    %c1536 = arith.constant 1536 : index
    %1188 = vector.load %arg9[%c0_456, %c1536] : memref<32x1792xbf16, #tpu.memory_space<vmem>>, vector<32x128xbf16>
    tpu.vector_store %arg9[%c0_456, %c1536], %1187 {strides = array<i32>} : memref<32x1792xbf16, #tpu.memory_space<vmem>>, vector<32x128xbf16>,
    %c0_457 = arith.constant 0 : index
    %c0_458 = arith.constant 0 : index
    %c0_459 = arith.constant 0 : index
    %1189 = vector.load %arg5[%c0_457, %c0_458, %c0_459] : memref<2x32x32xbf16, #tpu.memory_space<vmem>>, vector<1x32x32xbf16>
    %1190 = vector.shape_cast %1189 : vector<1x32x32xbf16> to vector<32x32xbf16>
    %c0_460 = arith.constant 0 : index
    %c0_461 = arith.constant 0 : index
    %1191 = vector.load %arg9[%c0_460, %c0_461] : memref<32x1792xbf16, #tpu.memory_space<vmem>>, vector<32x1664xbf16>
    %cst_462 = arith.constant dense<0.000000e+00> : vector<32x1664xf32>
    %1192 = tpu.matmul %1190, %1191, %cst_462 {dimension_numbers = #tpu.dot_dimension_numbers<[1], [0], [0], [1], [0, 0, 1, 1], [], []>} : vector<32x32xbf16>, vector<32x1664xbf16>, vector<32x1664xf32> -> vector<32x1664xf32>
    %c1_463 = arith.constant 1 : index
    %c0_464 = arith.constant 0 : index
    %c0_465 = arith.constant 0 : index
    %1193 = vector.load %arg5[%c1_463, %c0_464, %c0_465] : memref<2x32x32xbf16, #tpu.memory_space<vmem>>, vector<1x32x32xbf16>
    %1194 = vector.shape_cast %1193 : vector<1x32x32xbf16> to vector<32x32xbf16>
    %c0_466 = arith.constant 0 : index
    %c128_467 = arith.constant 128 : index
    %1195 = vector.load %arg9[%c0_466, %c128_467] : memref<32x1792xbf16, #tpu.memory_space<vmem>>, vector<32x1664xbf16>
    %cst_468 = arith.constant dense<0.000000e+00> : vector<32x1664xf32>
    %1196 = tpu.matmul %1194, %1195, %cst_468 {dimension_numbers = #tpu.dot_dimension_numbers<[1], [0], [0], [1], [0, 0, 1, 1], [], []>} : vector<32x32xbf16>, vector<32x1664xbf16>, vector<32x1664xf32> -> vector<32x1664xf32>
    %1197 = arith.addf %1192, %1196 : vector<32x1664xf32>
    %c2_469 = arith.constant 2 : index
    %c0_470 = arith.constant 0 : index
    %c0_471 = arith.constant 0 : index
    %1198 = vector.load %arg4[%c2_469, %c0_470, %c0_471] : memref<3x32x1xf32, #tpu.memory_space<vmem>>, vector<1x32x1xf32>
    %1199 = vector.shape_cast %1198 : vector<1x32x1xf32> to vector<32x1xf32>
    %1200 = vector.broadcast %1199 : vector<32x1xf32> to vector<32x1664xf32>
    %1201 = arith.addf %1197, %1200 : vector<32x1664xf32>
    %cst_472 = arith.constant 0.000000e+00 : f32
    %1202 = vector.broadcast %cst_472 : f32 to vector<32x1664xf32>
    %1203 = arith.cmpf ogt, %1201, %1202 : vector<32x1664xf32>
    %cst_473 = arith.constant 0.000000e+00 : f32
    %1204 = vector.broadcast %cst_473 : f32 to vector<32x1664xf32>
    %1205 = arith.minimumf %1201, %1204 : vector<32x1664xf32>
    %1206 = math.exp %1205 : vector<32x1664xf32>
    %cst_474 = arith.constant 1.000000e+00 : f32
    %1207 = vector.broadcast %cst_474 : f32 to vector<32x1664xf32>
    %1208 = arith.subf %1206, %1207 : vector<32x1664xf32>
    %1209 = arith.select %1203, %1201, %1208 : vector<32x1664xi1>, vector<32x1664xf32>
    %1210 = arith.truncf %1209 : vector<32x1664xf32> to vector<32x1664xbf16>
    %1211 = vector.extract_strided_slice %1210 {offsets = [0, 0], sizes = [32, 128], strides = [1, 1]} : vector<32x1664xbf16> to vector<32x128xbf16>
    %1212 = vector.extract_strided_slice %1210 {offsets = [0, 128], sizes = [32, 128], strides = [1, 1]} : vector<32x1664xbf16> to vector<32x128xbf16>
    %1213 = vector.extract_strided_slice %1210 {offsets = [0, 256], sizes = [32, 128], strides = [1, 1]} : vector<32x1664xbf16> to vector<32x128xbf16>
    %1214 = vector.extract_strided_slice %1210 {offsets = [0, 384], sizes = [32, 128], strides = [1, 1]} : vector<32x1664xbf16> to vector<32x128xbf16>
    %1215 = vector.extract_strided_slice %1210 {offsets = [0, 512], sizes = [32, 128], strides = [1, 1]} : vector<32x1664xbf16> to vector<32x128xbf16>
    %1216 = vector.extract_strided_slice %1210 {offsets = [0, 640], sizes = [32, 128], strides = [1, 1]} : vector<32x1664xbf16> to vector<32x128xbf16>
    %1217 = vector.extract_strided_slice %1210 {offsets = [0, 768], sizes = [32, 128], strides = [1, 1]} : vector<32x1664xbf16> to vector<32x128xbf16>
    %1218 = vector.extract_strided_slice %1210 {offsets = [0, 896], sizes = [32, 128], strides = [1, 1]} : vector<32x1664xbf16> to vector<32x128xbf16>
    %1219 = vector.extract_strided_slice %1210 {offsets = [0, 1024], sizes = [32, 128], strides = [1, 1]} : vector<32x1664xbf16> to vector<32x128xbf16>
    %1220 = vector.extract_strided_slice %1210 {offsets = [0, 1152], sizes = [32, 128], strides = [1, 1]} : vector<32x1664xbf16> to vector<32x128xbf16>
    %1221 = vector.extract_strided_slice %1210 {offsets = [0, 1280], sizes = [32, 128], strides = [1, 1]} : vector<32x1664xbf16> to vector<32x128xbf16>
    %1222 = vector.extract_strided_slice %1210 {offsets = [0, 1408], sizes = [32, 128], strides = [1, 1]} : vector<32x1664xbf16> to vector<32x128xbf16>
    %1223 = vector.extract_strided_slice %1210 {offsets = [0, 1536], sizes = [32, 128], strides = [1, 1]} : vector<32x1664xbf16> to vector<32x128xbf16>
    %1224 = tpu.concatenate %1211, %1212, %1213, %1214, %1215, %1216, %1217, %1218, %1219, %1220, %1221, %1222, %1223 in 0 : vector<32x128xbf16>, vector<32x128xbf16>, vector<32x128xbf16>, vector<32x128xbf16>, vector<32x128xbf16>, vector<32x128xbf16>, vector<32x128xbf16>, vector<32x128xbf16>, vector<32x128xbf16>, vector<32x128xbf16>, vector<32x128xbf16>, vector<32x128xbf16>, vector<32x128xbf16> -> vector<416x128xbf16>
    %c0_475 = arith.constant 0 : index
    %c0_476 = arith.constant 0 : index
    %1225 = vector.load %arg6[%c0_475, %c0_476] : memref<2x416xbf16, #tpu.memory_space<vmem>>, vector<2x416xbf16>
    %cst_477 = arith.constant dense<0.000000e+00> : vector<2x128xf32>
    %1226 = tpu.matmul %1225, %1224, %cst_477 {dimension_numbers = #tpu.dot_dimension_numbers<[1], [0], [0], [1], [0, 0, 1, 1], [], []>} : vector<2x416xbf16>, vector<416x128xbf16>, vector<2x128xf32> -> vector<2x128xf32>
    %c0_478 = arith.constant 0 : index
    %c0_479 = arith.constant 0 : index
    %1227 = vector.load %arg7[%c0_478, %c0_479] : memref<2x1xf32, #tpu.memory_space<vmem>>, vector<2x1xf32>
    %1228 = vector.broadcast %1227 : vector<2x1xf32> to vector<2x128xf32>
    %1229 = arith.addf %1226, %1228 : vector<2x128xf32>
    %c0_480 = arith.constant 0 : index
    %c0_481 = arith.constant 0 : index
    %1230 = vector.load %arg8[%c0_480, %c0_481] : memref<2x128xf32, #tpu.memory_space<vmem>>, vector<2x128xf32>
    tpu.vector_store %arg8[%c0_480, %c0_481], %1229 {strides = array<i32>} : memref<2x128xf32, #tpu.memory_space<vmem>>, vector<2x128xf32>,
    return
  }
  func.func @transform_0(%arg0: i32) -> (i32, i32, i32) {
    %c0_i32 = arith.constant 0 : i32
    %c0_i32_0 = arith.constant 0 : i32
    %c0_i32_1 = arith.constant 0 : i32
    return %arg0, %c0_i32, %c0_i32_0 : i32, i32, i32
  }
  func.func @transform_1(%arg0: i32) -> (i32, i32) {
    %c0_i32 = arith.constant 0 : i32
    %c0_i32_0 = arith.constant 0 : i32
    %c0_i32_1 = arith.constant 0 : i32
    return %c0_i32, %c0_i32_0 : i32, i32
  }
  func.func @transform_2(%arg0: i32) -> (i32, i32, i32) {
    %c0_i32 = arith.constant 0 : i32
    %c0_i32_0 = arith.constant 0 : i32
    %c0_i32_1 = arith.constant 0 : i32
    %c0_i32_2 = arith.constant 0 : i32
    return %c0_i32, %c0_i32_0, %c0_i32_1 : i32, i32, i32
  }
  func.func @transform_3(%arg0: i32) -> (i32, i32, i32) {
    %c0_i32 = arith.constant 0 : i32
    %c0_i32_0 = arith.constant 0 : i32
    %c0_i32_1 = arith.constant 0 : i32
    %c0_i32_2 = arith.constant 0 : i32
    return %c0_i32, %c0_i32_0, %c0_i32_1 : i32, i32, i32
  }
  func.func @transform_4(%arg0: i32) -> (i32, i32, i32) {
    %c0_i32 = arith.constant 0 : i32
    %c0_i32_0 = arith.constant 0 : i32
    %c0_i32_1 = arith.constant 0 : i32
    %c0_i32_2 = arith.constant 0 : i32
    return %c0_i32, %c0_i32_0, %c0_i32_1 : i32, i32, i32
  }
  func.func @transform_5(%arg0: i32) -> (i32, i32) {
    %c0_i32 = arith.constant 0 : i32
    %c0_i32_0 = arith.constant 0 : i32
    %c0_i32_1 = arith.constant 0 : i32
    return %c0_i32, %c0_i32_0 : i32, i32
  }
  func.func @transform_6(%arg0: i32) -> (i32, i32) {
    %c0_i32 = arith.constant 0 : i32
    %c0_i32_0 = arith.constant 0 : i32
    %c0_i32_1 = arith.constant 0 : i32
    return %c0_i32, %c0_i32_0 : i32, i32
  }
  func.func @transform_7(%arg0: i32) -> (i32, i32) {
    %c0_i32 = arith.constant 0 : i32
    %c0_i32_0 = arith.constant 0 : i32
    return %c0_i32, %arg0 : i32, i32
  }
}

</mosaic_0001>

<llo_original>
// kernel: frame2_025s_forward.1
$region0: #{frame2_025s_forward.1}
  #allocation0 [shape = 'u32[]', space=smem, size = 0x4, offset = 0x4, fixed_abs, tag = 'smem constant byte address 0x4 - core index']
  #allocation1 [shape = 'u32[144,128]{1,0:T(1,128)}', space=vmem, size = 0x12000, scoped, tag = 'internal scratch']
  #allocation2 [shape = 'bf16[32,1792]{1,0:T(16,128)(2,1)}', space=vmem, size = 0x1c000, scoped, tag = 'scratch operand']
  %s0 = inlined_call_operand.vmem [shape: bf16[1,66,4096], index: 0, kind: input, shape index: {}]
  %s1 = inlined_call_operand.vmem [shape: bf16[32,66], index: 1, kind: input, shape index: {}]
  %s2 = inlined_call_operand.vmem [shape: f32[10,32,128], index: 2, kind: input, shape index: {}]
  %s3 = inlined_call_operand.vmem [shape: f32[3,32,1], index: 3, kind: input, shape index: {}]
  %s4 = inlined_call_operand.vmem [shape: bf16[2,32,32], index: 4, kind: input, shape index: {}]
  %s5 = inlined_call_operand.vmem [shape: bf16[2,416], index: 5, kind: input, shape index: {}]
  %s6 = inlined_call_operand.vmem [shape: f32[2,1], index: 6, kind: input, shape index: {}]
  %s7 = inlined_call_operand.vmem [shape: f32[2,128], index: 7, kind: output, shape index: {}]
  %s8 = sld [smem:[#allocation0]]
  $region38: #{frame2_025s_forward.1} parent=0
    _
  %s10 = ssub.s32 1, %s8
  %s11 = scalar_select 0, %s10, %s8
  // Predicated region
  $region2: #{frame2_025s_forward.1} parent=0 // pred_check
    _
  $region3: #{frame2_025s_forward.1} parent=0 // pred_check_branch
    %13 = sbr.rel (0) target = $region5
  $region4: #{frame2_025s_forward.1} parent=0 // pred_region
    _
  $region5: #{frame2_025s_forward.1} parent=0 // pred_fallthru
    _
  // Predicated region
  $region6: #{frame2_025s_forward.1} parent=0 // pred_check
    _
  $region7: #{frame2_025s_forward.1} parent=0 // pred_check_branch
    %15 = sbr.rel (0) target = $region9
  $region8: #{frame2_025s_forward.1} parent=0 // pred_region
    _
  $region9: #{frame2_025s_forward.1} parent=0 // pred_fallthru
    _
  // Predicated region
  $region10: #{frame2_025s_forward.1} parent=0 // pred_check
    _
  $region11: #{frame2_025s_forward.1} parent=0 // pred_check_branch
    %17 = sbr.rel (0) target = $region13
  $region12: #{frame2_025s_forward.1} parent=0 // pred_region
    _
  $region13: #{frame2_025s_forward.1} parent=0 // pred_fallthru
    _
  // Predicated region
  $region14: #{frame2_025s_forward.1} parent=0 // pred_check
    _
  $region15: #{frame2_025s_forward.1} parent=0 // pred_check_branch
    %19 = sbr.rel (0) target = $region17
  $region16: #{frame2_025s_forward.1} parent=0 // pred_region
    _
  $region17: #{frame2_025s_forward.1} parent=0 // pred_fallthru
    _
  // Predicated region
  $region18: #{frame2_025s_forward.1} parent=0 // pred_check
    _
  $region19: #{frame2_025s_forward.1} parent=0 // pred_check_branch
    %21 = sbr.rel (0) target = $region21
  $region20: #{frame2_025s_forward.1} parent=0 // pred_region
    _
  $region21: #{frame2_025s_forward.1} parent=0 // pred_fallthru
    _
  // Predicated region
  $region22: #{frame2_025s_forward.1} parent=0 // pred_check
    _
  $region23: #{frame2_025s_forward.1} parent=0 // pred_check_branch
    %23 = sbr.rel (0) target = $region25
  $region24: #{frame2_025s_forward.1} parent=0 // pred_region
    _
  $region25: #{frame2_025s_forward.1} parent=0 // pred_fallthru
    _
  // Predicated region
  $region26: #{frame2_025s_forward.1} parent=0 // pred_check
    _
  $region27: #{frame2_025s_forward.1} parent=0 // pred_check_branch
    %25 = sbr.rel (0) target = $region29
  $region28: #{frame2_025s_forward.1} parent=0 // pred_region
    _
  $region29: #{frame2_025s_forward.1} parent=0 // pred_fallthru
    _
  %v27 = vld [vmem:[%s1] sm:$0xf]
  %v28 = vld [vmem:[%s1 + $0x4] sm:$0xf]
  %v29 = vld [vmem:[%s1 + $0x8] sm:$0xf]
  %v30 = vld [vmem:[%s1 + $0xc] sm:$0xf]
  %v31 = vld [vmem:[%s0] sm:$0xff]
  %v32 = vld [vmem:[%s0 + $0x8] sm:$0xff]
  %v33 = vld [vmem:[%s0 + $0x10] sm:$0xff]
  %v34 = vld [vmem:[%s0 + $0x18] sm:$0xff]
  %v35 = vld [vmem:[%s0 + $0x20] sm:$0xff]
  %v36 = vld [vmem:[%s0 + $0x28] sm:$0xff]
  %v37 = vld [vmem:[%s0 + $0x30] sm:$0xff]
  %v38 = vld [vmem:[%s0 + $0x38] sm:$0xff]
  %v39 = vld [vmem:[%s0 + $0x40] sm:$0xff]
  %v40 = vld [vmem:[%s0 + $0x48] sm:$0xff]
  %v41 = vld [vmem:[%s0 + $0x50] sm:$0xff]
  %v42 = vld [vmem:[%s0 + $0x58] sm:$0xff]
  %v43 = vld [vmem:[%s0 + $0x60] sm:$0xff]
  %v44 = vld [vmem:[%s0 + $0x68] sm:$0xff]
  %v45 = vld [vmem:[%s0 + $0x70] sm:$0xff]
  %v46 = vld [vmem:[%s0 + $0x78] sm:$0xff]
  %v47 = vld [vmem:[%s0 + $0x80] sm:$0xff]
  %v48 = vld [vmem:[%s0 + $0x88] sm:$0xff]
  %v49 = vld [vmem:[%s0 + $0x90] sm:$0xff]
  %v50 = vld [vmem:[%s0 + $0x98] sm:$0xff]
  %v51 = vld [vmem:[%s0 + $0xa0] sm:$0xff]
  %v52 = vld [vmem:[%s0 + $0xa8] sm:$0xff]
  %v53 = vld [vmem:[%s0 + $0xb0] sm:$0xff]
  %v54 = vld [vmem:[%s0 + $0xb8] sm:$0xff]
  %v55 = vld [vmem:[%s0 + $0xc0] sm:$0xff]
  %v56 = vld [vmem:[%s0 + $0xc8] sm:$0xff]
  %v57 = vld [vmem:[%s0 + $0xd0] sm:$0xff]
  %v58 = vld [vmem:[%s0 + $0xd8] sm:$0xff]
  %v59 = vld [vmem:[%s0 + $0xe0] sm:$0xff]
  %v60 = vld [vmem:[%s0 + $0xe8] sm:$0xff]
  %v61 = vld [vmem:[%s0 + $0xf0] sm:$0xff]
  %v62 = vld [vmem:[%s0 + $0xf8] sm:$0xff]
  %v63 = vld [vmem:[%s0 + $0x100] sm:$0xff]
  %v64 = vld [vmem:[%s0 + $0x108] sm:$0xff]
  %v65 = vld [vmem:[%s0 + $0x110] sm:$0xff]
  %v66 = vld [vmem:[%s0 + $0x118] sm:$0xff]
  %v67 = vld [vmem:[%s0 + $0x120] sm:$0xff]
  %v68 = vld [vmem:[%s0 + $0x128] sm:$0xff]
  %v69 = vld [vmem:[%s0 + $0x130] sm:$0xff]
  %v70 = vld [vmem:[%s0 + $0x138] sm:$0xff]
  %v71 = vld [vmem:[%s0 + $0x140] sm:$0xff]
  %v72 = vld [vmem:[%s0 + $0x148] sm:$0xff]
  %v73 = vld [vmem:[%s0 + $0x150] sm:$0xff]
  %v74 = vld [vmem:[%s0 + $0x158] sm:$0xff]
  %v75 = vld [vmem:[%s0 + $0x160] sm:$0xff]
  %v76 = vld [vmem:[%s0 + $0x168] sm:$0xff]
  %v77 = vld [vmem:[%s0 + $0x170] sm:$0xff]
  %v78 = vld [vmem:[%s0 + $0x178] sm:$0xff]
  %v79 = vld [vmem:[%s0 + $0x180] sm:$0xff]
  %v80 = vld [vmem:[%s0 + $0x188] sm:$0xff]
  %v81 = vld [vmem:[%s0 + $0x190] sm:$0xff]
  %v82 = vld [vmem:[%s0 + $0x198] sm:$0xff]
  %v83 = vld [vmem:[%s0 + $0x1a0] sm:$0xff]
  %v84 = vld [vmem:[%s0 + $0x1a8] sm:$0xff]
  %v85 = vld [vmem:[%s0 + $0x1b0] sm:$0xff]
  %v86 = vld [vmem:[%s0 + $0x1b8] sm:$0xff]
  %v87 = vld [vmem:[%s0 + $0x1c0] sm:$0xff]
  %v88 = vld [vmem:[%s0 + $0x1c8] sm:$0xff]
  %v89 = vld [vmem:[%s0 + $0x1d0] sm:$0xff]
  %v90 = vld [vmem:[%s0 + $0x1d8] sm:$0xff]
  %v91 = vld [vmem:[%s0 + $0x1e0] sm:$0xff]
  %v92 = vld [vmem:[%s0 + $0x1e8] sm:$0xff]
  %v93 = vld [vmem:[%s0 + $0x1f0] sm:$0xff]
  %v94 = vld [vmem:[%s0 + $0x1f8] sm:$0xff]
  %v95 = vld [vmem:[%s0 + $0x200] sm:$0xff]
  %v96 = vld [vmem:[%s0 + $0x208] sm:$0xff]
  %v97 = vld [vmem:[%s0 + $0x210] sm:$0xff]
  %v98 = vld [vmem:[%s0 + $0x218] sm:$0xff]
  %v99 = vld [vmem:[%s0 + $0x220] sm:$0xff]
  %v100 = vld [vmem:[%s0 + $0x228] sm:$0xff]
  %v101 = vld [vmem:[%s0 + $0x230] sm:$0xff]
  %v102 = vld [vmem:[%s0 + $0x238] sm:$0xff]
  %v103 = vld [vmem:[%s0 + $0x240] sm:$0xff]
  %v104 = vld [vmem:[%s0 + $0x248] sm:$0xff]
  %v105 = vld [vmem:[%s0 + $0x250] sm:$0xff]
  %v106 = vld [vmem:[%s0 + $0x258] sm:$0xff]
  %v107 = vld [vmem:[%s0 + $0x260] sm:$0xff]
  %v108 = vld [vmem:[%s0 + $0x268] sm:$0xff]
  %v109 = vld [vmem:[%s0 + $0x270] sm:$0xff]
  %v110 = vld [vmem:[%s0 + $0x278] sm:$0xff]
  %v111 = vld [vmem:[%s0 + $0x280] sm:$0xff]
  %v112 = vld [vmem:[%s0 + $0x288] sm:$0xff]
  %v113 = vld [vmem:[%s0 + $0x290] sm:$0xff]
  %v114 = vld [vmem:[%s0 + $0x298] sm:$0xff]
  %v115 = vld [vmem:[%s0 + $0x2a0] sm:$0xff]
  %v116 = vld [vmem:[%s0 + $0x2a8] sm:$0xff]
  %v117 = vld [vmem:[%s0 + $0x2b0] sm:$0xff]
  %v118 = vld [vmem:[%s0 + $0x2b8] sm:$0xff]
  %v119 = vld [vmem:[%s0 + $0x2c0] sm:$0xff]
  %v120 = vld [vmem:[%s0 + $0x2c8] sm:$0xff]
  %v121 = vld [vmem:[%s0 + $0x2d0] sm:$0xff]
  %v122 = vld [vmem:[%s0 + $0x2d8] sm:$0xff]
  %v123 = vld [vmem:[%s0 + $0x2e0] sm:$0xff]
  %v124 = vld [vmem:[%s0 + $0x2e8] sm:$0xff]
  %v125 = vld [vmem:[%s0 + $0x2f0] sm:$0xff]
  %v126 = vld [vmem:[%s0 + $0x2f8] sm:$0xff]
  %v127 = vld [vmem:[%s0 + $0x300] sm:$0xff]
  %v128 = vld [vmem:[%s0 + $0x308] sm:$0xff]
  %v129 = vld [vmem:[%s0 + $0x310] sm:$0xff]
  %v130 = vld [vmem:[%s0 + $0x318] sm:$0xff]
  %v131 = vld [vmem:[%s0 + $0x320] sm:$0xff]
  %v132 = vld [vmem:[%s0 + $0x328] sm:$0xff]
  %v133 = vld [vmem:[%s0 + $0x330] sm:$0xff]
  %v134 = vld [vmem:[%s0 + $0x338] sm:$0xff]
  %v135 = vld [vmem:[%s0 + $0x340] sm:$0xff]
  %v136 = vld [vmem:[%s0 + $0x348] sm:$0xff]
  %v137 = vld [vmem:[%s0 + $0x350] sm:$0xff]
  %v138 = vld [vmem:[%s0 + $0x358] sm:$0xff]
  %v139 = vld [vmem:[%s0 + $0x360] sm:$0xff]
  %v140 = vld [vmem:[%s0 + $0x368] sm:$0xff]
  %v141 = vld [vmem:[%s0 + $0x370] sm:$0xff]
  %v142 = vld [vmem:[%s0 + $0x378] sm:$0xff]
  %v143 = vld [vmem:[%s0 + $0x380] sm:$0xff]
  %v144 = vld [vmem:[%s0 + $0x388] sm:$0xff]
  %v145 = vld [vmem:[%s0 + $0x390] sm:$0xff]
  %v146 = vld [vmem:[%s0 + $0x398] sm:$0xff]
  %v147 = vld [vmem:[%s0 + $0x3a0] sm:$0xff]
  %v148 = vld [vmem:[%s0 + $0x3a8] sm:$0xff]
  %v149 = vld [vmem:[%s0 + $0x3b0] sm:$0xff]
  %v150 = vld [vmem:[%s0 + $0x3b8] sm:$0xff]
  %v151 = vld [vmem:[%s0 + $0x3c0] sm:$0xff]
  %v152 = vld [vmem:[%s0 + $0x3c8] sm:$0xff]
  %v153 = vld [vmem:[%s0 + $0x3d0] sm:$0xff]
  %v154 = vld [vmem:[%s0 + $0x3d8] sm:$0xff]
  %v155 = vld [vmem:[%s0 + $0x3e0] sm:$0xff]
  %v156 = vld [vmem:[%s0 + $0x3e8] sm:$0xff]
  %v157 = vld [vmem:[%s0 + $0x3f0] sm:$0xff]
  %v158 = vld [vmem:[%s0 + $0x3f8] sm:$0xff]
  %v159 = vld [vmem:[%s0 + $0x400] sm:$0x11]
  %v160 = vld [vmem:[%s0 + $0x408] sm:$0x11]
  %v161 = vld [vmem:[%s0 + $0x410] sm:$0x11]
  %v162 = vld [vmem:[%s0 + $0x418] sm:$0x11]
  %v163 = vld [vmem:[%s0 + $0x420] sm:$0x11]
  %v164 = vld [vmem:[%s0 + $0x428] sm:$0x11]
  %v165 = vld [vmem:[%s0 + $0x430] sm:$0x11]
  %v166 = vld [vmem:[%s0 + $0x438] sm:$0x11]
  %v167 = vld [vmem:[%s0 + $0x440] sm:$0x11]
  %v168 = vld [vmem:[%s0 + $0x448] sm:$0x11]
  %v169 = vld [vmem:[%s0 + $0x450] sm:$0x11]
  %v170 = vld [vmem:[%s0 + $0x458] sm:$0x11]
  %v171 = vld [vmem:[%s0 + $0x460] sm:$0x11]
  %v172 = vld [vmem:[%s0 + $0x468] sm:$0x11]
  %v173 = vld [vmem:[%s0 + $0x470] sm:$0x11]
  %v174 = vld [vmem:[%s0 + $0x478] sm:$0x11]
  %v179 = vunpack.c.l.b16 %v27
  %v180 = vunpack.c.l.b16 %v28
  %v181 = vunpack.c.l.b16 %v29
  %v182 = vunpack.c.l.b16 %v30
  %v183 = vpack.c.b16 %v180, %v179
  %v184 = vpack.c.b16 %v182, %v181
  %v329 = vunpack.c.l.b16 %v31
  %v330 = vunpack.c.h.b16 %v31
  %v331 = vunpack.c.l.b16 %v32
  %v332 = vunpack.c.h.b16 %v32
  %v333 = vunpack.c.l.b16 %v33
  %v334 = vunpack.c.h.b16 %v33
  %v335 = vunpack.c.l.b16 %v34
  %v336 = vunpack.c.h.b16 %v34
  %v337 = vunpack.c.l.b16 %v35
  %v338 = vunpack.c.h.b16 %v35
  %v339 = vunpack.c.l.b16 %v36
  %v340 = vunpack.c.h.b16 %v36
  %v341 = vunpack.c.l.b16 %v37
  %v342 = vunpack.c.h.b16 %v37
  %v343 = vunpack.c.l.b16 %v38
  %v344 = vunpack.c.h.b16 %v38
  %v345 = vunpack.c.l.b16 %v39
  %v346 = vunpack.c.h.b16 %v39
  %v347 = vunpack.c.l.b16 %v40
  %v348 = vunpack.c.h.b16 %v40
  %v349 = vunpack.c.l.b16 %v41
  %v350 = vunpack.c.h.b16 %v41
  %v351 = vunpack.c.l.b16 %v42
  %v352 = vunpack.c.h.b16 %v42
  %v353 = vunpack.c.l.b16 %v43
  %v354 = vunpack.c.h.b16 %v43
  %v355 = vunpack.c.l.b16 %v44
  %v356 = vunpack.c.h.b16 %v44
  %v357 = vunpack.c.l.b16 %v45
  %v358 = vunpack.c.h.b16 %v45
  %v359 = vunpack.c.l.b16 %v46
  %v360 = vunpack.c.h.b16 %v46
  %v361 = vunpack.c.l.b16 %v47
  %v362 = vunpack.c.h.b16 %v47
  %v363 = vunpack.c.l.b16 %v48
  %v364 = vunpack.c.h.b16 %v48
  %v365 = vunpack.c.l.b16 %v49
  %v366 = vunpack.c.h.b16 %v49
  %v367 = vunpack.c.l.b16 %v50
  %v368 = vunpack.c.h.b16 %v50
  %v369 = vunpack.c.l.b16 %v51
  %v370 = vunpack.c.h.b16 %v51
  %v371 = vunpack.c.l.b16 %v52
  %v372 = vunpack.c.h.b16 %v52
  %v373 = vunpack.c.l.b16 %v53
  %v374 = vunpack.c.h.b16 %v53
  %v375 = vunpack.c.l.b16 %v54
  %v376 = vunpack.c.h.b16 %v54
  %v377 = vunpack.c.l.b16 %v55
  %v378 = vunpack.c.h.b16 %v55
  %v379 = vunpack.c.l.b16 %v56
  %v380 = vunpack.c.h.b16 %v56
  %v381 = vunpack.c.l.b16 %v57
  %v382 = vunpack.c.h.b16 %v57
  %v383 = vunpack.c.l.b16 %v58
  %v384 = vunpack.c.h.b16 %v58
  %v385 = vunpack.c.l.b16 %v59
  %v386 = vunpack.c.h.b16 %v59
  %v387 = vunpack.c.l.b16 %v60
  %v388 = vunpack.c.h.b16 %v60
  %v389 = vunpack.c.l.b16 %v61
  %v390 = vunpack.c.h.b16 %v61
  %v391 = vunpack.c.l.b16 %v62
  %v392 = vunpack.c.h.b16 %v62
  %v393 = vunpack.c.l.b16 %v63
  %v394 = vunpack.c.h.b16 %v63
  %v395 = vunpack.c.l.b16 %v64
  %v396 = vunpack.c.h.b16 %v64
  %v397 = vunpack.c.l.b16 %v65
  %v398 = vunpack.c.h.b16 %v65
  %v399 = vunpack.c.l.b16 %v66
  %v400 = vunpack.c.h.b16 %v66
  %v401 = vunpack.c.l.b16 %v67
  %v402 = vunpack.c.h.b16 %v67
  %v403 = vunpack.c.l.b16 %v68
  %v404 = vunpack.c.h.b16 %v68
  %v405 = vunpack.c.l.b16 %v69
  %v406 = vunpack.c.h.b16 %v69
  %v407 = vunpack.c.l.b16 %v70
  %v408 = vunpack.c.h.b16 %v70
  %v409 = vunpack.c.l.b16 %v71
  %v410 = vunpack.c.h.b16 %v71
  %v411 = vunpack.c.l.b16 %v72
  %v412 = vunpack.c.h.b16 %v72
  %v413 = vunpack.c.l.b16 %v73
  %v414 = vunpack.c.h.b16 %v73
  %v415 = vunpack.c.l.b16 %v74
  %v416 = vunpack.c.h.b16 %v74
  %v417 = vunpack.c.l.b16 %v75
  %v418 = vunpack.c.h.b16 %v75
  %v419 = vunpack.c.l.b16 %v76
  %v420 = vunpack.c.h.b16 %v76
  %v421 = vunpack.c.l.b16 %v77
  %v422 = vunpack.c.h.b16 %v77
  %v423 = vunpack.c.l.b16 %v78
  %v424 = vunpack.c.h.b16 %v78
  %v425 = vunpack.c.l.b16 %v79
  %v426 = vunpack.c.h.b16 %v79
  %v427 = vunpack.c.l.b16 %v80
  %v428 = vunpack.c.h.b16 %v80
  %v429 = vunpack.c.l.b16 %v81
  %v430 = vunpack.c.h.b16 %v81
  %v431 = vunpack.c.l.b16 %v82
  %v432 = vunpack.c.h.b16 %v82
  %v433 = vunpack.c.l.b16 %v83
  %v434 = vunpack.c.h.b16 %v83
  %v435 = vunpack.c.l.b16 %v84
  %v436 = vunpack.c.h.b16 %v84
  %v437 = vunpack.c.l.b16 %v85
  %v438 = vunpack.c.h.b16 %v85
  %v439 = vunpack.c.l.b16 %v86
  %v440 = vunpack.c.h.b16 %v86
  %v441 = vunpack.c.l.b16 %v87
  %v442 = vunpack.c.h.b16 %v87
  %v443 = vunpack.c.l.b16 %v88
  %v444 = vunpack.c.h.b16 %v88
  %v445 = vunpack.c.l.b16 %v89
  %v446 = vunpack.c.h.b16 %v89
  %v447 = vunpack.c.l.b16 %v90
  %v448 = vunpack.c.h.b16 %v90
  %v449 = vunpack.c.l.b16 %v91
  %v450 = vunpack.c.h.b16 %v91
  %v451 = vunpack.c.l.b16 %v92
  %v452 = vunpack.c.h.b16 %v92
  %v453 = vunpack.c.l.b16 %v93
  %v454 = vunpack.c.h.b16 %v93
  %v455 = vunpack.c.l.b16 %v94
  %v456 = vunpack.c.h.b16 %v94
  %v457 = vunpack.c.l.b16 %v95
  %v458 = vunpack.c.h.b16 %v95
  %v459 = vunpack.c.l.b16 %v96
  %v460 = vunpack.c.h.b16 %v96
  %v461 = vunpack.c.l.b16 %v97
  %v462 = vunpack.c.h.b16 %v97
  %v463 = vunpack.c.l.b16 %v98
  %v464 = vunpack.c.h.b16 %v98
  %v465 = vunpack.c.l.b16 %v99
  %v466 = vunpack.c.h.b16 %v99
  %v467 = vunpack.c.l.b16 %v100
  %v468 = vunpack.c.h.b16 %v100
  %v469 = vunpack.c.l.b16 %v101
  %v470 = vunpack.c.h.b16 %v101
  %v471 = vunpack.c.l.b16 %v102
  %v472 = vunpack.c.h.b16 %v102
  %v473 = vunpack.c.l.b16 %v103
  %v474 = vunpack.c.h.b16 %v103
  %v475 = vunpack.c.l.b16 %v104
  %v476 = vunpack.c.h.b16 %v104
  %v477 = vunpack.c.l.b16 %v105
  %v478 = vunpack.c.h.b16 %v105
  %v479 = vunpack.c.l.b16 %v106
  %v480 = vunpack.c.h.b16 %v106
  %v481 = vunpack.c.l.b16 %v107
  %v482 = vunpack.c.h.b16 %v107
  %v483 = vunpack.c.l.b16 %v108
  %v484 = vunpack.c.h.b16 %v108
  %v485 = vunpack.c.l.b16 %v109
  %v486 = vunpack.c.h.b16 %v109
  %v487 = vunpack.c.l.b16 %v110
  %v488 = vunpack.c.h.b16 %v110
  %v489 = vunpack.c.l.b16 %v111
  %v490 = vunpack.c.h.b16 %v111
  %v491 = vunpack.c.l.b16 %v112
  %v492 = vunpack.c.h.b16 %v112
  %v493 = vunpack.c.l.b16 %v113
  %v494 = vunpack.c.h.b16 %v113
  %v495 = vunpack.c.l.b16 %v114
  %v496 = vunpack.c.h.b16 %v114
  %v497 = vunpack.c.l.b16 %v115
  %v498 = vunpack.c.h.b16 %v115
  %v499 = vunpack.c.l.b16 %v116
  %v500 = vunpack.c.h.b16 %v116
  %v501 = vunpack.c.l.b16 %v117
  %v502 = vunpack.c.h.b16 %v117
  %v503 = vunpack.c.l.b16 %v118
  %v504 = vunpack.c.h.b16 %v118
  %v505 = vunpack.c.l.b16 %v119
  %v506 = vunpack.c.h.b16 %v119
  %v507 = vunpack.c.l.b16 %v120
  %v508 = vunpack.c.h.b16 %v120
  %v509 = vunpack.c.l.b16 %v121
  %v510 = vunpack.c.h.b16 %v121
  %v511 = vunpack.c.l.b16 %v122
  %v512 = vunpack.c.h.b16 %v122
  %v513 = vunpack.c.l.b16 %v123
  %v514 = vunpack.c.h.b16 %v123
  %v515 = vunpack.c.l.b16 %v124
  %v516 = vunpack.c.h.b16 %v124
  %v517 = vunpack.c.l.b16 %v125
  %v518 = vunpack.c.h.b16 %v125
  %v519 = vunpack.c.l.b16 %v126
  %v520 = vunpack.c.h.b16 %v126
  %v521 = vunpack.c.l.b16 %v127
  %v522 = vunpack.c.h.b16 %v127
  %v523 = vunpack.c.l.b16 %v128
  %v524 = vunpack.c.h.b16 %v128
  %v525 = vunpack.c.l.b16 %v129
  %v526 = vunpack.c.h.b16 %v129
  %v527 = vunpack.c.l.b16 %v130
  %v528 = vunpack.c.h.b16 %v130
  %v529 = vunpack.c.l.b16 %v131
  %v530 = vunpack.c.h.b16 %v131
  %v531 = vunpack.c.l.b16 %v132
  %v532 = vunpack.c.h.b16 %v132
  %v533 = vunpack.c.l.b16 %v133
  %v534 = vunpack.c.h.b16 %v133
  %v535 = vunpack.c.l.b16 %v134
  %v536 = vunpack.c.h.b16 %v134
  %v537 = vunpack.c.l.b16 %v135
  %v538 = vunpack.c.h.b16 %v135
  %v539 = vunpack.c.l.b16 %v136
  %v540 = vunpack.c.h.b16 %v136
  %v541 = vunpack.c.l.b16 %v137
  %v542 = vunpack.c.h.b16 %v137
  %v543 = vunpack.c.l.b16 %v138
  %v544 = vunpack.c.h.b16 %v138
  %v545 = vunpack.c.l.b16 %v139
  %v546 = vunpack.c.h.b16 %v139
  %v547 = vunpack.c.l.b16 %v140
  %v548 = vunpack.c.h.b16 %v140
  %v549 = vunpack.c.l.b16 %v141
  %v550 = vunpack.c.h.b16 %v141
  %v551 = vunpack.c.l.b16 %v142
  %v552 = vunpack.c.h.b16 %v142
  %v553 = vunpack.c.l.b16 %v143
  %v554 = vunpack.c.h.b16 %v143
  %v555 = vunpack.c.l.b16 %v144
  %v556 = vunpack.c.h.b16 %v144
  %v557 = vunpack.c.l.b16 %v145
  %v558 = vunpack.c.h.b16 %v145
  %v559 = vunpack.c.l.b16 %v146
  %v560 = vunpack.c.h.b16 %v146
  %v561 = vunpack.c.l.b16 %v147
  %v562 = vunpack.c.h.b16 %v147
  %v563 = vunpack.c.l.b16 %v148
  %v564 = vunpack.c.h.b16 %v148
  %v565 = vunpack.c.l.b16 %v149
  %v566 = vunpack.c.h.b16 %v149
  %v567 = vunpack.c.l.b16 %v150
  %v568 = vunpack.c.h.b16 %v150
  %v569 = vunpack.c.l.b16 %v151
  %v570 = vunpack.c.h.b16 %v151
  %v571 = vunpack.c.l.b16 %v152
  %v572 = vunpack.c.h.b16 %v152
  %v573 = vunpack.c.l.b16 %v153
  %v574 = vunpack.c.h.b16 %v153
  %v575 = vunpack.c.l.b16 %v154
  %v576 = vunpack.c.h.b16 %v154
  %v577 = vunpack.c.l.b16 %v155
  %v578 = vunpack.c.h.b16 %v155
  %v579 = vunpack.c.l.b16 %v156
  %v580 = vunpack.c.h.b16 %v156
  %v581 = vunpack.c.l.b16 %v157
  %v582 = vunpack.c.h.b16 %v157
  %v583 = vunpack.c.l.b16 %v158
  %v584 = vunpack.c.h.b16 %v158
  %v585 = vunpack.c.l.b16 %v159
  %v586 = vunpack.c.h.b16 %v159
  %v587 = vunpack.c.l.b16 %v160
  %v588 = vunpack.c.h.b16 %v160
  %v589 = vunpack.c.l.b16 %v161
  %v590 = vunpack.c.h.b16 %v161
  %v591 = vunpack.c.l.b16 %v162
  %v592 = vunpack.c.h.b16 %v162
  %v593 = vunpack.c.l.b16 %v163
  %v594 = vunpack.c.h.b16 %v163
  %v595 = vunpack.c.l.b16 %v164
  %v596 = vunpack.c.h.b16 %v164
  %v597 = vunpack.c.l.b16 %v165
  %v598 = vunpack.c.h.b16 %v165
  %v599 = vunpack.c.l.b16 %v166
  %v600 = vunpack.c.h.b16 %v166
  %v601 = vunpack.c.l.b16 %v167
  %v602 = vunpack.c.h.b16 %v167
  %v603 = vunpack.c.l.b16 %v168
  %v604 = vunpack.c.h.b16 %v168
  %v605 = vunpack.c.l.b16 %v169
  %v606 = vunpack.c.h.b16 %v169
  %v607 = vunpack.c.l.b16 %v170
  %v608 = vunpack.c.h.b16 %v170
  %v609 = vunpack.c.l.b16 %v171
  %v610 = vunpack.c.h.b16 %v171
  %v611 = vunpack.c.l.b16 %v172
  %v612 = vunpack.c.h.b16 %v172
  %v613 = vunpack.c.l.b16 %v173
  %v614 = vunpack.c.h.b16 %v173
  %v615 = vunpack.c.l.b16 %v174
  %v616 = vunpack.c.h.b16 %v174
  %v617 = vpack.c.b16 %v361, %v329
  %v618 = vpack.c.b16 %v362, %v330
  %v619 = vpack.c.b16 %v363, %v331
  %v620 = vpack.c.b16 %v364, %v332
  %v621 = vpack.c.b16 %v365, %v333
  %v622 = vpack.c.b16 %v366, %v334
  %v623 = vpack.c.b16 %v367, %v335
  %v624 = vpack.c.b16 %v368, %v336
  %v625 = vpack.c.b16 %v369, %v337
  %v626 = vpack.c.b16 %v370, %v338
  %v627 = vpack.c.b16 %v371, %v339
  %v628 = vpack.c.b16 %v372, %v340
  %v629 = vpack.c.b16 %v373, %v341
  %v630 = vpack.c.b16 %v374, %v342
  %v631 = vpack.c.b16 %v375, %v343
  %v632 = vpack.c.b16 %v376, %v344
  %v633 = vpack.c.b16 %v377, %v345
  %v634 = vpack.c.b16 %v378, %v346
  %v635 = vpack.c.b16 %v379, %v347
  %v636 = vpack.c.b16 %v380, %v348
  %v637 = vpack.c.b16 %v381, %v349
  %v638 = vpack.c.b16 %v382, %v350
  %v639 = vpack.c.b16 %v383, %v351
  %v640 = vpack.c.b16 %v384, %v352
  %v641 = vpack.c.b16 %v385, %v353
  %v642 = vpack.c.b16 %v386, %v354
  %v643 = vpack.c.b16 %v387, %v355
  %v644 = vpack.c.b16 %v388, %v356
  %v645 = vpack.c.b16 %v389, %v357
  %v646 = vpack.c.b16 %v390, %v358
  %v647 = vpack.c.b16 %v391, %v359
  %v648 = vpack.c.b16 %v392, %v360
  %v649 = vpack.c.b16 %v425, %v393
  %v650 = vpack.c.b16 %v426, %v394
  %v651 = vpack.c.b16 %v427, %v395
  %v652 = vpack.c.b16 %v428, %v396
  %v653 = vpack.c.b16 %v429, %v397
  %v654 = vpack.c.b16 %v430, %v398
  %v655 = vpack.c.b16 %v431, %v399
  %v656 = vpack.c.b16 %v432, %v400
  %v657 = vpack.c.b16 %v433, %v401
  %v658 = vpack.c.b16 %v434, %v402
  %v659 = vpack.c.b16 %v435, %v403
  %v660 = vpack.c.b16 %v436, %v404
  %v661 = vpack.c.b16 %v437, %v405
  %v662 = vpack.c.b16 %v438, %v406
  %v663 = vpack.c.b16 %v439, %v407
  %v664 = vpack.c.b16 %v440, %v408
  %v665 = vpack.c.b16 %v441, %v409
  %v666 = vpack.c.b16 %v442, %v410
  %v667 = vpack.c.b16 %v443, %v411
  %v668 = vpack.c.b16 %v444, %v412
  %v669 = vpack.c.b16 %v445, %v413
  %v670 = vpack.c.b16 %v446, %v414
  %v671 = vpack.c.b16 %v447, %v415
  %v672 = vpack.c.b16 %v448, %v416
  %v673 = vpack.c.b16 %v449, %v417
  %v674 = vpack.c.b16 %v450, %v418
  %v675 = vpack.c.b16 %v451, %v419
  %v676 = vpack.c.b16 %v452, %v420
  %v677 = vpack.c.b16 %v453, %v421
  %v678 = vpack.c.b16 %v454, %v422
  %v679 = vpack.c.b16 %v455, %v423
  %v680 = vpack.c.b16 %v456, %v424
  %v681 = vpack.c.b16 %v489, %v457
  %v682 = vpack.c.b16 %v490, %v458
  %v683 = vpack.c.b16 %v491, %v459
  %v684 = vpack.c.b16 %v492, %v460
  %v685 = vpack.c.b16 %v493, %v461
  %v686 = vpack.c.b16 %v494, %v462
  %v687 = vpack.c.b16 %v495, %v463
  %v688 = vpack.c.b16 %v496, %v464
  %v689 = vpack.c.b16 %v497, %v465
  %v690 = vpack.c.b16 %v498, %v466
  %v691 = vpack.c.b16 %v499, %v467
  %v692 = vpack.c.b16 %v500, %v468
  %v693 = vpack.c.b16 %v501, %v469
  %v694 = vpack.c.b16 %v502, %v470
  %v695 = vpack.c.b16 %v503, %v471
  %v696 = vpack.c.b16 %v504, %v472
  %v697 = vpack.c.b16 %v505, %v473
  %v698 = vpack.c.b16 %v506, %v474
  %v699 = vpack.c.b16 %v507, %v475
  %v700 = vpack.c.b16 %v508, %v476
  %v701 = vpack.c.b16 %v509, %v477
  %v702 = vpack.c.b16 %v510, %v478
  %v703 = vpack.c.b16 %v511, %v479
  %v704 = vpack.c.b16 %v512, %v480
  %v705 = vpack.c.b16 %v513, %v481
  %v706 = vpack.c.b16 %v514, %v482
  %v707 = vpack.c.b16 %v515, %v483
  %v708 = vpack.c.b16 %v516, %v484
  %v709 = vpack.c.b16 %v517, %v485
  %v710 = vpack.c.b16 %v518, %v486
  %v711 = vpack.c.b16 %v519, %v487
  %v712 = vpack.c.b16 %v520, %v488
  %v713 = vpack.c.b16 %v553, %v521
  %v714 = vpack.c.b16 %v554, %v522
  %v715 = vpack.c.b16 %v555, %v523
  %v716 = vpack.c.b16 %v556, %v524
  %v717 = vpack.c.b16 %v557, %v525
  %v718 = vpack.c.b16 %v558, %v526
  %v719 = vpack.c.b16 %v559, %v527
  %v720 = vpack.c.b16 %v560, %v528
  %v721 = vpack.c.b16 %v561, %v529
  %v722 = vpack.c.b16 %v562, %v530
  %v723 = vpack.c.b16 %v563, %v531
  %v724 = vpack.c.b16 %v564, %v532
  %v725 = vpack.c.b16 %v565, %v533
  %v726 = vpack.c.b16 %v566, %v534
  %v727 = vpack.c.b16 %v567, %v535
  %v728 = vpack.c.b16 %v568, %v536
  %v729 = vpack.c.b16 %v569, %v537
  %v730 = vpack.c.b16 %v570, %v538
  %v731 = vpack.c.b16 %v571, %v539
  %v732 = vpack.c.b16 %v572, %v540
  %v733 = vpack.c.b16 %v573, %v541
  %v734 = vpack.c.b16 %v574, %v542
  %v735 = vpack.c.b16 %v575, %v543
  %v736 = vpack.c.b16 %v576, %v544
  %v737 = vpack.c.b16 %v577, %v545
  %v738 = vpack.c.b16 %v578, %v546
  %v739 = vpack.c.b16 %v579, %v547
  %v740 = vpack.c.b16 %v580, %v548
  %v741 = vpack.c.b16 %v581, %v549
  %v742 = vpack.c.b16 %v582, %v550
  %v743 = vpack.c.b16 %v583, %v551
  %v744 = vpack.c.b16 %v584, %v552
  %v745 = vpack.c.b16 %v585, %v585
  %v746 = vpack.c.b16 %v586, %v586
  %v747 = vpack.c.b16 %v587, %v587
  %v748 = vpack.c.b16 %v588, %v588
  %v749 = vpack.c.b16 %v589, %v589
  %v750 = vpack.c.b16 %v590, %v590
  %v751 = vpack.c.b16 %v591, %v591
  %v752 = vpack.c.b16 %v592, %v592
  %v753 = vpack.c.b16 %v593, %v593
  %v754 = vpack.c.b16 %v594, %v594
  %v755 = vpack.c.b16 %v595, %v595
  %v756 = vpack.c.b16 %v596, %v596
  %v757 = vpack.c.b16 %v597, %v597
  %v758 = vpack.c.b16 %v598, %v598
  %v759 = vpack.c.b16 %v599, %v599
  %v760 = vpack.c.b16 %v600, %v600
  %v761 = vpack.c.b16 %v601, %v601
  %v762 = vpack.c.b16 %v602, %v602
  %v763 = vpack.c.b16 %v603, %v603
  %v764 = vpack.c.b16 %v604, %v604
  %v765 = vpack.c.b16 %v605, %v605
  %v766 = vpack.c.b16 %v606, %v606
  %v767 = vpack.c.b16 %v607, %v607
  %v768 = vpack.c.b16 %v608, %v608
  %v769 = vpack.c.b16 %v609, %v609
  %v770 = vpack.c.b16 %v610, %v610
  %v771 = vpack.c.b16 %v611, %v611
  %v772 = vpack.c.b16 %v612, %v612
  %v773 = vpack.c.b16 %v613, %v613
  %v774 = vpack.c.b16 %v614, %v614
  %v775 = vpack.c.b16 %v615, %v615
  %v776 = vpack.c.b16 %v616, %v616
  %vm905 = vcmask 539648
  %v907 = vsel %vm905, %v183, 0
  %v910 = vsel %vm905, %v184, 0
  %vm912 = vcmask 1040384
  %v914 = vsel %vm912, %v745, 0
  %v917 = vsel %vm912, %v746, 0
  %v920 = vsel %vm912, %v747, 0
  %v923 = vsel %vm912, %v748, 0
  %v926 = vsel %vm912, %v749, 0
  %v929 = vsel %vm912, %v750, 0
  %v932 = vsel %vm912, %v751, 0
  %v935 = vsel %vm912, %v752, 0
  %v938 = vsel %vm912, %v753, 0
  %v941 = vsel %vm912, %v754, 0
  %v944 = vsel %vm912, %v755, 0
  %v947 = vsel %vm912, %v756, 0
  %v950 = vsel %vm912, %v757, 0
  %v953 = vsel %vm912, %v758, 0
  %v956 = vsel %vm912, %v759, 0
  %v959 = vsel %vm912, %v760, 0
  %v962 = vsel %vm912, %v761, 0
  %v965 = vsel %vm912, %v762, 0
  %v968 = vsel %vm912, %v763, 0
  %v971 = vsel %vm912, %v764, 0
  %v974 = vsel %vm912, %v765, 0
  %v977 = vsel %vm912, %v766, 0
  %v980 = vsel %vm912, %v767, 0
  %v983 = vsel %vm912, %v768, 0
  %v986 = vsel %vm912, %v769, 0
  %v989 = vsel %vm912, %v770, 0
  %v992 = vsel %vm912, %v771, 0
  %v995 = vsel %vm912, %v772, 0
  %v998 = vsel %vm912, %v773, 0
  %v1001 = vsel %vm912, %v774, 0
  %v1004 = vsel %vm912, %v775, 0
  %v1007 = vsel %vm912, %v776, 0
  %1009 = vmatprep.subr.bf16.mxu0 %v618
  %1010 = vmatpush1.bf16.msra.mxu0 %v617
  %1011 = vmatprep.subr.bf16.mxu0 %v650
  %1012 = vmatpush1.bf16.msra.mxu0 %v649
  %1013 = vmatprep.subr.bf16.mxu0 %v682
  %1014 = vmatpush1.bf16.msra.mxu0 %v681
  %1015 = vmatprep.subr.bf16.mxu0 %v714
  %1016 = vmatpush1.bf16.msra.mxu0 %v713
  %1017 = vmatprep.subr.bf16.mxu0 %v917
  %1018 = vmatpush1.bf16.msra.mxu0 %v914
  %1019 = vmatprep.subr.bf16.mxu0 0
  %1020 = vmatpush1.bf16.msra.mxu0 0
  %1021 = vmatprep.subr.bf16.mxu0 0
  %1022 = vmatpush1.bf16.msra.mxu0 0
  %1023 = vmatprep.subr.bf16.mxu0 0
  %1024 = vmatpush1.bf16.msra.mxu0 0
  %1025 = vmatprep.subr.bf16.mxu0 0
  %1026 = vmatpush1.bf16.msra.mxu0 0
  %1027 = vmatprep.subr.bf16.mxu0 0
  %1028 = vmatpush1.bf16.msra.mxu0 0
  %1029 = vmatprep.subr.bf16.mxu0 0
  %1030 = vmatpush1.bf16.msra.mxu0 0
  %1031 = vmatprep.subr.bf16.mxu0 0
  %1032 = vmatpush1.bf16.msra.mxu0 0
  %1033 = vmatprep.subr.bf16.mxu0 0
  %1034 = vmatpush1.bf16.msra.mxu0 0
  %1035 = vmatprep.subr.bf16.mxu0 0
  %1036 = vmatpush1.bf16.msra.mxu0 0
  %1037 = vmatprep.subr.bf16.mxu0 0
  %1038 = vmatpush1.bf16.msra.mxu0 0
  %1039 = vmatprep.subr.bf16.mxu0 0
  %1040 = vmatpush1.bf16.msra.mxu0 0
  %1041 = vmatprep.mubr.bf16.mxu0 0
  %1042 = vmatmul.mubr.bf16.gmra.mrb[0].mxu0 %v907
  %v1043 = vpop.f32.mrb[0].mxu0
  %v1044 = vadd.f32 0.0, %v1043
  %v1045 = vpop.f32.mrb[0].mxu0
  %v1046 = vadd.f32 0.0, %v1045
  %v1047 = vpop.f32.mrb[0].mxu0
  %v1048 = vadd.f32 0.0, %v1047
  %v1049 = vpop.f32.mrb[0].mxu0
  %v1050 = vadd.f32 0.0, %v1049
  %1051 = vmatprep.mubr.bf16.mxu0 0
  %1052 = vmatmul.mubr.bf16.gmra.mrb[0].mxu0 %v910
  %v1053 = vpop.f32.mrb[0].mxu0
  %v1054 = vadd.f32 0.0, %v1053
  %v1055 = vpop.f32.mrb[0].mxu0
  %v1056 = vadd.f32 0.0, %v1055
  %v1057 = vpop.f32.mrb[0].mxu0
  %v1058 = vadd.f32 0.0, %v1057
  %v1059 = vpop.f32.mrb[0].mxu0
  %v1060 = vadd.f32 0.0, %v1059
  %1061 = vdwg.mxu0
  %1062 = vmatprep.subr.bf16.mxu0 %v620
  %1063 = vmatpush1.bf16.msra.mxu0 %v619
  %1064 = vmatprep.subr.bf16.mxu0 %v652
  %1065 = vmatpush1.bf16.msra.mxu0 %v651
  %1066 = vmatprep.subr.bf16.mxu0 %v684
  %1067 = vmatpush1.bf16.msra.mxu0 %v683
  %1068 = vmatprep.subr.bf16.mxu0 %v716
  %1069 = vmatpush1.bf16.msra.mxu0 %v715
  %1070 = vmatprep.subr.bf16.mxu0 %v923
  %1071 = vmatpush1.bf16.msra.mxu0 %v920
  %1072 = vmatprep.subr.bf16.mxu0 0
  %1073 = vmatpush1.bf16.msra.mxu0 0
  %1074 = vmatprep.subr.bf16.mxu0 0
  %1075 = vmatpush1.bf16.msra.mxu0 0
  %1076 = vmatprep.subr.bf16.mxu0 0
  %1077 = vmatpush1.bf16.msra.mxu0 0
  %1078 = vmatprep.subr.bf16.mxu0 0
  %1079 = vmatpush1.bf16.msra.mxu0 0
  %1080 = vmatprep.subr.bf16.mxu0 0
  %1081 = vmatpush1.bf16.msra.mxu0 0
  %1082 = vmatprep.subr.bf16.mxu0 0
  %1083 = vmatpush1.bf16.msra.mxu0 0
  %1084 = vmatprep.subr.bf16.mxu0 0
  %1085 = vmatpush1.bf16.msra.mxu0 0
  %1086 = vmatprep.subr.bf16.mxu0 0
  %1087 = vmatpush1.bf16.msra.mxu0 0
  %1088 = vmatprep.subr.bf16.mxu0 0
  %1089 = vmatpush1.bf16.msra.mxu0 0
  %1090 = vmatprep.subr.bf16.mxu0 0
  %1091 = vmatpush1.bf16.msra.mxu0 0
  %1092 = vmatprep.subr.bf16.mxu0 0
  %1093 = vmatpush1.bf16.msra.mxu0 0
  %1094 = vmatprep.mubr.bf16.mxu0 0
  %1095 = vmatmul.mubr.bf16.gmra.mrb[0].mxu0 %v907
  %v1096 = vpop.f32.mrb[0].mxu0
  %v1097 = vadd.f32 0.0, %v1096
  %v1098 = vpop.f32.mrb[0].mxu0
  %v1099 = vadd.f32 0.0, %v1098
  %v1100 = vpop.f32.mrb[0].mxu0
  %v1101 = vadd.f32 0.0, %v1100
  %v1102 = vpop.f32.mrb[0].mxu0
  %v1103 = vadd.f32 0.0, %v1102
  %1104 = vmatprep.mubr.bf16.mxu0 0
  %1105 = vmatmul.mubr.bf16.gmra.mrb[0].mxu0 %v910
  %v1106 = vpop.f32.mrb[0].mxu0
  %v1107 = vadd.f32 0.0, %v1106
  %v1108 = vpop.f32.mrb[0].mxu0
  %v1109 = vadd.f32 0.0, %v1108
  %v1110 = vpop.f32.mrb[0].mxu0
  %v1111 = vadd.f32 0.0, %v1110
  %v1112 = vpop.f32.mrb[0].mxu0
  %v1113 = vadd.f32 0.0, %v1112
  %1114 = vdwg.mxu0
  %1115 = vmatprep.subr.bf16.mxu0 %v622
  %1116 = vmatpush1.bf16.msra.mxu0 %v621
  %1117 = vmatprep.subr.bf16.mxu0 %v654
  %1118 = vmatpush1.bf16.msra.mxu0 %v653
  %1119 = vmatprep.subr.bf16.mxu0 %v686
  %1120 = vmatpush1.bf16.msra.mxu0 %v685
  %1121 = vmatprep.subr.bf16.mxu0 %v718
  %1122 = vmatpush1.bf16.msra.mxu0 %v717
  %1123 = vmatprep.subr.bf16.mxu0 %v929
  %1124 = vmatpush1.bf16.msra.mxu0 %v926
  %1125 = vmatprep.subr.bf16.mxu0 0
  %1126 = vmatpush1.bf16.msra.mxu0 0
  %1127 = vmatprep.subr.bf16.mxu0 0
  %1128 = vmatpush1.bf16.msra.mxu0 0
  %1129 = vmatprep.subr.bf16.mxu0 0
  %1130 = vmatpush1.bf16.msra.mxu0 0
  %1131 = vmatprep.subr.bf16.mxu0 0
  %1132 = vmatpush1.bf16.msra.mxu0 0
  %1133 = vmatprep.subr.bf16.mxu0 0
  %1134 = vmatpush1.bf16.msra.mxu0 0
  %1135 = vmatprep.subr.bf16.mxu0 0
  %1136 = vmatpush1.bf16.msra.mxu0 0
  %1137 = vmatprep.subr.bf16.mxu0 0
  %1138 = vmatpush1.bf16.msra.mxu0 0
  %1139 = vmatprep.subr.bf16.mxu0 0
  %1140 = vmatpush1.bf16.msra.mxu0 0
  %1141 = vmatprep.subr.bf16.mxu0 0
  %1142 = vmatpush1.bf16.msra.mxu0 0
  %1143 = vmatprep.subr.bf16.mxu0 0
  %1144 = vmatpush1.bf16.msra.mxu0 0
  %1145 = vmatprep.subr.bf16.mxu0 0
  %1146 = vmatpush1.bf16.msra.mxu0 0
  %1147 = vmatprep.mubr.bf16.mxu0 0
  %1148 = vmatmul.mubr.bf16.gmra.mrb[0].mxu0 %v907
  %v1149 = vpop.f32.mrb[0].mxu0
  %v1150 = vadd.f32 0.0, %v1149
  %v1151 = vpop.f32.mrb[0].mxu0
  %v1152 = vadd.f32 0.0, %v1151
  %v1153 = vpop.f32.mrb[0].mxu0
  %v1154 = vadd.f32 0.0, %v1153
  %v1155 = vpop.f32.mrb[0].mxu0
  %v1156 = vadd.f32 0.0, %v1155
  %1157 = vmatprep.mubr.bf16.mxu0 0
  %1158 = vmatmul.mubr.bf16.gmra.mrb[0].mxu0 %v910
  %v1159 = vpop.f32.mrb[0].mxu0
  %v1160 = vadd.f32 0.0, %v1159
  %v1161 = vpop.f32.mrb[0].mxu0
  %v1162 = vadd.f32 0.0, %v1161
  %v1163 = vpop.f32.mrb[0].mxu0
  %v1164 = vadd.f32 0.0, %v1163
  %v1165 = vpop.f32.mrb[0].mxu0
  %v1166 = vadd.f32 0.0, %v1165
  %1167 = vdwg.mxu0
  %1168 = vmatprep.subr.bf16.mxu0 %v624
  %1169 = vmatpush1.bf16.msra.mxu0 %v623
  %1170 = vmatprep.subr.bf16.mxu0 %v656
  %1171 = vmatpush1.bf16.msra.mxu0 %v655
  %1172 = vmatprep.subr.bf16.mxu0 %v688
  %1173 = vmatpush1.bf16.msra.mxu0 %v687
  %1174 = vmatprep.subr.bf16.mxu0 %v720
  %1175 = vmatpush1.bf16.msra.mxu0 %v719
  %1176 = vmatprep.subr.bf16.mxu0 %v935
  %1177 = vmatpush1.bf16.msra.mxu0 %v932
  %1178 = vmatprep.subr.bf16.mxu0 0
  %1179 = vmatpush1.bf16.msra.mxu0 0
  %1180 = vmatprep.subr.bf16.mxu0 0
  %1181 = vmatpush1.bf16.msra.mxu0 0
  %1182 = vmatprep.subr.bf16.mxu0 0
  %1183 = vmatpush1.bf16.msra.mxu0 0
  %1184 = vmatprep.subr.bf16.mxu0 0
  %1185 = vmatpush1.bf16.msra.mxu0 0
  %1186 = vmatprep.subr.bf16.mxu0 0
  %1187 = vmatpush1.bf16.msra.mxu0 0
  %1188 = vmatprep.subr.bf16.mxu0 0
  %1189 = vmatpush1.bf16.msra.mxu0 0
  %1190 = vmatprep.subr.bf16.mxu0 0
  %1191 = vmatpush1.bf16.msra.mxu0 0
  %1192 = vmatprep.subr.bf16.mxu0 0
  %1193 = vmatpush1.bf16.msra.mxu0 0
  %1194 = vmatprep.subr.bf16.mxu0 0
  %1195 = vmatpush1.bf16.msra.mxu0 0
  %1196 = vmatprep.subr.bf16.mxu0 0
  %1197 = vmatpush1.bf16.msra.mxu0 0
  %1198 = vmatprep.subr.bf16.mxu0 0
  %1199 = vmatpush1.bf16.msra.mxu0 0
  %1200 = vmatprep.mubr.bf16.mxu0 0
  %1201 = vmatmul.mubr.bf16.gmra.mrb[0].mxu0 %v907
  %v1202 = vpop.f32.mrb[0].mxu0
  %v1203 = vadd.f32 0.0, %v1202
  %v1204 = vpop.f32.mrb[0].mxu0
  %v1205 = vadd.f32 0.0, %v1204
  %v1206 = vpop.f32.mrb[0].mxu0
  %v1207 = vadd.f32 0.0, %v1206
  %v1208 = vpop.f32.mrb[0].mxu0
  %v1209 = vadd.f32 0.0, %v1208
  %1210 = vmatprep.mubr.bf16.mxu0 0
  %1211 = vmatmul.mubr.bf16.gmra.mrb[0].mxu0 %v910
  %v1212 = vpop.f32.mrb[0].mxu0
  %v1213 = vadd.f32 0.0, %v1212
  %v1214 = vpop.f32.mrb[0].mxu0
  %v1215 = vadd.f32 0.0, %v1214
  %v1216 = vpop.f32.mrb[0].mxu0
  %v1217 = vadd.f32 0.0, %v1216
  %v1218 = vpop.f32.mrb[0].mxu0
  %v1219 = vadd.f32 0.0, %v1218
  %1220 = vdwg.mxu0
  %1221 = vmatprep.subr.bf16.mxu0 %v626
  %1222 = vmatpush1.bf16.msra.mxu0 %v625
  %1223 = vmatprep.subr.bf16.mxu0 %v658
  %1224 = vmatpush1.bf16.msra.mxu0 %v657
  %1225 = vmatprep.subr.bf16.mxu0 %v690
  %1226 = vmatpush1.bf16.msra.mxu0 %v689
  %1227 = vmatprep.subr.bf16.mxu0 %v722
  %1228 = vmatpush1.bf16.msra.mxu0 %v721
  %1229 = vmatprep.subr.bf16.mxu0 %v941
  %1230 = vmatpush1.bf16.msra.mxu0 %v938
  %1231 = vmatprep.subr.bf16.mxu0 0
  %1232 = vmatpush1.bf16.msra.mxu0 0
  %1233 = vmatprep.subr.bf16.mxu0 0
  %1234 = vmatpush1.bf16.msra.mxu0 0
  %1235 = vmatprep.subr.bf16.mxu0 0
  %1236 = vmatpush1.bf16.msra.mxu0 0
  %1237 = vmatprep.subr.bf16.mxu0 0
  %1238 = vmatpush1.bf16.msra.mxu0 0
  %1239 = vmatprep.subr.bf16.mxu0 0
  %1240 = vmatpush1.bf16.msra.mxu0 0
  %1241 = vmatprep.subr.bf16.mxu0 0
  %1242 = vmatpush1.bf16.msra.mxu0 0
  %1243 = vmatprep.subr.bf16.mxu0 0
  %1244 = vmatpush1.bf16.msra.mxu0 0
  %1245 = vmatprep.subr.bf16.mxu0 0
  %1246 = vmatpush1.bf16.msra.mxu0 0
  %1247 = vmatprep.subr.bf16.mxu0 0
  %1248 = vmatpush1.bf16.msra.mxu0 0
  %1249 = vmatprep.subr.bf16.mxu0 0
  %1250 = vmatpush1.bf16.msra.mxu0 0
  %1251 = vmatprep.subr.bf16.mxu0 0
  %1252 = vmatpush1.bf16.msra.mxu0 0
  %1253 = vmatprep.mubr.bf16.mxu0 0
  %1254 = vmatmul.mubr.bf16.gmra.mrb[0].mxu0 %v907
  %v1255 = vpop.f32.mrb[0].mxu0
  %v1256 = vadd.f32 0.0, %v1255
  %v1257 = vpop.f32.mrb[0].mxu0
  %v1258 = vadd.f32 0.0, %v1257
  %v1259 = vpop.f32.mrb[0].mxu0
  %v1260 = vadd.f32 0.0, %v1259
  %v1261 = vpop.f32.mrb[0].mxu0
  %v1262 = vadd.f32 0.0, %v1261
  %1263 = vmatprep.mubr.bf16.mxu0 0
  %1264 = vmatmul.mubr.bf16.gmra.mrb[0].mxu0 %v910
  %v1265 = vpop.f32.mrb[0].mxu0
  %v1266 = vadd.f32 0.0, %v1265
  %v1267 = vpop.f32.mrb[0].mxu0
  %v1268 = vadd.f32 0.0, %v1267
  %v1269 = vpop.f32.mrb[0].mxu0
  %v1270 = vadd.f32 0.0, %v1269
  %v1271 = vpop.f32.mrb[0].mxu0
  %v1272 = vadd.f32 0.0, %v1271
  %1273 = vdwg.mxu0
  %1274 = vmatprep.subr.bf16.mxu0 %v628
  %1275 = vmatpush1.bf16.msra.mxu0 %v627
  %1276 = vmatprep.subr.bf16.mxu0 %v660
  %1277 = vmatpush1.bf16.msra.mxu0 %v659
  %1278 = vmatprep.subr.bf16.mxu0 %v692
  %1279 = vmatpush1.bf16.msra.mxu0 %v691
  %1280 = vmatprep.subr.bf16.mxu0 %v724
  %1281 = vmatpush1.bf16.msra.mxu0 %v723
  %1282 = vmatprep.subr.bf16.mxu0 %v947
  %1283 = vmatpush1.bf16.msra.mxu0 %v944
  %1284 = vmatprep.subr.bf16.mxu0 0
  %1285 = vmatpush1.bf16.msra.mxu0 0
  %1286 = vmatprep.subr.bf16.mxu0 0
  %1287 = vmatpush1.bf16.msra.mxu0 0
  %1288 = vmatprep.subr.bf16.mxu0 0
  %1289 = vmatpush1.bf16.msra.mxu0 0
  %1290 = vmatprep.subr.bf16.mxu0 0
  %1291 = vmatpush1.bf16.msra.mxu0 0
  %1292 = vmatprep.subr.bf16.mxu0 0
  %1293 = vmatpush1.bf16.msra.mxu0 0
  %1294 = vmatprep.subr.bf16.mxu0 0
  %1295 = vmatpush1.bf16.msra.mxu0 0
  %1296 = vmatprep.subr.bf16.mxu0 0
  %1297 = vmatpush1.bf16.msra.mxu0 0
  %1298 = vmatprep.subr.bf16.mxu0 0
  %1299 = vmatpush1.bf16.msra.mxu0 0
  %1300 = vmatprep.subr.bf16.mxu0 0
  %1301 = vmatpush1.bf16.msra.mxu0 0
  %1302 = vmatprep.subr.bf16.mxu0 0
  %1303 = vmatpush1.bf16.msra.mxu0 0
  %1304 = vmatprep.subr.bf16.mxu0 0
  %1305 = vmatpush1.bf16.msra.mxu0 0
  %1306 = vmatprep.mubr.bf16.mxu0 0
  %1307 = vmatmul.mubr.bf16.gmra.mrb[0].mxu0 %v907
  %v1308 = vpop.f32.mrb[0].mxu0
  %v1309 = vadd.f32 0.0, %v1308
  %v1310 = vpop.f32.mrb[0].mxu0
  %v1311 = vadd.f32 0.0, %v1310
  %v1312 = vpop.f32.mrb[0].mxu0
  %v1313 = vadd.f32 0.0, %v1312
  %v1314 = vpop.f32.mrb[0].mxu0
  %v1315 = vadd.f32 0.0, %v1314
  %1316 = vmatprep.mubr.bf16.mxu0 0
  %1317 = vmatmul.mubr.bf16.gmra.mrb[0].mxu0 %v910
  %v1318 = vpop.f32.mrb[0].mxu0
  %v1319 = vadd.f32 0.0, %v1318
  %v1320 = vpop.f32.mrb[0].mxu0
  %v1321 = vadd.f32 0.0, %v1320
  %v1322 = vpop.f32.mrb[0].mxu0
  %v1323 = vadd.f32 0.0, %v1322
  %v1324 = vpop.f32.mrb[0].mxu0
  %v1325 = vadd.f32 0.0, %v1324
  %1326 = vdwg.mxu0
  %1327 = vmatprep.subr.bf16.mxu0 %v630
  %1328 = vmatpush1.bf16.msra.mxu0 %v629
  %1329 = vmatprep.subr.bf16.mxu0 %v662
  %1330 = vmatpush1.bf16.msra.mxu0 %v661
  %1331 = vmatprep.subr.bf16.mxu0 %v694
  %1332 = vmatpush1.bf16.msra.mxu0 %v693
  %1333 = vmatprep.subr.bf16.mxu0 %v726
  %1334 = vmatpush1.bf16.msra.mxu0 %v725
  %1335 = vmatprep.subr.bf16.mxu0 %v953
  %1336 = vmatpush1.bf16.msra.mxu0 %v950
  %1337 = vmatprep.subr.bf16.mxu0 0
  %1338 = vmatpush1.bf16.msra.mxu0 0
  %1339 = vmatprep.subr.bf16.mxu0 0
  %1340 = vmatpush1.bf16.msra.mxu0 0
  %1341 = vmatprep.subr.bf16.mxu0 0
  %1342 = vmatpush1.bf16.msra.mxu0 0
  %1343 = vmatprep.subr.bf16.mxu0 0
  %1344 = vmatpush1.bf16.msra.mxu0 0
  %1345 = vmatprep.subr.bf16.mxu0 0
  %1346 = vmatpush1.bf16.msra.mxu0 0
  %1347 = vmatprep.subr.bf16.mxu0 0
  %1348 = vmatpush1.bf16.msra.mxu0 0
  %1349 = vmatprep.subr.bf16.mxu0 0
  %1350 = vmatpush1.bf16.msra.mxu0 0
  %1351 = vmatprep.subr.bf16.mxu0 0
  %1352 = vmatpush1.bf16.msra.mxu0 0
  %1353 = vmatprep.subr.bf16.mxu0 0
  %1354 = vmatpush1.bf16.msra.mxu0 0
  %1355 = vmatprep.subr.bf16.mxu0 0
  %1356 = vmatpush1.bf16.msra.mxu0 0
  %1357 = vmatprep.subr.bf16.mxu0 0
  %1358 = vmatpush1.bf16.msra.mxu0 0
  %1359 = vmatprep.mubr.bf16.mxu0 0
  %1360 = vmatmul.mubr.bf16.gmra.mrb[0].mxu0 %v907
  %v1361 = vpop.f32.mrb[0].mxu0
  %v1362 = vadd.f32 0.0, %v1361
  %v1363 = vpop.f32.mrb[0].mxu0
  %v1364 = vadd.f32 0.0, %v1363
  %v1365 = vpop.f32.mrb[0].mxu0
  %v1366 = vadd.f32 0.0, %v1365
  %v1367 = vpop.f32.mrb[0].mxu0
  %v1368 = vadd.f32 0.0, %v1367
  %1369 = vmatprep.mubr.bf16.mxu0 0
  %1370 = vmatmul.mubr.bf16.gmra.mrb[0].mxu0 %v910
  %v1371 = vpop.f32.mrb[0].mxu0
  %v1372 = vadd.f32 0.0, %v1371
  %v1373 = vpop.f32.mrb[0].mxu0
  %v1374 = vadd.f32 0.0, %v1373
  %v1375 = vpop.f32.mrb[0].mxu0
  %v1376 = vadd.f32 0.0, %v1375
  %v1377 = vpop.f32.mrb[0].mxu0
  %v1378 = vadd.f32 0.0, %v1377
  %1379 = vdwg.mxu0
  %1380 = vmatprep.subr.bf16.mxu0 %v632
  %1381 = vmatpush1.bf16.msra.mxu0 %v631
  %1382 = vmatprep.subr.bf16.mxu0 %v664
  %1383 = vmatpush1.bf16.msra.mxu0 %v663
  %1384 = vmatprep.subr.bf16.mxu0 %v696
  %1385 = vmatpush1.bf16.msra.mxu0 %v695
  %1386 = vmatprep.subr.bf16.mxu0 %v728
  %1387 = vmatpush1.bf16.msra.mxu0 %v727
  %1388 = vmatprep.subr.bf16.mxu0 %v959
  %1389 = vmatpush1.bf16.msra.mxu0 %v956
  %1390 = vmatprep.subr.bf16.mxu0 0
  %1391 = vmatpush1.bf16.msra.mxu0 0
  %1392 = vmatprep.subr.bf16.mxu0 0
  %1393 = vmatpush1.bf16.msra.mxu0 0
  %1394 = vmatprep.subr.bf16.mxu0 0
  %1395 = vmatpush1.bf16.msra.mxu0 0
  %1396 = vmatprep.subr.bf16.mxu0 0
  %1397 = vmatpush1.bf16.msra.mxu0 0
  %1398 = vmatprep.subr.bf16.mxu0 0
  %1399 = vmatpush1.bf16.msra.mxu0 0
  %1400 = vmatprep.subr.bf16.mxu0 0
  %1401 = vmatpush1.bf16.msra.mxu0 0
  %1402 = vmatprep.subr.bf16.mxu0 0
  %1403 = vmatpush1.bf16.msra.mxu0 0
  %1404 = vmatprep.subr.bf16.mxu0 0
  %1405 = vmatpush1.bf16.msra.mxu0 0
  %1406 = vmatprep.subr.bf16.mxu0 0
  %1407 = vmatpush1.bf16.msra.mxu0 0
  %1408 = vmatprep.subr.bf16.mxu0 0
  %1409 = vmatpush1.bf16.msra.mxu0 0
  %1410 = vmatprep.subr.bf16.mxu0 0
  %1411 = vmatpush1.bf16.msra.mxu0 0
  %1412 = vmatprep.mubr.bf16.mxu0 0
  %1413 = vmatmul.mubr.bf16.gmra.mrb[0].mxu0 %v907
  %v1414 = vpop.f32.mrb[0].mxu0
  %v1415 = vadd.f32 0.0, %v1414
  %v1416 = vpop.f32.mrb[0].mxu0
  %v1417 = vadd.f32 0.0, %v1416
  %v1418 = vpop.f32.mrb[0].mxu0
  %v1419 = vadd.f32 0.0, %v1418
  %v1420 = vpop.f32.mrb[0].mxu0
  %v1421 = vadd.f32 0.0, %v1420
  %1422 = vmatprep.mubr.bf16.mxu0 0
  %1423 = vmatmul.mubr.bf16.gmra.mrb[0].mxu0 %v910
  %v1424 = vpop.f32.mrb[0].mxu0
  %v1425 = vadd.f32 0.0, %v1424
  %v1426 = vpop.f32.mrb[0].mxu0
  %v1427 = vadd.f32 0.0, %v1426
  %v1428 = vpop.f32.mrb[0].mxu0
  %v1429 = vadd.f32 0.0, %v1428
  %v1430 = vpop.f32.mrb[0].mxu0
  %v1431 = vadd.f32 0.0, %v1430
  %1432 = vdwg.mxu0
  %1433 = vmatprep.subr.bf16.mxu0 %v634
  %1434 = vmatpush1.bf16.msra.mxu0 %v633
  %1435 = vmatprep.subr.bf16.mxu0 %v666
  %1436 = vmatpush1.bf16.msra.mxu0 %v665
  %1437 = vmatprep.subr.bf16.mxu0 %v698
  %1438 = vmatpush1.bf16.msra.mxu0 %v697
  %1439 = vmatprep.subr.bf16.mxu0 %v730
  %1440 = vmatpush1.bf16.msra.mxu0 %v729
  %1441 = vmatprep.subr.bf16.mxu0 %v965
  %1442 = vmatpush1.bf16.msra.mxu0 %v962
  %1443 = vmatprep.subr.bf16.mxu0 0
  %1444 = vmatpush1.bf16.msra.mxu0 0
  %1445 = vmatprep.subr.bf16.mxu0 0
  %1446 = vmatpush1.bf16.msra.mxu0 0
  %1447 = vmatprep.subr.bf16.mxu0 0
  %1448 = vmatpush1.bf16.msra.mxu0 0
  %1449 = vmatprep.subr.bf16.mxu0 0
  %1450 = vmatpush1.bf16.msra.mxu0 0
  %1451 = vmatprep.subr.bf16.mxu0 0
  %1452 = vmatpush1.bf16.msra.mxu0 0
  %1453 = vmatprep.subr.bf16.mxu0 0
  %1454 = vmatpush1.bf16.msra.mxu0 0
  %1455 = vmatprep.subr.bf16.mxu0 0
  %1456 = vmatpush1.bf16.msra.mxu0 0
  %1457 = vmatprep.subr.bf16.mxu0 0
  %1458 = vmatpush1.bf16.msra.mxu0 0
  %1459 = vmatprep.subr.bf16.mxu0 0
  %1460 = vmatpush1.bf16.msra.mxu0 0
  %1461 = vmatprep.subr.bf16.mxu0 0
  %1462 = vmatpush1.bf16.msra.mxu0 0
  %1463 = vmatprep.subr.bf16.mxu0 0
  %1464 = vmatpush1.bf16.msra.mxu0 0
  %1465 = vmatprep.mubr.bf16.mxu0 0
  %1466 = vmatmul.mubr.bf16.gmra.mrb[0].mxu0 %v907
  %v1467 = vpop.f32.mrb[0].mxu0
  %v1468 = vadd.f32 0.0, %v1467
  %v1469 = vpop.f32.mrb[0].mxu0
  %v1470 = vadd.f32 0.0, %v1469
  %v1471 = vpop.f32.mrb[0].mxu0
  %v1472 = vadd.f32 0.0, %v1471
  %v1473 = vpop.f32.mrb[0].mxu0
  %v1474 = vadd.f32 0.0, %v1473
  %1475 = vmatprep.mubr.bf16.mxu0 0
  %1476 = vmatmul.mubr.bf16.gmra.mrb[0].mxu0 %v910
  %v1477 = vpop.f32.mrb[0].mxu0
  %v1478 = vadd.f32 0.0, %v1477
  %v1479 = vpop.f32.mrb[0].mxu0
  %v1480 = vadd.f32 0.0, %v1479
  %v1481 = vpop.f32.mrb[0].mxu0
  %v1482 = vadd.f32 0.0, %v1481
  %v1483 = vpop.f32.mrb[0].mxu0
  %v1484 = vadd.f32 0.0, %v1483
  %1485 = vdwg.mxu0
  %1486 = vmatprep.subr.bf16.mxu0 %v636
  %1487 = vmatpush1.bf16.msra.mxu0 %v635
  %1488 = vmatprep.subr.bf16.mxu0 %v668
  %1489 = vmatpush1.bf16.msra.mxu0 %v667
  %1490 = vmatprep.subr.bf16.mxu0 %v700
  %1491 = vmatpush1.bf16.msra.mxu0 %v699
  %1492 = vmatprep.subr.bf16.mxu0 %v732
  %1493 = vmatpush1.bf16.msra.mxu0 %v731
  %1494 = vmatprep.subr.bf16.mxu0 %v971
  %1495 = vmatpush1.bf16.msra.mxu0 %v968
  %1496 = vmatprep.subr.bf16.mxu0 0
  %1497 = vmatpush1.bf16.msra.mxu0 0
  %1498 = vmatprep.subr.bf16.mxu0 0
  %1499 = vmatpush1.bf16.msra.mxu0 0
  %1500 = vmatprep.subr.bf16.mxu0 0
  %1501 = vmatpush1.bf16.msra.mxu0 0
  %1502 = vmatprep.subr.bf16.mxu0 0
  %1503 = vmatpush1.bf16.msra.mxu0 0
  %1504 = vmatprep.subr.bf16.mxu0 0
  %1505 = vmatpush1.bf16.msra.mxu0 0
  %1506 = vmatprep.subr.bf16.mxu0 0
  %1507 = vmatpush1.bf16.msra.mxu0 0
  %1508 = vmatprep.subr.bf16.mxu0 0
  %1509 = vmatpush1.bf16.msra.mxu0 0
  %1510 = vmatprep.subr.bf16.mxu0 0
  %1511 = vmatpush1.bf16.msra.mxu0 0
  %1512 = vmatprep.subr.bf16.mxu0 0
  %1513 = vmatpush1.bf16.msra.mxu0 0
  %1514 = vmatprep.subr.bf16.mxu0 0
  %1515 = vmatpush1.bf16.msra.mxu0 0
  %1516 = vmatprep.subr.bf16.mxu0 0
  %1517 = vmatpush1.bf16.msra.mxu0 0
  %1518 = vmatprep.mubr.bf16.mxu0 0
  %1519 = vmatmul.mubr.bf16.gmra.mrb[0].mxu0 %v907
  %v1520 = vpop.f32.mrb[0].mxu0
  %v1521 = vadd.f32 0.0, %v1520
  %v1522 = vpop.f32.mrb[0].mxu0
  %v1523 = vadd.f32 0.0, %v1522
  %v1524 = vpop.f32.mrb[0].mxu0
  %v1525 = vadd.f32 0.0, %v1524
  %v1526 = vpop.f32.mrb[0].mxu0
  %v1527 = vadd.f32 0.0, %v1526
  %1528 = vmatprep.mubr.bf16.mxu0 0
  %1529 = vmatmul.mubr.bf16.gmra.mrb[0].mxu0 %v910
  %v1530 = vpop.f32.mrb[0].mxu0
  %v1531 = vadd.f32 0.0, %v1530
  %v1532 = vpop.f32.mrb[0].mxu0
  %v1533 = vadd.f32 0.0, %v1532
  %v1534 = vpop.f32.mrb[0].mxu0
  %v1535 = vadd.f32 0.0, %v1534
  %v1536 = vpop.f32.mrb[0].mxu0
  %v1537 = vadd.f32 0.0, %v1536
  %1538 = vdwg.mxu0
  %1539 = vmatprep.subr.bf16.mxu0 %v638
  %1540 = vmatpush1.bf16.msra.mxu0 %v637
  %1541 = vmatprep.subr.bf16.mxu0 %v670
  %1542 = vmatpush1.bf16.msra.mxu0 %v669
  %1543 = vmatprep.subr.bf16.mxu0 %v702
  %1544 = vmatpush1.bf16.msra.mxu0 %v701
  %1545 = vmatprep.subr.bf16.mxu0 %v734
  %1546 = vmatpush1.bf16.msra.mxu0 %v733
  %1547 = vmatprep.subr.bf16.mxu0 %v977
  %1548 = vmatpush1.bf16.msra.mxu0 %v974
  %1549 = vmatprep.subr.bf16.mxu0 0
  %1550 = vmatpush1.bf16.msra.mxu0 0
  %1551 = vmatprep.subr.bf16.mxu0 0
  %1552 = vmatpush1.bf16.msra.mxu0 0
  %1553 = vmatprep.subr.bf16.mxu0 0
  %1554 = vmatpush1.bf16.msra.mxu0 0
  %1555 = vmatprep.subr.bf16.mxu0 0
  %1556 = vmatpush1.bf16.msra.mxu0 0
  %1557 = vmatprep.subr.bf16.mxu0 0
  %1558 = vmatpush1.bf16.msra.mxu0 0
  %1559 = vmatprep.subr.bf16.mxu0 0
  %1560 = vmatpush1.bf16.msra.mxu0 0
  %1561 = vmatprep.subr.bf16.mxu0 0
  %1562 = vmatpush1.bf16.msra.mxu0 0
  %1563 = vmatprep.subr.bf16.mxu0 0
  %1564 = vmatpush1.bf16.msra.mxu0 0
  %1565 = vmatprep.subr.bf16.mxu0 0
  %1566 = vmatpush1.bf16.msra.mxu0 0
  %1567 = vmatprep.subr.bf16.mxu0 0
  %1568 = vmatpush1.bf16.msra.mxu0 0
  %1569 = vmatprep.subr.bf16.mxu0 0
  %1570 = vmatpush1.bf16.msra.mxu0 0
  %1571 = vmatprep.mubr.bf16.mxu0 0
  %1572 = vmatmul.mubr.bf16.gmra.mrb[0].mxu0 %v907
  %v1573 = vpop.f32.mrb[0].mxu0
  %v1574 = vadd.f32 0.0, %v1573
  %v1575 = vpop.f32.mrb[0].mxu0
  %v1576 = vadd.f32 0.0, %v1575
  %v1577 = vpop.f32.mrb[0].mxu0
  %v1578 = vadd.f32 0.0, %v1577
  %v1579 = vpop.f32.mrb[0].mxu0
  %v1580 = vadd.f32 0.0, %v1579
  %1581 = vmatprep.mubr.bf16.mxu0 0
  %1582 = vmatmul.mubr.bf16.gmra.mrb[0].mxu0 %v910
  %v1583 = vpop.f32.mrb[0].mxu0
  %v1584 = vadd.f32 0.0, %v1583
  %v1585 = vpop.f32.mrb[0].mxu0
  %v1586 = vadd.f32 0.0, %v1585
  %v1587 = vpop.f32.mrb[0].mxu0
  %v1588 = vadd.f32 0.0, %v1587
  %v1589 = vpop.f32.mrb[0].mxu0
  %v1590 = vadd.f32 0.0, %v1589
  %1591 = vdwg.mxu0
  %1592 = vmatprep.subr.bf16.mxu0 %v640
  %1593 = vmatpush1.bf16.msra.mxu0 %v639
  %1594 = vmatprep.subr.bf16.mxu0 %v672
  %1595 = vmatpush1.bf16.msra.mxu0 %v671
  %1596 = vmatprep.subr.bf16.mxu0 %v704
  %1597 = vmatpush1.bf16.msra.mxu0 %v703
  %1598 = vmatprep.subr.bf16.mxu0 %v736
  %1599 = vmatpush1.bf16.msra.mxu0 %v735
  %1600 = vmatprep.subr.bf16.mxu0 %v983
  %1601 = vmatpush1.bf16.msra.mxu0 %v980
  %1602 = vmatprep.subr.bf16.mxu0 0
  %1603 = vmatpush1.bf16.msra.mxu0 0
  %1604 = vmatprep.subr.bf16.mxu0 0
  %1605 = vmatpush1.bf16.msra.mxu0 0
  %1606 = vmatprep.subr.bf16.mxu0 0
  %1607 = vmatpush1.bf16.msra.mxu0 0
  %1608 = vmatprep.subr.bf16.mxu0 0
  %1609 = vmatpush1.bf16.msra.mxu0 0
  %1610 = vmatprep.subr.bf16.mxu0 0
  %1611 = vmatpush1.bf16.msra.mxu0 0
  %1612 = vmatprep.subr.bf16.mxu0 0
  %1613 = vmatpush1.bf16.msra.mxu0 0
  %1614 = vmatprep.subr.bf16.mxu0 0
  %1615 = vmatpush1.bf16.msra.mxu0 0
  %1616 = vmatprep.subr.bf16.mxu0 0
  %1617 = vmatpush1.bf16.msra.mxu0 0
  %1618 = vmatprep.subr.bf16.mxu0 0
  %1619 = vmatpush1.bf16.msra.mxu0 0
  %1620 = vmatprep.subr.bf16.mxu0 0
  %1621 = vmatpush1.bf16.msra.mxu0 0
  %1622 = vmatprep.subr.bf16.mxu0 0
  %1623 = vmatpush1.bf16.msra.mxu0 0
  %1624 = vmatprep.mubr.bf16.mxu0 0
  %1625 = vmatmul.mubr.bf16.gmra.mrb[0].mxu0 %v907
  %v1626 = vpop.f32.mrb[0].mxu0
  %v1627 = vadd.f32 0.0, %v1626
  %v1628 = vpop.f32.mrb[0].mxu0
  %v1629 = vadd.f32 0.0, %v1628
  %v1630 = vpop.f32.mrb[0].mxu0
  %v1631 = vadd.f32 0.0, %v1630
  %v1632 = vpop.f32.mrb[0].mxu0
  %v1633 = vadd.f32 0.0, %v1632
  %1634 = vmatprep.mubr.bf16.mxu0 0
  %1635 = vmatmul.mubr.bf16.gmra.mrb[0].mxu0 %v910
  %v1636 = vpop.f32.mrb[0].mxu0
  %v1637 = vadd.f32 0.0, %v1636
  %v1638 = vpop.f32.mrb[0].mxu0
  %v1639 = vadd.f32 0.0, %v1638
  %v1640 = vpop.f32.mrb[0].mxu0
  %v1641 = vadd.f32 0.0, %v1640
  %v1642 = vpop.f32.mrb[0].mxu0
  %v1643 = vadd.f32 0.0, %v1642
  %1644 = vdwg.mxu0
  %1645 = vmatprep.subr.bf16.mxu0 %v642
  %1646 = vmatpush1.bf16.msra.mxu0 %v641
  %1647 = vmatprep.subr.bf16.mxu0 %v674
  %1648 = vmatpush1.bf16.msra.mxu0 %v673
  %1649 = vmatprep.subr.bf16.mxu0 %v706
  %1650 = vmatpush1.bf16.msra.mxu0 %v705
  %1651 = vmatprep.subr.bf16.mxu0 %v738
  %1652 = vmatpush1.bf16.msra.mxu0 %v737
  %1653 = vmatprep.subr.bf16.mxu0 %v989
  %1654 = vmatpush1.bf16.msra.mxu0 %v986
  %1655 = vmatprep.subr.bf16.mxu0 0
  %1656 = vmatpush1.bf16.msra.mxu0 0
  %1657 = vmatprep.subr.bf16.mxu0 0
  %1658 = vmatpush1.bf16.msra.mxu0 0
  %1659 = vmatprep.subr.bf16.mxu0 0
  %1660 = vmatpush1.bf16.msra.mxu0 0
  %1661 = vmatprep.subr.bf16.mxu0 0
  %1662 = vmatpush1.bf16.msra.mxu0 0
  %1663 = vmatprep.subr.bf16.mxu0 0
  %1664 = vmatpush1.bf16.msra.mxu0 0
  %1665 = vmatprep.subr.bf16.mxu0 0
  %1666 = vmatpush1.bf16.msra.mxu0 0
  %1667 = vmatprep.subr.bf16.mxu0 0
  %1668 = vmatpush1.bf16.msra.mxu0 0
  %1669 = vmatprep.subr.bf16.mxu0 0
  %1670 = vmatpush1.bf16.msra.mxu0 0
  %1671 = vmatprep.subr.bf16.mxu0 0
  %1672 = vmatpush1.bf16.msra.mxu0 0
  %1673 = vmatprep.subr.bf16.mxu0 0
  %1674 = vmatpush1.bf16.msra.mxu0 0
  %1675 = vmatprep.subr.bf16.mxu0 0
  %1676 = vmatpush1.bf16.msra.mxu0 0
  %1677 = vmatprep.mubr.bf16.mxu0 0
  %1678 = vmatmul.mubr.bf16.gmra.mrb[0].mxu0 %v907
  %v1679 = vpop.f32.mrb[0].mxu0
  %v1680 = vadd.f32 0.0, %v1679
  %v1681 = vpop.f32.mrb[0].mxu0
  %v1682 = vadd.f32 0.0, %v1681
  %v1683 = vpop.f32.mrb[0].mxu0
  %v1684 = vadd.f32 0.0, %v1683
  %v1685 = vpop.f32.mrb[0].mxu0
  %v1686 = vadd.f32 0.0, %v1685
  %1687 = vmatprep.mubr.bf16.mxu0 0
  %1688 = vmatmul.mubr.bf16.gmra.mrb[0].mxu0 %v910
  %v1689 = vpop.f32.mrb[0].mxu0
  %v1690 = vadd.f32 0.0, %v1689
  %v1691 = vpop.f32.mrb[0].mxu0
  %v1692 = vadd.f32 0.0, %v1691
  %v1693 = vpop.f32.mrb[0].mxu0
  %v1694 = vadd.f32 0.0, %v1693
  %v1695 = vpop.f32.mrb[0].mxu0
  %v1696 = vadd.f32 0.0, %v1695
  %1697 = vdwg.mxu0
  %1698 = vmatprep.subr.bf16.mxu0 %v644
  %1699 = vmatpush1.bf16.msra.mxu0 %v643
  %1700 = vmatprep.subr.bf16.mxu0 %v676
  %1701 = vmatpush1.bf16.msra.mxu0 %v675
  %1702 = vmatprep.subr.bf16.mxu0 %v708
  %1703 = vmatpush1.bf16.msra.mxu0 %v707
  %1704 = vmatprep.subr.bf16.mxu0 %v740
  %1705 = vmatpush1.bf16.msra.mxu0 %v739
  %1706 = vmatprep.subr.bf16.mxu0 %v995
  %1707 = vmatpush1.bf16.msra.mxu0 %v992
  %1708 = vmatprep.subr.bf16.mxu0 0
  %1709 = vmatpush1.bf16.msra.mxu0 0
  %1710 = vmatprep.subr.bf16.mxu0 0
  %1711 = vmatpush1.bf16.msra.mxu0 0
  %1712 = vmatprep.subr.bf16.mxu0 0
  %1713 = vmatpush1.bf16.msra.mxu0 0
  %1714 = vmatprep.subr.bf16.mxu0 0
  %1715 = vmatpush1.bf16.msra.mxu0 0
  %1716 = vmatprep.subr.bf16.mxu0 0
  %1717 = vmatpush1.bf16.msra.mxu0 0
  %1718 = vmatprep.subr.bf16.mxu0 0
  %1719 = vmatpush1.bf16.msra.mxu0 0
  %1720 = vmatprep.subr.bf16.mxu0 0
  %1721 = vmatpush1.bf16.msra.mxu0 0
  %1722 = vmatprep.subr.bf16.mxu0 0
  %1723 = vmatpush1.bf16.msra.mxu0 0
  %1724 = vmatprep.subr.bf16.mxu0 0
  %1725 = vmatpush1.bf16.msra.mxu0 0
  %1726 = vmatprep.subr.bf16.mxu0 0
  %1727 = vmatpush1.bf16.msra.mxu0 0
  %1728 = vmatprep.subr.bf16.mxu0 0
  %1729 = vmatpush1.bf16.msra.mxu0 0
  %1730 = vmatprep.mubr.bf16.mxu0 0
  %1731 = vmatmul.mubr.bf16.gmra.mrb[0].mxu0 %v907
  %v1732 = vpop.f32.mrb[0].mxu0
  %v1733 = vadd.f32 0.0, %v1732
  %v1734 = vpop.f32.mrb[0].mxu0
  %v1735 = vadd.f32 0.0, %v1734
  %v1736 = vpop.f32.mrb[0].mxu0
  %v1737 = vadd.f32 0.0, %v1736
  %v1738 = vpop.f32.mrb[0].mxu0
  %v1739 = vadd.f32 0.0, %v1738
  %1740 = vmatprep.mubr.bf16.mxu0 0
  %1741 = vmatmul.mubr.bf16.gmra.mrb[0].mxu0 %v910
  %v1742 = vpop.f32.mrb[0].mxu0
  %v1743 = vadd.f32 0.0, %v1742
  %v1744 = vpop.f32.mrb[0].mxu0
  %v1745 = vadd.f32 0.0, %v1744
  %v1746 = vpop.f32.mrb[0].mxu0
  %v1747 = vadd.f32 0.0, %v1746
  %v1748 = vpop.f32.mrb[0].mxu0
  %v1749 = vadd.f32 0.0, %v1748
  %1750 = vdwg.mxu0
  %1751 = vmatprep.subr.bf16.mxu0 %v646
  %1752 = vmatpush1.bf16.msra.mxu0 %v645
  %1753 = vmatprep.subr.bf16.mxu0 %v678
  %1754 = vmatpush1.bf16.msra.mxu0 %v677
  %1755 = vmatprep.subr.bf16.mxu0 %v710
  %1756 = vmatpush1.bf16.msra.mxu0 %v709
  %1757 = vmatprep.subr.bf16.mxu0 %v742
  %1758 = vmatpush1.bf16.msra.mxu0 %v741
  %1759 = vmatprep.subr.bf16.mxu0 %v1001
  %1760 = vmatpush1.bf16.msra.mxu0 %v998
  %1761 = vmatprep.subr.bf16.mxu0 0
  %1762 = vmatpush1.bf16.msra.mxu0 0
  %1763 = vmatprep.subr.bf16.mxu0 0
  %1764 = vmatpush1.bf16.msra.mxu0 0
  %1765 = vmatprep.subr.bf16.mxu0 0
  %1766 = vmatpush1.bf16.msra.mxu0 0
  %1767 = vmatprep.subr.bf16.mxu0 0
  %1768 = vmatpush1.bf16.msra.mxu0 0
  %1769 = vmatprep.subr.bf16.mxu0 0
  %1770 = vmatpush1.bf16.msra.mxu0 0
  %1771 = vmatprep.subr.bf16.mxu0 0
  %1772 = vmatpush1.bf16.msra.mxu0 0
  %1773 = vmatprep.subr.bf16.mxu0 0
  %1774 = vmatpush1.bf16.msra.mxu0 0
  %1775 = vmatprep.subr.bf16.mxu0 0
  %1776 = vmatpush1.bf16.msra.mxu0 0
  %1777 = vmatprep.subr.bf16.mxu0 0
  %1778 = vmatpush1.bf16.msra.mxu0 0
  %1779 = vmatprep.subr.bf16.mxu0 0
  %1780 = vmatpush1.bf16.msra.mxu0 0
  %1781 = vmatprep.subr.bf16.mxu0 0
  %1782 = vmatpush1.bf16.msra.mxu0 0
  %1783 = vmatprep.mubr.bf16.mxu0 0
  %1784 = vmatmul.mubr.bf16.gmra.mrb[0].mxu0 %v907
  %v1785 = vpop.f32.mrb[0].mxu0
  %v1786 = vadd.f32 0.0, %v1785
  %v1787 = vpop.f32.mrb[0].mxu0
  %v1788 = vadd.f32 0.0, %v1787
  %v1789 = vpop.f32.mrb[0].mxu0
  %v1790 = vadd.f32 0.0, %v1789
  %v1791 = vpop.f32.mrb[0].mxu0
  %v1792 = vadd.f32 0.0, %v1791
  %1793 = vmatprep.mubr.bf16.mxu0 0
  %1794 = vmatmul.mubr.bf16.gmra.mrb[0].mxu0 %v910
  %v1795 = vpop.f32.mrb[0].mxu0
  %v1796 = vadd.f32 0.0, %v1795
  %v1797 = vpop.f32.mrb[0].mxu0
  %v1798 = vadd.f32 0.0, %v1797
  %v1799 = vpop.f32.mrb[0].mxu0
  %v1800 = vadd.f32 0.0, %v1799
  %v1801 = vpop.f32.mrb[0].mxu0
  %v1802 = vadd.f32 0.0, %v1801
  %1803 = vdwg.mxu0
  %1804 = vmatprep.subr.bf16.mxu0 %v648
  %1805 = vmatpush1.bf16.msra.mxu0 %v647
  %1806 = vmatprep.subr.bf16.mxu0 %v680
  %1807 = vmatpush1.bf16.msra.mxu0 %v679
  %1808 = vmatprep.subr.bf16.mxu0 %v712
  %1809 = vmatpush1.bf16.msra.mxu0 %v711
  %1810 = vmatprep.subr.bf16.mxu0 %v744
  %1811 = vmatpush1.bf16.msra.mxu0 %v743
  %1812 = vmatprep.subr.bf16.mxu0 %v1007
  %1813 = vmatpush1.bf16.msra.mxu0 %v1004
  %1814 = vmatprep.subr.bf16.mxu0 0
  %1815 = vmatpush1.bf16.msra.mxu0 0
  %1816 = vmatprep.subr.bf16.mxu0 0
  %1817 = vmatpush1.bf16.msra.mxu0 0
  %1818 = vmatprep.subr.bf16.mxu0 0
  %1819 = vmatpush1.bf16.msra.mxu0 0
  %1820 = vmatprep.subr.bf16.mxu0 0
  %1821 = vmatpush1.bf16.msra.mxu0 0
  %1822 = vmatprep.subr.bf16.mxu0 0
  %1823 = vmatpush1.bf16.msra.mxu0 0
  %1824 = vmatprep.subr.bf16.mxu0 0
  %1825 = vmatpush1.bf16.msra.mxu0 0
  %1826 = vmatprep.subr.bf16.mxu0 0
  %1827 = vmatpush1.bf16.msra.mxu0 0
  %1828 = vmatprep.subr.bf16.mxu0 0
  %1829 = vmatpush1.bf16.msra.mxu0 0
  %1830 = vmatprep.subr.bf16.mxu0 0
  %1831 = vmatpush1.bf16.msra.mxu0 0
  %1832 = vmatprep.subr.bf16.mxu0 0
  %1833 = vmatpush1.bf16.msra.mxu0 0
  %1834 = vmatprep.subr.bf16.mxu0 0
  %1835 = vmatpush1.bf16.msra.mxu0 0
  %1836 = vmatprep.mubr.bf16.mxu0 0
  %1837 = vmatmul.mubr.bf16.gmra.mrb[0].mxu0 %v907
  %v1838 = vpop.f32.mrb[0].mxu0
  %v1839 = vadd.f32 0.0, %v1838
  %v1840 = vpop.f32.mrb[0].mxu0
  %v1841 = vadd.f32 0.0, %v1840
  %v1842 = vpop.f32.mrb[0].mxu0
  %v1843 = vadd.f32 0.0, %v1842
  %v1844 = vpop.f32.mrb[0].mxu0
  %v1845 = vadd.f32 0.0, %v1844
  %1846 = vmatprep.mubr.bf16.mxu0 0
  %1847 = vmatmul.mubr.bf16.gmra.mrb[0].mxu0 %v910
  %v1848 = vpop.f32.mrb[0].mxu0
  %v1849 = vadd.f32 0.0, %v1848
  %v1850 = vpop.f32.mrb[0].mxu0
  %v1851 = vadd.f32 0.0, %v1850
  %v1852 = vpop.f32.mrb[0].mxu0
  %v1853 = vadd.f32 0.0, %v1852
  %v1854 = vpop.f32.mrb[0].mxu0
  %v1855 = vadd.f32 0.0, %v1854
  %1856 = vdwg.mxu0
  %v1857 = vld [vmem:[%s3] sm:$0xff]
  %v1858 = vld [vmem:[%s3 + $0x8] sm:$0xff]
  %v1859 = vld [vmem:[%s3 + $0x10] sm:$0xff]
  %v1860 = vld [vmem:[%s3 + $0x18] sm:$0xff]
  %1862 = vset.pattern.permute.xlu0 0
  %1863 = vperm.xlu0 %1862, %v1857
  %v1864 = vpop.permute.xlu0 %1863
  %1867 = vset.pattern.permute.xlu0 0
  %1868 = vperm.xlu0 %1867, %v1858
  %v1869 = vpop.permute.xlu0 %1868
  %1872 = vset.pattern.permute.xlu0 0
  %1873 = vperm.xlu0 %1872, %v1859
  %v1874 = vpop.permute.xlu0 %1873
  %1877 = vset.pattern.permute.xlu0 0
  %1878 = vperm.xlu0 %1877, %v1860
  %v1879 = vpop.permute.xlu0 %1878
  %s1881 = scalar_lea.vmem %s3, 32
  %v1882 = vld [vmem:[%s1881] sm:$0xff]
  %v1883 = vld [vmem:[%s1881 + $0x8] sm:$0xff]
  %v1884 = vld [vmem:[%s1881 + $0x10] sm:$0xff]
  %v1885 = vld [vmem:[%s1881 + $0x18] sm:$0xff]
  %1887 = vset.pattern.permute.xlu0 0
  %1888 = vperm.xlu0 %1887, %v1882
  %v1889 = vpop.permute.xlu0 %1888
  %1892 = vset.pattern.permute.xlu0 0
  %1893 = vperm.xlu0 %1892, %v1883
  %v1894 = vpop.permute.xlu0 %1893
  %1897 = vset.pattern.permute.xlu0 0
  %1898 = vperm.xlu0 %1897, %v1884
  %v1899 = vpop.permute.xlu0 %1898
  %1902 = vset.pattern.permute.xlu0 0
  %1903 = vperm.xlu0 %1902, %v1885
  %v1904 = vpop.permute.xlu0 %1903
  %v1906 = vpack.c.bf16 %v1894, %v1889
  %v1907 = vpack.c.bf16 %v1904, %v1899
  %1908 = vst [vmem:[#allocation2] sm:$0xff] %v1906
  %1909 = vst [vmem:[#allocation2 + $0x70] sm:$0xff] %v1907
  %1910 = vst [vmem:[#allocation2 + $0x68] sm:$0xff] %v1906
  %1911 = vst [vmem:[#allocation2 + $0xd8] sm:$0xff] %v1907
  %v1912 = vld [vmem:[%s2] sm:$0xff]
  %v1913 = vld [vmem:[%s2 + $0x8] sm:$0xff]
  %v1914 = vld [vmem:[%s2 + $0x10] sm:$0xff]
  %v1915 = vld [vmem:[%s2 + $0x18] sm:$0xff]
  %v1916 = vmul.f32 %v1912, %v1044
  %v1917 = vmul.f32 %v1913, %v1048
  %v1918 = vmul.f32 %v1914, %v1054
  %v1919 = vmul.f32 %v1915, %v1058
  %v1920 = vmul.f32 %v1912, %v1046
  %v1921 = vmul.f32 %v1913, %v1050
  %v1922 = vmul.f32 %v1914, %v1056
  %v1923 = vmul.f32 %v1915, %v1060
  %s1924 = scalar_lea.vmem %s2, 32
  %v1925 = vld [vmem:[%s1924] sm:$0xff]
  %v1926 = vld [vmem:[%s1924 + $0x8] sm:$0xff]
  %v1927 = vld [vmem:[%s1924 + $0x10] sm:$0xff]
  %v1928 = vld [vmem:[%s1924 + $0x18] sm:$0xff]
  %v1929 = vmul.f32 %v1925, %v1046
  %v1930 = vmul.f32 %v1926, %v1050
  %v1931 = vmul.f32 %v1927, %v1056
  %v1932 = vmul.f32 %v1928, %v1060
  %v1933 = vadd.f32 %v1916, %v1929
  %v1934 = vadd.f32 %v1917, %v1930
  %v1935 = vadd.f32 %v1918, %v1931
  %v1936 = vadd.f32 %v1919, %v1932
  %v1937 = vmul.f32 %v1925, %v1097
  %v1938 = vmul.f32 %v1926, %v1101
  %v1939 = vmul.f32 %v1927, %v1107
  %v1940 = vmul.f32 %v1928, %v1111
  %v1941 = vadd.f32 %v1920, %v1937
  %v1942 = vadd.f32 %v1921, %v1938
  %v1943 = vadd.f32 %v1922, %v1939
  %v1944 = vadd.f32 %v1923, %v1940
  %s1945 = scalar_lea.vmem %s2, 64
  %v1946 = vld [vmem:[%s1945] sm:$0xff]
  %v1947 = vld [vmem:[%s1945 + $0x8] sm:$0xff]
  %v1948 = vld [vmem:[%s1945 + $0x10] sm:$0xff]
  %v1949 = vld [vmem:[%s1945 + $0x18] sm:$0xff]
  %v1950 = vmul.f32 %v1946, %v1097
  %v1951 = vmul.f32 %v1947, %v1101
  %v1952 = vmul.f32 %v1948, %v1107
  %v1953 = vmul.f32 %v1949, %v1111
  %v1954 = vadd.f32 %v1933, %v1950
  %v1955 = vadd.f32 %v1934, %v1951
  %v1956 = vadd.f32 %v1935, %v1952
  %v1957 = vadd.f32 %v1936, %v1953
  %v1958 = vmul.f32 %v1946, %v1099
  %v1959 = vmul.f32 %v1947, %v1103
  %v1960 = vmul.f32 %v1948, %v1109
  %v1961 = vmul.f32 %v1949, %v1113
  %v1962 = vadd.f32 %v1941, %v1958
  %v1963 = vadd.f32 %v1942, %v1959
  %v1964 = vadd.f32 %v1943, %v1960
  %v1965 = vadd.f32 %v1944, %v1961
  %s1966 = scalar_lea.vmem %s2, 96
  %v1967 = vld [vmem:[%s1966] sm:$0xff]
  %v1968 = vld [vmem:[%s1966 + $0x8] sm:$0xff]
  %v1969 = vld [vmem:[%s1966 + $0x10] sm:$0xff]
  %v1970 = vld [vmem:[%s1966 + $0x18] sm:$0xff]
  %v1971 = vmul.f32 %v1967, %v1099
  %v1972 = vmul.f32 %v1968, %v1103
  %v1973 = vmul.f32 %v1969, %v1109
  %v1974 = vmul.f32 %v1970, %v1113
  %v1975 = vadd.f32 %v1954, %v1971
  %v1976 = vadd.f32 %v1955, %v1972
  %v1977 = vadd.f32 %v1956, %v1973
  %v1978 = vadd.f32 %v1957, %v1974
  %v1979 = vmul.f32 %v1967, %v1150
  %v1980 = vmul.f32 %v1968, %v1154
  %v1981 = vmul.f32 %v1969, %v1160
  %v1982 = vmul.f32 %v1970, %v1164
  %v1983 = vadd.f32 %v1962, %v1979
  %v1984 = vadd.f32 %v1963, %v1980
  %v1985 = vadd.f32 %v1964, %v1981
  %v1986 = vadd.f32 %v1965, %v1982
  %s1987 = scalar_lea.vmem %s2, 128
  %v1988 = vld [vmem:[%s1987] sm:$0xff]
  %v1989 = vld [vmem:[%s1987 + $0x8] sm:$0xff]
  %v1990 = vld [vmem:[%s1987 + $0x10] sm:$0xff]
  %v1991 = vld [vmem:[%s1987 + $0x18] sm:$0xff]
  %v1992 = vmul.f32 %v1988, %v1150
  %v1993 = vmul.f32 %v1989, %v1154
  %v1994 = vmul.f32 %v1990, %v1160
  %v1995 = vmul.f32 %v1991, %v1164
  %v1996 = vadd.f32 %v1975, %v1992
  %v1997 = vadd.f32 %v1976, %v1993
  %v1998 = vadd.f32 %v1977, %v1994
  %v1999 = vadd.f32 %v1978, %v1995
  %v2000 = vmul.f32 %v1988, %v1152
  %v2001 = vmul.f32 %v1989, %v1156
  %v2002 = vmul.f32 %v1990, %v1162
  %v2003 = vmul.f32 %v1991, %v1166
  %v2004 = vadd.f32 %v1983, %v2000
  %v2005 = vadd.f32 %v1984, %v2001
  %v2006 = vadd.f32 %v1985, %v2002
  %v2007 = vadd.f32 %v1986, %v2003
  %s2008 = scalar_lea.vmem %s2, 160
  %v2009 = vld [vmem:[%s2008] sm:$0xff]
  %v2010 = vld [vmem:[%s2008 + $0x8] sm:$0xff]
  %v2011 = vld [vmem:[%s2008 + $0x10] sm:$0xff]
  %v2012 = vld [vmem:[%s2008 + $0x18] sm:$0xff]
  %v2013 = vmul.f32 %v2009, %v1152
  %v2014 = vmul.f32 %v2010, %v1156
  %v2015 = vmul.f32 %v2011, %v1162
  %v2016 = vmul.f32 %v2012, %v1166
  %v2017 = vadd.f32 %v1996, %v2013
  %v2018 = vadd.f32 %v1997, %v2014
  %v2019 = vadd.f32 %v1998, %v2015
  %v2020 = vadd.f32 %v1999, %v2016
  %v2021 = vmul.f32 %v2009, %v1203
  %v2022 = vmul.f32 %v2010, %v1207
  %v2023 = vmul.f32 %v2011, %v1213
  %v2024 = vmul.f32 %v2012, %v1217
  %v2025 = vadd.f32 %v2004, %v2021
  %v2026 = vadd.f32 %v2005, %v2022
  %v2027 = vadd.f32 %v2006, %v2023
  %v2028 = vadd.f32 %v2007, %v2024
  %s2029 = scalar_lea.vmem %s2, 192
  %v2030 = vld [vmem:[%s2029] sm:$0xff]
  %v2031 = vld [vmem:[%s2029 + $0x8] sm:$0xff]
  %v2032 = vld [vmem:[%s2029 + $0x10] sm:$0xff]
  %v2033 = vld [vmem:[%s2029 + $0x18] sm:$0xff]
  %v2034 = vmul.f32 %v2030, %v1203
  %v2035 = vmul.f32 %v2031, %v1207
  %v2036 = vmul.f32 %v2032, %v1213
  %v2037 = vmul.f32 %v2033, %v1217
  %v2038 = vadd.f32 %v2017, %v2034
  %v2039 = vadd.f32 %v2018, %v2035
  %v2040 = vadd.f32 %v2019, %v2036
  %v2041 = vadd.f32 %v2020, %v2037
  %v2042 = vmul.f32 %v2030, %v1205
  %v2043 = vmul.f32 %v2031, %v1209
  %v2044 = vmul.f32 %v2032, %v1215
  %v2045 = vmul.f32 %v2033, %v1219
  %v2046 = vadd.f32 %v2025, %v2042
  %v2047 = vadd.f32 %v2026, %v2043
  %v2048 = vadd.f32 %v2027, %v2044
  %v2049 = vadd.f32 %v2028, %v2045
  %s2050 = scalar_lea.vmem %s2, 224
  %v2051 = vld [vmem:[%s2050] sm:$0xff]
  %v2052 = vld [vmem:[%s2050 + $0x8] sm:$0xff]
  %v2053 = vld [vmem:[%s2050 + $0x10] sm:$0xff]
  %v2054 = vld [vmem:[%s2050 + $0x18] sm:$0xff]
  %v2055 = vmul.f32 %v2051, %v1205
  %v2056 = vmul.f32 %v2052, %v1209
  %v2057 = vmul.f32 %v2053, %v1215
  %v2058 = vmul.f32 %v2054, %v1219
  %v2059 = vadd.f32 %v2038, %v2055
  %v2060 = vadd.f32 %v2039, %v2056
  %v2061 = vadd.f32 %v2040, %v2057
  %v2062 = vadd.f32 %v2041, %v2058
  %v2063 = vmul.f32 %v2051, %v1256
  %v2064 = vmul.f32 %v2052, %v1260
  %v2065 = vmul.f32 %v2053, %v1266
  %v2066 = vmul.f32 %v2054, %v1270
  %v2067 = vadd.f32 %v2046, %v2063
  %v2068 = vadd.f32 %v2047, %v2064
  %v2069 = vadd.f32 %v2048, %v2065
  %v2070 = vadd.f32 %v2049, %v2066
  %s2071 = scalar_lea.vmem %s2, 256
  %v2072 = vld [vmem:[%s2071] sm:$0xff]
  %v2073 = vld [vmem:[%s2071 + $0x8] sm:$0xff]
  %v2074 = vld [vmem:[%s2071 + $0x10] sm:$0xff]
  %v2075 = vld [vmem:[%s2071 + $0x18] sm:$0xff]
  %v2076 = vmul.f32 %v2072, %v1256
  %v2077 = vmul.f32 %v2073, %v1260
  %v2078 = vmul.f32 %v2074, %v1266
  %v2079 = vmul.f32 %v2075, %v1270
  %v2080 = vadd.f32 %v2059, %v2076
  %v2081 = vadd.f32 %v2060, %v2077
  %v2082 = vadd.f32 %v2061, %v2078
  %v2083 = vadd.f32 %v2062, %v2079
  %v2084 = vmul.f32 %v2072, %v1258
  %v2085 = vmul.f32 %v2073, %v1262
  %v2086 = vmul.f32 %v2074, %v1268
  %v2087 = vmul.f32 %v2075, %v1272
  %v2088 = vadd.f32 %v2067, %v2084
  %v2089 = vadd.f32 %v2068, %v2085
  %v2090 = vadd.f32 %v2069, %v2086
  %v2091 = vadd.f32 %v2070, %v2087
  %s2092 = scalar_lea.vmem %s2, 288
  %v2093 = vld [vmem:[%s2092] sm:$0xff]
  %v2094 = vld [vmem:[%s2092 + $0x8] sm:$0xff]
  %v2095 = vld [vmem:[%s2092 + $0x10] sm:$0xff]
  %v2096 = vld [vmem:[%s2092 + $0x18] sm:$0xff]
  %v2097 = vmul.f32 %v2093, %v1258
  %v2098 = vmul.f32 %v2094, %v1262
  %v2099 = vmul.f32 %v2095, %v1268
  %v2100 = vmul.f32 %v2096, %v1272
  %v2101 = vadd.f32 %v2080, %v2097
  %v2102 = vadd.f32 %v2081, %v2098
  %v2103 = vadd.f32 %v2082, %v2099
  %v2104 = vadd.f32 %v2083, %v2100
  %v2105 = vmul.f32 %v2093, %v1309
  %v2106 = vmul.f32 %v2094, %v1313
  %v2107 = vmul.f32 %v2095, %v1319
  %v2108 = vmul.f32 %v2096, %v1323
  %v2109 = vadd.f32 %v2088, %v2105
  %v2110 = vadd.f32 %v2089, %v2106
  %v2111 = vadd.f32 %v2090, %v2107
  %v2112 = vadd.f32 %v2091, %v2108
  %v2113 = vadd.f32 %v2101, %v1864
  %v2114 = vadd.f32 %v2102, %v1869
  %v2115 = vadd.f32 %v2103, %v1874
  %v2116 = vadd.f32 %v2104, %v1879
  %vm2117 = vcmp.gt.f32.partialorder %v2113, 0.0
  %vm2118 = vcmp.gt.f32.partialorder %v2114, 0.0
  %vm2119 = vcmp.gt.f32.partialorder %v2115, 0.0
  %vm2120 = vcmp.gt.f32.partialorder %v2116, 0.0
  %v2121 = vmin.f32 %v2113, 0.0
  %v2122 = vmin.f32 %v2114, 0.0
  %v2123 = vmin.f32 %v2115, 0.0
  %v2124 = vmin.f32 %v2116, 0.0
  %v2125 = vmul.f32 %v2121, 1.442695
  %v2126 = vpow.pop %v2125
  %v2127 = vmul.f32 %v2122, 1.442695
  %v2128 = vpow.pop %v2127
  %v2129 = vmul.f32 %v2123, 1.442695
  %v2130 = vpow.pop %v2129
  %v2131 = vmul.f32 %v2124, 1.442695
  %v2132 = vpow.pop %v2131
  %v2133 = vsub.f32 %v2126, 1.0
  %v2134 = vsub.f32 %v2128, 1.0
  %v2135 = vsub.f32 %v2130, 1.0
  %v2136 = vsub.f32 %v2132, 1.0
  %v2137 = vsel %vm2117, %v2113, %v2133
  %v2138 = vsel %vm2118, %v2114, %v2134
  %v2139 = vsel %vm2119, %v2115, %v2135
  %v2140 = vsel %vm2120, %v2116, %v2136
  %v2141 = vadd.f32 %v2109, %v1864
  %v2142 = vadd.f32 %v2110, %v1869
  %v2143 = vadd.f32 %v2111, %v1874
  %v2144 = vadd.f32 %v2112, %v1879
  %vm2145 = vcmp.gt.f32.partialorder %v2141, 0.0
  %vm2146 = vcmp.gt.f32.partialorder %v2142, 0.0
  %vm2147 = vcmp.gt.f32.partialorder %v2143, 0.0
  %vm2148 = vcmp.gt.f32.partialorder %v2144, 0.0
  %v2149 = vmin.f32 %v2141, 0.0
  %v2150 = vmin.f32 %v2142, 0.0
  %v2151 = vmin.f32 %v2143, 0.0
  %v2152 = vmin.f32 %v2144, 0.0
  %v2153 = vmul.f32 %v2149, 1.442695
  %v2154 = vpow.pop %v2153
  %v2155 = vmul.f32 %v2150, 1.442695
  %v2156 = vpow.pop %v2155
  %v2157 = vmul.f32 %v2151, 1.442695
  %v2158 = vpow.pop %v2157
  %v2159 = vmul.f32 %v2152, 1.442695
  %v2160 = vpow.pop %v2159
  %v2161 = vsub.f32 %v2154, 1.0
  %v2162 = vsub.f32 %v2156, 1.0
  %v2163 = vsub.f32 %v2158, 1.0
  %v2164 = vsub.f32 %v2160, 1.0
  %v2165 = vsel %vm2145, %v2141, %v2161
  %v2166 = vsel %vm2146, %v2142, %v2162
  %v2167 = vsel %vm2147, %v2143, %v2163
  %v2168 = vsel %vm2148, %v2144, %v2164
  %v2169 = vadd.f32 %v2137, %v2165
  %v2170 = vadd.f32 %v2138, %v2166
  %v2171 = vadd.f32 %v2139, %v2167
  %v2172 = vadd.f32 %v2140, %v2168
  %v2173 = vmul.f32 %v2169, 0.5
  %v2174 = vmul.f32 %v2170, 0.5
  %v2175 = vmul.f32 %v2171, 0.5
  %v2176 = vmul.f32 %v2172, 0.5
  %v2177 = vpack.c.bf16 %v2174, %v2173
  %v2178 = vpack.c.bf16 %v2176, %v2175
  %2179 = vst [vmem:[#allocation2 + $0x8] sm:$0xff] %v2177
  %2180 = vst [vmem:[#allocation2 + $0x78] sm:$0xff] %v2178
  %v2181 = vld [vmem:[%s2] sm:$0xff]
  %v2182 = vld [vmem:[%s2 + $0x8] sm:$0xff]
  %v2183 = vld [vmem:[%s2 + $0x10] sm:$0xff]
  %v2184 = vld [vmem:[%s2 + $0x18] sm:$0xff]
  %v2185 = vmul.f32 %v2181, %v1097
  %v2186 = vmul.f32 %v2182, %v1101
  %v2187 = vmul.f32 %v2183, %v1107
  %v2188 = vmul.f32 %v2184, %v1111
  %v2189 = vmul.f32 %v2181, %v1099
  %v2190 = vmul.f32 %v2182, %v1103
  %v2191 = vmul.f32 %v2183, %v1109
  %v2192 = vmul.f32 %v2184, %v1113
  %v2193 = vld [vmem:[%s1924] sm:$0xff]
  %v2194 = vld [vmem:[%s1924 + $0x8] sm:$0xff]
  %v2195 = vld [vmem:[%s1924 + $0x10] sm:$0xff]
  %v2196 = vld [vmem:[%s1924 + $0x18] sm:$0xff]
  %v2197 = vmul.f32 %v2193, %v1099
  %v2198 = vmul.f32 %v2194, %v1103
  %v2199 = vmul.f32 %v2195, %v1109
  %v2200 = vmul.f32 %v2196, %v1113
  %v2201 = vadd.f32 %v2185, %v2197
  %v2202 = vadd.f32 %v2186, %v2198
  %v2203 = vadd.f32 %v2187, %v2199
  %v2204 = vadd.f32 %v2188, %v2200
  %v2205 = vmul.f32 %v2193, %v1150
  %v2206 = vmul.f32 %v2194, %v1154
  %v2207 = vmul.f32 %v2195, %v1160
  %v2208 = vmul.f32 %v2196, %v1164
  %v2209 = vadd.f32 %v2189, %v2205
  %v2210 = vadd.f32 %v2190, %v2206
  %v2211 = vadd.f32 %v2191, %v2207
  %v2212 = vadd.f32 %v2192, %v2208
  %v2213 = vld [vmem:[%s1945] sm:$0xff]
  %v2214 = vld [vmem:[%s1945 + $0x8] sm:$0xff]
  %v2215 = vld [vmem:[%s1945 + $0x10] sm:$0xff]
  %v2216 = vld [vmem:[%s1945 + $0x18] sm:$0xff]
  %v2217 = vmul.f32 %v2213, %v1150
  %v2218 = vmul.f32 %v2214, %v1154
  %v2219 = vmul.f32 %v2215, %v1160
  %v2220 = vmul.f32 %v2216, %v1164
  %v2221 = vadd.f32 %v2201, %v2217
  %v2222 = vadd.f32 %v2202, %v2218
  %v2223 = vadd.f32 %v2203, %v2219
  %v2224 = vadd.f32 %v2204, %v2220
  %v2225 = vmul.f32 %v2213, %v1152
  %v2226 = vmul.f32 %v2214, %v1156
  %v2227 = vmul.f32 %v2215, %v1162
  %v2228 = vmul.f32 %v2216, %v1166
  %v2229 = vadd.f32 %v2209, %v2225
  %v2230 = vadd.f32 %v2210, %v2226
  %v2231 = vadd.f32 %v2211, %v2227
  %v2232 = vadd.f32 %v2212, %v2228
  %v2233 = vld [vmem:[%s1966] sm:$0xff]
  %v2234 = vld [vmem:[%s1966 + $0x8] sm:$0xff]
  %v2235 = vld [vmem:[%s1966 + $0x10] sm:$0xff]
  %v2236 = vld [vmem:[%s1966 + $0x18] sm:$0xff]
  %v2237 = vmul.f32 %v2233, %v1152
  %v2238 = vmul.f32 %v2234, %v1156
  %v2239 = vmul.f32 %v2235, %v1162
  %v2240 = vmul.f32 %v2236, %v1166
  %v2241 = vadd.f32 %v2221, %v2237
  %v2242 = vadd.f32 %v2222, %v2238
  %v2243 = vadd.f32 %v2223, %v2239
  %v2244 = vadd.f32 %v2224, %v2240
  %v2245 = vmul.f32 %v2233, %v1203
  %v2246 = vmul.f32 %v2234, %v1207
  %v2247 = vmul.f32 %v2235, %v1213
  %v2248 = vmul.f32 %v2236, %v1217
  %v2249 = vadd.f32 %v2229, %v2245
  %v2250 = vadd.f32 %v2230, %v2246
  %v2251 = vadd.f32 %v2231, %v2247
  %v2252 = vadd.f32 %v2232, %v2248
  %v2253 = vld [vmem:[%s1987] sm:$0xff]
  %v2254 = vld [vmem:[%s1987 + $0x8] sm:$0xff]
  %v2255 = vld [vmem:[%s1987 + $0x10] sm:$0xff]
  %v2256 = vld [vmem:[%s1987 + $0x18] sm:$0xff]
  %v2257 = vmul.f32 %v2253, %v1203
  %v2258 = vmul.f32 %v2254, %v1207
  %v2259 = vmul.f32 %v2255, %v1213
  %v2260 = vmul.f32 %v2256, %v1217
  %v2261 = vadd.f32 %v2241, %v2257
  %v2262 = vadd.f32 %v2242, %v2258
  %v2263 = vadd.f32 %v2243, %v2259
  %v2264 = vadd.f32 %v2244, %v2260
  %v2265 = vmul.f32 %v2253, %v1205
  %v2266 = vmul.f32 %v2254, %v1209
  %v2267 = vmul.f32 %v2255, %v1215
  %v2268 = vmul.f32 %v2256, %v1219
  %v2269 = vadd.f32 %v2249, %v2265
  %v2270 = vadd.f32 %v2250, %v2266
  %v2271 = vadd.f32 %v2251, %v2267
  %v2272 = vadd.f32 %v2252, %v2268
  %v2273 = vld [vmem:[%s2008] sm:$0xff]
  %v2274 = vld [vmem:[%s2008 + $0x8] sm:$0xff]
  %v2275 = vld [vmem:[%s2008 + $0x10] sm:$0xff]
  %v2276 = vld [vmem:[%s2008 + $0x18] sm:$0xff]
  %v2277 = vmul.f32 %v2273, %v1205
  %v2278 = vmul.f32 %v2274, %v1209
  %v2279 = vmul.f32 %v2275, %v1215
  %v2280 = vmul.f32 %v2276, %v1219
  %v2281 = vadd.f32 %v2261, %v2277
  %v2282 = vadd.f32 %v2262, %v2278
  %v2283 = vadd.f32 %v2263, %v2279
  %v2284 = vadd.f32 %v2264, %v2280
  %v2285 = vmul.f32 %v2273, %v1256
  %v2286 = vmul.f32 %v2274, %v1260
  %v2287 = vmul.f32 %v2275, %v1266
  %v2288 = vmul.f32 %v2276, %v1270
  %v2289 = vadd.f32 %v2269, %v2285
  %v2290 = vadd.f32 %v2270, %v2286
  %v2291 = vadd.f32 %v2271, %v2287
  %v2292 = vadd.f32 %v2272, %v2288
  %v2293 = vld [vmem:[%s2029] sm:$0xff]
  %v2294 = vld [vmem:[%s2029 + $0x8] sm:$0xff]
  %v2295 = vld [vmem:[%s2029 + $0x10] sm:$0xff]
  %v2296 = vld [vmem:[%s2029 + $0x18] sm:$0xff]
  %v2297 = vmul.f32 %v2293, %v1256
  %v2298 = vmul.f32 %v2294, %v1260
  %v2299 = vmul.f32 %v2295, %v1266
  %v2300 = vmul.f32 %v2296, %v1270
  %v2301 = vadd.f32 %v2281, %v2297
  %v2302 = vadd.f32 %v2282, %v2298
  %v2303 = vadd.f32 %v2283, %v2299
  %v2304 = vadd.f32 %v2284, %v2300
  %v2305 = vmul.f32 %v2293, %v1258
  %v2306 = vmul.f32 %v2294, %v1262
  %v2307 = vmul.f32 %v2295, %v1268
  %v2308 = vmul.f32 %v2296, %v1272
  %v2309 = vadd.f32 %v2289, %v2305
  %v2310 = vadd.f32 %v2290, %v2306
  %v2311 = vadd.f32 %v2291, %v2307
  %v2312 = vadd.f32 %v2292, %v2308
  %v2313 = vld [vmem:[%s2050] sm:$0xff]
  %v2314 = vld [vmem:[%s2050 + $0x8] sm:$0xff]
  %v2315 = vld [vmem:[%s2050 + $0x10] sm:$0xff]
  %v2316 = vld [vmem:[%s2050 + $0x18] sm:$0xff]
  %v2317 = vmul.f32 %v2313, %v1258
  %v2318 = vmul.f32 %v2314, %v1262
  %v2319 = vmul.f32 %v2315, %v1268
  %v2320 = vmul.f32 %v2316, %v1272
  %v2321 = vadd.f32 %v2301, %v2317
  %v2322 = vadd.f32 %v2302, %v2318
  %v2323 = vadd.f32 %v2303, %v2319
  %v2324 = vadd.f32 %v2304, %v2320
  %v2325 = vmul.f32 %v2313, %v1309
  %v2326 = vmul.f32 %v2314, %v1313
  %v2327 = vmul.f32 %v2315, %v1319
  %v2328 = vmul.f32 %v2316, %v1323
  %v2329 = vadd.f32 %v2309, %v2325
  %v2330 = vadd.f32 %v2310, %v2326
  %v2331 = vadd.f32 %v2311, %v2327
  %v2332 = vadd.f32 %v2312, %v2328
  %v2333 = vld [vmem:[%s2071] sm:$0xff]
  %v2334 = vld [vmem:[%s2071 + $0x8] sm:$0xff]
  %v2335 = vld [vmem:[%s2071 + $0x10] sm:$0xff]
  %v2336 = vld [vmem:[%s2071 + $0x18] sm:$0xff]
  %v2337 = vmul.f32 %v2333, %v1309
  %v2338 = vmul.f32 %v2334, %v1313
  %v2339 = vmul.f32 %v2335, %v1319
  %v2340 = vmul.f32 %v2336, %v1323
  %v2341 = vadd.f32 %v2321, %v2337
  %v2342 = vadd.f32 %v2322, %v2338
  %v2343 = vadd.f32 %v2323, %v2339
  %v2344 = vadd.f32 %v2324, %v2340
  %v2345 = vmul.f32 %v2333, %v1311
  %v2346 = vmul.f32 %v2334, %v1315
  %v2347 = vmul.f32 %v2335, %v1321
  %v2348 = vmul.f32 %v2336, %v1325
  %v2349 = vadd.f32 %v2329, %v2345
  %v2350 = vadd.f32 %v2330, %v2346
  %v2351 = vadd.f32 %v2331, %v2347
  %v2352 = vadd.f32 %v2332, %v2348
  %v2353 = vld [vmem:[%s2092] sm:$0xff]
  %v2354 = vld [vmem:[%s2092 + $0x8] sm:$0xff]
  %v2355 = vld [vmem:[%s2092 + $0x10] sm:$0xff]
  %v2356 = vld [vmem:[%s2092 + $0x18] sm:$0xff]
  %v2357 = vmul.f32 %v2353, %v1311
  %v2358 = vmul.f32 %v2354, %v1315
  %v2359 = vmul.f32 %v2355, %v1321
  %v2360 = vmul.f32 %v2356, %v1325
  %v2361 = vadd.f32 %v2341, %v2357
  %v2362 = vadd.f32 %v2342, %v2358
  %v2363 = vadd.f32 %v2343, %v2359
  %v2364 = vadd.f32 %v2344, %v2360
  %v2365 = vmul.f32 %v2353, %v1362
  %v2366 = vmul.f32 %v2354, %v1366
  %v2367 = vmul.f32 %v2355, %v1372
  %v2368 = vmul.f32 %v2356, %v1376
  %v2369 = vadd.f32 %v2349, %v2365
  %v2370 = vadd.f32 %v2350, %v2366
  %v2371 = vadd.f32 %v2351, %v2367
  %v2372 = vadd.f32 %v2352, %v2368
  %v2373 = vadd.f32 %v2361, %v1864
  %v2374 = vadd.f32 %v2362, %v1869
  %v2375 = vadd.f32 %v2363, %v1874
  %v2376 = vadd.f32 %v2364, %v1879
  %vm2377 = vcmp.gt.f32.partialorder %v2373, 0.0
  %vm2378 = vcmp.gt.f32.partialorder %v2374, 0.0
  %vm2379 = vcmp.gt.f32.partialorder %v2375, 0.0
  %vm2380 = vcmp.gt.f32.partialorder %v2376, 0.0
  %v2381 = vmin.f32 %v2373, 0.0
  %v2382 = vmin.f32 %v2374, 0.0
  %v2383 = vmin.f32 %v2375, 0.0
  %v2384 = vmin.f32 %v2376, 0.0
  %v2385 = vmul.f32 %v2381, 1.442695
  %v2386 = vpow.pop %v2385
  %v2387 = vmul.f32 %v2382, 1.442695
  %v2388 = vpow.pop %v2387
  %v2389 = vmul.f32 %v2383, 1.442695
  %v2390 = vpow.pop %v2389
  %v2391 = vmul.f32 %v2384, 1.442695
  %v2392 = vpow.pop %v2391
  %v2393 = vsub.f32 %v2386, 1.0
  %v2394 = vsub.f32 %v2388, 1.0
  %v2395 = vsub.f32 %v2390, 1.0
  %v2396 = vsub.f32 %v2392, 1.0
  %v2397 = vsel %vm2377, %v2373, %v2393
  %v2398 = vsel %vm2378, %v2374, %v2394
  %v2399 = vsel %vm2379, %v2375, %v2395
  %v2400 = vsel %vm2380, %v2376, %v2396
  %v2401 = vadd.f32 %v2369, %v1864
  %v2402 = vadd.f32 %v2370, %v1869
  %v2403 = vadd.f32 %v2371, %v1874
  %v2404 = vadd.f32 %v2372, %v1879
  %vm2405 = vcmp.gt.f32.partialorder %v2401, 0.0
  %vm2406 = vcmp.gt.f32.partialorder %v2402, 0.0
  %vm2407 = vcmp.gt.f32.partialorder %v2403, 0.0
  %vm2408 = vcmp.gt.f32.partialorder %v2404, 0.0
  %v2409 = vmin.f32 %v2401, 0.0
  %v2410 = vmin.f32 %v2402, 0.0
  %v2411 = vmin.f32 %v2403, 0.0
  %v2412 = vmin.f32 %v2404, 0.0
  %v2413 = vmul.f32 %v2409, 1.442695
  %v2414 = vpow.pop %v2413
  %v2415 = vmul.f32 %v2410, 1.442695
  %v2416 = vpow.pop %v2415
  %v2417 = vmul.f32 %v2411, 1.442695
  %v2418 = vpow.pop %v2417
  %v2419 = vmul.f32 %v2412, 1.442695
  %v2420 = vpow.pop %v2419
  %v2421 = vsub.f32 %v2414, 1.0
  %v2422 = vsub.f32 %v2416, 1.0
  %v2423 = vsub.f32 %v2418, 1.0
  %v2424 = vsub.f32 %v2420, 1.0
  %v2425 = vsel %vm2405, %v2401, %v2421
  %v2426 = vsel %vm2406, %v2402, %v2422
  %v2427 = vsel %vm2407, %v2403, %v2423
  %v2428 = vsel %vm2408, %v2404, %v2424
  %v2429 = vadd.f32 %v2397, %v2425
  %v2430 = vadd.f32 %v2398, %v2426
  %v2431 = vadd.f32 %v2399, %v2427
  %v2432 = vadd.f32 %v2400, %v2428
  %v2433 = vmul.f32 %v2429, 0.5
  %v2434 = vmul.f32 %v2430, 0.5
  %v2435 = vmul.f32 %v2431, 0.5
  %v2436 = vmul.f32 %v2432, 0.5
  %v2437 = vpack.c.bf16 %v2434, %v2433
  %v2438 = vpack.c.bf16 %v2436, %v2435
  %2439 = vst [vmem:[#allocation2 + $0x10] sm:$0xff] %v2437
  %2440 = vst [vmem:[#allocation2 + $0x80] sm:$0xff] %v2438
  %v2441 = vld [vmem:[%s2] sm:$0xff]
  %v2442 = vld [vmem:[%s2 + $0x8] sm:$0xff]
  %v2443 = vld [vmem:[%s2 + $0x10] sm:$0xff]
  %v2444 = vld [vmem:[%s2 + $0x18] sm:$0xff]
  %v2445 = vmul.f32 %v2441, %v1150
  %v2446 = vmul.f32 %v2442, %v1154
  %v2447 = vmul.f32 %v2443, %v1160
  %v2448 = vmul.f32 %v2444, %v1164
  %v2449 = vmul.f32 %v2441, %v1152
  %v2450 = vmul.f32 %v2442, %v1156
  %v2451 = vmul.f32 %v2443, %v1162
  %v2452 = vmul.f32 %v2444, %v1166
  %v2453 = vld [vmem:[%s1924] sm:$0xff]
  %v2454 = vld [vmem:[%s1924 + $0x8] sm:$0xff]
  %v2455 = vld [vmem:[%s1924 + $0x10] sm:$0xff]
  %v2456 = vld [vmem:[%s1924 + $0x18] sm:$0xff]
  %v2457 = vmul.f32 %v2453, %v1152
  %v2458 = vmul.f32 %v2454, %v1156
  %v2459 = vmul.f32 %v2455, %v1162
  %v2460 = vmul.f32 %v2456, %v1166
  %v2461 = vadd.f32 %v2445, %v2457
  %v2462 = vadd.f32 %v2446, %v2458
  %v2463 = vadd.f32 %v2447, %v2459
  %v2464 = vadd.f32 %v2448, %v2460
  %v2465 = vmul.f32 %v2453, %v1203
  %v2466 = vmul.f32 %v2454, %v1207
  %v2467 = vmul.f32 %v2455, %v1213
  %v2468 = vmul.f32 %v2456, %v1217
  %v2469 = vadd.f32 %v2449, %v2465
  %v2470 = vadd.f32 %v2450, %v2466
  %v2471 = vadd.f32 %v2451, %v2467
  %v2472 = vadd.f32 %v2452, %v2468
  %v2473 = vld [vmem:[%s1945] sm:$0xff]
  %v2474 = vld [vmem:[%s1945 + $0x8] sm:$0xff]
  %v2475 = vld [vmem:[%s1945 + $0x10] sm:$0xff]
  %v2476 = vld [vmem:[%s1945 + $0x18] sm:$0xff]
  %v2477 = vmul.f32 %v2473, %v1203
  %v2478 = vmul.f32 %v2474, %v1207
  %v2479 = vmul.f32 %v2475, %v1213
  %v2480 = vmul.f32 %v2476, %v1217
  %v2481 = vadd.f32 %v2461, %v2477
  %v2482 = vadd.f32 %v2462, %v2478
  %v2483 = vadd.f32 %v2463, %v2479
  %v2484 = vadd.f32 %v2464, %v2480
  %v2485 = vmul.f32 %v2473, %v1205
  %v2486 = vmul.f32 %v2474, %v1209
  %v2487 = vmul.f32 %v2475, %v1215
  %v2488 = vmul.f32 %v2476, %v1219
  %v2489 = vadd.f32 %v2469, %v2485
  %v2490 = vadd.f32 %v2470, %v2486
  %v2491 = vadd.f32 %v2471, %v2487
  %v2492 = vadd.f32 %v2472, %v2488
  %v2493 = vld [vmem:[%s1966] sm:$0xff]
  %v2494 = vld [vmem:[%s1966 + $0x8] sm:$0xff]
  %v2495 = vld [vmem:[%s1966 + $0x10] sm:$0xff]
  %v2496 = vld [vmem:[%s1966 + $0x18] sm:$0xff]
  %v2497 = vmul.f32 %v2493, %v1205
  %v2498 = vmul.f32 %v2494, %v1209
  %v2499 = vmul.f32 %v2495, %v1215
  %v2500 = vmul.f32 %v2496, %v1219
  %v2501 = vadd.f32 %v2481, %v2497
  %v2502 = vadd.f32 %v2482, %v2498
  %v2503 = vadd.f32 %v2483, %v2499
  %v2504 = vadd.f32 %v2484, %v2500
  %v2505 = vmul.f32 %v2493, %v1256
  %v2506 = vmul.f32 %v2494, %v1260
  %v2507 = vmul.f32 %v2495, %v1266
  %v2508 = vmul.f32 %v2496, %v1270
  %v2509 = vadd.f32 %v2489, %v2505
  %v2510 = vadd.f32 %v2490, %v2506
  %v2511 = vadd.f32 %v2491, %v2507
  %v2512 = vadd.f32 %v2492, %v2508
  %v2513 = vld [vmem:[%s1987] sm:$0xff]
  %v2514 = vld [vmem:[%s1987 + $0x8] sm:$0xff]
  %v2515 = vld [vmem:[%s1987 + $0x10] sm:$0xff]
  %v2516 = vld [vmem:[%s1987 + $0x18] sm:$0xff]
  %v2517 = vmul.f32 %v2513, %v1256
  %v2518 = vmul.f32 %v2514, %v1260
  %v2519 = vmul.f32 %v2515, %v1266
  %v2520 = vmul.f32 %v2516, %v1270
  %v2521 = vadd.f32 %v2501, %v2517
  %v2522 = vadd.f32 %v2502, %v2518
  %v2523 = vadd.f32 %v2503, %v2519
  %v2524 = vadd.f32 %v2504, %v2520
  %v2525 = vmul.f32 %v2513, %v1258
  %v2526 = vmul.f32 %v2514, %v1262
  %v2527 = vmul.f32 %v2515, %v1268
  %v2528 = vmul.f32 %v2516, %v1272
  %v2529 = vadd.f32 %v2509, %v2525
  %v2530 = vadd.f32 %v2510, %v2526
  %v2531 = vadd.f32 %v2511, %v2527
  %v2532 = vadd.f32 %v2512, %v2528
  %v2533 = vld [vmem:[%s2008] sm:$0xff]
  %v2534 = vld [vmem:[%s2008 + $0x8] sm:$0xff]
  %v2535 = vld [vmem:[%s2008 + $0x10] sm:$0xff]
  %v2536 = vld [vmem:[%s2008 + $0x18] sm:$0xff]
  %v2537 = vmul.f32 %v2533, %v1258
  %v2538 = vmul.f32 %v2534, %v1262
  %v2539 = vmul.f32 %v2535, %v1268
  %v2540 = vmul.f32 %v2536, %v1272
  %v2541 = vadd.f32 %v2521, %v2537
  %v2542 = vadd.f32 %v2522, %v2538
  %v2543 = vadd.f32 %v2523, %v2539
  %v2544 = vadd.f32 %v2524, %v2540
  %v2545 = vmul.f32 %v2533, %v1309
  %v2546 = vmul.f32 %v2534, %v1313
  %v2547 = vmul.f32 %v2535, %v1319
  %v2548 = vmul.f32 %v2536, %v1323
  %v2549 = vadd.f32 %v2529, %v2545
  %v2550 = vadd.f32 %v2530, %v2546
  %v2551 = vadd.f32 %v2531, %v2547
  %v2552 = vadd.f32 %v2532, %v2548
  %v2553 = vld [vmem:[%s2029] sm:$0xff]
  %v2554 = vld [vmem:[%s2029 + $0x8] sm:$0xff]
  %v2555 = vld [vmem:[%s2029 + $0x10] sm:$0xff]
  %v2556 = vld [vmem:[%s2029 + $0x18] sm:$0xff]
  %v2557 = vmul.f32 %v2553, %v1309
  %v2558 = vmul.f32 %v2554, %v1313
  %v2559 = vmul.f32 %v2555, %v1319
  %v2560 = vmul.f32 %v2556, %v1323
  %v2561 = vadd.f32 %v2541, %v2557
  %v2562 = vadd.f32 %v2542, %v2558
  %v2563 = vadd.f32 %v2543, %v2559
  %v2564 = vadd.f32 %v2544, %v2560
  %v2565 = vmul.f32 %v2553, %v1311
  %v2566 = vmul.f32 %v2554, %v1315
  %v2567 = vmul.f32 %v2555, %v1321
  %v2568 = vmul.f32 %v2556, %v1325
  %v2569 = vadd.f32 %v2549, %v2565
  %v2570 = vadd.f32 %v2550, %v2566
  %v2571 = vadd.f32 %v2551, %v2567
  %v2572 = vadd.f32 %v2552, %v2568
  %v2573 = vld [vmem:[%s2050] sm:$0xff]
  %v2574 = vld [vmem:[%s2050 + $0x8] sm:$0xff]
  %v2575 = vld [vmem:[%s2050 + $0x10] sm:$0xff]
  %v2576 = vld [vmem:[%s2050 + $0x18] sm:$0xff]
  %v2577 = vmul.f32 %v2573, %v1311
  %v2578 = vmul.f32 %v2574, %v1315
  %v2579 = vmul.f32 %v2575, %v1321
  %v2580 = vmul.f32 %v2576, %v1325
  %v2581 = vadd.f32 %v2561, %v2577
  %v2582 = vadd.f32 %v2562, %v2578
  %v2583 = vadd.f32 %v2563, %v2579
  %v2584 = vadd.f32 %v2564, %v2580
  %v2585 = vmul.f32 %v2573, %v1362
  %v2586 = vmul.f32 %v2574, %v1366
  %v2587 = vmul.f32 %v2575, %v1372
  %v2588 = vmul.f32 %v2576, %v1376
  %v2589 = vadd.f32 %v2569, %v2585
  %v2590 = vadd.f32 %v2570, %v2586
  %v2591 = vadd.f32 %v2571, %v2587
  %v2592 = vadd.f32 %v2572, %v2588
  %v2593 = vld [vmem:[%s2071] sm:$0xff]
  %v2594 = vld [vmem:[%s2071 + $0x8] sm:$0xff]
  %v2595 = vld [vmem:[%s2071 + $0x10] sm:$0xff]
  %v2596 = vld [vmem:[%s2071 + $0x18] sm:$0xff]
  %v2597 = vmul.f32 %v2593, %v1362
  %v2598 = vmul.f32 %v2594, %v1366
  %v2599 = vmul.f32 %v2595, %v1372
  %v2600 = vmul.f32 %v2596, %v1376
  %v2601 = vadd.f32 %v2581, %v2597
  %v2602 = vadd.f32 %v2582, %v2598
  %v2603 = vadd.f32 %v2583, %v2599
  %v2604 = vadd.f32 %v2584, %v2600
  %v2605 = vmul.f32 %v2593, %v1364
  %v2606 = vmul.f32 %v2594, %v1368
  %v2607 = vmul.f32 %v2595, %v1374
  %v2608 = vmul.f32 %v2596, %v1378
  %v2609 = vadd.f32 %v2589, %v2605
  %v2610 = vadd.f32 %v2590, %v2606
  %v2611 = vadd.f32 %v2591, %v2607
  %v2612 = vadd.f32 %v2592, %v2608
  %v2613 = vld [vmem:[%s2092] sm:$0xff]
  %v2614 = vld [vmem:[%s2092 + $0x8] sm:$0xff]
  %v2615 = vld [vmem:[%s2092 + $0x10] sm:$0xff]
  %v2616 = vld [vmem:[%s2092 + $0x18] sm:$0xff]
  %v2617 = vmul.f32 %v2613, %v1364
  %v2618 = vmul.f32 %v2614, %v1368
  %v2619 = vmul.f32 %v2615, %v1374
  %v2620 = vmul.f32 %v2616, %v1378
  %v2621 = vadd.f32 %v2601, %v2617
  %v2622 = vadd.f32 %v2602, %v2618
  %v2623 = vadd.f32 %v2603, %v2619
  %v2624 = vadd.f32 %v2604, %v2620
  %v2625 = vmul.f32 %v2613, %v1415
  %v2626 = vmul.f32 %v2614, %v1419
  %v2627 = vmul.f32 %v2615, %v1425
  %v2628 = vmul.f32 %v2616, %v1429
  %v2629 = vadd.f32 %v2609, %v2625
  %v2630 = vadd.f32 %v2610, %v2626
  %v2631 = vadd.f32 %v2611, %v2627
  %v2632 = vadd.f32 %v2612, %v2628
  %v2633 = vadd.f32 %v2621, %v1864
  %v2634 = vadd.f32 %v2622, %v1869
  %v2635 = vadd.f32 %v2623, %v1874
  %v2636 = vadd.f32 %v2624, %v1879
  %vm2637 = vcmp.gt.f32.partialorder %v2633, 0.0
  %vm2638 = vcmp.gt.f32.partialorder %v2634, 0.0
  %vm2639 = vcmp.gt.f32.partialorder %v2635, 0.0
  %vm2640 = vcmp.gt.f32.partialorder %v2636, 0.0
  %v2641 = vmin.f32 %v2633, 0.0
  %v2642 = vmin.f32 %v2634, 0.0
  %v2643 = vmin.f32 %v2635, 0.0
  %v2644 = vmin.f32 %v2636, 0.0
  %v2645 = vmul.f32 %v2641, 1.442695
  %v2646 = vpow.pop %v2645
  %v2647 = vmul.f32 %v2642, 1.442695
  %v2648 = vpow.pop %v2647
  %v2649 = vmul.f32 %v2643, 1.442695
  %v2650 = vpow.pop %v2649
  %v2651 = vmul.f32 %v2644, 1.442695
  %v2652 = vpow.pop %v2651
  %v2653 = vsub.f32 %v2646, 1.0
  %v2654 = vsub.f32 %v2648, 1.0
  %v2655 = vsub.f32 %v2650, 1.0
  %v2656 = vsub.f32 %v2652, 1.0
  %v2657 = vsel %vm2637, %v2633, %v2653
  %v2658 = vsel %vm2638, %v2634, %v2654
  %v2659 = vsel %vm2639, %v2635, %v2655
  %v2660 = vsel %vm2640, %v2636, %v2656
  %v2661 = vadd.f32 %v2629, %v1864
  %v2662 = vadd.f32 %v2630, %v1869
  %v2663 = vadd.f32 %v2631, %v1874
  %v2664 = vadd.f32 %v2632, %v1879
  %vm2665 = vcmp.gt.f32.partialorder %v2661, 0.0
  %vm2666 = vcmp.gt.f32.partialorder %v2662, 0.0
  %vm2667 = vcmp.gt.f32.partialorder %v2663, 0.0
  %vm2668 = vcmp.gt.f32.partialorder %v2664, 0.0
  %v2669 = vmin.f32 %v2661, 0.0
  %v2670 = vmin.f32 %v2662, 0.0
  %v2671 = vmin.f32 %v2663, 0.0
  %v2672 = vmin.f32 %v2664, 0.0
  %v2673 = vmul.f32 %v2669, 1.442695
  %v2674 = vpow.pop %v2673
  %v2675 = vmul.f32 %v2670, 1.442695
  %v2676 = vpow.pop %v2675
  %v2677 = vmul.f32 %v2671, 1.442695
  %v2678 = vpow.pop %v2677
  %v2679 = vmul.f32 %v2672, 1.442695
  %v2680 = vpow.pop %v2679
  %v2681 = vsub.f32 %v2674, 1.0
  %v2682 = vsub.f32 %v2676, 1.0
  %v2683 = vsub.f32 %v2678, 1.0
  %v2684 = vsub.f32 %v2680, 1.0
  %v2685 = vsel %vm2665, %v2661, %v2681
  %v2686 = vsel %vm2666, %v2662, %v2682
  %v2687 = vsel %vm2667, %v2663, %v2683
  %v2688 = vsel %vm2668, %v2664, %v2684
  %v2689 = vadd.f32 %v2657, %v2685
  %v2690 = vadd.f32 %v2658, %v2686
  %v2691 = vadd.f32 %v2659, %v2687
  %v2692 = vadd.f32 %v2660, %v2688
  %v2693 = vmul.f32 %v2689, 0.5
  %v2694 = vmul.f32 %v2690, 0.5
  %v2695 = vmul.f32 %v2691, 0.5
  %v2696 = vmul.f32 %v2692, 0.5
  %v2697 = vpack.c.bf16 %v2694, %v2693
  %v2698 = vpack.c.bf16 %v2696, %v2695
  %2699 = vst [vmem:[#allocation2 + $0x18] sm:$0xff] %v2697
  %2700 = vst [vmem:[#allocation2 + $0x88] sm:$0xff] %v2698
  %v2701 = vld [vmem:[%s2] sm:$0xff]
  %v2702 = vld [vmem:[%s2 + $0x8] sm:$0xff]
  %v2703 = vld [vmem:[%s2 + $0x10] sm:$0xff]
  %v2704 = vld [vmem:[%s2 + $0x18] sm:$0xff]
  %v2705 = vmul.f32 %v2701, %v1203
  %v2706 = vmul.f32 %v2702, %v1207
  %v2707 = vmul.f32 %v2703, %v1213
  %v2708 = vmul.f32 %v2704, %v1217
  %v2709 = vmul.f32 %v2701, %v1205
  %v2710 = vmul.f32 %v2702, %v1209
  %v2711 = vmul.f32 %v2703, %v1215
  %v2712 = vmul.f32 %v2704, %v1219
  %v2713 = vld [vmem:[%s1924] sm:$0xff]
  %v2714 = vld [vmem:[%s1924 + $0x8] sm:$0xff]
  %v2715 = vld [vmem:[%s1924 + $0x10] sm:$0xff]
  %v2716 = vld [vmem:[%s1924 + $0x18] sm:$0xff]
  %v2717 = vmul.f32 %v2713, %v1205
  %v2718 = vmul.f32 %v2714, %v1209
  %v2719 = vmul.f32 %v2715, %v1215
  %v2720 = vmul.f32 %v2716, %v1219
  %v2721 = vadd.f32 %v2705, %v2717
  %v2722 = vadd.f32 %v2706, %v2718
  %v2723 = vadd.f32 %v2707, %v2719
  %v2724 = vadd.f32 %v2708, %v2720
  %v2725 = vmul.f32 %v2713, %v1256
  %v2726 = vmul.f32 %v2714, %v1260
  %v2727 = vmul.f32 %v2715, %v1266
  %v2728 = vmul.f32 %v2716, %v1270
  %v2729 = vadd.f32 %v2709, %v2725
  %v2730 = vadd.f32 %v2710, %v2726
  %v2731 = vadd.f32 %v2711, %v2727
  %v2732 = vadd.f32 %v2712, %v2728
  %v2733 = vld [vmem:[%s1945] sm:$0xff]
  %v2734 = vld [vmem:[%s1945 + $0x8] sm:$0xff]
  %v2735 = vld [vmem:[%s1945 + $0x10] sm:$0xff]
  %v2736 = vld [vmem:[%s1945 + $0x18] sm:$0xff]
  %v2737 = vmul.f32 %v2733, %v1256
  %v2738 = vmul.f32 %v2734, %v1260
  %v2739 = vmul.f32 %v2735, %v1266
  %v2740 = vmul.f32 %v2736, %v1270
  %v2741 = vadd.f32 %v2721, %v2737
  %v2742 = vadd.f32 %v2722, %v2738
  %v2743 = vadd.f32 %v2723, %v2739
  %v2744 = vadd.f32 %v2724, %v2740
  %v2745 = vmul.f32 %v2733, %v1258
  %v2746 = vmul.f32 %v2734, %v1262
  %v2747 = vmul.f32 %v2735, %v1268
  %v2748 = vmul.f32 %v2736, %v1272
  %v2749 = vadd.f32 %v2729, %v2745
  %v2750 = vadd.f32 %v2730, %v2746
  %v2751 = vadd.f32 %v2731, %v2747
  %v2752 = vadd.f32 %v2732, %v2748
  %v2753 = vld [vmem:[%s1966] sm:$0xff]
  %v2754 = vld [vmem:[%s1966 + $0x8] sm:$0xff]
  %v2755 = vld [vmem:[%s1966 + $0x10] sm:$0xff]
  %v2756 = vld [vmem:[%s1966 + $0x18] sm:$0xff]
  %v2757 = vmul.f32 %v2753, %v1258
  %v2758 = vmul.f32 %v2754, %v1262
  %v2759 = vmul.f32 %v2755, %v1268
  %v2760 = vmul.f32 %v2756, %v1272
  %v2761 = vadd.f32 %v2741, %v2757
  %v2762 = vadd.f32 %v2742, %v2758
  %v2763 = vadd.f32 %v2743, %v2759
  %v2764 = vadd.f32 %v2744, %v2760
  %v2765 = vmul.f32 %v2753, %v1309
  %v2766 = vmul.f32 %v2754, %v1313
  %v2767 = vmul.f32 %v2755, %v1319
  %v2768 = vmul.f32 %v2756, %v1323
  %v2769 = vadd.f32 %v2749, %v2765
  %v2770 = vadd.f32 %v2750, %v2766
  %v2771 = vadd.f32 %v2751, %v2767
  %v2772 = vadd.f32 %v2752, %v2768
  %v2773 = vld [vmem:[%s1987] sm:$0xff]
  %v2774 = vld [vmem:[%s1987 + $0x8] sm:$0xff]
  %v2775 = vld [vmem:[%s1987 + $0x10] sm:$0xff]
  %v2776 = vld [vmem:[%s1987 + $0x18] sm:$0xff]
  %v2777 = vmul.f32 %v2773, %v1309
  %v2778 = vmul.f32 %v2774, %v1313
  %v2779 = vmul.f32 %v2775, %v1319
  %v2780 = vmul.f32 %v2776, %v1323
  %v2781 = vadd.f32 %v2761, %v2777
  %v2782 = vadd.f32 %v2762, %v2778
  %v2783 = vadd.f32 %v2763, %v2779
  %v2784 = vadd.f32 %v2764, %v2780
  %v2785 = vmul.f32 %v2773, %v1311
  %v2786 = vmul.f32 %v2774, %v1315
  %v2787 = vmul.f32 %v2775, %v1321
  %v2788 = vmul.f32 %v2776, %v1325
  %v2789 = vadd.f32 %v2769, %v2785
  %v2790 = vadd.f32 %v2770, %v2786
  %v2791 = vadd.f32 %v2771, %v2787
  %v2792 = vadd.f32 %v2772, %v2788
  %v2793 = vld [vmem:[%s2008] sm:$0xff]
  %v2794 = vld [vmem:[%s2008 + $0x8] sm:$0xff]
  %v2795 = vld [vmem:[%s2008 + $0x10] sm:$0xff]
  %v2796 = vld [vmem:[%s2008 + $0x18] sm:$0xff]
  %v2797 = vmul.f32 %v2793, %v1311
  %v2798 = vmul.f32 %v2794, %v1315
  %v2799 = vmul.f32 %v2795, %v1321
  %v2800 = vmul.f32 %v2796, %v1325
  %v2801 = vadd.f32 %v2781, %v2797
  %v2802 = vadd.f32 %v2782, %v2798
  %v2803 = vadd.f32 %v2783, %v2799
  %v2804 = vadd.f32 %v2784, %v2800
  %v2805 = vmul.f32 %v2793, %v1362
  %v2806 = vmul.f32 %v2794, %v1366
  %v2807 = vmul.f32 %v2795, %v1372
  %v2808 = vmul.f32 %v2796, %v1376
  %v2809 = vadd.f32 %v2789, %v2805
  %v2810 = vadd.f32 %v2790, %v2806
  %v2811 = vadd.f32 %v2791, %v2807
  %v2812 = vadd.f32 %v2792, %v2808
  %v2813 = vld [vmem:[%s2029] sm:$0xff]
  %v2814 = vld [vmem:[%s2029 + $0x8] sm:$0xff]
  %v2815 = vld [vmem:[%s2029 + $0x10] sm:$0xff]
  %v2816 = vld [vmem:[%s2029 + $0x18] sm:$0xff]
  %v2817 = vmul.f32 %v2813, %v1362
  %v2818 = vmul.f32 %v2814, %v1366
  %v2819 = vmul.f32 %v2815, %v1372
  %v2820 = vmul.f32 %v2816, %v1376
  %v2821 = vadd.f32 %v2801, %v2817
  %v2822 = vadd.f32 %v2802, %v2818
  %v2823 = vadd.f32 %v2803, %v2819
  %v2824 = vadd.f32 %v2804, %v2820
  %v2825 = vmul.f32 %v2813, %v1364
  %v2826 = vmul.f32 %v2814, %v1368
  %v2827 = vmul.f32 %v2815, %v1374
  %v2828 = vmul.f32 %v2816, %v1378
  %v2829 = vadd.f32 %v2809, %v2825
  %v2830 = vadd.f32 %v2810, %v2826
  %v2831 = vadd.f32 %v2811, %v2827
  %v2832 = vadd.f32 %v2812, %v2828
  %v2833 = vld [vmem:[%s2050] sm:$0xff]
  %v2834 = vld [vmem:[%s2050 + $0x8] sm:$0xff]
  %v2835 = vld [vmem:[%s2050 + $0x10] sm:$0xff]
  %v2836 = vld [vmem:[%s2050 + $0x18] sm:$0xff]
  %v2837 = vmul.f32 %v2833, %v1364
  %v2838 = vmul.f32 %v2834, %v1368
  %v2839 = vmul.f32 %v2835, %v1374
  %v2840 = vmul.f32 %v2836, %v1378
  %v2841 = vadd.f32 %v2821, %v2837
  %v2842 = vadd.f32 %v2822, %v2838
  %v2843 = vadd.f32 %v2823, %v2839
  %v2844 = vadd.f32 %v2824, %v2840
  %v2845 = vmul.f32 %v2833, %v1415
  %v2846 = vmul.f32 %v2834, %v1419
  %v2847 = vmul.f32 %v2835, %v1425
  %v2848 = vmul.f32 %v2836, %v1429
  %v2849 = vadd.f32 %v2829, %v2845
  %v2850 = vadd.f32 %v2830, %v2846
  %v2851 = vadd.f32 %v2831, %v2847
  %v2852 = vadd.f32 %v2832, %v2848
  %v2853 = vld [vmem:[%s2071] sm:$0xff]
  %v2854 = vld [vmem:[%s2071 + $0x8] sm:$0xff]
  %v2855 = vld [vmem:[%s2071 + $0x10] sm:$0xff]
  %v2856 = vld [vmem:[%s2071 + $0x18] sm:$0xff]
  %v2857 = vmul.f32 %v2853, %v1415
  %v2858 = vmul.f32 %v2854, %v1419
  %v2859 = vmul.f32 %v2855, %v1425
  %v2860 = vmul.f32 %v2856, %v1429
  %v2861 = vadd.f32 %v2841, %v2857
  %v2862 = vadd.f32 %v2842, %v2858
  %v2863 = vadd.f32 %v2843, %v2859
  %v2864 = vadd.f32 %v2844, %v2860
  %v2865 = vmul.f32 %v2853, %v1417
  %v2866 = vmul.f32 %v2854, %v1421
  %v2867 = vmul.f32 %v2855, %v1427
  %v2868 = vmul.f32 %v2856, %v1431
  %v2869 = vadd.f32 %v2849, %v2865
  %v2870 = vadd.f32 %v2850, %v2866
  %v2871 = vadd.f32 %v2851, %v2867
  %v2872 = vadd.f32 %v2852, %v2868
  %v2873 = vld [vmem:[%s2092] sm:$0xff]
  %v2874 = vld [vmem:[%s2092 + $0x8] sm:$0xff]
  %v2875 = vld [vmem:[%s2092 + $0x10] sm:$0xff]
  %v2876 = vld [vmem:[%s2092 + $0x18] sm:$0xff]
  %v2877 = vmul.f32 %v2873, %v1417
  %v2878 = vmul.f32 %v2874, %v1421
  %v2879 = vmul.f32 %v2875, %v1427
  %v2880 = vmul.f32 %v2876, %v1431
  %v2881 = vadd.f32 %v2861, %v2877
  %v2882 = vadd.f32 %v2862, %v2878
  %v2883 = vadd.f32 %v2863, %v2879
  %v2884 = vadd.f32 %v2864, %v2880
  %v2885 = vmul.f32 %v2873, %v1468
  %v2886 = vmul.f32 %v2874, %v1472
  %v2887 = vmul.f32 %v2875, %v1478
  %v2888 = vmul.f32 %v2876, %v1482
  %v2889 = vadd.f32 %v2869, %v2885
  %v2890 = vadd.f32 %v2870, %v2886
  %v2891 = vadd.f32 %v2871, %v2887
  %v2892 = vadd.f32 %v2872, %v2888
  %v2893 = vadd.f32 %v2881, %v1864
  %v2894 = vadd.f32 %v2882, %v1869
  %v2895 = vadd.f32 %v2883, %v1874
  %v2896 = vadd.f32 %v2884, %v1879
  %vm2897 = vcmp.gt.f32.partialorder %v2893, 0.0
  %vm2898 = vcmp.gt.f32.partialorder %v2894, 0.0
  %vm2899 = vcmp.gt.f32.partialorder %v2895, 0.0
  %vm2900 = vcmp.gt.f32.partialorder %v2896, 0.0
  %v2901 = vmin.f32 %v2893, 0.0
  %v2902 = vmin.f32 %v2894, 0.0
  %v2903 = vmin.f32 %v2895, 0.0
  %v2904 = vmin.f32 %v2896, 0.0
  %v2905 = vmul.f32 %v2901, 1.442695
  %v2906 = vpow.pop %v2905
  %v2907 = vmul.f32 %v2902, 1.442695
  %v2908 = vpow.pop %v2907
  %v2909 = vmul.f32 %v2903, 1.442695
  %v2910 = vpow.pop %v2909
  %v2911 = vmul.f32 %v2904, 1.442695
  %v2912 = vpow.pop %v2911
  %v2913 = vsub.f32 %v2906, 1.0
  %v2914 = vsub.f32 %v2908, 1.0
  %v2915 = vsub.f32 %v2910, 1.0
  %v2916 = vsub.f32 %v2912, 1.0
  %v2917 = vsel %vm2897, %v2893, %v2913
  %v2918 = vsel %vm2898, %v2894, %v2914
  %v2919 = vsel %vm2899, %v2895, %v2915
  %v2920 = vsel %vm2900, %v2896, %v2916
  %v2921 = vadd.f32 %v2889, %v1864
  %v2922 = vadd.f32 %v2890, %v1869
  %v2923 = vadd.f32 %v2891, %v1874
  %v2924 = vadd.f32 %v2892, %v1879
  %vm2925 = vcmp.gt.f32.partialorder %v2921, 0.0
  %vm2926 = vcmp.gt.f32.partialorder %v2922, 0.0
  %vm2927 = vcmp.gt.f32.partialorder %v2923, 0.0
  %vm2928 = vcmp.gt.f32.partialorder %v2924, 0.0
  %v2929 = vmin.f32 %v2921, 0.0
  %v2930 = vmin.f32 %v2922, 0.0
  %v2931 = vmin.f32 %v2923, 0.0
  %v2932 = vmin.f32 %v2924, 0.0
  %v2933 = vmul.f32 %v2929, 1.442695
  %v2934 = vpow.pop %v2933
  %v2935 = vmul.f32 %v2930, 1.442695
  %v2936 = vpow.pop %v2935
  %v2937 = vmul.f32 %v2931, 1.442695
  %v2938 = vpow.pop %v2937
  %v2939 = vmul.f32 %v2932, 1.442695
  %v2940 = vpow.pop %v2939
  %v2941 = vsub.f32 %v2934, 1.0
  %v2942 = vsub.f32 %v2936, 1.0
  %v2943 = vsub.f32 %v2938, 1.0
  %v2944 = vsub.f32 %v2940, 1.0
  %v2945 = vsel %vm2925, %v2921, %v2941
  %v2946 = vsel %vm2926, %v2922, %v2942
  %v2947 = vsel %vm2927, %v2923, %v2943
  %v2948 = vsel %vm2928, %v2924, %v2944
  %v2949 = vadd.f32 %v2917, %v2945
  %v2950 = vadd.f32 %v2918, %v2946
  %v2951 = vadd.f32 %v2919, %v2947
  %v2952 = vadd.f32 %v2920, %v2948
  %v2953 = vmul.f32 %v2949, 0.5
  %v2954 = vmul.f32 %v2950, 0.5
  %v2955 = vmul.f32 %v2951, 0.5
  %v2956 = vmul.f32 %v2952, 0.5
  %v2957 = vpack.c.bf16 %v2954, %v2953
  %v2958 = vpack.c.bf16 %v2956, %v2955
  %2959 = vst [vmem:[#allocation2 + $0x20] sm:$0xff] %v2957
  %2960 = vst [vmem:[#allocation2 + $0x90] sm:$0xff] %v2958
  %v2961 = vld [vmem:[%s2] sm:$0xff]
  %v2962 = vld [vmem:[%s2 + $0x8] sm:$0xff]
  %v2963 = vld [vmem:[%s2 + $0x10] sm:$0xff]
  %v2964 = vld [vmem:[%s2 + $0x18] sm:$0xff]
  %v2965 = vmul.f32 %v2961, %v1256
  %v2966 = vmul.f32 %v2962, %v1260
  %v2967 = vmul.f32 %v2963, %v1266
  %v2968 = vmul.f32 %v2964, %v1270
  %v2969 = vmul.f32 %v2961, %v1258
  %v2970 = vmul.f32 %v2962, %v1262
  %v2971 = vmul.f32 %v2963, %v1268
  %v2972 = vmul.f32 %v2964, %v1272
  %v2973 = vld [vmem:[%s1924] sm:$0xff]
  %v2974 = vld [vmem:[%s1924 + $0x8] sm:$0xff]
  %v2975 = vld [vmem:[%s1924 + $0x10] sm:$0xff]
  %v2976 = vld [vmem:[%s1924 + $0x18] sm:$0xff]
  %v2977 = vmul.f32 %v2973, %v1258
  %v2978 = vmul.f32 %v2974, %v1262
  %v2979 = vmul.f32 %v2975, %v1268
  %v2980 = vmul.f32 %v2976, %v1272
  %v2981 = vadd.f32 %v2965, %v2977
  %v2982 = vadd.f32 %v2966, %v2978
  %v2983 = vadd.f32 %v2967, %v2979
  %v2984 = vadd.f32 %v2968, %v2980
  %v2985 = vmul.f32 %v2973, %v1309
  %v2986 = vmul.f32 %v2974, %v1313
  %v2987 = vmul.f32 %v2975, %v1319
  %v2988 = vmul.f32 %v2976, %v1323
  %v2989 = vadd.f32 %v2969, %v2985
  %v2990 = vadd.f32 %v2970, %v2986
  %v2991 = vadd.f32 %v2971, %v2987
  %v2992 = vadd.f32 %v2972, %v2988
  %v2993 = vld [vmem:[%s1945] sm:$0xff]
  %v2994 = vld [vmem:[%s1945 + $0x8] sm:$0xff]
  %v2995 = vld [vmem:[%s1945 + $0x10] sm:$0xff]
  %v2996 = vld [vmem:[%s1945 + $0x18] sm:$0xff]
  %v2997 = vmul.f32 %v2993, %v1309
  %v2998 = vmul.f32 %v2994, %v1313
  %v2999 = vmul.f32 %v2995, %v1319
  %v3000 = vmul.f32 %v2996, %v1323
  %v3001 = vadd.f32 %v2981, %v2997
  %v3002 = vadd.f32 %v2982, %v2998
  %v3003 = vadd.f32 %v2983, %v2999
  %v3004 = vadd.f32 %v2984, %v3000
  %v3005 = vmul.f32 %v2993, %v1311
  %v3006 = vmul.f32 %v2994, %v1315
  %v3007 = vmul.f32 %v2995, %v1321
  %v3008 = vmul.f32 %v2996, %v1325
  %v3009 = vadd.f32 %v2989, %v3005
  %v3010 = vadd.f32 %v2990, %v3006
  %v3011 = vadd.f32 %v2991, %v3007
  %v3012 = vadd.f32 %v2992, %v3008
  %v3013 = vld [vmem:[%s1966] sm:$0xff]
  %v3014 = vld [vmem:[%s1966 + $0x8] sm:$0xff]
  %v3015 = vld [vmem:[%s1966 + $0x10] sm:$0xff]
  %v3016 = vld [vmem:[%s1966 + $0x18] sm:$0xff]
  %v3017 = vmul.f32 %v3013, %v1311
  %v3018 = vmul.f32 %v3014, %v1315
  %v3019 = vmul.f32 %v3015, %v1321
  %v3020 = vmul.f32 %v3016, %v1325
  %v3021 = vadd.f32 %v3001, %v3017
  %v3022 = vadd.f32 %v3002, %v3018
  %v3023 = vadd.f32 %v3003, %v3019
  %v3024 = vadd.f32 %v3004, %v3020
  %v3025 = vmul.f32 %v3013, %v1362
  %v3026 = vmul.f32 %v3014, %v1366
  %v3027 = vmul.f32 %v3015, %v1372
  %v3028 = vmul.f32 %v3016, %v1376
  %v3029 = vadd.f32 %v3009, %v3025
  %v3030 = vadd.f32 %v3010, %v3026
  %v3031 = vadd.f32 %v3011, %v3027
  %v3032 = vadd.f32 %v3012, %v3028
  %v3033 = vld [vmem:[%s1987] sm:$0xff]
  %v3034 = vld [vmem:[%s1987 + $0x8] sm:$0xff]
  %v3035 = vld [vmem:[%s1987 + $0x10] sm:$0xff]
  %v3036 = vld [vmem:[%s1987 + $0x18] sm:$0xff]
  %v3037 = vmul.f32 %v3033, %v1362
  %v3038 = vmul.f32 %v3034, %v1366
  %v3039 = vmul.f32 %v3035, %v1372
  %v3040 = vmul.f32 %v3036, %v1376
  %v3041 = vadd.f32 %v3021, %v3037
  %v3042 = vadd.f32 %v3022, %v3038
  %v3043 = vadd.f32 %v3023, %v3039
  %v3044 = vadd.f32 %v3024, %v3040
  %v3045 = vmul.f32 %v3033, %v1364
  %v3046 = vmul.f32 %v3034, %v1368
  %v3047 = vmul.f32 %v3035, %v1374
  %v3048 = vmul.f32 %v3036, %v1378
  %v3049 = vadd.f32 %v3029, %v3045
  %v3050 = vadd.f32 %v3030, %v3046
  %v3051 = vadd.f32 %v3031, %v3047
  %v3052 = vadd.f32 %v3032, %v3048
  %v3053 = vld [vmem:[%s2008] sm:$0xff]
  %v3054 = vld [vmem:[%s2008 + $0x8] sm:$0xff]
  %v3055 = vld [vmem:[%s2008 + $0x10] sm:$0xff]
  %v3056 = vld [vmem:[%s2008 + $0x18] sm:$0xff]
  %v3057 = vmul.f32 %v3053, %v1364
  %v3058 = vmul.f32 %v3054, %v1368
  %v3059 = vmul.f32 %v3055, %v1374
  %v3060 = vmul.f32 %v3056, %v1378
  %v3061 = vadd.f32 %v3041, %v3057
  %v3062 = vadd.f32 %v3042, %v3058
  %v3063 = vadd.f32 %v3043, %v3059
  %v3064 = vadd.f32 %v3044, %v3060
  %v3065 = vmul.f32 %v3053, %v1415
  %v3066 = vmul.f32 %v3054, %v1419
  %v3067 = vmul.f32 %v3055, %v1425
  %v3068 = vmul.f32 %v3056, %v1429
  %v3069 = vadd.f32 %v3049, %v3065
  %v3070 = vadd.f32 %v3050, %v3066
  %v3071 = vadd.f32 %v3051, %v3067
  %v3072 = vadd.f32 %v3052, %v3068
  %v3073 = vld [vmem:[%s2029] sm:$0xff]
  %v3074 = vld [vmem:[%s2029 + $0x8] sm:$0xff]
  %v3075 = vld [vmem:[%s2029 + $0x10] sm:$0xff]
  %v3076 = vld [vmem:[%s2029 + $0x18] sm:$0xff]
  %v3077 = vmul.f32 %v3073, %v1415
  %v3078 = vmul.f32 %v3074, %v1419
  %v3079 = vmul.f32 %v3075, %v1425
  %v3080 = vmul.f32 %v3076, %v1429
  %v3081 = vadd.f32 %v3061, %v3077
  %v3082 = vadd.f32 %v3062, %v3078
  %v3083 = vadd.f32 %v3063, %v3079
  %v3084 = vadd.f32 %v3064, %v3080
  %v3085 = vmul.f32 %v3073, %v1417
  %v3086 = vmul.f32 %v3074, %v1421
  %v3087 = vmul.f32 %v3075, %v1427
  %v3088 = vmul.f32 %v3076, %v1431
  %v3089 = vadd.f32 %v3069, %v3085
  %v3090 = vadd.f32 %v3070, %v3086
  %v3091 = vadd.f32 %v3071, %v3087
  %v3092 = vadd.f32 %v3072, %v3088
  %v3093 = vld [vmem:[%s2050] sm:$0xff]
  %v3094 = vld [vmem:[%s2050 + $0x8] sm:$0xff]
  %v3095 = vld [vmem:[%s2050 + $0x10] sm:$0xff]
  %v3096 = vld [vmem:[%s2050 + $0x18] sm:$0xff]
  %v3097 = vmul.f32 %v3093, %v1417
  %v3098 = vmul.f32 %v3094, %v1421
  %v3099 = vmul.f32 %v3095, %v1427
  %v3100 = vmul.f32 %v3096, %v1431
  %v3101 = vadd.f32 %v3081, %v3097
  %v3102 = vadd.f32 %v3082, %v3098
  %v3103 = vadd.f32 %v3083, %v3099
  %v3104 = vadd.f32 %v3084, %v3100
  %v3105 = vmul.f32 %v3093, %v1468
  %v3106 = vmul.f32 %v3094, %v1472
  %v3107 = vmul.f32 %v3095, %v1478
  %v3108 = vmul.f32 %v3096, %v1482
  %v3109 = vadd.f32 %v3089, %v3105
  %v3110 = vadd.f32 %v3090, %v3106
  %v3111 = vadd.f32 %v3091, %v3107
  %v3112 = vadd.f32 %v3092, %v3108
  %v3113 = vld [vmem:[%s2071] sm:$0xff]
  %v3114 = vld [vmem:[%s2071 + $0x8] sm:$0xff]
  %v3115 = vld [vmem:[%s2071 + $0x10] sm:$0xff]
  %v3116 = vld [vmem:[%s2071 + $0x18] sm:$0xff]
  %v3117 = vmul.f32 %v3113, %v1468
  %v3118 = vmul.f32 %v3114, %v1472
  %v3119 = vmul.f32 %v3115, %v1478
  %v3120 = vmul.f32 %v3116, %v1482
  %v3121 = vadd.f32 %v3101, %v3117
  %v3122 = vadd.f32 %v3102, %v3118
  %v3123 = vadd.f32 %v3103, %v3119
  %v3124 = vadd.f32 %v3104, %v3120
  %v3125 = vmul.f32 %v3113, %v1470
  %v3126 = vmul.f32 %v3114, %v1474
  %v3127 = vmul.f32 %v3115, %v1480
  %v3128 = vmul.f32 %v3116, %v1484
  %v3129 = vadd.f32 %v3109, %v3125
  %v3130 = vadd.f32 %v3110, %v3126
  %v3131 = vadd.f32 %v3111, %v3127
  %v3132 = vadd.f32 %v3112, %v3128
  %v3133 = vld [vmem:[%s2092] sm:$0xff]
  %v3134 = vld [vmem:[%s2092 + $0x8] sm:$0xff]
  %v3135 = vld [vmem:[%s2092 + $0x10] sm:$0xff]
  %v3136 = vld [vmem:[%s2092 + $0x18] sm:$0xff]
  %v3137 = vmul.f32 %v3133, %v1470
  %v3138 = vmul.f32 %v3134, %v1474
  %v3139 = vmul.f32 %v3135, %v1480
  %v3140 = vmul.f32 %v3136, %v1484
  %v3141 = vadd.f32 %v3121, %v3137
  %v3142 = vadd.f32 %v3122, %v3138
  %v3143 = vadd.f32 %v3123, %v3139
  %v3144 = vadd.f32 %v3124, %v3140
  %v3145 = vmul.f32 %v3133, %v1521
  %v3146 = vmul.f32 %v3134, %v1525
  %v3147 = vmul.f32 %v3135, %v1531
  %v3148 = vmul.f32 %v3136, %v1535
  %v3149 = vadd.f32 %v3129, %v3145
  %v3150 = vadd.f32 %v3130, %v3146
  %v3151 = vadd.f32 %v3131, %v3147
  %v3152 = vadd.f32 %v3132, %v3148
  %v3153 = vadd.f32 %v3141, %v1864
  %v3154 = vadd.f32 %v3142, %v1869
  %v3155 = vadd.f32 %v3143, %v1874
  %v3156 = vadd.f32 %v3144, %v1879
  %vm3157 = vcmp.gt.f32.partialorder %v3153, 0.0
  %vm3158 = vcmp.gt.f32.partialorder %v3154, 0.0
  %vm3159 = vcmp.gt.f32.partialorder %v3155, 0.0
  %vm3160 = vcmp.gt.f32.partialorder %v3156, 0.0
  %v3161 = vmin.f32 %v3153, 0.0
  %v3162 = vmin.f32 %v3154, 0.0
  %v3163 = vmin.f32 %v3155, 0.0
  %v3164 = vmin.f32 %v3156, 0.0
  %v3165 = vmul.f32 %v3161, 1.442695
  %v3166 = vpow.pop %v3165
  %v3167 = vmul.f32 %v3162, 1.442695
  %v3168 = vpow.pop %v3167
  %v3169 = vmul.f32 %v3163, 1.442695
  %v3170 = vpow.pop %v3169
  %v3171 = vmul.f32 %v3164, 1.442695
  %v3172 = vpow.pop %v3171
  %v3173 = vsub.f32 %v3166, 1.0
  %v3174 = vsub.f32 %v3168, 1.0
  %v3175 = vsub.f32 %v3170, 1.0
  %v3176 = vsub.f32 %v3172, 1.0
  %v3177 = vsel %vm3157, %v3153, %v3173
  %v3178 = vsel %vm3158, %v3154, %v3174
  %v3179 = vsel %vm3159, %v3155, %v3175
  %v3180 = vsel %vm3160, %v3156, %v3176
  %v3181 = vadd.f32 %v3149, %v1864
  %v3182 = vadd.f32 %v3150, %v1869
  %v3183 = vadd.f32 %v3151, %v1874
  %v3184 = vadd.f32 %v3152, %v1879
  %vm3185 = vcmp.gt.f32.partialorder %v3181, 0.0
  %vm3186 = vcmp.gt.f32.partialorder %v3182, 0.0
  %vm3187 = vcmp.gt.f32.partialorder %v3183, 0.0
  %vm3188 = vcmp.gt.f32.partialorder %v3184, 0.0
  %v3189 = vmin.f32 %v3181, 0.0
  %v3190 = vmin.f32 %v3182, 0.0
  %v3191 = vmin.f32 %v3183, 0.0
  %v3192 = vmin.f32 %v3184, 0.0
  %v3193 = vmul.f32 %v3189, 1.442695
  %v3194 = vpow.pop %v3193
  %v3195 = vmul.f32 %v3190, 1.442695
  %v3196 = vpow.pop %v3195
  %v3197 = vmul.f32 %v3191, 1.442695
  %v3198 = vpow.pop %v3197
  %v3199 = vmul.f32 %v3192, 1.442695
  %v3200 = vpow.pop %v3199
  %v3201 = vsub.f32 %v3194, 1.0
  %v3202 = vsub.f32 %v3196, 1.0
  %v3203 = vsub.f32 %v3198, 1.0
  %v3204 = vsub.f32 %v3200, 1.0
  %v3205 = vsel %vm3185, %v3181, %v3201
  %v3206 = vsel %vm3186, %v3182, %v3202
  %v3207 = vsel %vm3187, %v3183, %v3203
  %v3208 = vsel %vm3188, %v3184, %v3204
  %v3209 = vadd.f32 %v3177, %v3205
  %v3210 = vadd.f32 %v3178, %v3206
  %v3211 = vadd.f32 %v3179, %v3207
  %v3212 = vadd.f32 %v3180, %v3208
  %v3213 = vmul.f32 %v3209, 0.5
  %v3214 = vmul.f32 %v3210, 0.5
  %v3215 = vmul.f32 %v3211, 0.5
  %v3216 = vmul.f32 %v3212, 0.5
  %v3217 = vpack.c.bf16 %v3214, %v3213
  %v3218 = vpack.c.bf16 %v3216, %v3215
  %3219 = vst [vmem:[#allocation2 + $0x28] sm:$0xff] %v3217
  %3220 = vst [vmem:[#allocation2 + $0x98] sm:$0xff] %v3218
  %v3221 = vld [vmem:[%s2] sm:$0xff]
  %v3222 = vld [vmem:[%s2 + $0x8] sm:$0xff]
  %v3223 = vld [vmem:[%s2 + $0x10] sm:$0xff]
  %v3224 = vld [vmem:[%s2 + $0x18] sm:$0xff]
  %v3225 = vmul.f32 %v3221, %v1309
  %v3226 = vmul.f32 %v3222, %v1313
  %v3227 = vmul.f32 %v3223, %v1319
  %v3228 = vmul.f32 %v3224, %v1323
  %v3229 = vmul.f32 %v3221, %v1311
  %v3230 = vmul.f32 %v3222, %v1315
  %v3231 = vmul.f32 %v3223, %v1321
  %v3232 = vmul.f32 %v3224, %v1325
  %v3233 = vld [vmem:[%s1924] sm:$0xff]
  %v3234 = vld [vmem:[%s1924 + $0x8] sm:$0xff]
  %v3235 = vld [vmem:[%s1924 + $0x10] sm:$0xff]
  %v3236 = vld [vmem:[%s1924 + $0x18] sm:$0xff]
  %v3237 = vmul.f32 %v3233, %v1311
  %v3238 = vmul.f32 %v3234, %v1315
  %v3239 = vmul.f32 %v3235, %v1321
  %v3240 = vmul.f32 %v3236, %v1325
  %v3241 = vadd.f32 %v3225, %v3237
  %v3242 = vadd.f32 %v3226, %v3238
  %v3243 = vadd.f32 %v3227, %v3239
  %v3244 = vadd.f32 %v3228, %v3240
  %v3245 = vmul.f32 %v3233, %v1362
  %v3246 = vmul.f32 %v3234, %v1366
  %v3247 = vmul.f32 %v3235, %v1372
  %v3248 = vmul.f32 %v3236, %v1376
  %v3249 = vadd.f32 %v3229, %v3245
  %v3250 = vadd.f32 %v3230, %v3246
  %v3251 = vadd.f32 %v3231, %v3247
  %v3252 = vadd.f32 %v3232, %v3248
  %v3253 = vld [vmem:[%s1945] sm:$0xff]
  %v3254 = vld [vmem:[%s1945 + $0x8] sm:$0xff]
  %v3255 = vld [vmem:[%s1945 + $0x10] sm:$0xff]
  %v3256 = vld [vmem:[%s1945 + $0x18] sm:$0xff]
  %v3257 = vmul.f32 %v3253, %v1362
  %v3258 = vmul.f32 %v3254, %v1366
  %v3259 = vmul.f32 %v3255, %v1372
  %v3260 = vmul.f32 %v3256, %v1376
  %v3261 = vadd.f32 %v3241, %v3257
  %v3262 = vadd.f32 %v3242, %v3258
  %v3263 = vadd.f32 %v3243, %v3259
  %v3264 = vadd.f32 %v3244, %v3260
  %v3265 = vmul.f32 %v3253, %v1364
  %v3266 = vmul.f32 %v3254, %v1368
  %v3267 = vmul.f32 %v3255, %v1374
  %v3268 = vmul.f32 %v3256, %v1378
  %v3269 = vadd.f32 %v3249, %v3265
  %v3270 = vadd.f32 %v3250, %v3266
  %v3271 = vadd.f32 %v3251, %v3267
  %v3272 = vadd.f32 %v3252, %v3268
  %v3273 = vld [vmem:[%s1966] sm:$0xff]
  %v3274 = vld [vmem:[%s1966 + $0x8] sm:$0xff]
  %v3275 = vld [vmem:[%s1966 + $0x10] sm:$0xff]
  %v3276 = vld [vmem:[%s1966 + $0x18] sm:$0xff]
  %v3277 = vmul.f32 %v3273, %v1364
  %v3278 = vmul.f32 %v3274, %v1368
  %v3279 = vmul.f32 %v3275, %v1374
  %v3280 = vmul.f32 %v3276, %v1378
  %v3281 = vadd.f32 %v3261, %v3277
  %v3282 = vadd.f32 %v3262, %v3278
  %v3283 = vadd.f32 %v3263, %v3279
  %v3284 = vadd.f32 %v3264, %v3280
  %v3285 = vmul.f32 %v3273, %v1415
  %v3286 = vmul.f32 %v3274, %v1419
  %v3287 = vmul.f32 %v3275, %v1425
  %v3288 = vmul.f32 %v3276, %v1429
  %v3289 = vadd.f32 %v3269, %v3285
  %v3290 = vadd.f32 %v3270, %v3286
  %v3291 = vadd.f32 %v3271, %v3287
  %v3292 = vadd.f32 %v3272, %v3288
  %v3293 = vld [vmem:[%s1987] sm:$0xff]
  %v3294 = vld [vmem:[%s1987 + $0x8] sm:$0xff]
  %v3295 = vld [vmem:[%s1987 + $0x10] sm:$0xff]
  %v3296 = vld [vmem:[%s1987 + $0x18] sm:$0xff]
  %v3297 = vmul.f32 %v3293, %v1415
  %v3298 = vmul.f32 %v3294, %v1419
  %v3299 = vmul.f32 %v3295, %v1425
  %v3300 = vmul.f32 %v3296, %v1429
  %v3301 = vadd.f32 %v3281, %v3297
  %v3302 = vadd.f32 %v3282, %v3298
  %v3303 = vadd.f32 %v3283, %v3299
  %v3304 = vadd.f32 %v3284, %v3300
  %v3305 = vmul.f32 %v3293, %v1417
  %v3306 = vmul.f32 %v3294, %v1421
  %v3307 = vmul.f32 %v3295, %v1427
  %v3308 = vmul.f32 %v3296, %v1431
  %v3309 = vadd.f32 %v3289, %v3305
  %v3310 = vadd.f32 %v3290, %v3306
  %v3311 = vadd.f32 %v3291, %v3307
  %v3312 = vadd.f32 %v3292, %v3308
  %v3313 = vld [vmem:[%s2008] sm:$0xff]
  %v3314 = vld [vmem:[%s2008 + $0x8] sm:$0xff]
  %v3315 = vld [vmem:[%s2008 + $0x10] sm:$0xff]
  %v3316 = vld [vmem:[%s2008 + $0x18] sm:$0xff]
  %v3317 = vmul.f32 %v3313, %v1417
  %v3318 = vmul.f32 %v3314, %v1421
  %v3319 = vmul.f32 %v3315, %v1427
  %v3320 = vmul.f32 %v3316, %v1431
  %v3321 = vadd.f32 %v3301, %v3317
  %v3322 = vadd.f32 %v3302, %v3318
  %v3323 = vadd.f32 %v3303, %v3319
  %v3324 = vadd.f32 %v3304, %v3320
  %v3325 = vmul.f32 %v3313, %v1468
  %v3326 = vmul.f32 %v3314, %v1472
  %v3327 = vmul.f32 %v3315, %v1478
  %v3328 = vmul.f32 %v3316, %v1482
  %v3329 = vadd.f32 %v3309, %v3325
  %v3330 = vadd.f32 %v3310, %v3326
  %v3331 = vadd.f32 %v3311, %v3327
  %v3332 = vadd.f32 %v3312, %v3328
  %v3333 = vld [vmem:[%s2029] sm:$0xff]
  %v3334 = vld [vmem:[%s2029 + $0x8] sm:$0xff]
  %v3335 = vld [vmem:[%s2029 + $0x10] sm:$0xff]
  %v3336 = vld [vmem:[%s2029 + $0x18] sm:$0xff]
  %v3337 = vmul.f32 %v3333, %v1468
  %v3338 = vmul.f32 %v3334, %v1472
  %v3339 = vmul.f32 %v3335, %v1478
  %v3340 = vmul.f32 %v3336, %v1482
  %v3341 = vadd.f32 %v3321, %v3337
  %v3342 = vadd.f32 %v3322, %v3338
  %v3343 = vadd.f32 %v3323, %v3339
  %v3344 = vadd.f32 %v3324, %v3340
  %v3345 = vmul.f32 %v3333, %v1470
  %v3346 = vmul.f32 %v3334, %v1474
  %v3347 = vmul.f32 %v3335, %v1480
  %v3348 = vmul.f32 %v3336, %v1484
  %v3349 = vadd.f32 %v3329, %v3345
  %v3350 = vadd.f32 %v3330, %v3346
  %v3351 = vadd.f32 %v3331, %v3347
  %v3352 = vadd.f32 %v3332, %v3348
  %v3353 = vld [vmem:[%s2050] sm:$0xff]
  %v3354 = vld [vmem:[%s2050 + $0x8] sm:$0xff]
  %v3355 = vld [vmem:[%s2050 + $0x10] sm:$0xff]
  %v3356 = vld [vmem:[%s2050 + $0x18] sm:$0xff]
  %v3357 = vmul.f32 %v3353, %v1470
  %v3358 = vmul.f32 %v3354, %v1474
  %v3359 = vmul.f32 %v3355, %v1480
  %v3360 = vmul.f32 %v3356, %v1484
  %v3361 = vadd.f32 %v3341, %v3357
  %v3362 = vadd.f32 %v3342, %v3358
  %v3363 = vadd.f32 %v3343, %v3359
  %v3364 = vadd.f32 %v3344, %v3360
  %v3365 = vmul.f32 %v3353, %v1521
  %v3366 = vmul.f32 %v3354, %v1525
  %v3367 = vmul.f32 %v3355, %v1531
  %v3368 = vmul.f32 %v3356, %v1535
  %v3369 = vadd.f32 %v3349, %v3365
  %v3370 = vadd.f32 %v3350, %v3366
  %v3371 = vadd.f32 %v3351, %v3367
  %v3372 = vadd.f32 %v3352, %v3368
  %v3373 = vld [vmem:[%s2071] sm:$0xff]
  %v3374 = vld [vmem:[%s2071 + $0x8] sm:$0xff]
  %v3375 = vld [vmem:[%s2071 + $0x10] sm:$0xff]
  %v3376 = vld [vmem:[%s2071 + $0x18] sm:$0xff]
  %v3377 = vmul.f32 %v3373, %v1521
  %v3378 = vmul.f32 %v3374, %v1525
  %v3379 = vmul.f32 %v3375, %v1531
  %v3380 = vmul.f32 %v3376, %v1535
  %v3381 = vadd.f32 %v3361, %v3377
  %v3382 = vadd.f32 %v3362, %v3378
  %v3383 = vadd.f32 %v3363, %v3379
  %v3384 = vadd.f32 %v3364, %v3380
  %v3385 = vmul.f32 %v3373, %v1523
  %v3386 = vmul.f32 %v3374, %v1527
  %v3387 = vmul.f32 %v3375, %v1533
  %v3388 = vmul.f32 %v3376, %v1537
  %v3389 = vadd.f32 %v3369, %v3385
  %v3390 = vadd.f32 %v3370, %v3386
  %v3391 = vadd.f32 %v3371, %v3387
  %v3392 = vadd.f32 %v3372, %v3388
  %v3393 = vld [vmem:[%s2092] sm:$0xff]
  %v3394 = vld [vmem:[%s2092 + $0x8] sm:$0xff]
  %v3395 = vld [vmem:[%s2092 + $0x10] sm:$0xff]
  %v3396 = vld [vmem:[%s2092 + $0x18] sm:$0xff]
  %v3397 = vmul.f32 %v3393, %v1523
  %v3398 = vmul.f32 %v3394, %v1527
  %v3399 = vmul.f32 %v3395, %v1533
  %v3400 = vmul.f32 %v3396, %v1537
  %v3401 = vadd.f32 %v3381, %v3397
  %v3402 = vadd.f32 %v3382, %v3398
  %v3403 = vadd.f32 %v3383, %v3399
  %v3404 = vadd.f32 %v3384, %v3400
  %v3405 = vmul.f32 %v3393, %v1574
  %v3406 = vmul.f32 %v3394, %v1578
  %v3407 = vmul.f32 %v3395, %v1584
  %v3408 = vmul.f32 %v3396, %v1588
  %v3409 = vadd.f32 %v3389, %v3405
  %v3410 = vadd.f32 %v3390, %v3406
  %v3411 = vadd.f32 %v3391, %v3407
  %v3412 = vadd.f32 %v3392, %v3408
  %v3413 = vadd.f32 %v3401, %v1864
  %v3414 = vadd.f32 %v3402, %v1869
  %v3415 = vadd.f32 %v3403, %v1874
  %v3416 = vadd.f32 %v3404, %v1879
  %vm3417 = vcmp.gt.f32.partialorder %v3413, 0.0
  %vm3418 = vcmp.gt.f32.partialorder %v3414, 0.0
  %vm3419 = vcmp.gt.f32.partialorder %v3415, 0.0
  %vm3420 = vcmp.gt.f32.partialorder %v3416, 0.0
  %v3421 = vmin.f32 %v3413, 0.0
  %v3422 = vmin.f32 %v3414, 0.0
  %v3423 = vmin.f32 %v3415, 0.0
  %v3424 = vmin.f32 %v3416, 0.0
  %v3425 = vmul.f32 %v3421, 1.442695
  %v3426 = vpow.pop %v3425
  %v3427 = vmul.f32 %v3422, 1.442695
  %v3428 = vpow.pop %v3427
  %v3429 = vmul.f32 %v3423, 1.442695
  %v3430 = vpow.pop %v3429
  %v3431 = vmul.f32 %v3424, 1.442695
  %v3432 = vpow.pop %v3431
  %v3433 = vsub.f32 %v3426, 1.0
  %v3434 = vsub.f32 %v3428, 1.0
  %v3435 = vsub.f32 %v3430, 1.0
  %v3436 = vsub.f32 %v3432, 1.0
  %v3437 = vsel %vm3417, %v3413, %v3433
  %v3438 = vsel %vm3418, %v3414, %v3434
  %v3439 = vsel %vm3419, %v3415, %v3435
  %v3440 = vsel %vm3420, %v3416, %v3436
  %v3441 = vadd.f32 %v3409, %v1864
  %v3442 = vadd.f32 %v3410, %v1869
  %v3443 = vadd.f32 %v3411, %v1874
  %v3444 = vadd.f32 %v3412, %v1879
  %vm3445 = vcmp.gt.f32.partialorder %v3441, 0.0
  %vm3446 = vcmp.gt.f32.partialorder %v3442, 0.0
  %vm3447 = vcmp.gt.f32.partialorder %v3443, 0.0
  %vm3448 = vcmp.gt.f32.partialorder %v3444, 0.0
  %v3449 = vmin.f32 %v3441, 0.0
  %v3450 = vmin.f32 %v3442, 0.0
  %v3451 = vmin.f32 %v3443, 0.0
  %v3452 = vmin.f32 %v3444, 0.0
  %v3453 = vmul.f32 %v3449, 1.442695
  %v3454 = vpow.pop %v3453
  %v3455 = vmul.f32 %v3450, 1.442695
  %v3456 = vpow.pop %v3455
  %v3457 = vmul.f32 %v3451, 1.442695
  %v3458 = vpow.pop %v3457
  %v3459 = vmul.f32 %v3452, 1.442695
  %v3460 = vpow.pop %v3459
  %v3461 = vsub.f32 %v3454, 1.0
  %v3462 = vsub.f32 %v3456, 1.0
  %v3463 = vsub.f32 %v3458, 1.0
  %v3464 = vsub.f32 %v3460, 1.0
  %v3465 = vsel %vm3445, %v3441, %v3461
  %v3466 = vsel %vm3446, %v3442, %v3462
  %v3467 = vsel %vm3447, %v3443, %v3463
  %v3468 = vsel %vm3448, %v3444, %v3464
  %v3469 = vadd.f32 %v3437, %v3465
  %v3470 = vadd.f32 %v3438, %v3466
  %v3471 = vadd.f32 %v3439, %v3467
  %v3472 = vadd.f32 %v3440, %v3468
  %v3473 = vmul.f32 %v3469, 0.5
  %v3474 = vmul.f32 %v3470, 0.5
  %v3475 = vmul.f32 %v3471, 0.5
  %v3476 = vmul.f32 %v3472, 0.5
  %v3477 = vpack.c.bf16 %v3474, %v3473
  %v3478 = vpack.c.bf16 %v3476, %v3475
  %3479 = vst [vmem:[#allocation2 + $0x30] sm:$0xff] %v3477
  %3480 = vst [vmem:[#allocation2 + $0xa0] sm:$0xff] %v3478
  %v3481 = vld [vmem:[%s2] sm:$0xff]
  %v3482 = vld [vmem:[%s2 + $0x8] sm:$0xff]
  %v3483 = vld [vmem:[%s2 + $0x10] sm:$0xff]
  %v3484 = vld [vmem:[%s2 + $0x18] sm:$0xff]
  %v3485 = vmul.f32 %v3481, %v1362
  %v3486 = vmul.f32 %v3482, %v1366
  %v3487 = vmul.f32 %v3483, %v1372
  %v3488 = vmul.f32 %v3484, %v1376
  %v3489 = vmul.f32 %v3481, %v1364
  %v3490 = vmul.f32 %v3482, %v1368
  %v3491 = vmul.f32 %v3483, %v1374
  %v3492 = vmul.f32 %v3484, %v1378
  %v3493 = vld [vmem:[%s1924] sm:$0xff]
  %v3494 = vld [vmem:[%s1924 + $0x8] sm:$0xff]
  %v3495 = vld [vmem:[%s1924 + $0x10] sm:$0xff]
  %v3496 = vld [vmem:[%s1924 + $0x18] sm:$0xff]
  %v3497 = vmul.f32 %v3493, %v1364
  %v3498 = vmul.f32 %v3494, %v1368
  %v3499 = vmul.f32 %v3495, %v1374
  %v3500 = vmul.f32 %v3496, %v1378
  %v3501 = vadd.f32 %v3485, %v3497
  %v3502 = vadd.f32 %v3486, %v3498
  %v3503 = vadd.f32 %v3487, %v3499
  %v3504 = vadd.f32 %v3488, %v3500
  %v3505 = vmul.f32 %v3493, %v1415
  %v3506 = vmul.f32 %v3494, %v1419
  %v3507 = vmul.f32 %v3495, %v1425
  %v3508 = vmul.f32 %v3496, %v1429
  %v3509 = vadd.f32 %v3489, %v3505
  %v3510 = vadd.f32 %v3490, %v3506
  %v3511 = vadd.f32 %v3491, %v3507
  %v3512 = vadd.f32 %v3492, %v3508
  %v3513 = vld [vmem:[%s1945] sm:$0xff]
  %v3514 = vld [vmem:[%s1945 + $0x8] sm:$0xff]
  %v3515 = vld [vmem:[%s1945 + $0x10] sm:$0xff]
  %v3516 = vld [vmem:[%s1945 + $0x18] sm:$0xff]
  %v3517 = vmul.f32 %v3513, %v1415
  %v3518 = vmul.f32 %v3514, %v1419
  %v3519 = vmul.f32 %v3515, %v1425
  %v3520 = vmul.f32 %v3516, %v1429
  %v3521 = vadd.f32 %v3501, %v3517
  %v3522 = vadd.f32 %v3502, %v3518
  %v3523 = vadd.f32 %v3503, %v3519
  %v3524 = vadd.f32 %v3504, %v3520
  %v3525 = vmul.f32 %v3513, %v1417
  %v3526 = vmul.f32 %v3514, %v1421
  %v3527 = vmul.f32 %v3515, %v1427
  %v3528 = vmul.f32 %v3516, %v1431
  %v3529 = vadd.f32 %v3509, %v3525
  %v3530 = vadd.f32 %v3510, %v3526
  %v3531 = vadd.f32 %v3511, %v3527
  %v3532 = vadd.f32 %v3512, %v3528
  %v3533 = vld [vmem:[%s1966] sm:$0xff]
  %v3534 = vld [vmem:[%s1966 + $0x8] sm:$0xff]
  %v3535 = vld [vmem:[%s1966 + $0x10] sm:$0xff]
  %v3536 = vld [vmem:[%s1966 + $0x18] sm:$0xff]
  %v3537 = vmul.f32 %v3533, %v1417
  %v3538 = vmul.f32 %v3534, %v1421
  %v3539 = vmul.f32 %v3535, %v1427
  %v3540 = vmul.f32 %v3536, %v1431
  %v3541 = vadd.f32 %v3521, %v3537
  %v3542 = vadd.f32 %v3522, %v3538
  %v3543 = vadd.f32 %v3523, %v3539
  %v3544 = vadd.f32 %v3524, %v3540
  %v3545 = vmul.f32 %v3533, %v1468
  %v3546 = vmul.f32 %v3534, %v1472
  %v3547 = vmul.f32 %v3535, %v1478
  %v3548 = vmul.f32 %v3536, %v1482
  %v3549 = vadd.f32 %v3529, %v3545
  %v3550 = vadd.f32 %v3530, %v3546
  %v3551 = vadd.f32 %v3531, %v3547
  %v3552 = vadd.f32 %v3532, %v3548
  %v3553 = vld [vmem:[%s1987] sm:$0xff]
  %v3554 = vld [vmem:[%s1987 + $0x8] sm:$0xff]
  %v3555 = vld [vmem:[%s1987 + $0x10] sm:$0xff]
  %v3556 = vld [vmem:[%s1987 + $0x18] sm:$0xff]
  %v3557 = vmul.f32 %v3553, %v1468
  %v3558 = vmul.f32 %v3554, %v1472
  %v3559 = vmul.f32 %v3555, %v1478
  %v3560 = vmul.f32 %v3556, %v1482
  %v3561 = vadd.f32 %v3541, %v3557
  %v3562 = vadd.f32 %v3542, %v3558
  %v3563 = vadd.f32 %v3543, %v3559
  %v3564 = vadd.f32 %v3544, %v3560
  %v3565 = vmul.f32 %v3553, %v1470
  %v3566 = vmul.f32 %v3554, %v1474
  %v3567 = vmul.f32 %v3555, %v1480
  %v3568 = vmul.f32 %v3556, %v1484
  %v3569 = vadd.f32 %v3549, %v3565
  %v3570 = vadd.f32 %v3550, %v3566
  %v3571 = vadd.f32 %v3551, %v3567
  %v3572 = vadd.f32 %v3552, %v3568
  %v3573 = vld [vmem:[%s2008] sm:$0xff]
  %v3574 = vld [vmem:[%s2008 + $0x8] sm:$0xff]
  %v3575 = vld [vmem:[%s2008 + $0x10] sm:$0xff]
  %v3576 = vld [vmem:[%s2008 + $0x18] sm:$0xff]
  %v3577 = vmul.f32 %v3573, %v1470
  %v3578 = vmul.f32 %v3574, %v1474
  %v3579 = vmul.f32 %v3575, %v1480
  %v3580 = vmul.f32 %v3576, %v1484
  %v3581 = vadd.f32 %v3561, %v3577
  %v3582 = vadd.f32 %v3562, %v3578
  %v3583 = vadd.f32 %v3563, %v3579
  %v3584 = vadd.f32 %v3564, %v3580
  %v3585 = vmul.f32 %v3573, %v1521
  %v3586 = vmul.f32 %v3574, %v1525
  %v3587 = vmul.f32 %v3575, %v1531
  %v3588 = vmul.f32 %v3576, %v1535
  %v3589 = vadd.f32 %v3569, %v3585
  %v3590 = vadd.f32 %v3570, %v3586
  %v3591 = vadd.f32 %v3571, %v3587
  %v3592 = vadd.f32 %v3572, %v3588
  %v3593 = vld [vmem:[%s2029] sm:$0xff]
  %v3594 = vld [vmem:[%s2029 + $0x8] sm:$0xff]
  %v3595 = vld [vmem:[%s2029 + $0x10] sm:$0xff]
  %v3596 = vld [vmem:[%s2029 + $0x18] sm:$0xff]
  %v3597 = vmul.f32 %v3593, %v1521
  %v3598 = vmul.f32 %v3594, %v1525
  %v3599 = vmul.f32 %v3595, %v1531
  %v3600 = vmul.f32 %v3596, %v1535
  %v3601 = vadd.f32 %v3581, %v3597
  %v3602 = vadd.f32 %v3582, %v3598
  %v3603 = vadd.f32 %v3583, %v3599
  %v3604 = vadd.f32 %v3584, %v3600
  %v3605 = vmul.f32 %v3593, %v1523
  %v3606 = vmul.f32 %v3594, %v1527
  %v3607 = vmul.f32 %v3595, %v1533
  %v3608 = vmul.f32 %v3596, %v1537
  %v3609 = vadd.f32 %v3589, %v3605
  %v3610 = vadd.f32 %v3590, %v3606
  %v3611 = vadd.f32 %v3591, %v3607
  %v3612 = vadd.f32 %v3592, %v3608
  %v3613 = vld [vmem:[%s2050] sm:$0xff]
  %v3614 = vld [vmem:[%s2050 + $0x8] sm:$0xff]
  %v3615 = vld [vmem:[%s2050 + $0x10] sm:$0xff]
  %v3616 = vld [vmem:[%s2050 + $0x18] sm:$0xff]
  %v3617 = vmul.f32 %v3613, %v1523
  %v3618 = vmul.f32 %v3614, %v1527
  %v3619 = vmul.f32 %v3615, %v1533
  %v3620 = vmul.f32 %v3616, %v1537
  %v3621 = vadd.f32 %v3601, %v3617
  %v3622 = vadd.f32 %v3602, %v3618
  %v3623 = vadd.f32 %v3603, %v3619
  %v3624 = vadd.f32 %v3604, %v3620
  %v3625 = vmul.f32 %v3613, %v1574
  %v3626 = vmul.f32 %v3614, %v1578
  %v3627 = vmul.f32 %v3615, %v1584
  %v3628 = vmul.f32 %v3616, %v1588
  %v3629 = vadd.f32 %v3609, %v3625
  %v3630 = vadd.f32 %v3610, %v3626
  %v3631 = vadd.f32 %v3611, %v3627
  %v3632 = vadd.f32 %v3612, %v3628
  %v3633 = vld [vmem:[%s2071] sm:$0xff]
  %v3634 = vld [vmem:[%s2071 + $0x8] sm:$0xff]
  %v3635 = vld [vmem:[%s2071 + $0x10] sm:$0xff]
  %v3636 = vld [vmem:[%s2071 + $0x18] sm:$0xff]
  %v3637 = vmul.f32 %v3633, %v1574
  %v3638 = vmul.f32 %v3634, %v1578
  %v3639 = vmul.f32 %v3635, %v1584
  %v3640 = vmul.f32 %v3636, %v1588
  %v3641 = vadd.f32 %v3621, %v3637
  %v3642 = vadd.f32 %v3622, %v3638
  %v3643 = vadd.f32 %v3623, %v3639
  %v3644 = vadd.f32 %v3624, %v3640
  %v3645 = vmul.f32 %v3633, %v1576
  %v3646 = vmul.f32 %v3634, %v1580
  %v3647 = vmul.f32 %v3635, %v1586
  %v3648 = vmul.f32 %v3636, %v1590
  %v3649 = vadd.f32 %v3629, %v3645
  %v3650 = vadd.f32 %v3630, %v3646
  %v3651 = vadd.f32 %v3631, %v3647
  %v3652 = vadd.f32 %v3632, %v3648
  %v3653 = vld [vmem:[%s2092] sm:$0xff]
  %v3654 = vld [vmem:[%s2092 + $0x8] sm:$0xff]
  %v3655 = vld [vmem:[%s2092 + $0x10] sm:$0xff]
  %v3656 = vld [vmem:[%s2092 + $0x18] sm:$0xff]
  %v3657 = vmul.f32 %v3653, %v1576
  %v3658 = vmul.f32 %v3654, %v1580
  %v3659 = vmul.f32 %v3655, %v1586
  %v3660 = vmul.f32 %v3656, %v1590
  %v3661 = vadd.f32 %v3641, %v3657
  %v3662 = vadd.f32 %v3642, %v3658
  %v3663 = vadd.f32 %v3643, %v3659
  %v3664 = vadd.f32 %v3644, %v3660
  %v3665 = vmul.f32 %v3653, %v1627
  %v3666 = vmul.f32 %v3654, %v1631
  %v3667 = vmul.f32 %v3655, %v1637
  %v3668 = vmul.f32 %v3656, %v1641
  %v3669 = vadd.f32 %v3649, %v3665
  %v3670 = vadd.f32 %v3650, %v3666
  %v3671 = vadd.f32 %v3651, %v3667
  %v3672 = vadd.f32 %v3652, %v3668
  %v3673 = vadd.f32 %v3661, %v1864
  %v3674 = vadd.f32 %v3662, %v1869
  %v3675 = vadd.f32 %v3663, %v1874
  %v3676 = vadd.f32 %v3664, %v1879
  %vm3677 = vcmp.gt.f32.partialorder %v3673, 0.0
  %vm3678 = vcmp.gt.f32.partialorder %v3674, 0.0
  %vm3679 = vcmp.gt.f32.partialorder %v3675, 0.0
  %vm3680 = vcmp.gt.f32.partialorder %v3676, 0.0
  %v3681 = vmin.f32 %v3673, 0.0
  %v3682 = vmin.f32 %v3674, 0.0
  %v3683 = vmin.f32 %v3675, 0.0
  %v3684 = vmin.f32 %v3676, 0.0
  %v3685 = vmul.f32 %v3681, 1.442695
  %v3686 = vpow.pop %v3685
  %v3687 = vmul.f32 %v3682, 1.442695
  %v3688 = vpow.pop %v3687
  %v3689 = vmul.f32 %v3683, 1.442695
  %v3690 = vpow.pop %v3689
  %v3691 = vmul.f32 %v3684, 1.442695
  %v3692 = vpow.pop %v3691
  %v3693 = vsub.f32 %v3686, 1.0
  %v3694 = vsub.f32 %v3688, 1.0
  %v3695 = vsub.f32 %v3690, 1.0
  %v3696 = vsub.f32 %v3692, 1.0
  %v3697 = vsel %vm3677, %v3673, %v3693
  %v3698 = vsel %vm3678, %v3674, %v3694
  %v3699 = vsel %vm3679, %v3675, %v3695
  %v3700 = vsel %vm3680, %v3676, %v3696
  %v3701 = vadd.f32 %v3669, %v1864
  %v3702 = vadd.f32 %v3670, %v1869
  %v3703 = vadd.f32 %v3671, %v1874
  %v3704 = vadd.f32 %v3672, %v1879
  %vm3705 = vcmp.gt.f32.partialorder %v3701, 0.0
  %vm3706 = vcmp.gt.f32.partialorder %v3702, 0.0
  %vm3707 = vcmp.gt.f32.partialorder %v3703, 0.0
  %vm3708 = vcmp.gt.f32.partialorder %v3704, 0.0
  %v3709 = vmin.f32 %v3701, 0.0
  %v3710 = vmin.f32 %v3702, 0.0
  %v3711 = vmin.f32 %v3703, 0.0
  %v3712 = vmin.f32 %v3704, 0.0
  %v3713 = vmul.f32 %v3709, 1.442695
  %v3714 = vpow.pop %v3713
  %v3715 = vmul.f32 %v3710, 1.442695
  %v3716 = vpow.pop %v3715
  %v3717 = vmul.f32 %v3711, 1.442695
  %v3718 = vpow.pop %v3717
  %v3719 = vmul.f32 %v3712, 1.442695
  %v3720 = vpow.pop %v3719
  %v3721 = vsub.f32 %v3714, 1.0
  %v3722 = vsub.f32 %v3716, 1.0
  %v3723 = vsub.f32 %v3718, 1.0
  %v3724 = vsub.f32 %v3720, 1.0
  %v3725 = vsel %vm3705, %v3701, %v3721
  %v3726 = vsel %vm3706, %v3702, %v3722
  %v3727 = vsel %vm3707, %v3703, %v3723
  %v3728 = vsel %vm3708, %v3704, %v3724
  %v3729 = vadd.f32 %v3697, %v3725
  %v3730 = vadd.f32 %v3698, %v3726
  %v3731 = vadd.f32 %v3699, %v3727
  %v3732 = vadd.f32 %v3700, %v3728
  %v3733 = vmul.f32 %v3729, 0.5
  %v3734 = vmul.f32 %v3730, 0.5
  %v3735 = vmul.f32 %v3731, 0.5
  %v3736 = vmul.f32 %v3732, 0.5
  %v3737 = vpack.c.bf16 %v3734, %v3733
  %v3738 = vpack.c.bf16 %v3736, %v3735
  %3739 = vst [vmem:[#allocation2 + $0x38] sm:$0xff] %v3737
  %3740 = vst [vmem:[#allocation2 + $0xa8] sm:$0xff] %v3738
  %v3741 = vld [vmem:[%s2] sm:$0xff]
  %v3742 = vld [vmem:[%s2 + $0x8] sm:$0xff]
  %v3743 = vld [vmem:[%s2 + $0x10] sm:$0xff]
  %v3744 = vld [vmem:[%s2 + $0x18] sm:$0xff]
  %v3745 = vmul.f32 %v3741, %v1415
  %v3746 = vmul.f32 %v3742, %v1419
  %v3747 = vmul.f32 %v3743, %v1425
  %v3748 = vmul.f32 %v3744, %v1429
  %v3749 = vmul.f32 %v3741, %v1417
  %v3750 = vmul.f32 %v3742, %v1421
  %v3751 = vmul.f32 %v3743, %v1427
  %v3752 = vmul.f32 %v3744, %v1431
  %v3753 = vld [vmem:[%s1924] sm:$0xff]
  %v3754 = vld [vmem:[%s1924 + $0x8] sm:$0xff]
  %v3755 = vld [vmem:[%s1924 + $0x10] sm:$0xff]
  %v3756 = vld [vmem:[%s1924 + $0x18] sm:$0xff]
  %v3757 = vmul.f32 %v3753, %v1417
  %v3758 = vmul.f32 %v3754, %v1421
  %v3759 = vmul.f32 %v3755, %v1427
  %v3760 = vmul.f32 %v3756, %v1431
  %v3761 = vadd.f32 %v3745, %v3757
  %v3762 = vadd.f32 %v3746, %v3758
  %v3763 = vadd.f32 %v3747, %v3759
  %v3764 = vadd.f32 %v3748, %v3760
  %v3765 = vmul.f32 %v3753, %v1468
  %v3766 = vmul.f32 %v3754, %v1472
  %v3767 = vmul.f32 %v3755, %v1478
  %v3768 = vmul.f32 %v3756, %v1482
  %v3769 = vadd.f32 %v3749, %v3765
  %v3770 = vadd.f32 %v3750, %v3766
  %v3771 = vadd.f32 %v3751, %v3767
  %v3772 = vadd.f32 %v3752, %v3768
  %v3773 = vld [vmem:[%s1945] sm:$0xff]
  %v3774 = vld [vmem:[%s1945 + $0x8] sm:$0xff]
  %v3775 = vld [vmem:[%s1945 + $0x10] sm:$0xff]
  %v3776 = vld [vmem:[%s1945 + $0x18] sm:$0xff]
  %v3777 = vmul.f32 %v3773, %v1468
  %v3778 = vmul.f32 %v3774, %v1472
  %v3779 = vmul.f32 %v3775, %v1478
  %v3780 = vmul.f32 %v3776, %v1482
  %v3781 = vadd.f32 %v3761, %v3777
  %v3782 = vadd.f32 %v3762, %v3778
  %v3783 = vadd.f32 %v3763, %v3779
  %v3784 = vadd.f32 %v3764, %v3780
  %v3785 = vmul.f32 %v3773, %v1470
  %v3786 = vmul.f32 %v3774, %v1474
  %v3787 = vmul.f32 %v3775, %v1480
  %v3788 = vmul.f32 %v3776, %v1484
  %v3789 = vadd.f32 %v3769, %v3785
  %v3790 = vadd.f32 %v3770, %v3786
  %v3791 = vadd.f32 %v3771, %v3787
  %v3792 = vadd.f32 %v3772, %v3788
  %v3793 = vld [vmem:[%s1966] sm:$0xff]
  %v3794 = vld [vmem:[%s1966 + $0x8] sm:$0xff]
  %v3795 = vld [vmem:[%s1966 + $0x10] sm:$0xff]
  %v3796 = vld [vmem:[%s1966 + $0x18] sm:$0xff]
  %v3797 = vmul.f32 %v3793, %v1470
  %v3798 = vmul.f32 %v3794, %v1474
  %v3799 = vmul.f32 %v3795, %v1480
  %v3800 = vmul.f32 %v3796, %v1484
  %v3801 = vadd.f32 %v3781, %v3797
  %v3802 = vadd.f32 %v3782, %v3798
  %v3803 = vadd.f32 %v3783, %v3799
  %v3804 = vadd.f32 %v3784, %v3800
  %v3805 = vmul.f32 %v3793, %v1521
  %v3806 = vmul.f32 %v3794, %v1525
  %v3807 = vmul.f32 %v3795, %v1531
  %v3808 = vmul.f32 %v3796, %v1535
  %v3809 = vadd.f32 %v3789, %v3805
  %v3810 = vadd.f32 %v3790, %v3806
  %v3811 = vadd.f32 %v3791, %v3807
  %v3812 = vadd.f32 %v3792, %v3808
  %v3813 = vld [vmem:[%s1987] sm:$0xff]
  %v3814 = vld [vmem:[%s1987 + $0x8] sm:$0xff]
  %v3815 = vld [vmem:[%s1987 + $0x10] sm:$0xff]
  %v3816 = vld [vmem:[%s1987 + $0x18] sm:$0xff]
  %v3817 = vmul.f32 %v3813, %v1521
  %v3818 = vmul.f32 %v3814, %v1525
  %v3819 = vmul.f32 %v3815, %v1531
  %v3820 = vmul.f32 %v3816, %v1535
  %v3821 = vadd.f32 %v3801, %v3817
  %v3822 = vadd.f32 %v3802, %v3818
  %v3823 = vadd.f32 %v3803, %v3819
  %v3824 = vadd.f32 %v3804, %v3820
  %v3825 = vmul.f32 %v3813, %v1523
  %v3826 = vmul.f32 %v3814, %v1527
  %v3827 = vmul.f32 %v3815, %v1533
  %v3828 = vmul.f32 %v3816, %v1537
  %v3829 = vadd.f32 %v3809, %v3825
  %v3830 = vadd.f32 %v3810, %v3826
  %v3831 = vadd.f32 %v3811, %v3827
  %v3832 = vadd.f32 %v3812, %v3828
  %v3833 = vld [vmem:[%s2008] sm:$0xff]
  %v3834 = vld [vmem:[%s2008 + $0x8] sm:$0xff]
  %v3835 = vld [vmem:[%s2008 + $0x10] sm:$0xff]
  %v3836 = vld [vmem:[%s2008 + $0x18] sm:$0xff]
  %v3837 = vmul.f32 %v3833, %v1523
  %v3838 = vmul.f32 %v3834, %v1527
  %v3839 = vmul.f32 %v3835, %v1533
  %v3840 = vmul.f32 %v3836, %v1537
  %v3841 = vadd.f32 %v3821, %v3837
  %v3842 = vadd.f32 %v3822, %v3838
  %v3843 = vadd.f32 %v3823, %v3839
  %v3844 = vadd.f32 %v3824, %v3840
  %v3845 = vmul.f32 %v3833, %v1574
  %v3846 = vmul.f32 %v3834, %v1578
  %v3847 = vmul.f32 %v3835, %v1584
  %v3848 = vmul.f32 %v3836, %v1588
  %v3849 = vadd.f32 %v3829, %v3845
  %v3850 = vadd.f32 %v3830, %v3846
  %v3851 = vadd.f32 %v3831, %v3847
  %v3852 = vadd.f32 %v3832, %v3848
  %v3853 = vld [vmem:[%s2029] sm:$0xff]
  %v3854 = vld [vmem:[%s2029 + $0x8] sm:$0xff]
  %v3855 = vld [vmem:[%s2029 + $0x10] sm:$0xff]
  %v3856 = vld [vmem:[%s2029 + $0x18] sm:$0xff]
  %v3857 = vmul.f32 %v3853, %v1574
  %v3858 = vmul.f32 %v3854, %v1578
  %v3859 = vmul.f32 %v3855, %v1584
  %v3860 = vmul.f32 %v3856, %v1588
  %v3861 = vadd.f32 %v3841, %v3857
  %v3862 = vadd.f32 %v3842, %v3858
  %v3863 = vadd.f32 %v3843, %v3859
  %v3864 = vadd.f32 %v3844, %v3860
  %v3865 = vmul.f32 %v3853, %v1576
  %v3866 = vmul.f32 %v3854, %v1580
  %v3867 = vmul.f32 %v3855, %v1586
  %v3868 = vmul.f32 %v3856, %v1590
  %v3869 = vadd.f32 %v3849, %v3865
  %v3870 = vadd.f32 %v3850, %v3866
  %v3871 = vadd.f32 %v3851, %v3867
  %v3872 = vadd.f32 %v3852, %v3868
  %v3873 = vld [vmem:[%s2050] sm:$0xff]
  %v3874 = vld [vmem:[%s2050 + $0x8] sm:$0xff]
  %v3875 = vld [vmem:[%s2050 + $0x10] sm:$0xff]
  %v3876 = vld [vmem:[%s2050 + $0x18] sm:$0xff]
  %v3877 = vmul.f32 %v3873, %v1576
  %v3878 = vmul.f32 %v3874, %v1580
  %v3879 = vmul.f32 %v3875, %v1586
  %v3880 = vmul.f32 %v3876, %v1590
  %v3881 = vadd.f32 %v3861, %v3877
  %v3882 = vadd.f32 %v3862, %v3878
  %v3883 = vadd.f32 %v3863, %v3879
  %v3884 = vadd.f32 %v3864, %v3880
  %v3885 = vmul.f32 %v3873, %v1627
  %v3886 = vmul.f32 %v3874, %v1631
  %v3887 = vmul.f32 %v3875, %v1637
  %v3888 = vmul.f32 %v3876, %v1641
  %v3889 = vadd.f32 %v3869, %v3885
  %v3890 = vadd.f32 %v3870, %v3886
  %v3891 = vadd.f32 %v3871, %v3887
  %v3892 = vadd.f32 %v3872, %v3888
  %v3893 = vld [vmem:[%s2071] sm:$0xff]
  %v3894 = vld [vmem:[%s2071 + $0x8] sm:$0xff]
  %v3895 = vld [vmem:[%s2071 + $0x10] sm:$0xff]
  %v3896 = vld [vmem:[%s2071 + $0x18] sm:$0xff]
  %v3897 = vmul.f32 %v3893, %v1627
  %v3898 = vmul.f32 %v3894, %v1631
  %v3899 = vmul.f32 %v3895, %v1637
  %v3900 = vmul.f32 %v3896, %v1641
  %v3901 = vadd.f32 %v3881, %v3897
  %v3902 = vadd.f32 %v3882, %v3898
  %v3903 = vadd.f32 %v3883, %v3899
  %v3904 = vadd.f32 %v3884, %v3900
  %v3905 = vmul.f32 %v3893, %v1629
  %v3906 = vmul.f32 %v3894, %v1633
  %v3907 = vmul.f32 %v3895, %v1639
  %v3908 = vmul.f32 %v3896, %v1643
  %v3909 = vadd.f32 %v3889, %v3905
  %v3910 = vadd.f32 %v3890, %v3906
  %v3911 = vadd.f32 %v3891, %v3907
  %v3912 = vadd.f32 %v3892, %v3908
  %v3913 = vld [vmem:[%s2092] sm:$0xff]
  %v3914 = vld [vmem:[%s2092 + $0x8] sm:$0xff]
  %v3915 = vld [vmem:[%s2092 + $0x10] sm:$0xff]
  %v3916 = vld [vmem:[%s2092 + $0x18] sm:$0xff]
  %v3917 = vmul.f32 %v3913, %v1629
  %v3918 = vmul.f32 %v3914, %v1633
  %v3919 = vmul.f32 %v3915, %v1639
  %v3920 = vmul.f32 %v3916, %v1643
  %v3921 = vadd.f32 %v3901, %v3917
  %v3922 = vadd.f32 %v3902, %v3918
  %v3923 = vadd.f32 %v3903, %v3919
  %v3924 = vadd.f32 %v3904, %v3920
  %v3925 = vmul.f32 %v3913, %v1680
  %v3926 = vmul.f32 %v3914, %v1684
  %v3927 = vmul.f32 %v3915, %v1690
  %v3928 = vmul.f32 %v3916, %v1694
  %v3929 = vadd.f32 %v3909, %v3925
  %v3930 = vadd.f32 %v3910, %v3926
  %v3931 = vadd.f32 %v3911, %v3927
  %v3932 = vadd.f32 %v3912, %v3928
  %v3933 = vadd.f32 %v3921, %v1864
  %v3934 = vadd.f32 %v3922, %v1869
  %v3935 = vadd.f32 %v3923, %v1874
  %v3936 = vadd.f32 %v3924, %v1879
  %vm3937 = vcmp.gt.f32.partialorder %v3933, 0.0
  %vm3938 = vcmp.gt.f32.partialorder %v3934, 0.0
  %vm3939 = vcmp.gt.f32.partialorder %v3935, 0.0
  %vm3940 = vcmp.gt.f32.partialorder %v3936, 0.0
  %v3941 = vmin.f32 %v3933, 0.0
  %v3942 = vmin.f32 %v3934, 0.0
  %v3943 = vmin.f32 %v3935, 0.0
  %v3944 = vmin.f32 %v3936, 0.0
  %v3945 = vmul.f32 %v3941, 1.442695
  %v3946 = vpow.pop %v3945
  %v3947 = vmul.f32 %v3942, 1.442695
  %v3948 = vpow.pop %v3947
  %v3949 = vmul.f32 %v3943, 1.442695
  %v3950 = vpow.pop %v3949
  %v3951 = vmul.f32 %v3944, 1.442695
  %v3952 = vpow.pop %v3951
  %v3953 = vsub.f32 %v3946, 1.0
  %v3954 = vsub.f32 %v3948, 1.0
  %v3955 = vsub.f32 %v3950, 1.0
  %v3956 = vsub.f32 %v3952, 1.0
  %v3957 = vsel %vm3937, %v3933, %v3953
  %v3958 = vsel %vm3938, %v3934, %v3954
  %v3959 = vsel %vm3939, %v3935, %v3955
  %v3960 = vsel %vm3940, %v3936, %v3956
  %v3961 = vadd.f32 %v3929, %v1864
  %v3962 = vadd.f32 %v3930, %v1869
  %v3963 = vadd.f32 %v3931, %v1874
  %v3964 = vadd.f32 %v3932, %v1879
  %vm3965 = vcmp.gt.f32.partialorder %v3961, 0.0
  %vm3966 = vcmp.gt.f32.partialorder %v3962, 0.0
  %vm3967 = vcmp.gt.f32.partialorder %v3963, 0.0
  %vm3968 = vcmp.gt.f32.partialorder %v3964, 0.0
  %v3969 = vmin.f32 %v3961, 0.0
  %v3970 = vmin.f32 %v3962, 0.0
  %v3971 = vmin.f32 %v3963, 0.0
  %v3972 = vmin.f32 %v3964, 0.0
  %v3973 = vmul.f32 %v3969, 1.442695
  %v3974 = vpow.pop %v3973
  %v3975 = vmul.f32 %v3970, 1.442695
  %v3976 = vpow.pop %v3975
  %v3977 = vmul.f32 %v3971, 1.442695
  %v3978 = vpow.pop %v3977
  %v3979 = vmul.f32 %v3972, 1.442695
  %v3980 = vpow.pop %v3979
  %v3981 = vsub.f32 %v3974, 1.0
  %v3982 = vsub.f32 %v3976, 1.0
  %v3983 = vsub.f32 %v3978, 1.0
  %v3984 = vsub.f32 %v3980, 1.0
  %v3985 = vsel %vm3965, %v3961, %v3981
  %v3986 = vsel %vm3966, %v3962, %v3982
  %v3987 = vsel %vm3967, %v3963, %v3983
  %v3988 = vsel %vm3968, %v3964, %v3984
  %v3989 = vadd.f32 %v3957, %v3985
  %v3990 = vadd.f32 %v3958, %v3986
  %v3991 = vadd.f32 %v3959, %v3987
  %v3992 = vadd.f32 %v3960, %v3988
  %v3993 = vmul.f32 %v3989, 0.5
  %v3994 = vmul.f32 %v3990, 0.5
  %v3995 = vmul.f32 %v3991, 0.5
  %v3996 = vmul.f32 %v3992, 0.5
  %v3997 = vpack.c.bf16 %v3994, %v3993
  %v3998 = vpack.c.bf16 %v3996, %v3995
  %3999 = vst [vmem:[#allocation2 + $0x40] sm:$0xff] %v3997
  %4000 = vst [vmem:[#allocation2 + $0xb0] sm:$0xff] %v3998
  %v4001 = vld [vmem:[%s2] sm:$0xff]
  %v4002 = vld [vmem:[%s2 + $0x8] sm:$0xff]
  %v4003 = vld [vmem:[%s2 + $0x10] sm:$0xff]
  %v4004 = vld [vmem:[%s2 + $0x18] sm:$0xff]
  %v4005 = vmul.f32 %v4001, %v1468
  %v4006 = vmul.f32 %v4002, %v1472
  %v4007 = vmul.f32 %v4003, %v1478
  %v4008 = vmul.f32 %v4004, %v1482
  %v4009 = vmul.f32 %v4001, %v1470
  %v4010 = vmul.f32 %v4002, %v1474
  %v4011 = vmul.f32 %v4003, %v1480
  %v4012 = vmul.f32 %v4004, %v1484
  %v4013 = vld [vmem:[%s1924] sm:$0xff]
  %v4014 = vld [vmem:[%s1924 + $0x8] sm:$0xff]
  %v4015 = vld [vmem:[%s1924 + $0x10] sm:$0xff]
  %v4016 = vld [vmem:[%s1924 + $0x18] sm:$0xff]
  %v4017 = vmul.f32 %v4013, %v1470
  %v4018 = vmul.f32 %v4014, %v1474
  %v4019 = vmul.f32 %v4015, %v1480
  %v4020 = vmul.f32 %v4016, %v1484
  %v4021 = vadd.f32 %v4005, %v4017
  %v4022 = vadd.f32 %v4006, %v4018
  %v4023 = vadd.f32 %v4007, %v4019
  %v4024 = vadd.f32 %v4008, %v4020
  %v4025 = vmul.f32 %v4013, %v1521
  %v4026 = vmul.f32 %v4014, %v1525
  %v4027 = vmul.f32 %v4015, %v1531
  %v4028 = vmul.f32 %v4016, %v1535
  %v4029 = vadd.f32 %v4009, %v4025
  %v4030 = vadd.f32 %v4010, %v4026
  %v4031 = vadd.f32 %v4011, %v4027
  %v4032 = vadd.f32 %v4012, %v4028
  %v4033 = vld [vmem:[%s1945] sm:$0xff]
  %v4034 = vld [vmem:[%s1945 + $0x8] sm:$0xff]
  %v4035 = vld [vmem:[%s1945 + $0x10] sm:$0xff]
  %v4036 = vld [vmem:[%s1945 + $0x18] sm:$0xff]
  %v4037 = vmul.f32 %v4033, %v1521
  %v4038 = vmul.f32 %v4034, %v1525
  %v4039 = vmul.f32 %v4035, %v1531
  %v4040 = vmul.f32 %v4036, %v1535
  %v4041 = vadd.f32 %v4021, %v4037
  %v4042 = vadd.f32 %v4022, %v4038
  %v4043 = vadd.f32 %v4023, %v4039
  %v4044 = vadd.f32 %v4024, %v4040
  %v4045 = vmul.f32 %v4033, %v1523
  %v4046 = vmul.f32 %v4034, %v1527
  %v4047 = vmul.f32 %v4035, %v1533
  %v4048 = vmul.f32 %v4036, %v1537
  %v4049 = vadd.f32 %v4029, %v4045
  %v4050 = vadd.f32 %v4030, %v4046
  %v4051 = vadd.f32 %v4031, %v4047
  %v4052 = vadd.f32 %v4032, %v4048
  %v4053 = vld [vmem:[%s1966] sm:$0xff]
  %v4054 = vld [vmem:[%s1966 + $0x8] sm:$0xff]
  %v4055 = vld [vmem:[%s1966 + $0x10] sm:$0xff]
  %v4056 = vld [vmem:[%s1966 + $0x18] sm:$0xff]
  %v4057 = vmul.f32 %v4053, %v1523
  %v4058 = vmul.f32 %v4054, %v1527
  %v4059 = vmul.f32 %v4055, %v1533
  %v4060 = vmul.f32 %v4056, %v1537
  %v4061 = vadd.f32 %v4041, %v4057
  %v4062 = vadd.f32 %v4042, %v4058
  %v4063 = vadd.f32 %v4043, %v4059
  %v4064 = vadd.f32 %v4044, %v4060
  %v4065 = vmul.f32 %v4053, %v1574
  %v4066 = vmul.f32 %v4054, %v1578
  %v4067 = vmul.f32 %v4055, %v1584
  %v4068 = vmul.f32 %v4056, %v1588
  %v4069 = vadd.f32 %v4049, %v4065
  %v4070 = vadd.f32 %v4050, %v4066
  %v4071 = vadd.f32 %v4051, %v4067
  %v4072 = vadd.f32 %v4052, %v4068
  %v4073 = vld [vmem:[%s1987] sm:$0xff]
  %v4074 = vld [vmem:[%s1987 + $0x8] sm:$0xff]
  %v4075 = vld [vmem:[%s1987 + $0x10] sm:$0xff]
  %v4076 = vld [vmem:[%s1987 + $0x18] sm:$0xff]
  %v4077 = vmul.f32 %v4073, %v1574
  %v4078 = vmul.f32 %v4074, %v1578
  %v4079 = vmul.f32 %v4075, %v1584
  %v4080 = vmul.f32 %v4076, %v1588
  %v4081 = vadd.f32 %v4061, %v4077
  %v4082 = vadd.f32 %v4062, %v4078
  %v4083 = vadd.f32 %v4063, %v4079
  %v4084 = vadd.f32 %v4064, %v4080
  %v4085 = vmul.f32 %v4073, %v1576
  %v4086 = vmul.f32 %v4074, %v1580
  %v4087 = vmul.f32 %v4075, %v1586
  %v4088 = vmul.f32 %v4076, %v1590
  %v4089 = vadd.f32 %v4069, %v4085
  %v4090 = vadd.f32 %v4070, %v4086
  %v4091 = vadd.f32 %v4071, %v4087
  %v4092 = vadd.f32 %v4072, %v4088
  %v4093 = vld [vmem:[%s2008] sm:$0xff]
  %v4094 = vld [vmem:[%s2008 + $0x8] sm:$0xff]
  %v4095 = vld [vmem:[%s2008 + $0x10] sm:$0xff]
  %v4096 = vld [vmem:[%s2008 + $0x18] sm:$0xff]
  %v4097 = vmul.f32 %v4093, %v1576
  %v4098 = vmul.f32 %v4094, %v1580
  %v4099 = vmul.f32 %v4095, %v1586
  %v4100 = vmul.f32 %v4096, %v1590
  %v4101 = vadd.f32 %v4081, %v4097
  %v4102 = vadd.f32 %v4082, %v4098
  %v4103 = vadd.f32 %v4083, %v4099
  %v4104 = vadd.f32 %v4084, %v4100
  %v4105 = vmul.f32 %v4093, %v1627
  %v4106 = vmul.f32 %v4094, %v1631
  %v4107 = vmul.f32 %v4095, %v1637
  %v4108 = vmul.f32 %v4096, %v1641
  %v4109 = vadd.f32 %v4089, %v4105
  %v4110 = vadd.f32 %v4090, %v4106
  %v4111 = vadd.f32 %v4091, %v4107
  %v4112 = vadd.f32 %v4092, %v4108
  %v4113 = vld [vmem:[%s2029] sm:$0xff]
  %v4114 = vld [vmem:[%s2029 + $0x8] sm:$0xff]
  %v4115 = vld [vmem:[%s2029 + $0x10] sm:$0xff]
  %v4116 = vld [vmem:[%s2029 + $0x18] sm:$0xff]
  %v4117 = vmul.f32 %v4113, %v1627
  %v4118 = vmul.f32 %v4114, %v1631
  %v4119 = vmul.f32 %v4115, %v1637
  %v4120 = vmul.f32 %v4116, %v1641
  %v4121 = vadd.f32 %v4101, %v4117
  %v4122 = vadd.f32 %v4102, %v4118
  %v4123 = vadd.f32 %v4103, %v4119
  %v4124 = vadd.f32 %v4104, %v4120
  %v4125 = vmul.f32 %v4113, %v1629
  %v4126 = vmul.f32 %v4114, %v1633
  %v4127 = vmul.f32 %v4115, %v1639
  %v4128 = vmul.f32 %v4116, %v1643
  %v4129 = vadd.f32 %v4109, %v4125
  %v4130 = vadd.f32 %v4110, %v4126
  %v4131 = vadd.f32 %v4111, %v4127
  %v4132 = vadd.f32 %v4112, %v4128
  %v4133 = vld [vmem:[%s2050] sm:$0xff]
  %v4134 = vld [vmem:[%s2050 + $0x8] sm:$0xff]
  %v4135 = vld [vmem:[%s2050 + $0x10] sm:$0xff]
  %v4136 = vld [vmem:[%s2050 + $0x18] sm:$0xff]
  %v4137 = vmul.f32 %v4133, %v1629
  %v4138 = vmul.f32 %v4134, %v1633
  %v4139 = vmul.f32 %v4135, %v1639
  %v4140 = vmul.f32 %v4136, %v1643
  %v4141 = vadd.f32 %v4121, %v4137
  %v4142 = vadd.f32 %v4122, %v4138
  %v4143 = vadd.f32 %v4123, %v4139
  %v4144 = vadd.f32 %v4124, %v4140
  %v4145 = vmul.f32 %v4133, %v1680
  %v4146 = vmul.f32 %v4134, %v1684
  %v4147 = vmul.f32 %v4135, %v1690
  %v4148 = vmul.f32 %v4136, %v1694
  %v4149 = vadd.f32 %v4129, %v4145
  %v4150 = vadd.f32 %v4130, %v4146
  %v4151 = vadd.f32 %v4131, %v4147
  %v4152 = vadd.f32 %v4132, %v4148
  %v4153 = vld [vmem:[%s2071] sm:$0xff]
  %v4154 = vld [vmem:[%s2071 + $0x8] sm:$0xff]
  %v4155 = vld [vmem:[%s2071 + $0x10] sm:$0xff]
  %v4156 = vld [vmem:[%s2071 + $0x18] sm:$0xff]
  %v4157 = vmul.f32 %v4153, %v1680
  %v4158 = vmul.f32 %v4154, %v1684
  %v4159 = vmul.f32 %v4155, %v1690
  %v4160 = vmul.f32 %v4156, %v1694
  %v4161 = vadd.f32 %v4141, %v4157
  %v4162 = vadd.f32 %v4142, %v4158
  %v4163 = vadd.f32 %v4143, %v4159
  %v4164 = vadd.f32 %v4144, %v4160
  %v4165 = vmul.f32 %v4153, %v1682
  %v4166 = vmul.f32 %v4154, %v1686
  %v4167 = vmul.f32 %v4155, %v1692
  %v4168 = vmul.f32 %v4156, %v1696
  %v4169 = vadd.f32 %v4149, %v4165
  %v4170 = vadd.f32 %v4150, %v4166
  %v4171 = vadd.f32 %v4151, %v4167
  %v4172 = vadd.f32 %v4152, %v4168
  %v4173 = vld [vmem:[%s2092] sm:$0xff]
  %v4174 = vld [vmem:[%s2092 + $0x8] sm:$0xff]
  %v4175 = vld [vmem:[%s2092 + $0x10] sm:$0xff]
  %v4176 = vld [vmem:[%s2092 + $0x18] sm:$0xff]
  %v4177 = vmul.f32 %v4173, %v1682
  %v4178 = vmul.f32 %v4174, %v1686
  %v4179 = vmul.f32 %v4175, %v1692
  %v4180 = vmul.f32 %v4176, %v1696
  %v4181 = vadd.f32 %v4161, %v4177
  %v4182 = vadd.f32 %v4162, %v4178
  %v4183 = vadd.f32 %v4163, %v4179
  %v4184 = vadd.f32 %v4164, %v4180
  %v4185 = vmul.f32 %v4173, %v1733
  %v4186 = vmul.f32 %v4174, %v1737
  %v4187 = vmul.f32 %v4175, %v1743
  %v4188 = vmul.f32 %v4176, %v1747
  %v4189 = vadd.f32 %v4169, %v4185
  %v4190 = vadd.f32 %v4170, %v4186
  %v4191 = vadd.f32 %v4171, %v4187
  %v4192 = vadd.f32 %v4172, %v4188
  %v4193 = vadd.f32 %v4181, %v1864
  %v4194 = vadd.f32 %v4182, %v1869
  %v4195 = vadd.f32 %v4183, %v1874
  %v4196 = vadd.f32 %v4184, %v1879
  %vm4197 = vcmp.gt.f32.partialorder %v4193, 0.0
  %vm4198 = vcmp.gt.f32.partialorder %v4194, 0.0
  %vm4199 = vcmp.gt.f32.partialorder %v4195, 0.0
  %vm4200 = vcmp.gt.f32.partialorder %v4196, 0.0
  %v4201 = vmin.f32 %v4193, 0.0
  %v4202 = vmin.f32 %v4194, 0.0
  %v4203 = vmin.f32 %v4195, 0.0
  %v4204 = vmin.f32 %v4196, 0.0
  %v4205 = vmul.f32 %v4201, 1.442695
  %v4206 = vpow.pop %v4205
  %v4207 = vmul.f32 %v4202, 1.442695
  %v4208 = vpow.pop %v4207
  %v4209 = vmul.f32 %v4203, 1.442695
  %v4210 = vpow.pop %v4209
  %v4211 = vmul.f32 %v4204, 1.442695
  %v4212 = vpow.pop %v4211
  %v4213 = vsub.f32 %v4206, 1.0
  %v4214 = vsub.f32 %v4208, 1.0
  %v4215 = vsub.f32 %v4210, 1.0
  %v4216 = vsub.f32 %v4212, 1.0
  %v4217 = vsel %vm4197, %v4193, %v4213
  %v4218 = vsel %vm4198, %v4194, %v4214
  %v4219 = vsel %vm4199, %v4195, %v4215
  %v4220 = vsel %vm4200, %v4196, %v4216
  %v4221 = vadd.f32 %v4189, %v1864
  %v4222 = vadd.f32 %v4190, %v1869
  %v4223 = vadd.f32 %v4191, %v1874
  %v4224 = vadd.f32 %v4192, %v1879
  %vm4225 = vcmp.gt.f32.partialorder %v4221, 0.0
  %vm4226 = vcmp.gt.f32.partialorder %v4222, 0.0
  %vm4227 = vcmp.gt.f32.partialorder %v4223, 0.0
  %vm4228 = vcmp.gt.f32.partialorder %v4224, 0.0
  %v4229 = vmin.f32 %v4221, 0.0
  %v4230 = vmin.f32 %v4222, 0.0
  %v4231 = vmin.f32 %v4223, 0.0
  %v4232 = vmin.f32 %v4224, 0.0
  %v4233 = vmul.f32 %v4229, 1.442695
  %v4234 = vpow.pop %v4233
  %v4235 = vmul.f32 %v4230, 1.442695
  %v4236 = vpow.pop %v4235
  %v4237 = vmul.f32 %v4231, 1.442695
  %v4238 = vpow.pop %v4237
  %v4239 = vmul.f32 %v4232, 1.442695
  %v4240 = vpow.pop %v4239
  %v4241 = vsub.f32 %v4234, 1.0
  %v4242 = vsub.f32 %v4236, 1.0
  %v4243 = vsub.f32 %v4238, 1.0
  %v4244 = vsub.f32 %v4240, 1.0
  %v4245 = vsel %vm4225, %v4221, %v4241
  %v4246 = vsel %vm4226, %v4222, %v4242
  %v4247 = vsel %vm4227, %v4223, %v4243
  %v4248 = vsel %vm4228, %v4224, %v4244
  %v4249 = vadd.f32 %v4217, %v4245
  %v4250 = vadd.f32 %v4218, %v4246
  %v4251 = vadd.f32 %v4219, %v4247
  %v4252 = vadd.f32 %v4220, %v4248
  %v4253 = vmul.f32 %v4249, 0.5
  %v4254 = vmul.f32 %v4250, 0.5
  %v4255 = vmul.f32 %v4251, 0.5
  %v4256 = vmul.f32 %v4252, 0.5
  %v4257 = vpack.c.bf16 %v4254, %v4253
  %v4258 = vpack.c.bf16 %v4256, %v4255
  %4259 = vst [vmem:[#allocation2 + $0x48] sm:$0xff] %v4257
  %4260 = vst [vmem:[#allocation2 + $0xb8] sm:$0xff] %v4258
  %v4261 = vld [vmem:[%s2] sm:$0xff]
  %v4262 = vld [vmem:[%s2 + $0x8] sm:$0xff]
  %v4263 = vld [vmem:[%s2 + $0x10] sm:$0xff]
  %v4264 = vld [vmem:[%s2 + $0x18] sm:$0xff]
  %v4265 = vmul.f32 %v4261, %v1521
  %v4266 = vmul.f32 %v4262, %v1525
  %v4267 = vmul.f32 %v4263, %v1531
  %v4268 = vmul.f32 %v4264, %v1535
  %v4269 = vmul.f32 %v4261, %v1523
  %v4270 = vmul.f32 %v4262, %v1527
  %v4271 = vmul.f32 %v4263, %v1533
  %v4272 = vmul.f32 %v4264, %v1537
  %v4273 = vld [vmem:[%s1924] sm:$0xff]
  %v4274 = vld [vmem:[%s1924 + $0x8] sm:$0xff]
  %v4275 = vld [vmem:[%s1924 + $0x10] sm:$0xff]
  %v4276 = vld [vmem:[%s1924 + $0x18] sm:$0xff]
  %v4277 = vmul.f32 %v4273, %v1523
  %v4278 = vmul.f32 %v4274, %v1527
  %v4279 = vmul.f32 %v4275, %v1533
  %v4280 = vmul.f32 %v4276, %v1537
  %v4281 = vadd.f32 %v4265, %v4277
  %v4282 = vadd.f32 %v4266, %v4278
  %v4283 = vadd.f32 %v4267, %v4279
  %v4284 = vadd.f32 %v4268, %v4280
  %v4285 = vmul.f32 %v4273, %v1574
  %v4286 = vmul.f32 %v4274, %v1578
  %v4287 = vmul.f32 %v4275, %v1584
  %v4288 = vmul.f32 %v4276, %v1588
  %v4289 = vadd.f32 %v4269, %v4285
  %v4290 = vadd.f32 %v4270, %v4286
  %v4291 = vadd.f32 %v4271, %v4287
  %v4292 = vadd.f32 %v4272, %v4288
  %v4293 = vld [vmem:[%s1945] sm:$0xff]
  %v4294 = vld [vmem:[%s1945 + $0x8] sm:$0xff]
  %v4295 = vld [vmem:[%s1945 + $0x10] sm:$0xff]
  %v4296 = vld [vmem:[%s1945 + $0x18] sm:$0xff]
  %v4297 = vmul.f32 %v4293, %v1574
  %v4298 = vmul.f32 %v4294, %v1578
  %v4299 = vmul.f32 %v4295, %v1584
  %v4300 = vmul.f32 %v4296, %v1588
  %v4301 = vadd.f32 %v4281, %v4297
  %v4302 = vadd.f32 %v4282, %v4298
  %v4303 = vadd.f32 %v4283, %v4299
  %v4304 = vadd.f32 %v4284, %v4300
  %v4305 = vmul.f32 %v4293, %v1576
  %v4306 = vmul.f32 %v4294, %v1580
  %v4307 = vmul.f32 %v4295, %v1586
  %v4308 = vmul.f32 %v4296, %v1590
  %v4309 = vadd.f32 %v4289, %v4305
  %v4310 = vadd.f32 %v4290, %v4306
  %v4311 = vadd.f32 %v4291, %v4307
  %v4312 = vadd.f32 %v4292, %v4308
  %v4313 = vld [vmem:[%s1966] sm:$0xff]
  %v4314 = vld [vmem:[%s1966 + $0x8] sm:$0xff]
  %v4315 = vld [vmem:[%s1966 + $0x10] sm:$0xff]
  %v4316 = vld [vmem:[%s1966 + $0x18] sm:$0xff]
  %v4317 = vmul.f32 %v4313, %v1576
  %v4318 = vmul.f32 %v4314, %v1580
  %v4319 = vmul.f32 %v4315, %v1586
  %v4320 = vmul.f32 %v4316, %v1590
  %v4321 = vadd.f32 %v4301, %v4317
  %v4322 = vadd.f32 %v4302, %v4318
  %v4323 = vadd.f32 %v4303, %v4319
  %v4324 = vadd.f32 %v4304, %v4320
  %v4325 = vmul.f32 %v4313, %v1627
  %v4326 = vmul.f32 %v4314, %v1631
  %v4327 = vmul.f32 %v4315, %v1637
  %v4328 = vmul.f32 %v4316, %v1641
  %v4329 = vadd.f32 %v4309, %v4325
  %v4330 = vadd.f32 %v4310, %v4326
  %v4331 = vadd.f32 %v4311, %v4327
  %v4332 = vadd.f32 %v4312, %v4328
  %v4333 = vld [vmem:[%s1987] sm:$0xff]
  %v4334 = vld [vmem:[%s1987 + $0x8] sm:$0xff]
  %v4335 = vld [vmem:[%s1987 + $0x10] sm:$0xff]
  %v4336 = vld [vmem:[%s1987 + $0x18] sm:$0xff]
  %v4337 = vmul.f32 %v4333, %v1627
  %v4338 = vmul.f32 %v4334, %v1631
  %v4339 = vmul.f32 %v4335, %v1637
  %v4340 = vmul.f32 %v4336, %v1641
  %v4341 = vadd.f32 %v4321, %v4337
  %v4342 = vadd.f32 %v4322, %v4338
  %v4343 = vadd.f32 %v4323, %v4339
  %v4344 = vadd.f32 %v4324, %v4340
  %v4345 = vmul.f32 %v4333, %v1629
  %v4346 = vmul.f32 %v4334, %v1633
  %v4347 = vmul.f32 %v4335, %v1639
  %v4348 = vmul.f32 %v4336, %v1643
  %v4349 = vadd.f32 %v4329, %v4345
  %v4350 = vadd.f32 %v4330, %v4346
  %v4351 = vadd.f32 %v4331, %v4347
  %v4352 = vadd.f32 %v4332, %v4348
  %v4353 = vld [vmem:[%s2008] sm:$0xff]
  %v4354 = vld [vmem:[%s2008 + $0x8] sm:$0xff]
  %v4355 = vld [vmem:[%s2008 + $0x10] sm:$0xff]
  %v4356 = vld [vmem:[%s2008 + $0x18] sm:$0xff]
  %v4357 = vmul.f32 %v4353, %v1629
  %v4358 = vmul.f32 %v4354, %v1633
  %v4359 = vmul.f32 %v4355, %v1639
  %v4360 = vmul.f32 %v4356, %v1643
  %v4361 = vadd.f32 %v4341, %v4357
  %v4362 = vadd.f32 %v4342, %v4358
  %v4363 = vadd.f32 %v4343, %v4359
  %v4364 = vadd.f32 %v4344, %v4360
  %v4365 = vmul.f32 %v4353, %v1680
  %v4366 = vmul.f32 %v4354, %v1684
  %v4367 = vmul.f32 %v4355, %v1690
  %v4368 = vmul.f32 %v4356, %v1694
  %v4369 = vadd.f32 %v4349, %v4365
  %v4370 = vadd.f32 %v4350, %v4366
  %v4371 = vadd.f32 %v4351, %v4367
  %v4372 = vadd.f32 %v4352, %v4368
  %v4373 = vld [vmem:[%s2029] sm:$0xff]
  %v4374 = vld [vmem:[%s2029 + $0x8] sm:$0xff]
  %v4375 = vld [vmem:[%s2029 + $0x10] sm:$0xff]
  %v4376 = vld [vmem:[%s2029 + $0x18] sm:$0xff]
  %v4377 = vmul.f32 %v4373, %v1680
  %v4378 = vmul.f32 %v4374, %v1684
  %v4379 = vmul.f32 %v4375, %v1690
  %v4380 = vmul.f32 %v4376, %v1694
  %v4381 = vadd.f32 %v4361, %v4377
  %v4382 = vadd.f32 %v4362, %v4378
  %v4383 = vadd.f32 %v4363, %v4379
  %v4384 = vadd.f32 %v4364, %v4380
  %v4385 = vmul.f32 %v4373, %v1682
  %v4386 = vmul.f32 %v4374, %v1686
  %v4387 = vmul.f32 %v4375, %v1692
  %v4388 = vmul.f32 %v4376, %v1696
  %v4389 = vadd.f32 %v4369, %v4385
  %v4390 = vadd.f32 %v4370, %v4386
  %v4391 = vadd.f32 %v4371, %v4387
  %v4392 = vadd.f32 %v4372, %v4388
  %v4393 = vld [vmem:[%s2050] sm:$0xff]
  %v4394 = vld [vmem:[%s2050 + $0x8] sm:$0xff]
  %v4395 = vld [vmem:[%s2050 + $0x10] sm:$0xff]
  %v4396 = vld [vmem:[%s2050 + $0x18] sm:$0xff]
  %v4397 = vmul.f32 %v4393, %v1682
  %v4398 = vmul.f32 %v4394, %v1686
  %v4399 = vmul.f32 %v4395, %v1692
  %v4400 = vmul.f32 %v4396, %v1696
  %v4401 = vadd.f32 %v4381, %v4397
  %v4402 = vadd.f32 %v4382, %v4398
  %v4403 = vadd.f32 %v4383, %v4399
  %v4404 = vadd.f32 %v4384, %v4400
  %v4405 = vmul.f32 %v4393, %v1733
  %v4406 = vmul.f32 %v4394, %v1737
  %v4407 = vmul.f32 %v4395, %v1743
  %v4408 = vmul.f32 %v4396, %v1747
  %v4409 = vadd.f32 %v4389, %v4405
  %v4410 = vadd.f32 %v4390, %v4406
  %v4411 = vadd.f32 %v4391, %v4407
  %v4412 = vadd.f32 %v4392, %v4408
  %v4413 = vld [vmem:[%s2071] sm:$0xff]
  %v4414 = vld [vmem:[%s2071 + $0x8] sm:$0xff]
  %v4415 = vld [vmem:[%s2071 + $0x10] sm:$0xff]
  %v4416 = vld [vmem:[%s2071 + $0x18] sm:$0xff]
  %v4417 = vmul.f32 %v4413, %v1733
  %v4418 = vmul.f32 %v4414, %v1737
  %v4419 = vmul.f32 %v4415, %v1743
  %v4420 = vmul.f32 %v4416, %v1747
  %v4421 = vadd.f32 %v4401, %v4417
  %v4422 = vadd.f32 %v4402, %v4418
  %v4423 = vadd.f32 %v4403, %v4419
  %v4424 = vadd.f32 %v4404, %v4420
  %v4425 = vmul.f32 %v4413, %v1735
  %v4426 = vmul.f32 %v4414, %v1739
  %v4427 = vmul.f32 %v4415, %v1745
  %v4428 = vmul.f32 %v4416, %v1749
  %v4429 = vadd.f32 %v4409, %v4425
  %v4430 = vadd.f32 %v4410, %v4426
  %v4431 = vadd.f32 %v4411, %v4427
  %v4432 = vadd.f32 %v4412, %v4428
  %v4433 = vld [vmem:[%s2092] sm:$0xff]
  %v4434 = vld [vmem:[%s2092 + $0x8] sm:$0xff]
  %v4435 = vld [vmem:[%s2092 + $0x10] sm:$0xff]
  %v4436 = vld [vmem:[%s2092 + $0x18] sm:$0xff]
  %v4437 = vmul.f32 %v4433, %v1735
  %v4438 = vmul.f32 %v4434, %v1739
  %v4439 = vmul.f32 %v4435, %v1745
  %v4440 = vmul.f32 %v4436, %v1749
  %v4441 = vadd.f32 %v4421, %v4437
  %v4442 = vadd.f32 %v4422, %v4438
  %v4443 = vadd.f32 %v4423, %v4439
  %v4444 = vadd.f32 %v4424, %v4440
  %v4445 = vmul.f32 %v4433, %v1786
  %v4446 = vmul.f32 %v4434, %v1790
  %v4447 = vmul.f32 %v4435, %v1796
  %v4448 = vmul.f32 %v4436, %v1800
  %v4449 = vadd.f32 %v4429, %v4445
  %v4450 = vadd.f32 %v4430, %v4446
  %v4451 = vadd.f32 %v4431, %v4447
  %v4452 = vadd.f32 %v4432, %v4448
  %v4453 = vadd.f32 %v4441, %v1864
  %v4454 = vadd.f32 %v4442, %v1869
  %v4455 = vadd.f32 %v4443, %v1874
  %v4456 = vadd.f32 %v4444, %v1879
  %vm4457 = vcmp.gt.f32.partialorder %v4453, 0.0
  %vm4458 = vcmp.gt.f32.partialorder %v4454, 0.0
  %vm4459 = vcmp.gt.f32.partialorder %v4455, 0.0
  %vm4460 = vcmp.gt.f32.partialorder %v4456, 0.0
  %v4461 = vmin.f32 %v4453, 0.0
  %v4462 = vmin.f32 %v4454, 0.0
  %v4463 = vmin.f32 %v4455, 0.0
  %v4464 = vmin.f32 %v4456, 0.0
  %v4465 = vmul.f32 %v4461, 1.442695
  %v4466 = vpow.pop %v4465
  %v4467 = vmul.f32 %v4462, 1.442695
  %v4468 = vpow.pop %v4467
  %v4469 = vmul.f32 %v4463, 1.442695
  %v4470 = vpow.pop %v4469
  %v4471 = vmul.f32 %v4464, 1.442695
  %v4472 = vpow.pop %v4471
  %v4473 = vsub.f32 %v4466, 1.0
  %v4474 = vsub.f32 %v4468, 1.0
  %v4475 = vsub.f32 %v4470, 1.0
  %v4476 = vsub.f32 %v4472, 1.0
  %v4477 = vsel %vm4457, %v4453, %v4473
  %v4478 = vsel %vm4458, %v4454, %v4474
  %v4479 = vsel %vm4459, %v4455, %v4475
  %v4480 = vsel %vm4460, %v4456, %v4476
  %v4481 = vadd.f32 %v4449, %v1864
  %v4482 = vadd.f32 %v4450, %v1869
  %v4483 = vadd.f32 %v4451, %v1874
  %v4484 = vadd.f32 %v4452, %v1879
  %vm4485 = vcmp.gt.f32.partialorder %v4481, 0.0
  %vm4486 = vcmp.gt.f32.partialorder %v4482, 0.0
  %vm4487 = vcmp.gt.f32.partialorder %v4483, 0.0
  %vm4488 = vcmp.gt.f32.partialorder %v4484, 0.0
  %v4489 = vmin.f32 %v4481, 0.0
  %v4490 = vmin.f32 %v4482, 0.0
  %v4491 = vmin.f32 %v4483, 0.0
  %v4492 = vmin.f32 %v4484, 0.0
  %v4493 = vmul.f32 %v4489, 1.442695
  %v4494 = vpow.pop %v4493
  %v4495 = vmul.f32 %v4490, 1.442695
  %v4496 = vpow.pop %v4495
  %v4497 = vmul.f32 %v4491, 1.442695
  %v4498 = vpow.pop %v4497
  %v4499 = vmul.f32 %v4492, 1.442695
  %v4500 = vpow.pop %v4499
  %v4501 = vsub.f32 %v4494, 1.0
  %v4502 = vsub.f32 %v4496, 1.0
  %v4503 = vsub.f32 %v4498, 1.0
  %v4504 = vsub.f32 %v4500, 1.0
  %v4505 = vsel %vm4485, %v4481, %v4501
  %v4506 = vsel %vm4486, %v4482, %v4502
  %v4507 = vsel %vm4487, %v4483, %v4503
  %v4508 = vsel %vm4488, %v4484, %v4504
  %v4509 = vadd.f32 %v4477, %v4505
  %v4510 = vadd.f32 %v4478, %v4506
  %v4511 = vadd.f32 %v4479, %v4507
  %v4512 = vadd.f32 %v4480, %v4508
  %v4513 = vmul.f32 %v4509, 0.5
  %v4514 = vmul.f32 %v4510, 0.5
  %v4515 = vmul.f32 %v4511, 0.5
  %v4516 = vmul.f32 %v4512, 0.5
  %v4517 = vpack.c.bf16 %v4514, %v4513
  %v4518 = vpack.c.bf16 %v4516, %v4515
  %4519 = vst [vmem:[#allocation2 + $0x50] sm:$0xff] %v4517
  %4520 = vst [vmem:[#allocation2 + $0xc0] sm:$0xff] %v4518
  %v4521 = vld [vmem:[%s2] sm:$0xff]
  %v4522 = vld [vmem:[%s2 + $0x8] sm:$0xff]
  %v4523 = vld [vmem:[%s2 + $0x10] sm:$0xff]
  %v4524 = vld [vmem:[%s2 + $0x18] sm:$0xff]
  %v4525 = vmul.f32 %v4521, %v1574
  %v4526 = vmul.f32 %v4522, %v1578
  %v4527 = vmul.f32 %v4523, %v1584
  %v4528 = vmul.f32 %v4524, %v1588
  %v4529 = vmul.f32 %v4521, %v1576
  %v4530 = vmul.f32 %v4522, %v1580
  %v4531 = vmul.f32 %v4523, %v1586
  %v4532 = vmul.f32 %v4524, %v1590
  %v4533 = vld [vmem:[%s1924] sm:$0xff]
  %v4534 = vld [vmem:[%s1924 + $0x8] sm:$0xff]
  %v4535 = vld [vmem:[%s1924 + $0x10] sm:$0xff]
  %v4536 = vld [vmem:[%s1924 + $0x18] sm:$0xff]
  %v4537 = vmul.f32 %v4533, %v1576
  %v4538 = vmul.f32 %v4534, %v1580
  %v4539 = vmul.f32 %v4535, %v1586
  %v4540 = vmul.f32 %v4536, %v1590
  %v4541 = vadd.f32 %v4525, %v4537
  %v4542 = vadd.f32 %v4526, %v4538
  %v4543 = vadd.f32 %v4527, %v4539
  %v4544 = vadd.f32 %v4528, %v4540
  %v4545 = vmul.f32 %v4533, %v1627
  %v4546 = vmul.f32 %v4534, %v1631
  %v4547 = vmul.f32 %v4535, %v1637
  %v4548 = vmul.f32 %v4536, %v1641
  %v4549 = vadd.f32 %v4529, %v4545
  %v4550 = vadd.f32 %v4530, %v4546
  %v4551 = vadd.f32 %v4531, %v4547
  %v4552 = vadd.f32 %v4532, %v4548
  %v4553 = vld [vmem:[%s1945] sm:$0xff]
  %v4554 = vld [vmem:[%s1945 + $0x8] sm:$0xff]
  %v4555 = vld [vmem:[%s1945 + $0x10] sm:$0xff]
  %v4556 = vld [vmem:[%s1945 + $0x18] sm:$0xff]
  %v4557 = vmul.f32 %v4553, %v1627
  %v4558 = vmul.f32 %v4554, %v1631
  %v4559 = vmul.f32 %v4555, %v1637
  %v4560 = vmul.f32 %v4556, %v1641
  %v4561 = vadd.f32 %v4541, %v4557
  %v4562 = vadd.f32 %v4542, %v4558
  %v4563 = vadd.f32 %v4543, %v4559
  %v4564 = vadd.f32 %v4544, %v4560
  %v4565 = vmul.f32 %v4553, %v1629
  %v4566 = vmul.f32 %v4554, %v1633
  %v4567 = vmul.f32 %v4555, %v1639
  %v4568 = vmul.f32 %v4556, %v1643
  %v4569 = vadd.f32 %v4549, %v4565
  %v4570 = vadd.f32 %v4550, %v4566
  %v4571 = vadd.f32 %v4551, %v4567
  %v4572 = vadd.f32 %v4552, %v4568
  %v4573 = vld [vmem:[%s1966] sm:$0xff]
  %v4574 = vld [vmem:[%s1966 + $0x8] sm:$0xff]
  %v4575 = vld [vmem:[%s1966 + $0x10] sm:$0xff]
  %v4576 = vld [vmem:[%s1966 + $0x18] sm:$0xff]
  %v4577 = vmul.f32 %v4573, %v1629
  %v4578 = vmul.f32 %v4574, %v1633
  %v4579 = vmul.f32 %v4575, %v1639
  %v4580 = vmul.f32 %v4576, %v1643
  %v4581 = vadd.f32 %v4561, %v4577
  %v4582 = vadd.f32 %v4562, %v4578
  %v4583 = vadd.f32 %v4563, %v4579
  %v4584 = vadd.f32 %v4564, %v4580
  %v4585 = vmul.f32 %v4573, %v1680
  %v4586 = vmul.f32 %v4574, %v1684
  %v4587 = vmul.f32 %v4575, %v1690
  %v4588 = vmul.f32 %v4576, %v1694
  %v4589 = vadd.f32 %v4569, %v4585
  %v4590 = vadd.f32 %v4570, %v4586
  %v4591 = vadd.f32 %v4571, %v4587
  %v4592 = vadd.f32 %v4572, %v4588
  %v4593 = vld [vmem:[%s1987] sm:$0xff]
  %v4594 = vld [vmem:[%s1987 + $0x8] sm:$0xff]
  %v4595 = vld [vmem:[%s1987 + $0x10] sm:$0xff]
  %v4596 = vld [vmem:[%s1987 + $0x18] sm:$0xff]
  %v4597 = vmul.f32 %v4593, %v1680
  %v4598 = vmul.f32 %v4594, %v1684
  %v4599 = vmul.f32 %v4595, %v1690
  %v4600 = vmul.f32 %v4596, %v1694
  %v4601 = vadd.f32 %v4581, %v4597
  %v4602 = vadd.f32 %v4582, %v4598
  %v4603 = vadd.f32 %v4583, %v4599
  %v4604 = vadd.f32 %v4584, %v4600
  %v4605 = vmul.f32 %v4593, %v1682
  %v4606 = vmul.f32 %v4594, %v1686
  %v4607 = vmul.f32 %v4595, %v1692
  %v4608 = vmul.f32 %v4596, %v1696
  %v4609 = vadd.f32 %v4589, %v4605
  %v4610 = vadd.f32 %v4590, %v4606
  %v4611 = vadd.f32 %v4591, %v4607
  %v4612 = vadd.f32 %v4592, %v4608
  %v4613 = vld [vmem:[%s2008] sm:$0xff]
  %v4614 = vld [vmem:[%s2008 + $0x8] sm:$0xff]
  %v4615 = vld [vmem:[%s2008 + $0x10] sm:$0xff]
  %v4616 = vld [vmem:[%s2008 + $0x18] sm:$0xff]
  %v4617 = vmul.f32 %v4613, %v1682
  %v4618 = vmul.f32 %v4614, %v1686
  %v4619 = vmul.f32 %v4615, %v1692
  %v4620 = vmul.f32 %v4616, %v1696
  %v4621 = vadd.f32 %v4601, %v4617
  %v4622 = vadd.f32 %v4602, %v4618
  %v4623 = vadd.f32 %v4603, %v4619
  %v4624 = vadd.f32 %v4604, %v4620
  %v4625 = vmul.f32 %v4613, %v1733
  %v4626 = vmul.f32 %v4614, %v1737
  %v4627 = vmul.f32 %v4615, %v1743
  %v4628 = vmul.f32 %v4616, %v1747
  %v4629 = vadd.f32 %v4609, %v4625
  %v4630 = vadd.f32 %v4610, %v4626
  %v4631 = vadd.f32 %v4611, %v4627
  %v4632 = vadd.f32 %v4612, %v4628
  %v4633 = vld [vmem:[%s2029] sm:$0xff]
  %v4634 = vld [vmem:[%s2029 + $0x8] sm:$0xff]
  %v4635 = vld [vmem:[%s2029 + $0x10] sm:$0xff]
  %v4636 = vld [vmem:[%s2029 + $0x18] sm:$0xff]
  %v4637 = vmul.f32 %v4633, %v1733
  %v4638 = vmul.f32 %v4634, %v1737
  %v4639 = vmul.f32 %v4635, %v1743
  %v4640 = vmul.f32 %v4636, %v1747
  %v4641 = vadd.f32 %v4621, %v4637
  %v4642 = vadd.f32 %v4622, %v4638
  %v4643 = vadd.f32 %v4623, %v4639
  %v4644 = vadd.f32 %v4624, %v4640
  %v4645 = vmul.f32 %v4633, %v1735
  %v4646 = vmul.f32 %v4634, %v1739
  %v4647 = vmul.f32 %v4635, %v1745
  %v4648 = vmul.f32 %v4636, %v1749
  %v4649 = vadd.f32 %v4629, %v4645
  %v4650 = vadd.f32 %v4630, %v4646
  %v4651 = vadd.f32 %v4631, %v4647
  %v4652 = vadd.f32 %v4632, %v4648
  %v4653 = vld [vmem:[%s2050] sm:$0xff]
  %v4654 = vld [vmem:[%s2050 + $0x8] sm:$0xff]
  %v4655 = vld [vmem:[%s2050 + $0x10] sm:$0xff]
  %v4656 = vld [vmem:[%s2050 + $0x18] sm:$0xff]
  %v4657 = vmul.f32 %v4653, %v1735
  %v4658 = vmul.f32 %v4654, %v1739
  %v4659 = vmul.f32 %v4655, %v1745
  %v4660 = vmul.f32 %v4656, %v1749
  %v4661 = vadd.f32 %v4641, %v4657
  %v4662 = vadd.f32 %v4642, %v4658
  %v4663 = vadd.f32 %v4643, %v4659
  %v4664 = vadd.f32 %v4644, %v4660
  %v4665 = vmul.f32 %v4653, %v1786
  %v4666 = vmul.f32 %v4654, %v1790
  %v4667 = vmul.f32 %v4655, %v1796
  %v4668 = vmul.f32 %v4656, %v1800
  %v4669 = vadd.f32 %v4649, %v4665
  %v4670 = vadd.f32 %v4650, %v4666
  %v4671 = vadd.f32 %v4651, %v4667
  %v4672 = vadd.f32 %v4652, %v4668
  %v4673 = vld [vmem:[%s2071] sm:$0xff]
  %v4674 = vld [vmem:[%s2071 + $0x8] sm:$0xff]
  %v4675 = vld [vmem:[%s2071 + $0x10] sm:$0xff]
  %v4676 = vld [vmem:[%s2071 + $0x18] sm:$0xff]
  %v4677 = vmul.f32 %v4673, %v1786
  %v4678 = vmul.f32 %v4674, %v1790
  %v4679 = vmul.f32 %v4675, %v1796
  %v4680 = vmul.f32 %v4676, %v1800
  %v4681 = vadd.f32 %v4661, %v4677
  %v4682 = vadd.f32 %v4662, %v4678
  %v4683 = vadd.f32 %v4663, %v4679
  %v4684 = vadd.f32 %v4664, %v4680
  %v4685 = vmul.f32 %v4673, %v1788
  %v4686 = vmul.f32 %v4674, %v1792
  %v4687 = vmul.f32 %v4675, %v1798
  %v4688 = vmul.f32 %v4676, %v1802
  %v4689 = vadd.f32 %v4669, %v4685
  %v4690 = vadd.f32 %v4670, %v4686
  %v4691 = vadd.f32 %v4671, %v4687
  %v4692 = vadd.f32 %v4672, %v4688
  %v4693 = vld [vmem:[%s2092] sm:$0xff]
  %v4694 = vld [vmem:[%s2092 + $0x8] sm:$0xff]
  %v4695 = vld [vmem:[%s2092 + $0x10] sm:$0xff]
  %v4696 = vld [vmem:[%s2092 + $0x18] sm:$0xff]
  %v4697 = vmul.f32 %v4693, %v1788
  %v4698 = vmul.f32 %v4694, %v1792
  %v4699 = vmul.f32 %v4695, %v1798
  %v4700 = vmul.f32 %v4696, %v1802
  %v4701 = vadd.f32 %v4681, %v4697
  %v4702 = vadd.f32 %v4682, %v4698
  %v4703 = vadd.f32 %v4683, %v4699
  %v4704 = vadd.f32 %v4684, %v4700
  %v4705 = vmul.f32 %v4693, %v1839
  %v4706 = vmul.f32 %v4694, %v1843
  %v4707 = vmul.f32 %v4695, %v1849
  %v4708 = vmul.f32 %v4696, %v1853
  %v4709 = vadd.f32 %v4689, %v4705
  %v4710 = vadd.f32 %v4690, %v4706
  %v4711 = vadd.f32 %v4691, %v4707
  %v4712 = vadd.f32 %v4692, %v4708
  %v4713 = vadd.f32 %v4701, %v1864
  %v4714 = vadd.f32 %v4702, %v1869
  %v4715 = vadd.f32 %v4703, %v1874
  %v4716 = vadd.f32 %v4704, %v1879
  %vm4717 = vcmp.gt.f32.partialorder %v4713, 0.0
  %vm4718 = vcmp.gt.f32.partialorder %v4714, 0.0
  %vm4719 = vcmp.gt.f32.partialorder %v4715, 0.0
  %vm4720 = vcmp.gt.f32.partialorder %v4716, 0.0
  %v4721 = vmin.f32 %v4713, 0.0
  %v4722 = vmin.f32 %v4714, 0.0
  %v4723 = vmin.f32 %v4715, 0.0
  %v4724 = vmin.f32 %v4716, 0.0
  %v4725 = vmul.f32 %v4721, 1.442695
  %v4726 = vpow.pop %v4725
  %v4727 = vmul.f32 %v4722, 1.442695
  %v4728 = vpow.pop %v4727
  %v4729 = vmul.f32 %v4723, 1.442695
  %v4730 = vpow.pop %v4729
  %v4731 = vmul.f32 %v4724, 1.442695
  %v4732 = vpow.pop %v4731
  %v4733 = vsub.f32 %v4726, 1.0
  %v4734 = vsub.f32 %v4728, 1.0
  %v4735 = vsub.f32 %v4730, 1.0
  %v4736 = vsub.f32 %v4732, 1.0
  %v4737 = vsel %vm4717, %v4713, %v4733
  %v4738 = vsel %vm4718, %v4714, %v4734
  %v4739 = vsel %vm4719, %v4715, %v4735
  %v4740 = vsel %vm4720, %v4716, %v4736
  %v4741 = vadd.f32 %v4709, %v1864
  %v4742 = vadd.f32 %v4710, %v1869
  %v4743 = vadd.f32 %v4711, %v1874
  %v4744 = vadd.f32 %v4712, %v1879
  %vm4745 = vcmp.gt.f32.partialorder %v4741, 0.0
  %vm4746 = vcmp.gt.f32.partialorder %v4742, 0.0
  %vm4747 = vcmp.gt.f32.partialorder %v4743, 0.0
  %vm4748 = vcmp.gt.f32.partialorder %v4744, 0.0
  %v4749 = vmin.f32 %v4741, 0.0
  %v4750 = vmin.f32 %v4742, 0.0
  %v4751 = vmin.f32 %v4743, 0.0
  %v4752 = vmin.f32 %v4744, 0.0
  %v4753 = vmul.f32 %v4749, 1.442695
  %v4754 = vpow.pop %v4753
  %v4755 = vmul.f32 %v4750, 1.442695
  %v4756 = vpow.pop %v4755
  %v4757 = vmul.f32 %v4751, 1.442695
  %v4758 = vpow.pop %v4757
  %v4759 = vmul.f32 %v4752, 1.442695
  %v4760 = vpow.pop %v4759
  %v4761 = vsub.f32 %v4754, 1.0
  %v4762 = vsub.f32 %v4756, 1.0
  %v4763 = vsub.f32 %v4758, 1.0
  %v4764 = vsub.f32 %v4760, 1.0
  %v4765 = vsel %vm4745, %v4741, %v4761
  %v4766 = vsel %vm4746, %v4742, %v4762
  %v4767 = vsel %vm4747, %v4743, %v4763
  %v4768 = vsel %vm4748, %v4744, %v4764
  %v4769 = vadd.f32 %v4737, %v4765
  %v4770 = vadd.f32 %v4738, %v4766
  %v4771 = vadd.f32 %v4739, %v4767
  %v4772 = vadd.f32 %v4740, %v4768
  %v4773 = vmul.f32 %v4769, 0.5
  %v4774 = vmul.f32 %v4770, 0.5
  %v4775 = vmul.f32 %v4771, 0.5
  %v4776 = vmul.f32 %v4772, 0.5
  %v4777 = vpack.c.bf16 %v4774, %v4773
  %v4778 = vpack.c.bf16 %v4776, %v4775
  %4779 = vst [vmem:[#allocation2 + $0x58] sm:$0xff] %v4777
  %4780 = vst [vmem:[#allocation2 + $0xc8] sm:$0xff] %v4778
  %v4781 = vld [vmem:[%s2] sm:$0xff]
  %v4782 = vld [vmem:[%s2 + $0x8] sm:$0xff]
  %v4783 = vld [vmem:[%s2 + $0x10] sm:$0xff]
  %v4784 = vld [vmem:[%s2 + $0x18] sm:$0xff]
  %v4785 = vmul.f32 %v4781, %v1627
  %v4786 = vmul.f32 %v4782, %v1631
  %v4787 = vmul.f32 %v4783, %v1637
  %v4788 = vmul.f32 %v4784, %v1641
  %v4789 = vld [vmem:[%s1924] sm:$0xff]
  %v4790 = vld [vmem:[%s1924 + $0x8] sm:$0xff]
  %v4791 = vld [vmem:[%s1924 + $0x10] sm:$0xff]
  %v4792 = vld [vmem:[%s1924 + $0x18] sm:$0xff]
  %v4793 = vmul.f32 %v4789, %v1629
  %v4794 = vmul.f32 %v4790, %v1633
  %v4795 = vmul.f32 %v4791, %v1639
  %v4796 = vmul.f32 %v4792, %v1643
  %v4797 = vadd.f32 %v4785, %v4793
  %v4798 = vadd.f32 %v4786, %v4794
  %v4799 = vadd.f32 %v4787, %v4795
  %v4800 = vadd.f32 %v4788, %v4796
  %v4801 = vld [vmem:[%s1945] sm:$0xff]
  %v4802 = vld [vmem:[%s1945 + $0x8] sm:$0xff]
  %v4803 = vld [vmem:[%s1945 + $0x10] sm:$0xff]
  %v4804 = vld [vmem:[%s1945 + $0x18] sm:$0xff]
  %v4805 = vmul.f32 %v4801, %v1680
  %v4806 = vmul.f32 %v4802, %v1684
  %v4807 = vmul.f32 %v4803, %v1690
  %v4808 = vmul.f32 %v4804, %v1694
  %v4809 = vadd.f32 %v4797, %v4805
  %v4810 = vadd.f32 %v4798, %v4806
  %v4811 = vadd.f32 %v4799, %v4807
  %v4812 = vadd.f32 %v4800, %v4808
  %v4813 = vld [vmem:[%s1966] sm:$0xff]
  %v4814 = vld [vmem:[%s1966 + $0x8] sm:$0xff]
  %v4815 = vld [vmem:[%s1966 + $0x10] sm:$0xff]
  %v4816 = vld [vmem:[%s1966 + $0x18] sm:$0xff]
  %v4817 = vmul.f32 %v4813, %v1682
  %v4818 = vmul.f32 %v4814, %v1686
  %v4819 = vmul.f32 %v4815, %v1692
  %v4820 = vmul.f32 %v4816, %v1696
  %v4821 = vadd.f32 %v4809, %v4817
  %v4822 = vadd.f32 %v4810, %v4818
  %v4823 = vadd.f32 %v4811, %v4819
  %v4824 = vadd.f32 %v4812, %v4820
  %v4825 = vld [vmem:[%s1987] sm:$0xff]
  %v4826 = vld [vmem:[%s1987 + $0x8] sm:$0xff]
  %v4827 = vld [vmem:[%s1987 + $0x10] sm:$0xff]
  %v4828 = vld [vmem:[%s1987 + $0x18] sm:$0xff]
  %v4829 = vmul.f32 %v4825, %v1733
  %v4830 = vmul.f32 %v4826, %v1737
  %v4831 = vmul.f32 %v4827, %v1743
  %v4832 = vmul.f32 %v4828, %v1747
  %v4833 = vadd.f32 %v4821, %v4829
  %v4834 = vadd.f32 %v4822, %v4830
  %v4835 = vadd.f32 %v4823, %v4831
  %v4836 = vadd.f32 %v4824, %v4832
  %v4837 = vld [vmem:[%s2008] sm:$0xff]
  %v4838 = vld [vmem:[%s2008 + $0x8] sm:$0xff]
  %v4839 = vld [vmem:[%s2008 + $0x10] sm:$0xff]
  %v4840 = vld [vmem:[%s2008 + $0x18] sm:$0xff]
  %v4841 = vmul.f32 %v4837, %v1735
  %v4842 = vmul.f32 %v4838, %v1739
  %v4843 = vmul.f32 %v4839, %v1745
  %v4844 = vmul.f32 %v4840, %v1749
  %v4845 = vadd.f32 %v4833, %v4841
  %v4846 = vadd.f32 %v4834, %v4842
  %v4847 = vadd.f32 %v4835, %v4843
  %v4848 = vadd.f32 %v4836, %v4844
  %v4849 = vld [vmem:[%s2029] sm:$0xff]
  %v4850 = vld [vmem:[%s2029 + $0x8] sm:$0xff]
  %v4851 = vld [vmem:[%s2029 + $0x10] sm:$0xff]
  %v4852 = vld [vmem:[%s2029 + $0x18] sm:$0xff]
  %v4853 = vmul.f32 %v4849, %v1786
  %v4854 = vmul.f32 %v4850, %v1790
  %v4855 = vmul.f32 %v4851, %v1796
  %v4856 = vmul.f32 %v4852, %v1800
  %v4857 = vadd.f32 %v4845, %v4853
  %v4858 = vadd.f32 %v4846, %v4854
  %v4859 = vadd.f32 %v4847, %v4855
  %v4860 = vadd.f32 %v4848, %v4856
  %v4861 = vld [vmem:[%s2050] sm:$0xff]
  %v4862 = vld [vmem:[%s2050 + $0x8] sm:$0xff]
  %v4863 = vld [vmem:[%s2050 + $0x10] sm:$0xff]
  %v4864 = vld [vmem:[%s2050 + $0x18] sm:$0xff]
  %v4865 = vmul.f32 %v4861, %v1788
  %v4866 = vmul.f32 %v4862, %v1792
  %v4867 = vmul.f32 %v4863, %v1798
  %v4868 = vmul.f32 %v4864, %v1802
  %v4869 = vadd.f32 %v4857, %v4865
  %v4870 = vadd.f32 %v4858, %v4866
  %v4871 = vadd.f32 %v4859, %v4867
  %v4872 = vadd.f32 %v4860, %v4868
  %v4873 = vld [vmem:[%s2071] sm:$0xff]
  %v4874 = vld [vmem:[%s2071 + $0x8] sm:$0xff]
  %v4875 = vld [vmem:[%s2071 + $0x10] sm:$0xff]
  %v4876 = vld [vmem:[%s2071 + $0x18] sm:$0xff]
  %v4877 = vmul.f32 %v4873, %v1839
  %v4878 = vmul.f32 %v4874, %v1843
  %v4879 = vmul.f32 %v4875, %v1849
  %v4880 = vmul.f32 %v4876, %v1853
  %v4881 = vadd.f32 %v4869, %v4877
  %v4882 = vadd.f32 %v4870, %v4878
  %v4883 = vadd.f32 %v4871, %v4879
  %v4884 = vadd.f32 %v4872, %v4880
  %v4885 = vld [vmem:[%s2092] sm:$0xff]
  %v4886 = vld [vmem:[%s2092 + $0x8] sm:$0xff]
  %v4887 = vld [vmem:[%s2092 + $0x10] sm:$0xff]
  %v4888 = vld [vmem:[%s2092 + $0x18] sm:$0xff]
  %v4889 = vmul.f32 %v4885, %v1841
  %v4890 = vmul.f32 %v4886, %v1845
  %v4891 = vmul.f32 %v4887, %v1851
  %v4892 = vmul.f32 %v4888, %v1855
  %v4893 = vadd.f32 %v4881, %v4889
  %v4894 = vadd.f32 %v4882, %v4890
  %v4895 = vadd.f32 %v4883, %v4891
  %v4896 = vadd.f32 %v4884, %v4892
  %v4897 = vadd.f32 %v4893, %v1864
  %v4898 = vadd.f32 %v4894, %v1869
  %v4899 = vadd.f32 %v4895, %v1874
  %v4900 = vadd.f32 %v4896, %v1879
  %vm4901 = vcmp.gt.f32.partialorder %v4897, 0.0
  %vm4902 = vcmp.gt.f32.partialorder %v4898, 0.0
  %vm4903 = vcmp.gt.f32.partialorder %v4899, 0.0
  %vm4904 = vcmp.gt.f32.partialorder %v4900, 0.0
  %v4905 = vmin.f32 %v4897, 0.0
  %v4906 = vmin.f32 %v4898, 0.0
  %v4907 = vmin.f32 %v4899, 0.0
  %v4908 = vmin.f32 %v4900, 0.0
  %v4909 = vmul.f32 %v4905, 1.442695
  %v4910 = vpow.pop %v4909
  %v4911 = vmul.f32 %v4906, 1.442695
  %v4912 = vpow.pop %v4911
  %v4913 = vmul.f32 %v4907, 1.442695
  %v4914 = vpow.pop %v4913
  %v4915 = vmul.f32 %v4908, 1.442695
  %v4916 = vpow.pop %v4915
  %v4917 = vsub.f32 %v4910, 1.0
  %v4918 = vsub.f32 %v4912, 1.0
  %v4919 = vsub.f32 %v4914, 1.0
  %v4920 = vsub.f32 %v4916, 1.0
  %v4921 = vsel %vm4901, %v4897, %v4917
  %v4922 = vsel %vm4902, %v4898, %v4918
  %v4923 = vsel %vm4903, %v4899, %v4919
  %v4924 = vsel %vm4904, %v4900, %v4920
  %v4925 = vadd.f32 %v4921, %v1889
  %v4926 = vadd.f32 %v4922, %v1894
  %v4927 = vadd.f32 %v4923, %v1899
  %v4928 = vadd.f32 %v4924, %v1904
  %v4929 = vmul.f32 %v4925, 0.5
  %v4930 = vmul.f32 %v4926, 0.5
  %v4931 = vmul.f32 %v4927, 0.5
  %v4932 = vmul.f32 %v4928, 0.5
  %v4933 = vpack.c.bf16 %v4930, %v4929
  %v4934 = vpack.c.bf16 %v4932, %v4931
  %4935 = vst [vmem:[#allocation2 + $0x60] sm:$0xff] %v4933
  %4936 = vst [vmem:[#allocation2 + $0xd0] sm:$0xff] %v4934
  %v4937 = vld [vmem:[%s4] sm:$0xf]
  %v4938 = vld [vmem:[%s4 + $0x4] sm:$0xf]
  %v4939 = vld [vmem:[%s4 + $0x8] sm:$0xf]
  %v4940 = vld [vmem:[%s4 + $0xc] sm:$0xf]
  %v4941 = vld [vmem:[#allocation2] sm:$0xff]
  %v4942 = vld [vmem:[#allocation2 + $0x8] sm:$0xff]
  %v4943 = vld [vmem:[#allocation2 + $0x10] sm:$0xff]
  %v4944 = vld [vmem:[#allocation2 + $0x18] sm:$0xff]
  %v4945 = vld [vmem:[#allocation2 + $0x20] sm:$0xff]
  %v4946 = vld [vmem:[#allocation2 + $0x28] sm:$0xff]
  %v4947 = vld [vmem:[#allocation2 + $0x30] sm:$0xff]
  %v4948 = vld [vmem:[#allocation2 + $0x38] sm:$0xff]
  %v4949 = vld [vmem:[#allocation2 + $0x40] sm:$0xff]
  %v4950 = vld [vmem:[#allocation2 + $0x48] sm:$0xff]
  %v4951 = vld [vmem:[#allocation2 + $0x50] sm:$0xff]
  %v4952 = vld [vmem:[#allocation2 + $0x58] sm:$0xff]
  %v4953 = vld [vmem:[#allocation2 + $0x60] sm:$0xff]
  %v4954 = vld [vmem:[#allocation2 + $0x70] sm:$0xff]
  %v4955 = vld [vmem:[#allocation2 + $0x78] sm:$0xff]
  %v4956 = vld [vmem:[#allocation2 + $0x80] sm:$0xff]
  %v4957 = vld [vmem:[#allocation2 + $0x88] sm:$0xff]
  %v4958 = vld [vmem:[#allocation2 + $0x90] sm:$0xff]
  %v4959 = vld [vmem:[#allocation2 + $0x98] sm:$0xff]
  %v4960 = vld [vmem:[#allocation2 + $0xa0] sm:$0xff]
  %v4961 = vld [vmem:[#allocation2 + $0xa8] sm:$0xff]
  %v4962 = vld [vmem:[#allocation2 + $0xb0] sm:$0xff]
  %v4963 = vld [vmem:[#allocation2 + $0xb8] sm:$0xff]
  %v4964 = vld [vmem:[#allocation2 + $0xc0] sm:$0xff]
  %v4965 = vld [vmem:[#allocation2 + $0xc8] sm:$0xff]
  %v4966 = vld [vmem:[#allocation2 + $0xd0] sm:$0xff]
  %s4967 = scalar_lea.vmem %s4, 16
  %v4968 = vld [vmem:[%s4967] sm:$0xf]
  %v4969 = vld [vmem:[%s4967 + $0x4] sm:$0xf]
  %v4970 = vld [vmem:[%s4967 + $0x8] sm:$0xf]
  %v4971 = vld [vmem:[%s4967 + $0xc] sm:$0xf]
  %v4972 = vld [vmem:[#allocation2 + $0x8] sm:$0xff]
  %v4973 = vld [vmem:[#allocation2 + $0x10] sm:$0xff]
  %v4974 = vld [vmem:[#allocation2 + $0x18] sm:$0xff]
  %v4975 = vld [vmem:[#allocation2 + $0x20] sm:$0xff]
  %v4976 = vld [vmem:[#allocation2 + $0x28] sm:$0xff]
  %v4977 = vld [vmem:[#allocation2 + $0x30] sm:$0xff]
  %v4978 = vld [vmem:[#allocation2 + $0x38] sm:$0xff]
  %v4979 = vld [vmem:[#allocation2 + $0x40] sm:$0xff]
  %v4980 = vld [vmem:[#allocation2 + $0x48] sm:$0xff]
  %v4981 = vld [vmem:[#allocation2 + $0x50] sm:$0xff]
  %v4982 = vld [vmem:[#allocation2 + $0x58] sm:$0xff]
  %v4983 = vld [vmem:[#allocation2 + $0x60] sm:$0xff]
  %v4984 = vld [vmem:[#allocation2 + $0x68] sm:$0xff]
  %v4985 = vld [vmem:[#allocation2 + $0x78] sm:$0xff]
  %v4986 = vld [vmem:[#allocation2 + $0x80] sm:$0xff]
  %v4987 = vld [vmem:[#allocation2 + $0x88] sm:$0xff]
  %v4988 = vld [vmem:[#allocation2 + $0x90] sm:$0xff]
  %v4989 = vld [vmem:[#allocation2 + $0x98] sm:$0xff]
  %v4990 = vld [vmem:[#allocation2 + $0xa0] sm:$0xff]
  %v4991 = vld [vmem:[#allocation2 + $0xa8] sm:$0xff]
  %v4992 = vld [vmem:[#allocation2 + $0xb0] sm:$0xff]
  %v4993 = vld [vmem:[#allocation2 + $0xb8] sm:$0xff]
  %v4994 = vld [vmem:[#allocation2 + $0xc0] sm:$0xff]
  %v4995 = vld [vmem:[#allocation2 + $0xc8] sm:$0xff]
  %v4996 = vld [vmem:[#allocation2 + $0xd0] sm:$0xff]
  %v4997 = vld [vmem:[#allocation2 + $0xd8] sm:$0xff]
  %v5002 = vunpack.c.l.b16 %v4968
  %v5003 = vunpack.c.l.b16 %v4969
  %v5004 = vunpack.c.l.b16 %v4970
  %v5005 = vunpack.c.l.b16 %v4971
  %v5006 = vpack.c.b16 %v5003, %v5002
  %v5007 = vpack.c.b16 %v5005, %v5004
  %vm5008 = vcmask 261120
  %v5010 = vsel %vm5008, %v5006, 0
  %v5013 = vsel %vm5008, %v5007, 0
  %5015 = vmatprep.subr.bf16.mxu0 %v4973
  %5016 = vmatpush1.bf16.msra.mxu0 %v4972
  %5017 = vmatprep.subr.bf16.mxu0 %v4986
  %5018 = vmatpush1.bf16.msra.mxu0 %v4985
  %5019 = vmatprep.subr.bf16.mxu0 0
  %5020 = vmatpush1.bf16.msra.mxu0 0
  %5021 = vmatprep.subr.bf16.mxu0 0
  %5022 = vmatpush1.bf16.msra.mxu0 0
  %5023 = vmatprep.subr.bf16.mxu0 0
  %5024 = vmatpush1.bf16.msra.mxu0 0
  %5025 = vmatprep.subr.bf16.mxu0 0
  %5026 = vmatpush1.bf16.msra.mxu0 0
  %5027 = vmatprep.subr.bf16.mxu0 0
  %5028 = vmatpush1.bf16.msra.mxu0 0
  %5029 = vmatprep.subr.bf16.mxu0 0
  %5030 = vmatpush1.bf16.msra.mxu0 0
  %5031 = vmatprep.subr.bf16.mxu0 0
  %5032 = vmatpush1.bf16.msra.mxu0 0
  %5033 = vmatprep.subr.bf16.mxu0 0
  %5034 = vmatpush1.bf16.msra.mxu0 0
  %5035 = vmatprep.subr.bf16.mxu0 0
  %5036 = vmatpush1.bf16.msra.mxu0 0
  %5037 = vmatprep.subr.bf16.mxu0 0
  %5038 = vmatpush1.bf16.msra.mxu0 0
  %5039 = vmatprep.subr.bf16.mxu0 0
  %5040 = vmatpush1.bf16.msra.mxu0 0
  %5041 = vmatprep.subr.bf16.mxu0 0
  %5042 = vmatpush1.bf16.msra.mxu0 0
  %5043 = vmatprep.subr.bf16.mxu0 0
  %5044 = vmatpush1.bf16.msra.mxu0 0
  %5045 = vmatprep.subr.bf16.mxu0 0
  %5046 = vmatpush1.bf16.msra.mxu0 0
  %5047 = vmatprep.mubr.bf16.mxu0 0
  %5048 = vmatmul.mubr.bf16.gmra.mrb[0].mxu0 %v5010
  %v5049 = vpop.f32.mrb[0].mxu0
  %v5050 = vadd.f32 0.0, %v5049
  %v5051 = vpop.f32.mrb[0].mxu0
  %v5052 = vadd.f32 0.0, %v5051
  %v5053 = vpop.f32.mrb[0].mxu0
  %v5054 = vadd.f32 0.0, %v5053
  %v5055 = vpop.f32.mrb[0].mxu0
  %v5056 = vadd.f32 0.0, %v5055
  %5057 = vmatprep.mubr.bf16.mxu0 0
  %5058 = vmatmul.mubr.bf16.gmra.mrb[0].mxu0 %v5013
  %v5059 = vpop.f32.mrb[0].mxu0
  %v5060 = vadd.f32 0.0, %v5059
  %v5061 = vpop.f32.mrb[0].mxu0
  %v5062 = vadd.f32 0.0, %v5061
  %v5063 = vpop.f32.mrb[0].mxu0
  %v5064 = vadd.f32 0.0, %v5063
  %v5065 = vpop.f32.mrb[0].mxu0
  %v5066 = vadd.f32 0.0, %v5065
  %5067 = vdwg.mxu0
  %5068 = vmatprep.subr.bf16.mxu0 %v4975
  %5069 = vmatpush1.bf16.msra.mxu0 %v4974
  %5070 = vmatprep.subr.bf16.mxu0 %v4988
  %5071 = vmatpush1.bf16.msra.mxu0 %v4987
  %5072 = vmatprep.subr.bf16.mxu0 0
  %5073 = vmatpush1.bf16.msra.mxu0 0
  %5074 = vmatprep.subr.bf16.mxu0 0
  %5075 = vmatpush1.bf16.msra.mxu0 0
  %5076 = vmatprep.subr.bf16.mxu0 0
  %5077 = vmatpush1.bf16.msra.mxu0 0
  %5078 = vmatprep.subr.bf16.mxu0 0
  %5079 = vmatpush1.bf16.msra.mxu0 0
  %5080 = vmatprep.subr.bf16.mxu0 0
  %5081 = vmatpush1.bf16.msra.mxu0 0
  %5082 = vmatprep.subr.bf16.mxu0 0
  %5083 = vmatpush1.bf16.msra.mxu0 0
  %5084 = vmatprep.subr.bf16.mxu0 0
  %5085 = vmatpush1.bf16.msra.mxu0 0
  %5086 = vmatprep.subr.bf16.mxu0 0
  %5087 = vmatpush1.bf16.msra.mxu0 0
  %5088 = vmatprep.subr.bf16.mxu0 0
  %5089 = vmatpush1.bf16.msra.mxu0 0
  %5090 = vmatprep.subr.bf16.mxu0 0
  %5091 = vmatpush1.bf16.msra.mxu0 0
  %5092 = vmatprep.subr.bf16.mxu0 0
  %5093 = vmatpush1.bf16.msra.mxu0 0
  %5094 = vmatprep.subr.bf16.mxu0 0
  %5095 = vmatpush1.bf16.msra.mxu0 0
  %5096 = vmatprep.subr.bf16.mxu0 0
  %5097 = vmatpush1.bf16.msra.mxu0 0
  %5098 = vmatprep.subr.bf16.mxu0 0
  %5099 = vmatpush1.bf16.msra.mxu0 0
  %5100 = vmatprep.mubr.bf16.mxu0 0
  %5101 = vmatmul.mubr.bf16.gmra.mrb[0].mxu0 %v5010
  %v5102 = vpop.f32.mrb[0].mxu0
  %v5103 = vadd.f32 0.0, %v5102
  %v5104 = vpop.f32.mrb[0].mxu0
  %v5105 = vadd.f32 0.0, %v5104
  %v5106 = vpop.f32.mrb[0].mxu0
  %v5107 = vadd.f32 0.0, %v5106
  %v5108 = vpop.f32.mrb[0].mxu0
  %v5109 = vadd.f32 0.0, %v5108
  %5110 = vmatprep.mubr.bf16.mxu0 0
  %5111 = vmatmul.mubr.bf16.gmra.mrb[0].mxu0 %v5013
  %v5112 = vpop.f32.mrb[0].mxu0
  %v5113 = vadd.f32 0.0, %v5112
  %v5114 = vpop.f32.mrb[0].mxu0
  %v5115 = vadd.f32 0.0, %v5114
  %v5116 = vpop.f32.mrb[0].mxu0
  %v5117 = vadd.f32 0.0, %v5116
  %v5118 = vpop.f32.mrb[0].mxu0
  %v5119 = vadd.f32 0.0, %v5118
  %5120 = vdwg.mxu0
  %5121 = vmatprep.subr.bf16.mxu0 %v4977
  %5122 = vmatpush1.bf16.msra.mxu0 %v4976
  %5123 = vmatprep.subr.bf16.mxu0 %v4990
  %5124 = vmatpush1.bf16.msra.mxu0 %v4989
  %5125 = vmatprep.subr.bf16.mxu0 0
  %5126 = vmatpush1.bf16.msra.mxu0 0
  %5127 = vmatprep.subr.bf16.mxu0 0
  %5128 = vmatpush1.bf16.msra.mxu0 0
  %5129 = vmatprep.subr.bf16.mxu0 0
  %5130 = vmatpush1.bf16.msra.mxu0 0
  %5131 = vmatprep.subr.bf16.mxu0 0
  %5132 = vmatpush1.bf16.msra.mxu0 0
  %5133 = vmatprep.subr.bf16.mxu0 0
  %5134 = vmatpush1.bf16.msra.mxu0 0
  %5135 = vmatprep.subr.bf16.mxu0 0
  %5136 = vmatpush1.bf16.msra.mxu0 0
  %5137 = vmatprep.subr.bf16.mxu0 0
  %5138 = vmatpush1.bf16.msra.mxu0 0
  %5139 = vmatprep.subr.bf16.mxu0 0
  %5140 = vmatpush1.bf16.msra.mxu0 0
  %5141 = vmatprep.subr.bf16.mxu0 0
  %5142 = vmatpush1.bf16.msra.mxu0 0
  %5143 = vmatprep.subr.bf16.mxu0 0
  %5144 = vmatpush1.bf16.msra.mxu0 0
  %5145 = vmatprep.subr.bf16.mxu0 0
  %5146 = vmatpush1.bf16.msra.mxu0 0
  %5147 = vmatprep.subr.bf16.mxu0 0
  %5148 = vmatpush1.bf16.msra.mxu0 0
  %5149 = vmatprep.subr.bf16.mxu0 0
  %5150 = vmatpush1.bf16.msra.mxu0 0
  %5151 = vmatprep.subr.bf16.mxu0 0
  %5152 = vmatpush1.bf16.msra.mxu0 0
  %5153 = vmatprep.mubr.bf16.mxu0 0
  %5154 = vmatmul.mubr.bf16.gmra.mrb[0].mxu0 %v5010
  %v5155 = vpop.f32.mrb[0].mxu0
  %v5156 = vadd.f32 0.0, %v5155
  %v5157 = vpop.f32.mrb[0].mxu0
  %v5158 = vadd.f32 0.0, %v5157
  %v5159 = vpop.f32.mrb[0].mxu0
  %v5160 = vadd.f32 0.0, %v5159
  %v5161 = vpop.f32.mrb[0].mxu0
  %v5162 = vadd.f32 0.0, %v5161
  %5163 = vmatprep.mubr.bf16.mxu0 0
  %5164 = vmatmul.mubr.bf16.gmra.mrb[0].mxu0 %v5013
  %v5165 = vpop.f32.mrb[0].mxu0
  %v5166 = vadd.f32 0.0, %v5165
  %v5167 = vpop.f32.mrb[0].mxu0
  %v5168 = vadd.f32 0.0, %v5167
  %v5169 = vpop.f32.mrb[0].mxu0
  %v5170 = vadd.f32 0.0, %v5169
  %v5171 = vpop.f32.mrb[0].mxu0
  %v5172 = vadd.f32 0.0, %v5171
  %5173 = vdwg.mxu0
  %5174 = vmatprep.subr.bf16.mxu0 %v4979
  %5175 = vmatpush1.bf16.msra.mxu0 %v4978
  %5176 = vmatprep.subr.bf16.mxu0 %v4992
  %5177 = vmatpush1.bf16.msra.mxu0 %v4991
  %5178 = vmatprep.subr.bf16.mxu0 0
  %5179 = vmatpush1.bf16.msra.mxu0 0
  %5180 = vmatprep.subr.bf16.mxu0 0
  %5181 = vmatpush1.bf16.msra.mxu0 0
  %5182 = vmatprep.subr.bf16.mxu0 0
  %5183 = vmatpush1.bf16.msra.mxu0 0
  %5184 = vmatprep.subr.bf16.mxu0 0
  %5185 = vmatpush1.bf16.msra.mxu0 0
  %5186 = vmatprep.subr.bf16.mxu0 0
  %5187 = vmatpush1.bf16.msra.mxu0 0
  %5188 = vmatprep.subr.bf16.mxu0 0
  %5189 = vmatpush1.bf16.msra.mxu0 0
  %5190 = vmatprep.subr.bf16.mxu0 0
  %5191 = vmatpush1.bf16.msra.mxu0 0
  %5192 = vmatprep.subr.bf16.mxu0 0
  %5193 = vmatpush1.bf16.msra.mxu0 0
  %5194 = vmatprep.subr.bf16.mxu0 0
  %5195 = vmatpush1.bf16.msra.mxu0 0
  %5196 = vmatprep.subr.bf16.mxu0 0
  %5197 = vmatpush1.bf16.msra.mxu0 0
  %5198 = vmatprep.subr.bf16.mxu0 0
  %5199 = vmatpush1.bf16.msra.mxu0 0
  %5200 = vmatprep.subr.bf16.mxu0 0
  %5201 = vmatpush1.bf16.msra.mxu0 0
  %5202 = vmatprep.subr.bf16.mxu0 0
  %5203 = vmatpush1.bf16.msra.mxu0 0
  %5204 = vmatprep.subr.bf16.mxu0 0
  %5205 = vmatpush1.bf16.msra.mxu0 0
  %5206 = vmatprep.mubr.bf16.mxu0 0
  %5207 = vmatmul.mubr.bf16.gmra.mrb[0].mxu0 %v5010
  %v5208 = vpop.f32.mrb[0].mxu0
  %v5209 = vadd.f32 0.0, %v5208
  %v5210 = vpop.f32.mrb[0].mxu0
  %v5211 = vadd.f32 0.0, %v5210
  %v5212 = vpop.f32.mrb[0].mxu0
  %v5213 = vadd.f32 0.0, %v5212
  %v5214 = vpop.f32.mrb[0].mxu0
  %v5215 = vadd.f32 0.0, %v5214
  %5216 = vmatprep.mubr.bf16.mxu0 0
  %5217 = vmatmul.mubr.bf16.gmra.mrb[0].mxu0 %v5013
  %v5218 = vpop.f32.mrb[0].mxu0
  %v5219 = vadd.f32 0.0, %v5218
  %v5220 = vpop.f32.mrb[0].mxu0
  %v5221 = vadd.f32 0.0, %v5220
  %v5222 = vpop.f32.mrb[0].mxu0
  %v5223 = vadd.f32 0.0, %v5222
  %v5224 = vpop.f32.mrb[0].mxu0
  %v5225 = vadd.f32 0.0, %v5224
  %5226 = vdwg.mxu0
  %5227 = vmatprep.subr.bf16.mxu0 %v4981
  %5228 = vmatpush1.bf16.msra.mxu0 %v4980
  %5229 = vmatprep.subr.bf16.mxu0 %v4994
  %5230 = vmatpush1.bf16.msra.mxu0 %v4993
  %5231 = vmatprep.subr.bf16.mxu0 0
  %5232 = vmatpush1.bf16.msra.mxu0 0
  %5233 = vmatprep.subr.bf16.mxu0 0
  %5234 = vmatpush1.bf16.msra.mxu0 0
  %5235 = vmatprep.subr.bf16.mxu0 0
  %5236 = vmatpush1.bf16.msra.mxu0 0
  %5237 = vmatprep.subr.bf16.mxu0 0
  %5238 = vmatpush1.bf16.msra.mxu0 0
  %5239 = vmatprep.subr.bf16.mxu0 0
  %5240 = vmatpush1.bf16.msra.mxu0 0
  %5241 = vmatprep.subr.bf16.mxu0 0
  %5242 = vmatpush1.bf16.msra.mxu0 0
  %5243 = vmatprep.subr.bf16.mxu0 0
  %5244 = vmatpush1.bf16.msra.mxu0 0
  %5245 = vmatprep.subr.bf16.mxu0 0
  %5246 = vmatpush1.bf16.msra.mxu0 0
  %5247 = vmatprep.subr.bf16.mxu0 0
  %5248 = vmatpush1.bf16.msra.mxu0 0
  %5249 = vmatprep.subr.bf16.mxu0 0
  %5250 = vmatpush1.bf16.msra.mxu0 0
  %5251 = vmatprep.subr.bf16.mxu0 0
  %5252 = vmatpush1.bf16.msra.mxu0 0
  %5253 = vmatprep.subr.bf16.mxu0 0
  %5254 = vmatpush1.bf16.msra.mxu0 0
  %5255 = vmatprep.subr.bf16.mxu0 0
  %5256 = vmatpush1.bf16.msra.mxu0 0
  %5257 = vmatprep.subr.bf16.mxu0 0
  %5258 = vmatpush1.bf16.msra.mxu0 0
  %5259 = vmatprep.mubr.bf16.mxu0 0
  %5260 = vmatmul.mubr.bf16.gmra.mrb[0].mxu0 %v5010
  %v5261 = vpop.f32.mrb[0].mxu0
  %v5262 = vadd.f32 0.0, %v5261
  %v5263 = vpop.f32.mrb[0].mxu0
  %v5264 = vadd.f32 0.0, %v5263
  %v5265 = vpop.f32.mrb[0].mxu0
  %v5266 = vadd.f32 0.0, %v5265
  %v5267 = vpop.f32.mrb[0].mxu0
  %v5268 = vadd.f32 0.0, %v5267
  %5269 = vmatprep.mubr.bf16.mxu0 0
  %5270 = vmatmul.mubr.bf16.gmra.mrb[0].mxu0 %v5013
  %v5271 = vpop.f32.mrb[0].mxu0
  %v5272 = vadd.f32 0.0, %v5271
  %v5273 = vpop.f32.mrb[0].mxu0
  %v5274 = vadd.f32 0.0, %v5273
  %v5275 = vpop.f32.mrb[0].mxu0
  %v5276 = vadd.f32 0.0, %v5275
  %v5277 = vpop.f32.mrb[0].mxu0
  %v5278 = vadd.f32 0.0, %v5277
  %5279 = vdwg.mxu0
  %5280 = vmatprep.subr.bf16.mxu0 %v4983
  %5281 = vmatpush1.bf16.msra.mxu0 %v4982
  %5282 = vmatprep.subr.bf16.mxu0 %v4996
  %5283 = vmatpush1.bf16.msra.mxu0 %v4995
  %5284 = vmatprep.subr.bf16.mxu0 0
  %5285 = vmatpush1.bf16.msra.mxu0 0
  %5286 = vmatprep.subr.bf16.mxu0 0
  %5287 = vmatpush1.bf16.msra.mxu0 0
  %5288 = vmatprep.subr.bf16.mxu0 0
  %5289 = vmatpush1.bf16.msra.mxu0 0
  %5290 = vmatprep.subr.bf16.mxu0 0
  %5291 = vmatpush1.bf16.msra.mxu0 0
  %5292 = vmatprep.subr.bf16.mxu0 0
  %5293 = vmatpush1.bf16.msra.mxu0 0
  %5294 = vmatprep.subr.bf16.mxu0 0
  %5295 = vmatpush1.bf16.msra.mxu0 0
  %5296 = vmatprep.subr.bf16.mxu0 0
  %5297 = vmatpush1.bf16.msra.mxu0 0
  %5298 = vmatprep.subr.bf16.mxu0 0
  %5299 = vmatpush1.bf16.msra.mxu0 0
  %5300 = vmatprep.subr.bf16.mxu0 0
  %5301 = vmatpush1.bf16.msra.mxu0 0
  %5302 = vmatprep.subr.bf16.mxu0 0
  %5303 = vmatpush1.bf16.msra.mxu0 0
  %5304 = vmatprep.subr.bf16.mxu0 0
  %5305 = vmatpush1.bf16.msra.mxu0 0
  %5306 = vmatprep.subr.bf16.mxu0 0
  %5307 = vmatpush1.bf16.msra.mxu0 0
  %5308 = vmatprep.subr.bf16.mxu0 0
  %5309 = vmatpush1.bf16.msra.mxu0 0
  %5310 = vmatprep.subr.bf16.mxu0 0
  %5311 = vmatpush1.bf16.msra.mxu0 0
  %5312 = vmatprep.mubr.bf16.mxu0 0
  %5313 = vmatmul.mubr.bf16.gmra.mrb[0].mxu0 %v5010
  %v5314 = vpop.f32.mrb[0].mxu0
  %v5315 = vadd.f32 0.0, %v5314
  %v5316 = vpop.f32.mrb[0].mxu0
  %v5317 = vadd.f32 0.0, %v5316
  %v5318 = vpop.f32.mrb[0].mxu0
  %v5319 = vadd.f32 0.0, %v5318
  %v5320 = vpop.f32.mrb[0].mxu0
  %v5321 = vadd.f32 0.0, %v5320
  %5322 = vmatprep.mubr.bf16.mxu0 0
  %5323 = vmatmul.mubr.bf16.gmra.mrb[0].mxu0 %v5013
  %v5324 = vpop.f32.mrb[0].mxu0
  %v5325 = vadd.f32 0.0, %v5324
  %v5326 = vpop.f32.mrb[0].mxu0
  %v5327 = vadd.f32 0.0, %v5326
  %v5328 = vpop.f32.mrb[0].mxu0
  %v5329 = vadd.f32 0.0, %v5328
  %v5330 = vpop.f32.mrb[0].mxu0
  %v5331 = vadd.f32 0.0, %v5330
  %5332 = vdwg.mxu0
  %5333 = vmatprep.subr.bf16.mxu0 0
  %5334 = vmatpush1.bf16.msra.mxu0 %v4984
  %5335 = vmatprep.subr.bf16.mxu0 0
  %5336 = vmatpush1.bf16.msra.mxu0 %v4997
  %5337 = vmatprep.subr.bf16.mxu0 0
  %5338 = vmatpush1.bf16.msra.mxu0 0
  %5339 = vmatprep.subr.bf16.mxu0 0
  %5340 = vmatpush1.bf16.msra.mxu0 0
  %5341 = vmatprep.subr.bf16.mxu0 0
  %5342 = vmatpush1.bf16.msra.mxu0 0
  %5343 = vmatprep.subr.bf16.mxu0 0
  %5344 = vmatpush1.bf16.msra.mxu0 0
  %5345 = vmatprep.subr.bf16.mxu0 0
  %5346 = vmatpush1.bf16.msra.mxu0 0
  %5347 = vmatprep.subr.bf16.mxu0 0
  %5348 = vmatpush1.bf16.msra.mxu0 0
  %5349 = vmatprep.subr.bf16.mxu0 0
  %5350 = vmatpush1.bf16.msra.mxu0 0
  %5351 = vmatprep.subr.bf16.mxu0 0
  %5352 = vmatpush1.bf16.msra.mxu0 0
  %5353 = vmatprep.subr.bf16.mxu0 0
  %5354 = vmatpush1.bf16.msra.mxu0 0
  %5355 = vmatprep.subr.bf16.mxu0 0
  %5356 = vmatpush1.bf16.msra.mxu0 0
  %5357 = vmatprep.subr.bf16.mxu0 0
  %5358 = vmatpush1.bf16.msra.mxu0 0
  %5359 = vmatprep.subr.bf16.mxu0 0
  %5360 = vmatpush1.bf16.msra.mxu0 0
  %5361 = vmatprep.subr.bf16.mxu0 0
  %5362 = vmatpush1.bf16.msra.mxu0 0
  %5363 = vmatprep.subr.bf16.mxu0 0
  %5364 = vmatpush1.bf16.msra.mxu0 0
  %5365 = vmatprep.mubr.bf16.mxu0 0
  %5366 = vmatmul.mubr.bf16.gmra.mrb[0].mxu0 %v5010
  %v5367 = vpop.f32.mrb[0].mxu0
  %v5368 = vadd.f32 0.0, %v5367
  %v5369 = vpop.f32.mrb[0].mxu0
  %v5370 = vpop.f32.mrb[0].mxu0
  %v5371 = vadd.f32 0.0, %v5370
  %v5372 = vpop.f32.mrb[0].mxu0
  %5373 = vmatprep.mubr.bf16.mxu0 0
  %5374 = vmatmul.mubr.bf16.gmra.mrb[0].mxu0 %v5013
  %v5375 = vpop.f32.mrb[0].mxu0
  %v5376 = vadd.f32 0.0, %v5375
  %v5377 = vpop.f32.mrb[0].mxu0
  %v5378 = vpop.f32.mrb[0].mxu0
  %v5379 = vadd.f32 0.0, %v5378
  %v5380 = vpop.f32.mrb[0].mxu0
  %5381 = vdwg.mxu0
  %v5386 = vunpack.c.l.b16 %v4937
  %v5387 = vunpack.c.l.b16 %v4938
  %v5388 = vunpack.c.l.b16 %v4939
  %v5389 = vunpack.c.l.b16 %v4940
  %v5390 = vpack.c.b16 %v5387, %v5386
  %v5391 = vpack.c.b16 %v5389, %v5388
  %v5393 = vsel %vm5008, %v5390, 0
  %v5396 = vsel %vm5008, %v5391, 0
  %5398 = vmatprep.subr.bf16.mxu0 %v4942
  %5399 = vmatpush1.bf16.msra.mxu0 %v4941
  %5400 = vmatprep.subr.bf16.mxu0 %v4955
  %5401 = vmatpush1.bf16.msra.mxu0 %v4954
  %5402 = vmatprep.subr.bf16.mxu0 0
  %5403 = vmatpush1.bf16.msra.mxu0 0
  %5404 = vmatprep.subr.bf16.mxu0 0
  %5405 = vmatpush1.bf16.msra.mxu0 0
  %5406 = vmatprep.subr.bf16.mxu0 0
  %5407 = vmatpush1.bf16.msra.mxu0 0
  %5408 = vmatprep.subr.bf16.mxu0 0
  %5409 = vmatpush1.bf16.msra.mxu0 0
  %5410 = vmatprep.subr.bf16.mxu0 0
  %5411 = vmatpush1.bf16.msra.mxu0 0
  %5412 = vmatprep.subr.bf16.mxu0 0
  %5413 = vmatpush1.bf16.msra.mxu0 0
  %5414 = vmatprep.subr.bf16.mxu0 0
  %5415 = vmatpush1.bf16.msra.mxu0 0
  %5416 = vmatprep.subr.bf16.mxu0 0
  %5417 = vmatpush1.bf16.msra.mxu0 0
  %5418 = vmatprep.subr.bf16.mxu0 0
  %5419 = vmatpush1.bf16.msra.mxu0 0
  %5420 = vmatprep.subr.bf16.mxu0 0
  %5421 = vmatpush1.bf16.msra.mxu0 0
  %5422 = vmatprep.subr.bf16.mxu0 0
  %5423 = vmatpush1.bf16.msra.mxu0 0
  %5424 = vmatprep.subr.bf16.mxu0 0
  %5425 = vmatpush1.bf16.msra.mxu0 0
  %5426 = vmatprep.subr.bf16.mxu0 0
  %5427 = vmatpush1.bf16.msra.mxu0 0
  %5428 = vmatprep.subr.bf16.mxu0 0
  %5429 = vmatpush1.bf16.msra.mxu0 0
  %5430 = vmatprep.mubr.bf16.mxu0 0
  %5431 = vmatmul.mubr.bf16.gmra.mrb[0].mxu0 %v5393
  %v5432 = vpop.f32.mrb[0].mxu0
  %v5433 = vadd.f32 %v5050, %v5432
  %v5434 = vpop.f32.mrb[0].mxu0
  %v5435 = vadd.f32 %v5052, %v5434
  %v5436 = vpop.f32.mrb[0].mxu0
  %v5437 = vadd.f32 %v5054, %v5436
  %v5438 = vpop.f32.mrb[0].mxu0
  %v5439 = vadd.f32 %v5056, %v5438
  %5440 = vmatprep.mubr.bf16.mxu0 0
  %5441 = vmatmul.mubr.bf16.gmra.mrb[0].mxu0 %v5396
  %v5442 = vpop.f32.mrb[0].mxu0
  %v5443 = vadd.f32 %v5060, %v5442
  %v5444 = vpop.f32.mrb[0].mxu0
  %v5445 = vadd.f32 %v5062, %v5444
  %v5446 = vpop.f32.mrb[0].mxu0
  %v5447 = vadd.f32 %v5064, %v5446
  %v5448 = vpop.f32.mrb[0].mxu0
  %v5449 = vadd.f32 %v5066, %v5448
  %5450 = vdwg.mxu0
  %5451 = vmatprep.subr.bf16.mxu0 %v4944
  %5452 = vmatpush1.bf16.msra.mxu0 %v4943
  %5453 = vmatprep.subr.bf16.mxu0 %v4957
  %5454 = vmatpush1.bf16.msra.mxu0 %v4956
  %5455 = vmatprep.subr.bf16.mxu0 0
  %5456 = vmatpush1.bf16.msra.mxu0 0
  %5457 = vmatprep.subr.bf16.mxu0 0
  %5458 = vmatpush1.bf16.msra.mxu0 0
  %5459 = vmatprep.subr.bf16.mxu0 0
  %5460 = vmatpush1.bf16.msra.mxu0 0
  %5461 = vmatprep.subr.bf16.mxu0 0
  %5462 = vmatpush1.bf16.msra.mxu0 0
  %5463 = vmatprep.subr.bf16.mxu0 0
  %5464 = vmatpush1.bf16.msra.mxu0 0
  %5465 = vmatprep.subr.bf16.mxu0 0
  %5466 = vmatpush1.bf16.msra.mxu0 0
  %5467 = vmatprep.subr.bf16.mxu0 0
  %5468 = vmatpush1.bf16.msra.mxu0 0
  %5469 = vmatprep.subr.bf16.mxu0 0
  %5470 = vmatpush1.bf16.msra.mxu0 0
  %5471 = vmatprep.subr.bf16.mxu0 0
  %5472 = vmatpush1.bf16.msra.mxu0 0
  %5473 = vmatprep.subr.bf16.mxu0 0
  %5474 = vmatpush1.bf16.msra.mxu0 0
  %5475 = vmatprep.subr.bf16.mxu0 0
  %5476 = vmatpush1.bf16.msra.mxu0 0
  %5477 = vmatprep.subr.bf16.mxu0 0
  %5478 = vmatpush1.bf16.msra.mxu0 0
  %5479 = vmatprep.subr.bf16.mxu0 0
  %5480 = vmatpush1.bf16.msra.mxu0 0
  %5481 = vmatprep.subr.bf16.mxu0 0
  %5482 = vmatpush1.bf16.msra.mxu0 0
  %5483 = vmatprep.mubr.bf16.mxu0 0
  %5484 = vmatmul.mubr.bf16.gmra.mrb[0].mxu0 %v5393
  %v5485 = vpop.f32.mrb[0].mxu0
  %v5486 = vadd.f32 %v5103, %v5485
  %v5487 = vpop.f32.mrb[0].mxu0
  %v5488 = vadd.f32 %v5105, %v5487
  %v5489 = vpop.f32.mrb[0].mxu0
  %v5490 = vadd.f32 %v5107, %v5489
  %v5491 = vpop.f32.mrb[0].mxu0
  %v5492 = vadd.f32 %v5109, %v5491
  %5493 = vmatprep.mubr.bf16.mxu0 0
  %5494 = vmatmul.mubr.bf16.gmra.mrb[0].mxu0 %v5396
  %v5495 = vpop.f32.mrb[0].mxu0
  %v5496 = vadd.f32 %v5113, %v5495
  %v5497 = vpop.f32.mrb[0].mxu0
  %v5498 = vadd.f32 %v5115, %v5497
  %v5499 = vpop.f32.mrb[0].mxu0
  %v5500 = vadd.f32 %v5117, %v5499
  %v5501 = vpop.f32.mrb[0].mxu0
  %v5502 = vadd.f32 %v5119, %v5501
  %5503 = vdwg.mxu0
  %5504 = vmatprep.subr.bf16.mxu0 %v4946
  %5505 = vmatpush1.bf16.msra.mxu0 %v4945
  %5506 = vmatprep.subr.bf16.mxu0 %v4959
  %5507 = vmatpush1.bf16.msra.mxu0 %v4958
  %5508 = vmatprep.subr.bf16.mxu0 0
  %5509 = vmatpush1.bf16.msra.mxu0 0
  %5510 = vmatprep.subr.bf16.mxu0 0
  %5511 = vmatpush1.bf16.msra.mxu0 0
  %5512 = vmatprep.subr.bf16.mxu0 0
  %5513 = vmatpush1.bf16.msra.mxu0 0
  %5514 = vmatprep.subr.bf16.mxu0 0
  %5515 = vmatpush1.bf16.msra.mxu0 0
  %5516 = vmatprep.subr.bf16.mxu0 0
  %5517 = vmatpush1.bf16.msra.mxu0 0
  %5518 = vmatprep.subr.bf16.mxu0 0
  %5519 = vmatpush1.bf16.msra.mxu0 0
  %5520 = vmatprep.subr.bf16.mxu0 0
  %5521 = vmatpush1.bf16.msra.mxu0 0
  %5522 = vmatprep.subr.bf16.mxu0 0
  %5523 = vmatpush1.bf16.msra.mxu0 0
  %5524 = vmatprep.subr.bf16.mxu0 0
  %5525 = vmatpush1.bf16.msra.mxu0 0
  %5526 = vmatprep.subr.bf16.mxu0 0
  %5527 = vmatpush1.bf16.msra.mxu0 0
  %5528 = vmatprep.subr.bf16.mxu0 0
  %5529 = vmatpush1.bf16.msra.mxu0 0
  %5530 = vmatprep.subr.bf16.mxu0 0
  %5531 = vmatpush1.bf16.msra.mxu0 0
  %5532 = vmatprep.subr.bf16.mxu0 0
  %5533 = vmatpush1.bf16.msra.mxu0 0
  %5534 = vmatprep.subr.bf16.mxu0 0
  %5535 = vmatpush1.bf16.msra.mxu0 0
  %5536 = vmatprep.mubr.bf16.mxu0 0
  %5537 = vmatmul.mubr.bf16.gmra.mrb[0].mxu0 %v5393
  %v5538 = vpop.f32.mrb[0].mxu0
  %v5539 = vadd.f32 %v5156, %v5538
  %v5540 = vpop.f32.mrb[0].mxu0
  %v5541 = vadd.f32 %v5158, %v5540
  %v5542 = vpop.f32.mrb[0].mxu0
  %v5543 = vadd.f32 %v5160, %v5542
  %v5544 = vpop.f32.mrb[0].mxu0
  %v5545 = vadd.f32 %v5162, %v5544
  %5546 = vmatprep.mubr.bf16.mxu0 0
  %5547 = vmatmul.mubr.bf16.gmra.mrb[0].mxu0 %v5396
  %v5548 = vpop.f32.mrb[0].mxu0
  %v5549 = vadd.f32 %v5166, %v5548
  %v5550 = vpop.f32.mrb[0].mxu0
  %v5551 = vadd.f32 %v5168, %v5550
  %v5552 = vpop.f32.mrb[0].mxu0
  %v5553 = vadd.f32 %v5170, %v5552
  %v5554 = vpop.f32.mrb[0].mxu0
  %v5555 = vadd.f32 %v5172, %v5554
  %5556 = vdwg.mxu0
  %5557 = vmatprep.subr.bf16.mxu0 %v4948
  %5558 = vmatpush1.bf16.msra.mxu0 %v4947
  %5559 = vmatprep.subr.bf16.mxu0 %v4961
  %5560 = vmatpush1.bf16.msra.mxu0 %v4960
  %5561 = vmatprep.subr.bf16.mxu0 0
  %5562 = vmatpush1.bf16.msra.mxu0 0
  %5563 = vmatprep.subr.bf16.mxu0 0
  %5564 = vmatpush1.bf16.msra.mxu0 0
  %5565 = vmatprep.subr.bf16.mxu0 0
  %5566 = vmatpush1.bf16.msra.mxu0 0
  %5567 = vmatprep.subr.bf16.mxu0 0
  %5568 = vmatpush1.bf16.msra.mxu0 0
  %5569 = vmatprep.subr.bf16.mxu0 0
  %5570 = vmatpush1.bf16.msra.mxu0 0
  %5571 = vmatprep.subr.bf16.mxu0 0
  %5572 = vmatpush1.bf16.msra.mxu0 0
  %5573 = vmatprep.subr.bf16.mxu0 0
  %5574 = vmatpush1.bf16.msra.mxu0 0
  %5575 = vmatprep.subr.bf16.mxu0 0
  %5576 = vmatpush1.bf16.msra.mxu0 0
  %5577 = vmatprep.subr.bf16.mxu0 0
  %5578 = vmatpush1.bf16.msra.mxu0 0
  %5579 = vmatprep.subr.bf16.mxu0 0
  %5580 = vmatpush1.bf16.msra.mxu0 0
  %5581 = vmatprep.subr.bf16.mxu0 0
  %5582 = vmatpush1.bf16.msra.mxu0 0
  %5583 = vmatprep.subr.bf16.mxu0 0
  %5584 = vmatpush1.bf16.msra.mxu0 0
  %5585 = vmatprep.subr.bf16.mxu0 0
  %5586 = vmatpush1.bf16.msra.mxu0 0
  %5587 = vmatprep.subr.bf16.mxu0 0
  %5588 = vmatpush1.bf16.msra.mxu0 0
  %5589 = vmatprep.mubr.bf16.mxu0 0
  %5590 = vmatmul.mubr.bf16.gmra.mrb[0].mxu0 %v5393
  %v5591 = vpop.f32.mrb[0].mxu0
  %v5592 = vadd.f32 %v5209, %v5591
  %v5593 = vpop.f32.mrb[0].mxu0
  %v5594 = vadd.f32 %v5211, %v5593
  %v5595 = vpop.f32.mrb[0].mxu0
  %v5596 = vadd.f32 %v5213, %v5595
  %v5597 = vpop.f32.mrb[0].mxu0
  %v5598 = vadd.f32 %v5215, %v5597
  %5599 = vmatprep.mubr.bf16.mxu0 0
  %5600 = vmatmul.mubr.bf16.gmra.mrb[0].mxu0 %v5396
  %v5601 = vpop.f32.mrb[0].mxu0
  %v5602 = vadd.f32 %v5219, %v5601
  %v5603 = vpop.f32.mrb[0].mxu0
  %v5604 = vadd.f32 %v5221, %v5603
  %v5605 = vpop.f32.mrb[0].mxu0
  %v5606 = vadd.f32 %v5223, %v5605
  %v5607 = vpop.f32.mrb[0].mxu0
  %v5608 = vadd.f32 %v5225, %v5607
  %5609 = vdwg.mxu0
  %5610 = vmatprep.subr.bf16.mxu0 %v4950
  %5611 = vmatpush1.bf16.msra.mxu0 %v4949
  %5612 = vmatprep.subr.bf16.mxu0 %v4963
  %5613 = vmatpush1.bf16.msra.mxu0 %v4962
  %5614 = vmatprep.subr.bf16.mxu0 0
  %5615 = vmatpush1.bf16.msra.mxu0 0
  %5616 = vmatprep.subr.bf16.mxu0 0
  %5617 = vmatpush1.bf16.msra.mxu0 0
  %5618 = vmatprep.subr.bf16.mxu0 0
  %5619 = vmatpush1.bf16.msra.mxu0 0
  %5620 = vmatprep.subr.bf16.mxu0 0
  %5621 = vmatpush1.bf16.msra.mxu0 0
  %5622 = vmatprep.subr.bf16.mxu0 0
  %5623 = vmatpush1.bf16.msra.mxu0 0
  %5624 = vmatprep.subr.bf16.mxu0 0
  %5625 = vmatpush1.bf16.msra.mxu0 0
  %5626 = vmatprep.subr.bf16.mxu0 0
  %5627 = vmatpush1.bf16.msra.mxu0 0
  %5628 = vmatprep.subr.bf16.mxu0 0
  %5629 = vmatpush1.bf16.msra.mxu0 0
  %5630 = vmatprep.subr.bf16.mxu0 0
  %5631 = vmatpush1.bf16.msra.mxu0 0
  %5632 = vmatprep.subr.bf16.mxu0 0
  %5633 = vmatpush1.bf16.msra.mxu0 0
  %5634 = vmatprep.subr.bf16.mxu0 0
  %5635 = vmatpush1.bf16.msra.mxu0 0
  %5636 = vmatprep.subr.bf16.mxu0 0
  %5637 = vmatpush1.bf16.msra.mxu0 0
  %5638 = vmatprep.subr.bf16.mxu0 0
  %5639 = vmatpush1.bf16.msra.mxu0 0
  %5640 = vmatprep.subr.bf16.mxu0 0
  %5641 = vmatpush1.bf16.msra.mxu0 0
  %5642 = vmatprep.mubr.bf16.mxu0 0
  %5643 = vmatmul.mubr.bf16.gmra.mrb[0].mxu0 %v5393
  %v5644 = vpop.f32.mrb[0].mxu0
  %v5645 = vadd.f32 %v5262, %v5644
  %v5646 = vpop.f32.mrb[0].mxu0
  %v5647 = vadd.f32 %v5264, %v5646
  %v5648 = vpop.f32.mrb[0].mxu0
  %v5649 = vadd.f32 %v5266, %v5648
  %v5650 = vpop.f32.mrb[0].mxu0
  %v5651 = vadd.f32 %v5268, %v5650
  %5652 = vmatprep.mubr.bf16.mxu0 0
  %5653 = vmatmul.mubr.bf16.gmra.mrb[0].mxu0 %v5396
  %v5654 = vpop.f32.mrb[0].mxu0
  %v5655 = vadd.f32 %v5272, %v5654
  %v5656 = vpop.f32.mrb[0].mxu0
  %v5657 = vadd.f32 %v5274, %v5656
  %v5658 = vpop.f32.mrb[0].mxu0
  %v5659 = vadd.f32 %v5276, %v5658
  %v5660 = vpop.f32.mrb[0].mxu0
  %v5661 = vadd.f32 %v5278, %v5660
  %5662 = vdwg.mxu0
  %5663 = vmatprep.subr.bf16.mxu0 %v4952
  %5664 = vmatpush1.bf16.msra.mxu0 %v4951
  %5665 = vmatprep.subr.bf16.mxu0 %v4965
  %5666 = vmatpush1.bf16.msra.mxu0 %v4964
  %5667 = vmatprep.subr.bf16.mxu0 0
  %5668 = vmatpush1.bf16.msra.mxu0 0
  %5669 = vmatprep.subr.bf16.mxu0 0
  %5670 = vmatpush1.bf16.msra.mxu0 0
  %5671 = vmatprep.subr.bf16.mxu0 0
  %5672 = vmatpush1.bf16.msra.mxu0 0
  %5673 = vmatprep.subr.bf16.mxu0 0
  %5674 = vmatpush1.bf16.msra.mxu0 0
  %5675 = vmatprep.subr.bf16.mxu0 0
  %5676 = vmatpush1.bf16.msra.mxu0 0
  %5677 = vmatprep.subr.bf16.mxu0 0
  %5678 = vmatpush1.bf16.msra.mxu0 0
  %5679 = vmatprep.subr.bf16.mxu0 0
  %5680 = vmatpush1.bf16.msra.mxu0 0
  %5681 = vmatprep.subr.bf16.mxu0 0
  %5682 = vmatpush1.bf16.msra.mxu0 0
  %5683 = vmatprep.subr.bf16.mxu0 0
  %5684 = vmatpush1.bf16.msra.mxu0 0
  %5685 = vmatprep.subr.bf16.mxu0 0
  %5686 = vmatpush1.bf16.msra.mxu0 0
  %5687 = vmatprep.subr.bf16.mxu0 0
  %5688 = vmatpush1.bf16.msra.mxu0 0
  %5689 = vmatprep.subr.bf16.mxu0 0
  %5690 = vmatpush1.bf16.msra.mxu0 0
  %5691 = vmatprep.subr.bf16.mxu0 0
  %5692 = vmatpush1.bf16.msra.mxu0 0
  %5693 = vmatprep.subr.bf16.mxu0 0
  %5694 = vmatpush1.bf16.msra.mxu0 0
  %5695 = vmatprep.mubr.bf16.mxu0 0
  %5696 = vmatmul.mubr.bf16.gmra.mrb[0].mxu0 %v5393
  %v5697 = vpop.f32.mrb[0].mxu0
  %v5698 = vadd.f32 %v5315, %v5697
  %v5699 = vpop.f32.mrb[0].mxu0
  %v5700 = vadd.f32 %v5317, %v5699
  %v5701 = vpop.f32.mrb[0].mxu0
  %v5702 = vadd.f32 %v5319, %v5701
  %v5703 = vpop.f32.mrb[0].mxu0
  %v5704 = vadd.f32 %v5321, %v5703
  %5705 = vmatprep.mubr.bf16.mxu0 0
  %5706 = vmatmul.mubr.bf16.gmra.mrb[0].mxu0 %v5396
  %v5707 = vpop.f32.mrb[0].mxu0
  %v5708 = vadd.f32 %v5325, %v5707
  %v5709 = vpop.f32.mrb[0].mxu0
  %v5710 = vadd.f32 %v5327, %v5709
  %v5711 = vpop.f32.mrb[0].mxu0
  %v5712 = vadd.f32 %v5329, %v5711
  %v5713 = vpop.f32.mrb[0].mxu0
  %v5714 = vadd.f32 %v5331, %v5713
  %5715 = vdwg.mxu0
  %5716 = vmatprep.subr.bf16.mxu0 0
  %5717 = vmatpush1.bf16.msra.mxu0 %v4953
  %5718 = vmatprep.subr.bf16.mxu0 0
  %5719 = vmatpush1.bf16.msra.mxu0 %v4966
  %5720 = vmatprep.subr.bf16.mxu0 0
  %5721 = vmatpush1.bf16.msra.mxu0 0
  %5722 = vmatprep.subr.bf16.mxu0 0
  %5723 = vmatpush1.bf16.msra.mxu0 0
  %5724 = vmatprep.subr.bf16.mxu0 0
  %5725 = vmatpush1.bf16.msra.mxu0 0
  %5726 = vmatprep.subr.bf16.mxu0 0
  %5727 = vmatpush1.bf16.msra.mxu0 0
  %5728 = vmatprep.subr.bf16.mxu0 0
  %5729 = vmatpush1.bf16.msra.mxu0 0
  %5730 = vmatprep.subr.bf16.mxu0 0
  %5731 = vmatpush1.bf16.msra.mxu0 0
  %5732 = vmatprep.subr.bf16.mxu0 0
  %5733 = vmatpush1.bf16.msra.mxu0 0
  %5734 = vmatprep.subr.bf16.mxu0 0
  %5735 = vmatpush1.bf16.msra.mxu0 0
  %5736 = vmatprep.subr.bf16.mxu0 0
  %5737 = vmatpush1.bf16.msra.mxu0 0
  %5738 = vmatprep.subr.bf16.mxu0 0
  %5739 = vmatpush1.bf16.msra.mxu0 0
  %5740 = vmatprep.subr.bf16.mxu0 0
  %5741 = vmatpush1.bf16.msra.mxu0 0
  %5742 = vmatprep.subr.bf16.mxu0 0
  %5743 = vmatpush1.bf16.msra.mxu0 0
  %5744 = vmatprep.subr.bf16.mxu0 0
  %5745 = vmatpush1.bf16.msra.mxu0 0
  %5746 = vmatprep.subr.bf16.mxu0 0
  %5747 = vmatpush1.bf16.msra.mxu0 0
  %5748 = vmatprep.mubr.bf16.mxu0 0
  %5749 = vmatmul.mubr.bf16.gmra.mrb[0].mxu0 %v5393
  %v5750 = vpop.f32.mrb[0].mxu0
  %v5751 = vadd.f32 %v5368, %v5750
  %v5752 = vpop.f32.mrb[0].mxu0
  %v5753 = vpop.f32.mrb[0].mxu0
  %v5754 = vadd.f32 %v5371, %v5753
  %v5755 = vpop.f32.mrb[0].mxu0
  %5756 = vmatprep.mubr.bf16.mxu0 0
  %5757 = vmatmul.mubr.bf16.gmra.mrb[0].mxu0 %v5396
  %v5758 = vpop.f32.mrb[0].mxu0
  %v5759 = vadd.f32 %v5376, %v5758
  %v5760 = vpop.f32.mrb[0].mxu0
  %v5761 = vpop.f32.mrb[0].mxu0
  %v5762 = vadd.f32 %v5379, %v5761
  %v5763 = vpop.f32.mrb[0].mxu0
  %5764 = vdwg.mxu0
  %s5765 = scalar_lea.vmem %s3, 64
  %v5766 = vld [vmem:[%s5765] sm:$0xff]
  %v5767 = vld [vmem:[%s5765 + $0x8] sm:$0xff]
  %v5768 = vld [vmem:[%s5765 + $0x10] sm:$0xff]
  %v5769 = vld [vmem:[%s5765 + $0x18] sm:$0xff]
  %5771 = vset.pattern.permute.xlu0 0
  %5772 = vperm.xlu0 %5771, %v5766
  %v5773 = vpop.permute.xlu0 %5772
  %5776 = vset.pattern.permute.xlu0 0
  %5777 = vperm.xlu0 %5776, %v5767
  %v5778 = vpop.permute.xlu0 %5777
  %5781 = vset.pattern.permute.xlu0 0
  %5782 = vperm.xlu0 %5781, %v5768
  %v5783 = vpop.permute.xlu0 %5782
  %5786 = vset.pattern.permute.xlu0 0
  %5787 = vperm.xlu0 %5786, %v5769
  %v5788 = vpop.permute.xlu0 %5787
  %v5790 = vadd.f32 %v5433, %v5773
  %v5791 = vadd.f32 %v5435, %v5773
  %v5792 = vadd.f32 %v5486, %v5773
  %v5793 = vadd.f32 %v5488, %v5773
  %v5794 = vadd.f32 %v5539, %v5773
  %v5795 = vadd.f32 %v5541, %v5773
  %v5796 = vadd.f32 %v5592, %v5773
  %v5797 = vadd.f32 %v5594, %v5773
  %v5798 = vadd.f32 %v5645, %v5773
  %v5799 = vadd.f32 %v5647, %v5773
  %v5800 = vadd.f32 %v5698, %v5773
  %v5801 = vadd.f32 %v5700, %v5773
  %v5802 = vadd.f32 %v5751, %v5773
  %v5803 = vadd.f32 %v5437, %v5778
  %v5804 = vadd.f32 %v5439, %v5778
  %v5805 = vadd.f32 %v5490, %v5778
  %v5806 = vadd.f32 %v5492, %v5778
  %v5807 = vadd.f32 %v5543, %v5778
  %v5808 = vadd.f32 %v5545, %v5778
  %v5809 = vadd.f32 %v5596, %v5778
  %v5810 = vadd.f32 %v5598, %v5778
  %v5811 = vadd.f32 %v5649, %v5778
  %v5812 = vadd.f32 %v5651, %v5778
  %v5813 = vadd.f32 %v5702, %v5778
  %v5814 = vadd.f32 %v5704, %v5778
  %v5815 = vadd.f32 %v5754, %v5778
  %v5816 = vadd.f32 %v5443, %v5783
  %v5817 = vadd.f32 %v5445, %v5783
  %v5818 = vadd.f32 %v5496, %v5783
  %v5819 = vadd.f32 %v5498, %v5783
  %v5820 = vadd.f32 %v5549, %v5783
  %v5821 = vadd.f32 %v5551, %v5783
  %v5822 = vadd.f32 %v5602, %v5783
  %v5823 = vadd.f32 %v5604, %v5783
  %v5824 = vadd.f32 %v5655, %v5783
  %v5825 = vadd.f32 %v5657, %v5783
  %v5826 = vadd.f32 %v5708, %v5783
  %v5827 = vadd.f32 %v5710, %v5783
  %v5828 = vadd.f32 %v5759, %v5783
  %v5829 = vadd.f32 %v5447, %v5788
  %v5830 = vadd.f32 %v5449, %v5788
  %v5831 = vadd.f32 %v5500, %v5788
  %v5832 = vadd.f32 %v5502, %v5788
  %v5833 = vadd.f32 %v5553, %v5788
  %v5834 = vadd.f32 %v5555, %v5788
  %v5835 = vadd.f32 %v5606, %v5788
  %v5836 = vadd.f32 %v5608, %v5788
  %v5837 = vadd.f32 %v5659, %v5788
  %v5838 = vadd.f32 %v5661, %v5788
  %v5839 = vadd.f32 %v5712, %v5788
  %v5840 = vadd.f32 %v5714, %v5788
  %v5841 = vadd.f32 %v5762, %v5788
  %vm5842 = vcmp.gt.f32.partialorder %v5790, 0.0
  %vm5843 = vcmp.gt.f32.partialorder %v5791, 0.0
  %vm5844 = vcmp.gt.f32.partialorder %v5792, 0.0
  %vm5845 = vcmp.gt.f32.partialorder %v5793, 0.0
  %vm5846 = vcmp.gt.f32.partialorder %v5794, 0.0
  %vm5847 = vcmp.gt.f32.partialorder %v5795, 0.0
  %vm5848 = vcmp.gt.f32.partialorder %v5796, 0.0
  %vm5849 = vcmp.gt.f32.partialorder %v5797, 0.0
  %vm5850 = vcmp.gt.f32.partialorder %v5798, 0.0
  %vm5851 = vcmp.gt.f32.partialorder %v5799, 0.0
  %vm5852 = vcmp.gt.f32.partialorder %v5800, 0.0
  %vm5853 = vcmp.gt.f32.partialorder %v5801, 0.0
  %vm5854 = vcmp.gt.f32.partialorder %v5802, 0.0
  %vm5855 = vcmp.gt.f32.partialorder %v5803, 0.0
  %vm5856 = vcmp.gt.f32.partialorder %v5804, 0.0
  %vm5857 = vcmp.gt.f32.partialorder %v5805, 0.0
  %vm5858 = vcmp.gt.f32.partialorder %v5806, 0.0
  %vm5859 = vcmp.gt.f32.partialorder %v5807, 0.0
  %vm5860 = vcmp.gt.f32.partialorder %v5808, 0.0
  %vm5861 = vcmp.gt.f32.partialorder %v5809, 0.0
  %vm5862 = vcmp.gt.f32.partialorder %v5810, 0.0
  %vm5863 = vcmp.gt.f32.partialorder %v5811, 0.0
  %vm5864 = vcmp.gt.f32.partialorder %v5812, 0.0
  %vm5865 = vcmp.gt.f32.partialorder %v5813, 0.0
  %vm5866 = vcmp.gt.f32.partialorder %v5814, 0.0
  %vm5867 = vcmp.gt.f32.partialorder %v5815, 0.0
  %vm5868 = vcmp.gt.f32.partialorder %v5816, 0.0
  %vm5869 = vcmp.gt.f32.partialorder %v5817, 0.0
  %vm5870 = vcmp.gt.f32.partialorder %v5818, 0.0
  %vm5871 = vcmp.gt.f32.partialorder %v5819, 0.0
  %vm5872 = vcmp.gt.f32.partialorder %v5820, 0.0
  %vm5873 = vcmp.gt.f32.partialorder %v5821, 0.0
  %vm5874 = vcmp.gt.f32.partialorder %v5822, 0.0
  %vm5875 = vcmp.gt.f32.partialorder %v5823, 0.0
  %vm5876 = vcmp.gt.f32.partialorder %v5824, 0.0
  %vm5877 = vcmp.gt.f32.partialorder %v5825, 0.0
  %vm5878 = vcmp.gt.f32.partialorder %v5826, 0.0
  %vm5879 = vcmp.gt.f32.partialorder %v5827, 0.0
  %vm5880 = vcmp.gt.f32.partialorder %v5828, 0.0
  %vm5881 = vcmp.gt.f32.partialorder %v5829, 0.0
  %vm5882 = vcmp.gt.f32.partialorder %v5830, 0.0
  %vm5883 = vcmp.gt.f32.partialorder %v5831, 0.0
  %vm5884 = vcmp.gt.f32.partialorder %v5832, 0.0
  %vm5885 = vcmp.gt.f32.partialorder %v5833, 0.0
  %vm5886 = vcmp.gt.f32.partialorder %v5834, 0.0
  %vm5887 = vcmp.gt.f32.partialorder %v5835, 0.0
  %vm5888 = vcmp.gt.f32.partialorder %v5836, 0.0
  %vm5889 = vcmp.gt.f32.partialorder %v5837, 0.0
  %vm5890 = vcmp.gt.f32.partialorder %v5838, 0.0
  %vm5891 = vcmp.gt.f32.partialorder %v5839, 0.0
  %vm5892 = vcmp.gt.f32.partialorder %v5840, 0.0
  %vm5893 = vcmp.gt.f32.partialorder %v5841, 0.0
  %v5894 = vmin.f32 %v5790, 0.0
  %v5895 = vmin.f32 %v5791, 0.0
  %v5896 = vmin.f32 %v5792, 0.0
  %v5897 = vmin.f32 %v5793, 0.0
  %v5898 = vmin.f32 %v5794, 0.0
  %v5899 = vmin.f32 %v5795, 0.0
  %v5900 = vmin.f32 %v5796, 0.0
  %v5901 = vmin.f32 %v5797, 0.0
  %v5902 = vmin.f32 %v5798, 0.0
  %v5903 = vmin.f32 %v5799, 0.0
  %v5904 = vmin.f32 %v5800, 0.0
  %v5905 = vmin.f32 %v5801, 0.0
  %v5906 = vmin.f32 %v5802, 0.0
  %v5907 = vmin.f32 %v5803, 0.0
  %v5908 = vmin.f32 %v5804, 0.0
  %v5909 = vmin.f32 %v5805, 0.0
  %v5910 = vmin.f32 %v5806, 0.0
  %v5911 = vmin.f32 %v5807, 0.0
  %v5912 = vmin.f32 %v5808, 0.0
  %v5913 = vmin.f32 %v5809, 0.0
  %v5914 = vmin.f32 %v5810, 0.0
  %v5915 = vmin.f32 %v5811, 0.0
  %v5916 = vmin.f32 %v5812, 0.0
  %v5917 = vmin.f32 %v5813, 0.0
  %v5918 = vmin.f32 %v5814, 0.0
  %v5919 = vmin.f32 %v5815, 0.0
  %v5920 = vmin.f32 %v5816, 0.0
  %v5921 = vmin.f32 %v5817, 0.0
  %v5922 = vmin.f32 %v5818, 0.0
  %v5923 = vmin.f32 %v5819, 0.0
  %v5924 = vmin.f32 %v5820, 0.0
  %v5925 = vmin.f32 %v5821, 0.0
  %v5926 = vmin.f32 %v5822, 0.0
  %v5927 = vmin.f32 %v5823, 0.0
  %v5928 = vmin.f32 %v5824, 0.0
  %v5929 = vmin.f32 %v5825, 0.0
  %v5930 = vmin.f32 %v5826, 0.0
  %v5931 = vmin.f32 %v5827, 0.0
  %v5932 = vmin.f32 %v5828, 0.0
  %v5933 = vmin.f32 %v5829, 0.0
  %v5934 = vmin.f32 %v5830, 0.0
  %v5935 = vmin.f32 %v5831, 0.0
  %v5936 = vmin.f32 %v5832, 0.0
  %v5937 = vmin.f32 %v5833, 0.0
  %v5938 = vmin.f32 %v5834, 0.0
  %v5939 = vmin.f32 %v5835, 0.0
  %v5940 = vmin.f32 %v5836, 0.0
  %v5941 = vmin.f32 %v5837, 0.0
  %v5942 = vmin.f32 %v5838, 0.0
  %v5943 = vmin.f32 %v5839, 0.0
  %v5944 = vmin.f32 %v5840, 0.0
  %v5945 = vmin.f32 %v5841, 0.0
  %v5946 = vmul.f32 %v5894, 1.442695
  %v5947 = vpow.pop %v5946
  %v5948 = vmul.f32 %v5895, 1.442695
  %v5949 = vpow.pop %v5948
  %v5950 = vmul.f32 %v5896, 1.442695
  %v5951 = vpow.pop %v5950
  %v5952 = vmul.f32 %v5897, 1.442695
  %v5953 = vpow.pop %v5952
  %v5954 = vmul.f32 %v5898, 1.442695
  %v5955 = vpow.pop %v5954
  %v5956 = vmul.f32 %v5899, 1.442695
  %v5957 = vpow.pop %v5956
  %v5958 = vmul.f32 %v5900, 1.442695
  %v5959 = vpow.pop %v5958
  %v5960 = vmul.f32 %v5901, 1.442695
  %v5961 = vpow.pop %v5960
  %v5962 = vmul.f32 %v5902, 1.442695
  %v5963 = vpow.pop %v5962
  %v5964 = vmul.f32 %v5903, 1.442695
  %v5965 = vpow.pop %v5964
  %v5966 = vmul.f32 %v5904, 1.442695
  %v5967 = vpow.pop %v5966
  %v5968 = vmul.f32 %v5905, 1.442695
  %v5969 = vpow.pop %v5968
  %v5970 = vmul.f32 %v5906, 1.442695
  %v5971 = vpow.pop %v5970
  %v5972 = vmul.f32 %v5907, 1.442695
  %v5973 = vpow.pop %v5972
  %v5974 = vmul.f32 %v5908, 1.442695
  %v5975 = vpow.pop %v5974
  %v5976 = vmul.f32 %v5909, 1.442695
  %v5977 = vpow.pop %v5976
  %v5978 = vmul.f32 %v5910, 1.442695
  %v5979 = vpow.pop %v5978
  %v5980 = vmul.f32 %v5911, 1.442695
  %v5981 = vpow.pop %v5980
  %v5982 = vmul.f32 %v5912, 1.442695
  %v5983 = vpow.pop %v5982
  %v5984 = vmul.f32 %v5913, 1.442695
  %v5985 = vpow.pop %v5984
  %v5986 = vmul.f32 %v5914, 1.442695
  %v5987 = vpow.pop %v5986
  %v5988 = vmul.f32 %v5915, 1.442695
  %v5989 = vpow.pop %v5988
  %v5990 = vmul.f32 %v5916, 1.442695
  %v5991 = vpow.pop %v5990
  %v5992 = vmul.f32 %v5917, 1.442695
  %v5993 = vpow.pop %v5992
  %v5994 = vmul.f32 %v5918, 1.442695
  %v5995 = vpow.pop %v5994
  %v5996 = vmul.f32 %v5919, 1.442695
  %v5997 = vpow.pop %v5996
  %v5998 = vmul.f32 %v5920, 1.442695
  %v5999 = vpow.pop %v5998
  %v6000 = vmul.f32 %v5921, 1.442695
  %v6001 = vpow.pop %v6000
  %v6002 = vmul.f32 %v5922, 1.442695
  %v6003 = vpow.pop %v6002
  %v6004 = vmul.f32 %v5923, 1.442695
  %v6005 = vpow.pop %v6004
  %v6006 = vmul.f32 %v5924, 1.442695
  %v6007 = vpow.pop %v6006
  %v6008 = vmul.f32 %v5925, 1.442695
  %v6009 = vpow.pop %v6008
  %v6010 = vmul.f32 %v5926, 1.442695
  %v6011 = vpow.pop %v6010
  %v6012 = vmul.f32 %v5927, 1.442695
  %v6013 = vpow.pop %v6012
  %v6014 = vmul.f32 %v5928, 1.442695
  %v6015 = vpow.pop %v6014
  %v6016 = vmul.f32 %v5929, 1.442695
  %v6017 = vpow.pop %v6016
  %v6018 = vmul.f32 %v5930, 1.442695
  %v6019 = vpow.pop %v6018
  %v6020 = vmul.f32 %v5931, 1.442695
  %v6021 = vpow.pop %v6020
  %v6022 = vmul.f32 %v5932, 1.442695
  %v6023 = vpow.pop %v6022
  %v6024 = vmul.f32 %v5933, 1.442695
  %v6025 = vpow.pop %v6024
  %v6026 = vmul.f32 %v5934, 1.442695
  %v6027 = vpow.pop %v6026
  %v6028 = vmul.f32 %v5935, 1.442695
  %v6029 = vpow.pop %v6028
  %v6030 = vmul.f32 %v5936, 1.442695
  %v6031 = vpow.pop %v6030
  %v6032 = vmul.f32 %v5937, 1.442695
  %v6033 = vpow.pop %v6032
  %v6034 = vmul.f32 %v5938, 1.442695
  %v6035 = vpow.pop %v6034
  %v6036 = vmul.f32 %v5939, 1.442695
  %v6037 = vpow.pop %v6036
  %v6038 = vmul.f32 %v5940, 1.442695
  %v6039 = vpow.pop %v6038
  %v6040 = vmul.f32 %v5941, 1.442695
  %v6041 = vpow.pop %v6040
  %v6042 = vmul.f32 %v5942, 1.442695
  %v6043 = vpow.pop %v6042
  %v6044 = vmul.f32 %v5943, 1.442695
  %v6045 = vpow.pop %v6044
  %v6046 = vmul.f32 %v5944, 1.442695
  %v6047 = vpow.pop %v6046
  %v6048 = vmul.f32 %v5945, 1.442695
  %v6049 = vpow.pop %v6048
  %v6050 = vsub.f32 %v5947, 1.0
  %v6051 = vsub.f32 %v5949, 1.0
  %v6052 = vsub.f32 %v5951, 1.0
  %v6053 = vsub.f32 %v5953, 1.0
  %v6054 = vsub.f32 %v5955, 1.0
  %v6055 = vsub.f32 %v5957, 1.0
  %v6056 = vsub.f32 %v5959, 1.0
  %v6057 = vsub.f32 %v5961, 1.0
  %v6058 = vsub.f32 %v5963, 1.0
  %v6059 = vsub.f32 %v5965, 1.0
  %v6060 = vsub.f32 %v5967, 1.0
  %v6061 = vsub.f32 %v5969, 1.0
  %v6062 = vsub.f32 %v5971, 1.0
  %v6063 = vsub.f32 %v5973, 1.0
  %v6064 = vsub.f32 %v5975, 1.0
  %v6065 = vsub.f32 %v5977, 1.0
  %v6066 = vsub.f32 %v5979, 1.0
  %v6067 = vsub.f32 %v5981, 1.0
  %v6068 = vsub.f32 %v5983, 1.0
  %v6069 = vsub.f32 %v5985, 1.0
  %v6070 = vsub.f32 %v5987, 1.0
  %v6071 = vsub.f32 %v5989, 1.0
  %v6072 = vsub.f32 %v5991, 1.0
  %v6073 = vsub.f32 %v5993, 1.0
  %v6074 = vsub.f32 %v5995, 1.0
  %v6075 = vsub.f32 %v5997, 1.0
  %v6076 = vsub.f32 %v5999, 1.0
  %v6077 = vsub.f32 %v6001, 1.0
  %v6078 = vsub.f32 %v6003, 1.0
  %v6079 = vsub.f32 %v6005, 1.0
  %v6080 = vsub.f32 %v6007, 1.0
  %v6081 = vsub.f32 %v6009, 1.0
  %v6082 = vsub.f32 %v6011, 1.0
  %v6083 = vsub.f32 %v6013, 1.0
  %v6084 = vsub.f32 %v6015, 1.0
  %v6085 = vsub.f32 %v6017, 1.0
  %v6086 = vsub.f32 %v6019, 1.0
  %v6087 = vsub.f32 %v6021, 1.0
  %v6088 = vsub.f32 %v6023, 1.0
  %v6089 = vsub.f32 %v6025, 1.0
  %v6090 = vsub.f32 %v6027, 1.0
  %v6091 = vsub.f32 %v6029, 1.0
  %v6092 = vsub.f32 %v6031, 1.0
  %v6093 = vsub.f32 %v6033, 1.0
  %v6094 = vsub.f32 %v6035, 1.0
  %v6095 = vsub.f32 %v6037, 1.0
  %v6096 = vsub.f32 %v6039, 1.0
  %v6097 = vsub.f32 %v6041, 1.0
  %v6098 = vsub.f32 %v6043, 1.0
  %v6099 = vsub.f32 %v6045, 1.0
  %v6100 = vsub.f32 %v6047, 1.0
  %v6101 = vsub.f32 %v6049, 1.0
  %v6102 = vsel %vm5842, %v5790, %v6050
  %v6103 = vsel %vm5843, %v5791, %v6051
  %v6104 = vsel %vm5844, %v5792, %v6052
  %v6105 = vsel %vm5845, %v5793, %v6053
  %v6106 = vsel %vm5846, %v5794, %v6054
  %v6107 = vsel %vm5847, %v5795, %v6055
  %v6108 = vsel %vm5848, %v5796, %v6056
  %v6109 = vsel %vm5849, %v5797, %v6057
  %v6110 = vsel %vm5850, %v5798, %v6058
  %v6111 = vsel %vm5851, %v5799, %v6059
  %v6112 = vsel %vm5852, %v5800, %v6060
  %v6113 = vsel %vm5853, %v5801, %v6061
  %v6114 = vsel %vm5854, %v5802, %v6062
  %v6115 = vsel %vm5855, %v5803, %v6063
  %v6116 = vsel %vm5856, %v5804, %v6064
  %v6117 = vsel %vm5857, %v5805, %v6065
  %v6118 = vsel %vm5858, %v5806, %v6066
  %v6119 = vsel %vm5859, %v5807, %v6067
  %v6120 = vsel %vm5860, %v5808, %v6068
  %v6121 = vsel %vm5861, %v5809, %v6069
  %v6122 = vsel %vm5862, %v5810, %v6070
  %v6123 = vsel %vm5863, %v5811, %v6071
  %v6124 = vsel %vm5864, %v5812, %v6072
  %v6125 = vsel %vm5865, %v5813, %v6073
  %v6126 = vsel %vm5866, %v5814, %v6074
  %v6127 = vsel %vm5867, %v5815, %v6075
  %v6128 = vsel %vm5868, %v5816, %v6076
  %v6129 = vsel %vm5869, %v5817, %v6077
  %v6130 = vsel %vm5870, %v5818, %v6078
  %v6131 = vsel %vm5871, %v5819, %v6079
  %v6132 = vsel %vm5872, %v5820, %v6080
  %v6133 = vsel %vm5873, %v5821, %v6081
  %v6134 = vsel %vm5874, %v5822, %v6082
  %v6135 = vsel %vm5875, %v5823, %v6083
  %v6136 = vsel %vm5876, %v5824, %v6084
  %v6137 = vsel %vm5877, %v5825, %v6085
  %v6138 = vsel %vm5878, %v5826, %v6086
  %v6139 = vsel %vm5879, %v5827, %v6087
  %v6140 = vsel %vm5880, %v5828, %v6088
  %v6141 = vsel %vm5881, %v5829, %v6089
  %v6142 = vsel %vm5882, %v5830, %v6090
  %v6143 = vsel %vm5883, %v5831, %v6091
  %v6144 = vsel %vm5884, %v5832, %v6092
  %v6145 = vsel %vm5885, %v5833, %v6093
  %v6146 = vsel %vm5886, %v5834, %v6094
  %v6147 = vsel %vm5887, %v5835, %v6095
  %v6148 = vsel %vm5888, %v5836, %v6096
  %v6149 = vsel %vm5889, %v5837, %v6097
  %v6150 = vsel %vm5890, %v5838, %v6098
  %v6151 = vsel %vm5891, %v5839, %v6099
  %v6152 = vsel %vm5892, %v5840, %v6100
  %v6153 = vsel %vm5893, %v5841, %v6101
  %v6154 = vpack.c.bf16 %v6115, %v6102
  %v6155 = vpack.c.bf16 %v6116, %v6103
  %v6156 = vpack.c.bf16 %v6117, %v6104
  %v6157 = vpack.c.bf16 %v6118, %v6105
  %v6158 = vpack.c.bf16 %v6119, %v6106
  %v6159 = vpack.c.bf16 %v6120, %v6107
  %v6160 = vpack.c.bf16 %v6121, %v6108
  %v6161 = vpack.c.bf16 %v6122, %v6109
  %v6162 = vpack.c.bf16 %v6123, %v6110
  %v6163 = vpack.c.bf16 %v6124, %v6111
  %v6164 = vpack.c.bf16 %v6125, %v6112
  %v6165 = vpack.c.bf16 %v6126, %v6113
  %v6166 = vpack.c.bf16 %v6127, %v6114
  %v6167 = vpack.c.bf16 %v6141, %v6128
  %v6168 = vpack.c.bf16 %v6142, %v6129
  %v6169 = vpack.c.bf16 %v6143, %v6130
  %v6170 = vpack.c.bf16 %v6144, %v6131
  %v6171 = vpack.c.bf16 %v6145, %v6132
  %v6172 = vpack.c.bf16 %v6146, %v6133
  %v6173 = vpack.c.bf16 %v6147, %v6134
  %v6174 = vpack.c.bf16 %v6148, %v6135
  %v6175 = vpack.c.bf16 %v6149, %v6136
  %v6176 = vpack.c.bf16 %v6150, %v6137
  %v6177 = vpack.c.bf16 %v6151, %v6138
  %v6178 = vpack.c.bf16 %v6152, %v6139
  %v6179 = vpack.c.bf16 %v6153, %v6140
  %v6180 = vld [vmem:[%s5] sm:$0xf]
  %v6181 = vld [vmem:[%s6] sm:$0x3]
  %6183 = vset.pattern.permute.xlu0 0
  %6184 = vperm.xlu0 %6183, %v6181
  %v6185 = vpop.permute.xlu0 %6184
  %v6189 = vunpack.c.l.s4 1966171168
  %v6190 = vunpack.c.0.s8 %v6189
  %v6191 = vlaneseq
  %v6192 = vshrl.u32 %v6191, 7
  %v6193 = vsub.s32 %v6190, %v6192
  %v6194 = vrot.slane %v6180, %v6193
  %v6195 = vcombine.high %v6194, %v6194
  %v6197 = vunpack.c.l.s4 1966171168
  %v6198 = vunpack.c.0.s8 %v6197
  %v6199 = vlaneseq
  %v6200 = vshrl.u32 %v6199, 7
  %v6201 = vsub.s32 %v6198, %v6200
  %v6202 = vrot.slane %v6194, %v6201
  %v6204 = vunpack.c.l.s4 1966171168
  %v6205 = vunpack.c.0.s8 %v6204
  %v6206 = vlaneseq
  %v6207 = vshrl.u32 %v6206, 7
  %v6208 = vsub.s32 %v6205, %v6207
  %v6209 = vrot.slane %v6195, %v6208
  %v6210 = vcombine.high %v6202, %v6202
  %v6211 = vcombine.high %v6209, %v6209
  %v6216 = vsel %vm5008, %v6211, 0
  %6218 = vmatprep.subr.bf16.mxu0 0
  %6219 = vmatpush1.bf16.msra.mxu0 %v6154
  %6220 = vmatprep.subr.bf16.mxu0 0
  %6221 = vmatpush1.bf16.msra.mxu0 %v6167
  %6222 = vmatprep.subr.bf16.mxu0 0
  %6223 = vmatpush1.bf16.msra.mxu0 %v6155
  %6224 = vmatprep.subr.bf16.mxu0 0
  %6225 = vmatpush1.bf16.msra.mxu0 %v6168
  %6226 = vmatprep.subr.bf16.mxu0 0
  %6227 = vmatpush1.bf16.msra.mxu0 %v6156
  %6228 = vmatprep.subr.bf16.mxu0 0
  %6229 = vmatpush1.bf16.msra.mxu0 %v6169
  %6230 = vmatprep.subr.bf16.mxu0 0
  %6231 = vmatpush1.bf16.msra.mxu0 %v6157
  %6232 = vmatprep.subr.bf16.mxu0 0
  %6233 = vmatpush1.bf16.msra.mxu0 %v6170
  %6234 = vmatprep.subr.bf16.mxu0 0
  %6235 = vmatpush1.bf16.msra.mxu0 %v6158
  %6236 = vmatprep.subr.bf16.mxu0 0
  %6237 = vmatpush1.bf16.msra.mxu0 %v6171
  %6238 = vmatprep.subr.bf16.mxu0 0
  %6239 = vmatpush1.bf16.msra.mxu0 %v6159
  %6240 = vmatprep.subr.bf16.mxu0 0
  %6241 = vmatpush1.bf16.msra.mxu0 %v6172
  %6242 = vmatprep.subr.bf16.mxu0 0
  %6243 = vmatpush1.bf16.msra.mxu0 %v6160
  %6244 = vmatprep.subr.bf16.mxu0 0
  %6245 = vmatpush1.bf16.msra.mxu0 %v6173
  %6246 = vmatprep.subr.bf16.mxu0 0
  %6247 = vmatpush1.bf16.msra.mxu0 %v6161
  %6248 = vmatprep.subr.bf16.mxu0 0
  %6249 = vmatpush1.bf16.msra.mxu0 %v6174
  %6250 = vmatprep.mubr.bf16.mxu0 %v6209
  %6251 = vmatmul.mubr.bf16.gmra.mrb[0].mxu0 %v6202
  %v6252 = vpop.f32.mrb[0].mxu0
  %v6253 = vadd.f32 %v6185, %v6252
  %v6254 = vpop.f32.mrb[0].mxu0
  %v6255 = vpop.f32.mrb[0].mxu0
  %v6256 = vpop.f32.mrb[0].mxu0
  %6257 = vdwg.mxu0
  %6258 = vmatprep.subr.bf16.mxu0 0
  %6259 = vmatpush1.bf16.msra.mxu0 %v6162
  %6260 = vmatprep.subr.bf16.mxu0 0
  %6261 = vmatpush1.bf16.msra.mxu0 %v6175
  %6262 = vmatprep.subr.bf16.mxu0 0
  %6263 = vmatpush1.bf16.msra.mxu0 %v6163
  %6264 = vmatprep.subr.bf16.mxu0 0
  %6265 = vmatpush1.bf16.msra.mxu0 %v6176
  %6266 = vmatprep.subr.bf16.mxu0 0
  %6267 = vmatpush1.bf16.msra.mxu0 %v6164
  %6268 = vmatprep.subr.bf16.mxu0 0
  %6269 = vmatpush1.bf16.msra.mxu0 %v6177
  %6270 = vmatprep.subr.bf16.mxu0 0
  %6271 = vmatpush1.bf16.msra.mxu0 %v6165
  %6272 = vmatprep.subr.bf16.mxu0 0
  %6273 = vmatpush1.bf16.msra.mxu0 %v6178
  %6274 = vmatprep.subr.bf16.mxu0 0
  %6275 = vmatpush1.bf16.msra.mxu0 %v6166
  %6276 = vmatprep.subr.bf16.mxu0 0
  %6277 = vmatpush1.bf16.msra.mxu0 %v6179
  %6278 = vmatprep.subr.bf16.mxu0 0
  %6279 = vmatpush1.bf16.msra.mxu0 0
  %6280 = vmatprep.subr.bf16.mxu0 0
  %6281 = vmatpush1.bf16.msra.mxu0 0
  %6282 = vmatprep.subr.bf16.mxu0 0
  %6283 = vmatpush1.bf16.msra.mxu0 0
  %6284 = vmatprep.subr.bf16.mxu0 0
  %6285 = vmatpush1.bf16.msra.mxu0 0
  %6286 = vmatprep.subr.bf16.mxu0 0
  %6287 = vmatpush1.bf16.msra.mxu0 0
  %6288 = vmatprep.subr.bf16.mxu0 0
  %6289 = vmatpush1.bf16.msra.mxu0 0
  %6290 = vmatprep.mubr.bf16.mxu0 %v6216
  %6291 = vmatmul.mubr.bf16.gmra.mrb[0].mxu0 %v6210
  %v6292 = vpop.f32.mrb[0].mxu0
  %v6293 = vadd.f32 %v6253, %v6292
  %v6294 = vpop.f32.mrb[0].mxu0
  %v6295 = vpop.f32.mrb[0].mxu0
  %v6296 = vpop.f32.mrb[0].mxu0
  %6297 = vdwg.mxu0
  %6298 = vst [vmem:[%s7] sm:$0x3] %v6293
  // Predicated region
  $region30: #{frame2_025s_forward.1} parent=0 // pred_check
    _
  $region31: #{frame2_025s_forward.1} parent=0 // pred_check_branch
    %6300 = sbr.rel (0) target = $region33
  $region32: #{frame2_025s_forward.1} parent=0 // pred_region
    _
  $region33: #{frame2_025s_forward.1} parent=0 // pred_fallthru
    _
  // Predicated region
  $region34: #{frame2_025s_forward.1} parent=0 // pred_check
    _
  $region35: #{frame2_025s_forward.1} parent=0 // pred_check_branch
    %6302 = sbr.rel (0) target = $region37
  $region36: #{frame2_025s_forward.1} parent=0 // pred_region
    _
  $region37: #{frame2_025s_forward.1} parent=0 // pred_fallthru
    _

</llo_original>
